<compile_context>
chip_gen: v5e
topology: v5e:2x2
jax: 0.10.0
libtpu: 0.0.40
codegen_flags: <defaults>
</compile_context>

<pallas_src>
import math

import jax
import jax.numpy as jnp
from jax.experimental import pallas as pl
from jax.experimental.pallas import tpu as pltpu


# ----------------------------- Pallas kernel ------------------------------- #

def _make_conv_kernel(kh, kw, pad_in, relu, mode, out_dtype):
  """Fused conv kernel: one MXU dot over an in-VMEM im2col of kh*kw taps.

      col[:, :, t*Cin:(t+1)*Cin] = xpad[dh:dh+Ho, dw:dw+Wo, :]  (t = dh*kw+dw)
      acc = col.reshape(M, kh*kw*Cin) @ W                        (single dot)
      out = acc + bias   (+ xs @ Ws  if mode == "conv")
                         (+ residual if mode == "identity")
      out = relu(out)    if relu
  stored as one aligned full-block NHWC tile (no halo, no double write).
  """

  def kernel(*refs):
    if pad_in:
      *rest, col_ref, pad_ref = refs
    else:
      *rest, col_ref = refs
      pad_ref = None
    if mode == "identity":
      x_ref, w_ref, b_ref, r_ref, o_ref = rest
    elif mode == "conv":
      x_ref, w_ref, b_ref, xs_ref, ws_ref, o_ref = rest
    else:
      x_ref, w_ref, b_ref, o_ref = rest

    _, hin, win, cin = x_ref.shape
    ho, wo, kdim = col_ref.shape
    cout = w_ref.shape[-1]
    m = ho * wo
    # f32 validation path uses a high-precision MXU dot; bf16 path uses default.
    prec = jax.lax.Precision.HIGHEST if x_ref.dtype == jnp.float32 else None

    # Zero-halo staging of the input in VMEM (replaces a wrapper-side HBM pad
    # round-trip).  Re-zeroed every step so "parallel" batch sharding across
    # TensorCores stays correct.
    if pad_in:
      pad_ref[...] = jnp.zeros(pad_ref.shape, pad_ref.dtype)
      pad_ref[pad_in:pad_in + hin, pad_in:pad_in + win, :] = x_ref[0]

    # Build the (Ho, Wo, kh*kw*Cin) im2col operand in VMEM from shifted slabs
    # (never materialized in HBM).  The sublane-misaligned W shift happens once
    # per dw; the H shifts are free slices of that slab.
    for dw in range(kw):
      if pad_in:
        xw = pad_ref[:, dw:dw + wo, :]               # (hin+2*pad, wo, cin)
      else:
        xw = x_ref[0, :, dw:dw + wo, :]              # (hin, wo, cin)
      for dh in range(kh):
        t = dh * kw + dw
        col_ref[:, :, t * cin:(t + 1) * cin] = xw[dh:dh + ho]

    # Single MXU dot with full contraction depth K = kh*kw*Cin (instead of
    # kh*kw separate K=Cin dots and VPU partial-sum adds).
    acc = jnp.dot(col_ref[...].reshape(m, kdim), w_ref[...],
                  preferred_element_type=jnp.float32,
                  precision=prec)                               # (m, cout) f32

    if mode == "conv":       # fused 1x1 downsample shortcut (BN scale folded)
      cs = xs_ref.shape[-1]
      acc = acc + jnp.dot(xs_ref[0].reshape(m, cs), ws_ref[...],
                          preferred_element_type=jnp.float32, precision=prec)

    out = acc + b_ref[...]                      # folded BN bias, f32 epilogue
    if mode == "identity":                      # fused identity residual
      out = out + r_ref[0].astype(jnp.float32).reshape(m, cout)
    if relu:
      out = jnp.maximum(out, 0.0)
    # One aligned full-block store (no halo, written exactly once).
    o_ref[...] = out.astype(out_dtype).reshape(1, ho, wo, cout)

  return kernel


def fused_conv(x, w_flat, bias, *, kh, kw, pad_in, relu, out_dtype,
               residual=None, shortcut=None):
  """conv (fused tap dot) + folded BN (+ fused shortcut / residual) (+ relu).

  x: (N, Hin, Win, Cin) NHWC.  w_flat: (kh*kw*Cin, Cout), tap-major rows.
  """
  N, Hin, Win, Cin = x.shape
  kdim, Cout = w_flat.shape
  assert kdim == kh * kw * Cin
  Hp, Wp = Hin + 2 * pad_in, Win + 2 * pad_in
  Ho, Wo = Hp - kh + 1, Wp - kw + 1
  bias2 = jnp.asarray(bias, jnp.float32).reshape(1, Cout)

  in_specs = [
      # One full image per grid step (large M-tile = Ho*Wo rows).
      pl.BlockSpec((1, Hin, Win, Cin), lambda n: (n, 0, 0, 0)),
      # Grid-invariant index maps -> weights / bias stay VMEM resident.
      # TODO(synk): on v7x add pipeline_mode=pl.Buffered(1) here to drop the
      #   second buffer of the resident weights when VMEM is tight.
      pl.BlockSpec((kdim, Cout), lambda n: (0, 0)),
      pl.BlockSpec((1, Cout), lambda n: (0, 0)),
  ]
  args = [x, w_flat, bias2]

  if residual is not None:
    mode = "identity"
    in_specs.append(pl.BlockSpec((1, Ho, Wo, Cout), lambda n: (n, 0, 0, 0)))
    args.append(residual)
  elif shortcut is not None:
    mode = "conv"
    xs, ws = shortcut
    cs = xs.shape[-1]
    in_specs += [pl.BlockSpec((1, Ho, Wo, cs), lambda n: (n, 0, 0, 0)),
                 pl.BlockSpec((cs, Cout), lambda n: (0, 0))]
    args += [xs, ws]
  else:
    mode = "none"

  scratch = [pltpu.VMEM((Ho, Wo, kdim), x.dtype)]        # in-VMEM im2col
  if pad_in:
    scratch.append(pltpu.VMEM((Hp, Wp, Cin), x.dtype))   # zero-halo input

  # TODO(synk): for large shapes raise vmem_limit_bytes (esp. v5e's 16 MiB
  #   scoped default); unnecessary at these test sizes.
  return pl.pallas_call(
      _make_conv_kernel(kh, kw, pad_in, relu, mode, out_dtype),
      out_shape=jax.ShapeDtypeStruct((N, Ho, Wo, Cout), out_dtype),
      grid=(N,),
      in_specs=in_specs,
      out_specs=pl.BlockSpec((1, Ho, Wo, Cout), lambda n: (n, 0, 0, 0)),
      scratch_shapes=scratch,
      compiler_params=pltpu.CompilerParams(
          dimension_semantics=("parallel",)),
  )(*args)


# ------------------------------- JAX glue ---------------------------------- #

def fold_bn(gamma, beta, mean, var, eps=1e-5):
  scale = gamma / jnp.sqrt(var + eps)
  return scale, beta - mean * scale


def conv_w_folded(w_oihw, scale):
  """(Cout, Cin, kh, kw) with BN scale folded -> (kh, kw, Cin, Cout)."""
  return jnp.transpose(w_oihw * scale[:, None, None, None], (2, 3, 1, 0))


def w3x3_to_s2d_flat(w3):
  """3x3/stride-2 weights -> (16*Cin, Cout) for a 2x2-tap conv over a
  space-to-depth input (tap-major rows, phase-major channels)."""
  cin, cout = w3.shape[2], w3.shape[3]
  w4 = jnp.zeros((4, 4, cin, cout), w3.dtype).at[:3, :3].set(w3)
  w4 = w4.reshape(2, 2, 2, 2, cin, cout)          # (di, p, dj, q, cin, cout)
  w4 = jnp.transpose(w4, (0, 2, 1, 3, 4, 5))      # (di, dj, p, q, cin, cout)
  return w4.reshape(16 * cin, cout)


def space_to_depth2(x):
  """(N, H, W, C), H/W even -> (N, H/2, W/2, 4*C), phase-major channels."""
  N, H, W, C = x.shape
  x = x.reshape(N, H // 2, 2, W // 2, 2, C)
  x = jnp.transpose(x, (0, 1, 3, 2, 4, 5))
  return x.reshape(N, H // 2, W // 2, 4 * C)


def init_raw_params(key, in_planes, planes, stride):
  ks = jax.random.split(key, 16)
  def conv_init(k, cout, cin, ksz):
    fan = cin * ksz * ksz
    return jax.random.normal(k, (cout, cin, ksz, ksz), jnp.float32) / math.sqrt(fan)
  def bn_init(k0, k1, k2, k3, c):
    return (jax.random.uniform(k0, (c,), jnp.float32, 0.5, 1.5),   # gamma
            jax.random.normal(k1, (c,), jnp.float32) * 0.1,        # beta
            jax.random.normal(k2, (c,), jnp.float32) * 0.1,        # running mean
            jax.random.uniform(k3, (c,), jnp.float32, 0.5, 1.5))   # running var
  raw = {
      "conv1_w": conv_init(ks[0], planes, in_planes, 3),
      "bn1": bn_init(ks[1], ks[2], ks[3], ks[4], planes),
      "conv2_w": conv_init(ks[5], planes, planes, 3),
      "bn2": bn_init(ks[6], ks[7], ks[8], ks[9], planes),
  }
  if stride != 1 or in_planes != planes:
    raw["convs_w"] = conv_init(ks[10], planes, in_planes, 1)
    raw["bns"] = bn_init(ks[11], ks[12], ks[13], ks[14], planes)
  return raw


def to_kernel_params(raw, stride, dtype=jnp.bfloat16):
  """Fold BN scales into tap-major flat weights; keep biases in f32."""
  s1, b1 = fold_bn(*raw["bn1"])
  s2, b2 = fold_bn(*raw["bn2"])
  w1 = conv_w_folded(raw["conv1_w"], s1)              # (3, 3, Cin, Cmid)
  w2 = conv_w_folded(raw["conv2_w"], s2)              # (3, 3, Cmid, Cout)
  cin = w1.shape[2]
  p = {"b1": b1,
       "w2": w2.reshape(9 * w2.shape[2], w2.shape[3]).astype(dtype)}
  if stride == 1:
    p["w1"] = w1.reshape(9 * cin, w1.shape[3]).astype(dtype)
  else:
    p["w1"] = w3x3_to_s2d_flat(w1).astype(dtype)
  if "convs_w" in raw:
    ss, bs = fold_bn(*raw["bns"])
    ws = raw["convs_w"][:, :, 0, 0].T * ss[None, :]   # (Cin, Cout), BN folded
    if stride != 1:
      # The fused shortcut in conv2 reads the space-to-depth tensor; the 1x1
      # stride-2 conv only touches phase (1,1) = the last Cin of the 4*Cin
      # channels, so zero-extend the weight rows accordingly.
      ws = jnp.zeros((4 * cin, ws.shape[1]), ws.dtype).at[3 * cin:].set(ws)
    p["ws"] = ws.astype(dtype)
    p["bias2"] = b2 + bs                              # merge shortcut BN bias
  else:
    p["bias2"] = b2
  return p


def basic_block_forward(x_nhwc, params, stride):
  """Pallas-backed BasicBlock forward (NHWC in, NHWC f32 out)."""
  assert stride in (1, 2)
  N, H, W, Cin = x_nhwc.shape
  cdt = params["w1"].dtype
  x_c = x_nhwc.astype(cdt)

  # conv1 -> bn1 -> relu (zero pad done in-kernel for the stride-1 path).
  if stride == 1:
    h1 = fused_conv(x_c, params["w1"], params["b1"], kh=3, kw=3, pad_in=1,
                    relu=True, out_dtype=cdt)
    xs_src = x_c
  else:
    # stride-2 3x3 conv == stride-1 2x2-tap conv on space-to-depth(pad(x)).
    xp = jnp.pad(x_c, ((0, 0), (1, 1 + H % 2), (1, 1 + W % 2), (0, 0)))
    xs_src = space_to_depth2(xp)                # (N, Ho+1, Wo+1, 4*Cin)
    h1 = fused_conv(xs_src, params["w1"], params["b1"], kh=2, kw=2, pad_in=0,
                    relu=True, out_dtype=cdt)

  # conv2 -> bn2 -> (+ shortcut) -> relu, shortcut fused into the same kernel.
  if "ws" in params:
    out = fused_conv(h1, params["w2"], params["bias2"], kh=3, kw=3, pad_in=1,
                     relu=True, out_dtype=jnp.float32,
                     shortcut=(xs_src, params["ws"]))
  else:
    out = fused_conv(h1, params["w2"], params["bias2"], kh=3, kw=3, pad_in=1,
                     relu=True, out_dtype=jnp.float32, residual=x_c)
  return out


basic_block_forward_jit = jax.jit(basic_block_forward,
                                  static_argnames=("stride",))


# ------------------------- pure-JAX reference ------------------------------ #

def ref_basic_block(x_nhwc, raw, stride):
  def conv(x, w, s, pad):
    return jax.lax.conv_general_dilated(
        x, w, window_strides=(s, s), padding=((pad, pad), (pad, pad)),
        dimension_numbers=("NHWC", "OIHW", "NHWC"),
        precision=jax.lax.Precision.HIGHEST)
  def bn(x, stats, eps=1e-5):
    g, b, m, v = stats
    return (x - m) / jnp.sqrt(v + eps) * g + b
  out = jax.nn.relu(bn(conv(x_nhwc, raw["conv1_w"], stride, 1), raw["bn1"]))
  out = bn(conv(out, raw["conv2_w"], 1, 1), raw["bn2"])
  if "convs_w" in raw:
    sc = bn(conv(x_nhwc, raw["convs_w"], stride, 0), raw["bns"])
  else:
    sc = x_nhwc
  return jax.nn.relu(out + sc)


# --------------------------------- main ------------------------------------ #

if __name__ == "__main__":
  key = jax.random.PRNGKey(0)
  kx, kp1, kp2 = jax.random.split(key, 3)

  # PyTorch-style NCHW input, transposed to the kernels' NHWC layout.
  x_nchw = jax.random.normal(kx, (2, 4, 16, 16), jnp.float32)
  x_nhwc = jnp.transpose(x_nchw, (0, 2, 3, 1))

  # Case A: identity shortcut (in_planes == planes == 4, stride == 1).
  raw_a = init_raw_params(kp1, in_planes=4, planes=4, stride=1)
  # Case B: downsample shortcut (1x1 conv + bn, stride == 2, planes == 8).
  raw_b = init_raw_params(kp2, in_planes=4, planes=8, stride=2)
  cases = ((raw_a, 1, (2, 16, 16, 4)), (raw_b, 2, (2, 8, 8, 8)))

  # 1) f32 validation at tight tolerance (catches tap / s2d indexing bugs).
  for raw, stride, oshape in cases:
    got = basic_block_forward_jit(
        x_nhwc, to_kernel_params(raw, stride, jnp.float32), stride=stride)
    got = jax.block_until_ready(got)
    ref = ref_basic_block(x_nhwc, raw, stride)
    assert got.shape == oshape, got.shape
    assert jnp.allclose(got, ref, atol=5e-3, rtol=5e-3), \
        ("f32 mismatch", stride, float(jnp.max(jnp.abs(got - ref))))

  # 2) bf16 fast path (bf16 weights/activations, f32 accumulation/epilogue).
  x_ref32 = x_nhwc.astype(jnp.bfloat16).astype(jnp.float32)
  for raw, stride, oshape in cases:
    got = basic_block_forward_jit(
        x_nhwc, to_kernel_params(raw, stride, jnp.bfloat16), stride=stride)
    got = jax.block_until_ready(got)
    ref = ref_basic_block(x_ref32, raw, stride)
    assert got.shape == oshape, got.shape
    assert jnp.allclose(got, ref, atol=5e-2, rtol=5e-2), \
        ("bf16 mismatch", stride, float(jnp.max(jnp.abs(got - ref))))

  print("KERNEL_OK")
</pallas_src>

<mosaic_0001>
module attributes {stable_mosaic.version = 11 : i64} {
  func.func @kernel(%arg0: i32, %arg1: memref<1x16x16x4xf32, #tpu.memory_space<vmem>>, %arg2: memref<36x4xf32, #tpu.memory_space<vmem>>, %arg3: memref<1x4xf32, #tpu.memory_space<vmem>>, %arg4: memref<1x16x16x4xf32, #tpu.memory_space<vmem>>, %arg5: memref<1x16x16x4xf32, #tpu.memory_space<vmem>>, %arg6: memref<16x16x36xf32, #tpu.memory_space<vmem>>, %arg7: memref<18x18x4xf32, #tpu.memory_space<vmem>>) attributes {dimension_semantics = [#tpu.dimension_semantics<parallel>], iteration_bounds = array<i64: 2>, scalar_prefetch = 0 : i64, scratch_operands = 2 : i64, tpu.core_type = #tpu.core_type<tc>, window_params = [{transform_indices = @transform_0, window_bounds = array<i64: 1, 16, 16, 4>}, {pipeline_mode = #tpu.pipeline_mode<synchronous>, transform_indices = @transform_1, window_bounds = array<i64: 36, 4>}, {pipeline_mode = #tpu.pipeline_mode<synchronous>, transform_indices = @transform_2, window_bounds = array<i64: 1, 4>}, {transform_indices = @transform_3, window_bounds = array<i64: 1, 16, 16, 4>}, {transform_indices = @transform_4, window_bounds = array<i64: 1, 16, 16, 4>}]} {
    %cst = arith.constant 0.000000e+00 : f32
    %0 = vector.broadcast %cst : f32 to vector<18x18x4xf32>
    %c0 = arith.constant 0 : index
    %c0_0 = arith.constant 0 : index
    %c0_1 = arith.constant 0 : index
    %1 = vector.load %arg7[%c0, %c0_0, %c0_1] : memref<18x18x4xf32, #tpu.memory_space<vmem>>, vector<18x18x4xf32>
    tpu.vector_store %arg7[%c0, %c0_0, %c0_1], %0 {strides = array<i32>} : memref<18x18x4xf32, #tpu.memory_space<vmem>>, vector<18x18x4xf32>,
    %c0_2 = arith.constant 0 : index
    %c0_3 = arith.constant 0 : index
    %c0_4 = arith.constant 0 : index
    %c0_5 = arith.constant 0 : index
    %2 = vector.load %arg1[%c0_2, %c0_3, %c0_4, %c0_5] : memref<1x16x16x4xf32, #tpu.memory_space<vmem>>, vector<1x16x16x4xf32>
    %3 = vector.shape_cast %2 : vector<1x16x16x4xf32> to vector<16x16x4xf32>
    %c1 = arith.constant 1 : index
    %c1_6 = arith.constant 1 : index
    %c0_7 = arith.constant 0 : index
    %4 = vector.load %arg7[%c1, %c1_6, %c0_7] : memref<18x18x4xf32, #tpu.memory_space<vmem>>, vector<16x16x4xf32>
    tpu.vector_store %arg7[%c1, %c1_6, %c0_7], %3 {strides = array<i32>} : memref<18x18x4xf32, #tpu.memory_space<vmem>>, vector<16x16x4xf32>,
    %c0_8 = arith.constant 0 : index
    %c0_9 = arith.constant 0 : index
    %c0_10 = arith.constant 0 : index
    %5 = vector.load %arg7[%c0_8, %c0_9, %c0_10] : memref<18x18x4xf32, #tpu.memory_space<vmem>>, vector<18x16x4xf32>
    %6 = vector.extract_strided_slice %5 {offsets = [0, 0, 0], sizes = [16, 16, 4], strides = [1, 1, 1]} : vector<18x16x4xf32> to vector<16x16x4xf32>
    %c0_11 = arith.constant 0 : index
    %c0_12 = arith.constant 0 : index
    %c0_13 = arith.constant 0 : index
    %7 = vector.load %arg6[%c0_11, %c0_12, %c0_13] : memref<16x16x36xf32, #tpu.memory_space<vmem>>, vector<16x16x4xf32>
    tpu.vector_store %arg6[%c0_11, %c0_12, %c0_13], %6 {strides = array<i32>} : memref<16x16x36xf32, #tpu.memory_space<vmem>>, vector<16x16x4xf32>,
    %8 = vector.extract_strided_slice %5 {offsets = [1, 0, 0], sizes = [16, 16, 4], strides = [1, 1, 1]} : vector<18x16x4xf32> to vector<16x16x4xf32>
    %c0_14 = arith.constant 0 : index
    %c0_15 = arith.constant 0 : index
    %c12 = arith.constant 12 : index
    %9 = vector.load %arg6[%c0_14, %c0_15, %c12] : memref<16x16x36xf32, #tpu.memory_space<vmem>>, vector<16x16x4xf32>
    tpu.vector_store %arg6[%c0_14, %c0_15, %c12], %8 {strides = array<i32>} : memref<16x16x36xf32, #tpu.memory_space<vmem>>, vector<16x16x4xf32>,
    %10 = vector.extract_strided_slice %5 {offsets = [2, 0, 0], sizes = [16, 16, 4], strides = [1, 1, 1]} : vector<18x16x4xf32> to vector<16x16x4xf32>
    %c0_16 = arith.constant 0 : index
    %c0_17 = arith.constant 0 : index
    %c24 = arith.constant 24 : index
    %11 = vector.load %arg6[%c0_16, %c0_17, %c24] : memref<16x16x36xf32, #tpu.memory_space<vmem>>, vector<16x16x4xf32>
    tpu.vector_store %arg6[%c0_16, %c0_17, %c24], %10 {strides = array<i32>} : memref<16x16x36xf32, #tpu.memory_space<vmem>>, vector<16x16x4xf32>,
    %c0_18 = arith.constant 0 : index
    %c1_19 = arith.constant 1 : index
    %c0_20 = arith.constant 0 : index
    %12 = vector.load %arg7[%c0_18, %c1_19, %c0_20] : memref<18x18x4xf32, #tpu.memory_space<vmem>>, vector<18x16x4xf32>
    %13 = vector.extract_strided_slice %12 {offsets = [0, 0, 0], sizes = [16, 16, 4], strides = [1, 1, 1]} : vector<18x16x4xf32> to vector<16x16x4xf32>
    %c0_21 = arith.constant 0 : index
    %c0_22 = arith.constant 0 : index
    %c4 = arith.constant 4 : index
    %14 = vector.load %arg6[%c0_21, %c0_22, %c4] : memref<16x16x36xf32, #tpu.memory_space<vmem>>, vector<16x16x4xf32>
    tpu.vector_store %arg6[%c0_21, %c0_22, %c4], %13 {strides = array<i32>} : memref<16x16x36xf32, #tpu.memory_space<vmem>>, vector<16x16x4xf32>,
    %15 = vector.extract_strided_slice %12 {offsets = [1, 0, 0], sizes = [16, 16, 4], strides = [1, 1, 1]} : vector<18x16x4xf32> to vector<16x16x4xf32>
    %c0_23 = arith.constant 0 : index
    %c0_24 = arith.constant 0 : index
    %c16 = arith.constant 16 : index
    %16 = vector.load %arg6[%c0_23, %c0_24, %c16] : memref<16x16x36xf32, #tpu.memory_space<vmem>>, vector<16x16x4xf32>
    tpu.vector_store %arg6[%c0_23, %c0_24, %c16], %15 {strides = array<i32>} : memref<16x16x36xf32, #tpu.memory_space<vmem>>, vector<16x16x4xf32>,
    %17 = vector.extract_strided_slice %12 {offsets = [2, 0, 0], sizes = [16, 16, 4], strides = [1, 1, 1]} : vector<18x16x4xf32> to vector<16x16x4xf32>
    %c0_25 = arith.constant 0 : index
    %c0_26 = arith.constant 0 : index
    %c28 = arith.constant 28 : index
    %18 = vector.load %arg6[%c0_25, %c0_26, %c28] : memref<16x16x36xf32, #tpu.memory_space<vmem>>, vector<16x16x4xf32>
    tpu.vector_store %arg6[%c0_25, %c0_26, %c28], %17 {strides = array<i32>} : memref<16x16x36xf32, #tpu.memory_space<vmem>>, vector<16x16x4xf32>,
    %c0_27 = arith.constant 0 : index
    %c2 = arith.constant 2 : index
    %c0_28 = arith.constant 0 : index
    %19 = vector.load %arg7[%c0_27, %c2, %c0_28] : memref<18x18x4xf32, #tpu.memory_space<vmem>>, vector<18x16x4xf32>
    %20 = vector.extract_strided_slice %19 {offsets = [0, 0, 0], sizes = [16, 16, 4], strides = [1, 1, 1]} : vector<18x16x4xf32> to vector<16x16x4xf32>
    %c0_29 = arith.constant 0 : index
    %c0_30 = arith.constant 0 : index
    %c8 = arith.constant 8 : index
    %21 = vector.load %arg6[%c0_29, %c0_30, %c8] : memref<16x16x36xf32, #tpu.memory_space<vmem>>, vector<16x16x4xf32>
    tpu.vector_store %arg6[%c0_29, %c0_30, %c8], %20 {strides = array<i32>} : memref<16x16x36xf32, #tpu.memory_space<vmem>>, vector<16x16x4xf32>,
    %22 = vector.extract_strided_slice %19 {offsets = [1, 0, 0], sizes = [16, 16, 4], strides = [1, 1, 1]} : vector<18x16x4xf32> to vector<16x16x4xf32>
    %c0_31 = arith.constant 0 : index
    %c0_32 = arith.constant 0 : index
    %c20 = arith.constant 20 : index
    %23 = vector.load %arg6[%c0_31, %c0_32, %c20] : memref<16x16x36xf32, #tpu.memory_space<vmem>>, vector<16x16x4xf32>
    tpu.vector_store %arg6[%c0_31, %c0_32, %c20], %22 {strides = array<i32>} : memref<16x16x36xf32, #tpu.memory_space<vmem>>, vector<16x16x4xf32>,
    %24 = vector.extract_strided_slice %19 {offsets = [2, 0, 0], sizes = [16, 16, 4], strides = [1, 1, 1]} : vector<18x16x4xf32> to vector<16x16x4xf32>
    %c0_33 = arith.constant 0 : index
    %c0_34 = arith.constant 0 : index
    %c32 = arith.constant 32 : index
    %25 = vector.load %arg6[%c0_33, %c0_34, %c32] : memref<16x16x36xf32, #tpu.memory_space<vmem>>, vector<16x16x4xf32>
    tpu.vector_store %arg6[%c0_33, %c0_34, %c32], %24 {strides = array<i32>} : memref<16x16x36xf32, #tpu.memory_space<vmem>>, vector<16x16x4xf32>,
    %c0_35 = arith.constant 0 : index
    %c0_36 = arith.constant 0 : index
    %c0_37 = arith.constant 0 : index
    %26 = vector.load %arg6[%c0_35, %c0_36, %c0_37] : memref<16x16x36xf32, #tpu.memory_space<vmem>>, vector<16x16x36xf32>
    %27 = vector.shape_cast %26 : vector<16x16x36xf32> to vector<256x36xf32>
    %c0_38 = arith.constant 0 : index
    %c0_39 = arith.constant 0 : index
    %28 = vector.load %arg2[%c0_38, %c0_39] : memref<36x4xf32, #tpu.memory_space<vmem>>, vector<36x4xf32>
    %cst_40 = arith.constant dense<0.000000e+00> : vector<256x4xf32>
    %29 = tpu.matmul %27, %28, %cst_40 {dimension_numbers = #tpu.dot_dimension_numbers<[1], [0], [0], [1], [0, 0, 1, 1], [], []>, precision = #tpu.contract_precision<fp32>} : vector<256x36xf32>, vector<36x4xf32>, vector<256x4xf32> -> vector<256x4xf32>
    %c0_41 = arith.constant 0 : index
    %c0_42 = arith.constant 0 : index
    %30 = vector.load %arg3[%c0_41, %c0_42] : memref<1x4xf32, #tpu.memory_space<vmem>>, vector<1x4xf32>
    %31 = vector.broadcast %30 : vector<1x4xf32> to vector<256x4xf32>
    %32 = arith.addf %29, %31 : vector<256x4xf32>
    %c0_43 = arith.constant 0 : index
    %c0_44 = arith.constant 0 : index
    %c0_45 = arith.constant 0 : index
    %c0_46 = arith.constant 0 : index
    %33 = vector.load %arg4[%c0_43, %c0_44, %c0_45, %c0_46] : memref<1x16x16x4xf32, #tpu.memory_space<vmem>>, vector<1x16x16x4xf32>
    %34 = vector.shape_cast %33 : vector<1x16x16x4xf32> to vector<16x16x4xf32>
    %35 = vector.shape_cast %34 : vector<16x16x4xf32> to vector<256x4xf32>
    %36 = arith.addf %32, %35 : vector<256x4xf32>
    %cst_47 = arith.constant 0.000000e+00 : f32
    %37 = vector.broadcast %cst_47 : f32 to vector<256x4xf32>
    %38 = arith.maximumf %36, %37 : vector<256x4xf32>
    %39 = vector.shape_cast %38 : vector<256x4xf32> to vector<1x16x16x4xf32>
    %c0_48 = arith.constant 0 : index
    %c0_49 = arith.constant 0 : index
    %c0_50 = arith.constant 0 : index
    %c0_51 = arith.constant 0 : index
    %40 = vector.load %arg5[%c0_48, %c0_49, %c0_50, %c0_51] : memref<1x16x16x4xf32, #tpu.memory_space<vmem>>, vector<1x16x16x4xf32>
    tpu.vector_store %arg5[%c0_48, %c0_49, %c0_50, %c0_51], %39 {strides = array<i32>} : memref<1x16x16x4xf32, #tpu.memory_space<vmem>>, vector<1x16x16x4xf32>,
    return
  }
  func.func @transform_0(%arg0: i32) -> (i32, i32, i32, i32) {
    %c0_i32 = arith.constant 0 : i32
    %c0_i32_0 = arith.constant 0 : i32
    %c0_i32_1 = arith.constant 0 : i32
    %c0_i32_2 = arith.constant 0 : i32
    return %arg0, %c0_i32, %c0_i32_0, %c0_i32_1 : i32, i32, i32, i32
  }
  func.func @transform_1(%arg0: i32) -> (i32, i32) {
    %c0_i32 = arith.constant 0 : i32
    %c0_i32_0 = arith.constant 0 : i32
    %c0_i32_1 = arith.constant 0 : i32
    return %c0_i32, %c0_i32_0 : i32, i32
  }
  func.func @transform_2(%arg0: i32) -> (i32, i32) {
    %c0_i32 = arith.constant 0 : i32
    %c0_i32_0 = arith.constant 0 : i32
    %c0_i32_1 = arith.constant 0 : i32
    return %c0_i32, %c0_i32_0 : i32, i32
  }
  func.func @transform_3(%arg0: i32) -> (i32, i32, i32, i32) {
    %c0_i32 = arith.constant 0 : i32
    %c0_i32_0 = arith.constant 0 : i32
    %c0_i32_1 = arith.constant 0 : i32
    %c0_i32_2 = arith.constant 0 : i32
    return %arg0, %c0_i32, %c0_i32_0, %c0_i32_1 : i32, i32, i32, i32
  }
  func.func @transform_4(%arg0: i32) -> (i32, i32, i32, i32) {
    %c0_i32 = arith.constant 0 : i32
    %c0_i32_0 = arith.constant 0 : i32
    %c0_i32_1 = arith.constant 0 : i32
    %c0_i32_2 = arith.constant 0 : i32
    return %arg0, %c0_i32, %c0_i32_0, %c0_i32_1 : i32, i32, i32, i32
  }
}

module attributes {stable_mosaic.version = 11 : i64} {
  func.func @kernel(%arg0: i32, %arg1: memref<1x16x16x4xf32, #tpu.memory_space<vmem>>, %arg2: memref<36x4xf32, #tpu.memory_space<vmem>>, %arg3: memref<1x4xf32, #tpu.memory_space<vmem>>, %arg4: memref<1x16x16x4xf32, #tpu.memory_space<vmem>>, %arg5: memref<16x16x36xf32, #tpu.memory_space<vmem>>, %arg6: memref<18x18x4xf32, #tpu.memory_space<vmem>>) attributes {dimension_semantics = [#tpu.dimension_semantics<parallel>], iteration_bounds = array<i64: 2>, scalar_prefetch = 0 : i64, scratch_operands = 2 : i64, tpu.core_type = #tpu.core_type<tc>, window_params = [{transform_indices = @transform_0, window_bounds = array<i64: 1, 16, 16, 4>}, {pipeline_mode = #tpu.pipeline_mode<synchronous>, transform_indices = @transform_1, window_bounds = array<i64: 36, 4>}, {pipeline_mode = #tpu.pipeline_mode<synchronous>, transform_indices = @transform_2, window_bounds = array<i64: 1, 4>}, {transform_indices = @transform_3, window_bounds = array<i64: 1, 16, 16, 4>}]} {
    %cst = arith.constant 0.000000e+00 : f32
    %0 = vector.broadcast %cst : f32 to vector<18x18x4xf32>
    %c0 = arith.constant 0 : index
    %c0_0 = arith.constant 0 : index
    %c0_1 = arith.constant 0 : index
    %1 = vector.load %arg6[%c0, %c0_0, %c0_1] : memref<18x18x4xf32, #tpu.memory_space<vmem>>, vector<18x18x4xf32>
    tpu.vector_store %arg6[%c0, %c0_0, %c0_1], %0 {strides = array<i32>} : memref<18x18x4xf32, #tpu.memory_space<vmem>>, vector<18x18x4xf32>,
    %c0_2 = arith.constant 0 : index
    %c0_3 = arith.constant 0 : index
    %c0_4 = arith.constant 0 : index
    %c0_5 = arith.constant 0 : index
    %2 = vector.load %arg1[%c0_2, %c0_3, %c0_4, %c0_5] : memref<1x16x16x4xf32, #tpu.memory_space<vmem>>, vector<1x16x16x4xf32>
    %3 = vector.shape_cast %2 : vector<1x16x16x4xf32> to vector<16x16x4xf32>
    %c1 = arith.constant 1 : index
    %c1_6 = arith.constant 1 : index
    %c0_7 = arith.constant 0 : index
    %4 = vector.load %arg6[%c1, %c1_6, %c0_7] : memref<18x18x4xf32, #tpu.memory_space<vmem>>, vector<16x16x4xf32>
    tpu.vector_store %arg6[%c1, %c1_6, %c0_7], %3 {strides = array<i32>} : memref<18x18x4xf32, #tpu.memory_space<vmem>>, vector<16x16x4xf32>,
    %c0_8 = arith.constant 0 : index
    %c0_9 = arith.constant 0 : index
    %c0_10 = arith.constant 0 : index
    %5 = vector.load %arg6[%c0_8, %c0_9, %c0_10] : memref<18x18x4xf32, #tpu.memory_space<vmem>>, vector<18x16x4xf32>
    %6 = vector.extract_strided_slice %5 {offsets = [0, 0, 0], sizes = [16, 16, 4], strides = [1, 1, 1]} : vector<18x16x4xf32> to vector<16x16x4xf32>
    %c0_11 = arith.constant 0 : index
    %c0_12 = arith.constant 0 : index
    %c0_13 = arith.constant 0 : index
    %7 = vector.load %arg5[%c0_11, %c0_12, %c0_13] : memref<16x16x36xf32, #tpu.memory_space<vmem>>, vector<16x16x4xf32>
    tpu.vector_store %arg5[%c0_11, %c0_12, %c0_13], %6 {strides = array<i32>} : memref<16x16x36xf32, #tpu.memory_space<vmem>>, vector<16x16x4xf32>,
    %8 = vector.extract_strided_slice %5 {offsets = [1, 0, 0], sizes = [16, 16, 4], strides = [1, 1, 1]} : vector<18x16x4xf32> to vector<16x16x4xf32>
    %c0_14 = arith.constant 0 : index
    %c0_15 = arith.constant 0 : index
    %c12 = arith.constant 12 : index
    %9 = vector.load %arg5[%c0_14, %c0_15, %c12] : memref<16x16x36xf32, #tpu.memory_space<vmem>>, vector<16x16x4xf32>
    tpu.vector_store %arg5[%c0_14, %c0_15, %c12], %8 {strides = array<i32>} : memref<16x16x36xf32, #tpu.memory_space<vmem>>, vector<16x16x4xf32>,
    %10 = vector.extract_strided_slice %5 {offsets = [2, 0, 0], sizes = [16, 16, 4], strides = [1, 1, 1]} : vector<18x16x4xf32> to vector<16x16x4xf32>
    %c0_16 = arith.constant 0 : index
    %c0_17 = arith.constant 0 : index
    %c24 = arith.constant 24 : index
    %11 = vector.load %arg5[%c0_16, %c0_17, %c24] : memref<16x16x36xf32, #tpu.memory_space<vmem>>, vector<16x16x4xf32>
    tpu.vector_store %arg5[%c0_16, %c0_17, %c24], %10 {strides = array<i32>} : memref<16x16x36xf32, #tpu.memory_space<vmem>>, vector<16x16x4xf32>,
    %c0_18 = arith.constant 0 : index
    %c1_19 = arith.constant 1 : index
    %c0_20 = arith.constant 0 : index
    %12 = vector.load %arg6[%c0_18, %c1_19, %c0_20] : memref<18x18x4xf32, #tpu.memory_space<vmem>>, vector<18x16x4xf32>
    %13 = vector.extract_strided_slice %12 {offsets = [0, 0, 0], sizes = [16, 16, 4], strides = [1, 1, 1]} : vector<18x16x4xf32> to vector<16x16x4xf32>
    %c0_21 = arith.constant 0 : index
    %c0_22 = arith.constant 0 : index
    %c4 = arith.constant 4 : index
    %14 = vector.load %arg5[%c0_21, %c0_22, %c4] : memref<16x16x36xf32, #tpu.memory_space<vmem>>, vector<16x16x4xf32>
    tpu.vector_store %arg5[%c0_21, %c0_22, %c4], %13 {strides = array<i32>} : memref<16x16x36xf32, #tpu.memory_space<vmem>>, vector<16x16x4xf32>,
    %15 = vector.extract_strided_slice %12 {offsets = [1, 0, 0], sizes = [16, 16, 4], strides = [1, 1, 1]} : vector<18x16x4xf32> to vector<16x16x4xf32>
    %c0_23 = arith.constant 0 : index
    %c0_24 = arith.constant 0 : index
    %c16 = arith.constant 16 : index
    %16 = vector.load %arg5[%c0_23, %c0_24, %c16] : memref<16x16x36xf32, #tpu.memory_space<vmem>>, vector<16x16x4xf32>
    tpu.vector_store %arg5[%c0_23, %c0_24, %c16], %15 {strides = array<i32>} : memref<16x16x36xf32, #tpu.memory_space<vmem>>, vector<16x16x4xf32>,
    %17 = vector.extract_strided_slice %12 {offsets = [2, 0, 0], sizes = [16, 16, 4], strides = [1, 1, 1]} : vector<18x16x4xf32> to vector<16x16x4xf32>
    %c0_25 = arith.constant 0 : index
    %c0_26 = arith.constant 0 : index
    %c28 = arith.constant 28 : index
    %18 = vector.load %arg5[%c0_25, %c0_26, %c28] : memref<16x16x36xf32, #tpu.memory_space<vmem>>, vector<16x16x4xf32>
    tpu.vector_store %arg5[%c0_25, %c0_26, %c28], %17 {strides = array<i32>} : memref<16x16x36xf32, #tpu.memory_space<vmem>>, vector<16x16x4xf32>,
    %c0_27 = arith.constant 0 : index
    %c2 = arith.constant 2 : index
    %c0_28 = arith.constant 0 : index
    %19 = vector.load %arg6[%c0_27, %c2, %c0_28] : memref<18x18x4xf32, #tpu.memory_space<vmem>>, vector<18x16x4xf32>
    %20 = vector.extract_strided_slice %19 {offsets = [0, 0, 0], sizes = [16, 16, 4], strides = [1, 1, 1]} : vector<18x16x4xf32> to vector<16x16x4xf32>
    %c0_29 = arith.constant 0 : index
    %c0_30 = arith.constant 0 : index
    %c8 = arith.constant 8 : index
    %21 = vector.load %arg5[%c0_29, %c0_30, %c8] : memref<16x16x36xf32, #tpu.memory_space<vmem>>, vector<16x16x4xf32>
    tpu.vector_store %arg5[%c0_29, %c0_30, %c8], %20 {strides = array<i32>} : memref<16x16x36xf32, #tpu.memory_space<vmem>>, vector<16x16x4xf32>,
    %22 = vector.extract_strided_slice %19 {offsets = [1, 0, 0], sizes = [16, 16, 4], strides = [1, 1, 1]} : vector<18x16x4xf32> to vector<16x16x4xf32>
    %c0_31 = arith.constant 0 : index
    %c0_32 = arith.constant 0 : index
    %c20 = arith.constant 20 : index
    %23 = vector.load %arg5[%c0_31, %c0_32, %c20] : memref<16x16x36xf32, #tpu.memory_space<vmem>>, vector<16x16x4xf32>
    tpu.vector_store %arg5[%c0_31, %c0_32, %c20], %22 {strides = array<i32>} : memref<16x16x36xf32, #tpu.memory_space<vmem>>, vector<16x16x4xf32>,
    %24 = vector.extract_strided_slice %19 {offsets = [2, 0, 0], sizes = [16, 16, 4], strides = [1, 1, 1]} : vector<18x16x4xf32> to vector<16x16x4xf32>
    %c0_33 = arith.constant 0 : index
    %c0_34 = arith.constant 0 : index
    %c32 = arith.constant 32 : index
    %25 = vector.load %arg5[%c0_33, %c0_34, %c32] : memref<16x16x36xf32, #tpu.memory_space<vmem>>, vector<16x16x4xf32>
    tpu.vector_store %arg5[%c0_33, %c0_34, %c32], %24 {strides = array<i32>} : memref<16x16x36xf32, #tpu.memory_space<vmem>>, vector<16x16x4xf32>,
    %c0_35 = arith.constant 0 : index
    %c0_36 = arith.constant 0 : index
    %c0_37 = arith.constant 0 : index
    %26 = vector.load %arg5[%c0_35, %c0_36, %c0_37] : memref<16x16x36xf32, #tpu.memory_space<vmem>>, vector<16x16x36xf32>
    %27 = vector.shape_cast %26 : vector<16x16x36xf32> to vector<256x36xf32>
    %c0_38 = arith.constant 0 : index
    %c0_39 = arith.constant 0 : index
    %28 = vector.load %arg2[%c0_38, %c0_39] : memref<36x4xf32, #tpu.memory_space<vmem>>, vector<36x4xf32>
    %cst_40 = arith.constant dense<0.000000e+00> : vector<256x4xf32>
    %29 = tpu.matmul %27, %28, %cst_40 {dimension_numbers = #tpu.dot_dimension_numbers<[1], [0], [0], [1], [0, 0, 1, 1], [], []>, precision = #tpu.contract_precision<fp32>} : vector<256x36xf32>, vector<36x4xf32>, vector<256x4xf32> -> vector<256x4xf32>
    %c0_41 = arith.constant 0 : index
    %c0_42 = arith.constant 0 : index
    %30 = vector.load %arg3[%c0_41, %c0_42] : memref<1x4xf32, #tpu.memory_space<vmem>>, vector<1x4xf32>
    %31 = vector.broadcast %30 : vector<1x4xf32> to vector<256x4xf32>
    %32 = arith.addf %29, %31 : vector<256x4xf32>
    %cst_43 = arith.constant 0.000000e+00 : f32
    %33 = vector.broadcast %cst_43 : f32 to vector<256x4xf32>
    %34 = arith.maximumf %32, %33 : vector<256x4xf32>
    %35 = vector.shape_cast %34 : vector<256x4xf32> to vector<1x16x16x4xf32>
    %c0_44 = arith.constant 0 : index
    %c0_45 = arith.constant 0 : index
    %c0_46 = arith.constant 0 : index
    %c0_47 = arith.constant 0 : index
    %36 = vector.load %arg4[%c0_44, %c0_45, %c0_46, %c0_47] : memref<1x16x16x4xf32, #tpu.memory_space<vmem>>, vector<1x16x16x4xf32>
    tpu.vector_store %arg4[%c0_44, %c0_45, %c0_46, %c0_47], %35 {strides = array<i32>} : memref<1x16x16x4xf32, #tpu.memory_space<vmem>>, vector<1x16x16x4xf32>,
    return
  }
  func.func @transform_0(%arg0: i32) -> (i32, i32, i32, i32) {
    %c0_i32 = arith.constant 0 : i32
    %c0_i32_0 = arith.constant 0 : i32
    %c0_i32_1 = arith.constant 0 : i32
    %c0_i32_2 = arith.constant 0 : i32
    return %arg0, %c0_i32, %c0_i32_0, %c0_i32_1 : i32, i32, i32, i32
  }
  func.func @transform_1(%arg0: i32) -> (i32, i32) {
    %c0_i32 = arith.constant 0 : i32
    %c0_i32_0 = arith.constant 0 : i32
    %c0_i32_1 = arith.constant 0 : i32
    return %c0_i32, %c0_i32_0 : i32, i32
  }
  func.func @transform_2(%arg0: i32) -> (i32, i32) {
    %c0_i32 = arith.constant 0 : i32
    %c0_i32_0 = arith.constant 0 : i32
    %c0_i32_1 = arith.constant 0 : i32
    return %c0_i32, %c0_i32_0 : i32, i32
  }
  func.func @transform_3(%arg0: i32) -> (i32, i32, i32, i32) {
    %c0_i32 = arith.constant 0 : i32
    %c0_i32_0 = arith.constant 0 : i32
    %c0_i32_1 = arith.constant 0 : i32
    %c0_i32_2 = arith.constant 0 : i32
    return %arg0, %c0_i32, %c0_i32_0, %c0_i32_1 : i32, i32, i32, i32
  }
}

</mosaic_0001>

<llo_original>
// kernel: basic_block_forward.2
$region0: #{basic_block_forward.2}
  #allocation0 [shape = 'u32[]', space=smem, size = 0x4, offset = 0x4, fixed_abs, tag = 'smem constant byte address 0x4 - core index']
  #allocation1 [shape = 'u32[72,128]{1,0:T(1,128)}', space=vmem, size = 0x9000, scoped, tag = 'internal scratch']
  #allocation2 [shape = 'f32[16,16,36]{2,1,0:T(8,128)}', space=vmem, size = 0x20000, scoped, tag = 'scratch operand']
  #allocation3 [shape = 'f32[18,18,4]{2,1,0:T(8,128)}', space=vmem, size = 0x36000, scoped, tag = 'scratch operand']
  %s0 = inlined_call_operand.vmem [shape: f32[2,16,16,4], index: 0, kind: input, shape index: {}]
  %s1 = inlined_call_operand.vmem [shape: f32[36,4], index: 1, kind: input, shape index: {}]
  %s2 = inlined_call_operand.vmem [shape: f32[1,4], index: 2, kind: input, shape index: {}]
  %s3 = inlined_call_operand.vmem [shape: f32[2,16,16,4], index: 3, kind: output, shape index: {}]
  %s4 = sld [smem:[#allocation0]]
  $region45: #{basic_block_forward.2} parent=0
    _
  %s6 = ssub.s32 1, %s4
  %s7 = scalar_select 0, %s6, %s4
  loop: start=0, step=1, limit=4
  $region2: #{basic_block_forward.2} parent=0 // loop_pre_header
    _
  $region3: #{basic_block_forward.2} parent=0 // loop_header
    %s9 = sphi 0, %s13
    %p10 = scmp.ge.s32.totalorder %s9, 4
    %s19 = sphi 0, %s21
    %s22 = sphi 0, %s19
    %s23 = sphi 0, %s22
    %s39 = sphi 0, %s23
    %s43 = sphi 0, %s43
    %s45 = sphi 0, %s43
    %s46 = sphi 0, %s45
    %s60 = sphi 0, %s46
    %s64 = sphi 0, %s64
    %s66 = sphi 0, %s64
    %s67 = sphi 0, %s66
    %s81 = sphi 0, %s67
    %s87 = sphi 0, %s89
    %s90 = sphi 0, %s87
    %s91 = sphi 0, %s90
    %s107 = sphi 0, %s91
  $region4: #{basic_block_forward.2} parent=0 // loop_header_branch
    %12 = sbr.rel (%p10) target = $region8
  $region5: #{basic_block_forward.2} parent=0 // loop_body
    %s14 = ssub.s32 %s9, 1
    %s15 = ssub.s32 %s9, 2
    %s16 = sadd.s32 %s9, 1
    %s17 = ssub.s32 %s9, %s16
    %p18 = scmp.eq.s32.totalorder %s17, 0
    %s20 = sadd.s32 %s19, 1
    %s21 = scalar_select %p18, %s19, %s20
    %p24 = pneg %p18
    %p25 = scmp.eq.s32.totalorder %s9, 1
    %p26 = por %p24, %p25
    %p27 = scmp.ne.s32.totalorder %s19, %s22
    %p28 = scmp.eq.s32.totalorder %s9, 0
    %p29 = por %p27, %p28
    %p30 = scmp.ne.s32.totalorder %s19, %s22
    %p31 = scmp.eq.s32.totalorder %s14, 1
    %p32 = por %p30, %p31
    %p33 = scmp.ne.s32.totalorder %s22, %s23
    %p34 = scmp.eq.s32.totalorder %s14, 0
    %p35 = por %p33, %p34
    %p36 = scmp.ne.s32.totalorder %s22, %s23
    %p37 = scmp.eq.s32.totalorder %s15, 1
    %p38 = por %p36, %p37
    %p40 = scmp.ne.s32.totalorder %s23, %s39
    %p41 = scmp.eq.s32.totalorder %s15, 0
    %p42 = por %p40, %p41
    %s44 = sadd.s32 %s43, 1
    %p47 = scmp.eq.s32.totalorder %s9, 1
    %p48 = scmp.ne.s32.totalorder %s43, %s45
    %p49 = scmp.eq.s32.totalorder %s9, 0
    %p50 = por %p48, %p49
    %p51 = scmp.ne.s32.totalorder %s43, %s45
    %p52 = scmp.eq.s32.totalorder %s14, 1
    %p53 = por %p51, %p52
    %p54 = scmp.ne.s32.totalorder %s45, %s46
    %p55 = scmp.eq.s32.totalorder %s14, 0
    %p56 = por %p54, %p55
    %p57 = scmp.ne.s32.totalorder %s45, %s46
    %p58 = scmp.eq.s32.totalorder %s15, 1
    %p59 = por %p57, %p58
    %p61 = scmp.ne.s32.totalorder %s46, %s60
    %p62 = scmp.eq.s32.totalorder %s15, 0
    %p63 = por %p61, %p62
    %s65 = sadd.s32 %s64, 1
    %p68 = scmp.eq.s32.totalorder %s9, 1
    %p69 = scmp.ne.s32.totalorder %s64, %s66
    %p70 = scmp.eq.s32.totalorder %s9, 0
    %p71 = por %p69, %p70
    %p72 = scmp.ne.s32.totalorder %s64, %s66
    %p73 = scmp.eq.s32.totalorder %s14, 1
    %p74 = por %p72, %p73
    %p75 = scmp.ne.s32.totalorder %s66, %s67
    %p76 = scmp.eq.s32.totalorder %s14, 0
    %p77 = por %p75, %p76
    %p78 = scmp.ne.s32.totalorder %s66, %s67
    %p79 = scmp.eq.s32.totalorder %s15, 1
    %p80 = por %p78, %p79
    %p82 = scmp.ne.s32.totalorder %s67, %s81
    %p83 = scmp.eq.s32.totalorder %s15, 0
    %p84 = por %p82, %p83
    %s85 = ssub.s32 %s9, %s16
    %p86 = scmp.eq.s32.totalorder %s85, 0
    %s88 = sadd.s32 %s87, 1
    %s89 = scalar_select %p86, %s87, %s88
    %p92 = pneg %p86
    %p93 = scmp.eq.s32.totalorder %s9, 1
    %p94 = por %p92, %p93
    %p95 = scmp.ne.s32.totalorder %s87, %s90
    %p96 = scmp.eq.s32.totalorder %s9, 0
    %p97 = por %p95, %p96
    %p98 = scmp.ne.s32.totalorder %s87, %s90
    %p99 = scmp.eq.s32.totalorder %s14, 1
    %p100 = por %p98, %p99
    %p101 = scmp.ne.s32.totalorder %s90, %s91
    %p102 = scmp.eq.s32.totalorder %s14, 0
    %p103 = por %p101, %p102
    %p104 = scmp.ne.s32.totalorder %s90, %s91
    %p105 = scmp.eq.s32.totalorder %s15, 1
    %p106 = por %p104, %p105
    %p108 = scmp.ne.s32.totalorder %s91, %s107
    %p109 = scmp.eq.s32.totalorder %s15, 0
    %p110 = por %p108, %p109
    %p111 = scmp.le.s32.totalorder 1, %s9
    %p112 = scmp.lt.s32.totalorder %s9, 3
    %p113 = pnand %p111, %p112
    %p114 = pneg %p113
    // Predicated region
    $region9: #{basic_block_forward.2} parent=5 // pred_check
      _
    $region10: #{basic_block_forward.2} parent=5 // pred_check_branch
      %116 = sbr.rel (%p113) target = $region12
    $region11: #{basic_block_forward.2} parent=5 // pred_region
      %s117 = ssub.s32 %s9, 1
      // Predicated region
      $region13: #{basic_block_forward.2} parent=11 // pred_check
        %p118 = pneg %p56
      $region14: #{basic_block_forward.2} parent=11 // pred_check_branch
        %120 = sbr.rel (%p118) target = $region16
      $region15: #{basic_block_forward.2} parent=11 // pred_region
        _
      $region16: #{basic_block_forward.2} parent=11 // pred_fallthru
        _
      // Predicated region
      $region17: #{basic_block_forward.2} parent=11 // pred_check
        %p121 = pneg %p77
      $region18: #{basic_block_forward.2} parent=11 // pred_check_branch
        %123 = sbr.rel (%p121) target = $region20
      $region19: #{basic_block_forward.2} parent=11 // pred_region
        _
      $region20: #{basic_block_forward.2} parent=11 // pred_fallthru
        _
    $region12: #{basic_block_forward.2} parent=5 // pred_fallthru
      _
    %p124 = scmp.lt.s32.totalorder %s9, 2
    // Predicated region
    $region21: #{basic_block_forward.2} parent=5 // pred_check
      %p125 = pneg %p124
    $region22: #{basic_block_forward.2} parent=5 // pred_check_branch
      %127 = sbr.rel (%p125) target = $region24
    $region23: #{basic_block_forward.2} parent=5 // pred_region
      // Predicated region
      $region25: #{basic_block_forward.2} parent=23 // pred_check
        %p128 = pneg %p29
      $region26: #{basic_block_forward.2} parent=23 // pred_check_branch
        %130 = sbr.rel (%p128) target = $region28
      $region27: #{basic_block_forward.2} parent=23 // pred_region
        %p131 = scmp.lt.s32.totalorder %s9, 1
        %s132 = scalar_select %p131, %s9, 1
        %s133 = smul.addr %s132, 32
        %s134 = smul.addr %s133, 8
        %s135 = scalar_lea.vmem %s0, %s134
      $region28: #{basic_block_forward.2} parent=23 // pred_fallthru
        _
    $region24: #{basic_block_forward.2} parent=5 // pred_fallthru
      _
    %p136 = scmp.le.s32.totalorder 1, %s9
    %p137 = scmp.lt.s32.totalorder %s9, 3
    %p138 = pnand %p136, %p137
    %p139 = pneg %p138
    // Predicated region
    $region29: #{basic_block_forward.2} parent=5 // pred_check
      _
    $region30: #{basic_block_forward.2} parent=5 // pred_check_branch
      %141 = sbr.rel (%p138) target = $region32
    $region31: #{basic_block_forward.2} parent=5 // pred_region
      %s142 = ssub.s32 %s9, 1
      %p143 = scmp.lt.s32.totalorder %s14, 1
      %s144 = scalar_select %p143, %s14, 1
      %s145 = smul.addr %s144, 32
      %s146 = smul.addr %s145, 8
      %s147 = scalar_lea.vmem %s0, %s146
      %p148 = pneg %p35
      %p149 = pneg %p32
      %p150 = pneg %p56
      %p151 = pneg %p53
      %p152 = pneg %p77
      %p153 = pneg %p74
      %p154 = pneg %p103
      %p155 = pneg %p100
      %p156 = scmp.lt.s32.totalorder %s14, 1
      %s157 = scalar_select %p156, %s14, 1
      %s158 = smul.addr %s157, 32
      %s159 = smul.addr %s158, 8
      %s160 = scalar_lea.vmem %s3, %s159
      %p161 = scmp.lt.s32.totalorder %s14, 1
      %s162 = scalar_select %p161, %s14, 1
      %s163 = smul.addr %s162, 32
      %s164 = smul.addr %s163, 8
      %s165 = scalar_lea.vmem %s0, %s164
      %p166 = scmp.lt.s32.totalorder %s14, 1
      %s167 = scalar_select %p166, %s14, 1
      %s168 = smul.addr %s167, 32
      %s169 = smul.addr %s168, 8
      %s170 = scalar_lea.vmem %s3, %s169
      %vm171 = vcmask 31744
      %172 = vst.msk [vmem:[#allocation3] sm:$0xff] %vm171, 0.0
      %173 = vst.msk [vmem:[#allocation3 + $0x8] sm:$0xff] %vm171, 0.0
      %vm174 = vcmask 25600
      %175 = vst.msk [vmem:[#allocation3 + $0x10] sm:$0x3] %vm174, 0.0
      %176 = vst.msk [vmem:[#allocation3 + $0x18] sm:$0xff] %vm171, 0.0
      %177 = vst.msk [vmem:[#allocation3 + $0x20] sm:$0xff] %vm171, 0.0
      %178 = vst.msk [vmem:[#allocation3 + $0x28] sm:$0x3] %vm174, 0.0
      %179 = vst.msk [vmem:[#allocation3 + $0x30] sm:$0xff] %vm171, 0.0
      %180 = vst.msk [vmem:[#allocation3 + $0x38] sm:$0xff] %vm171, 0.0
      %181 = vst.msk [vmem:[#allocation3 + $0x40] sm:$0x3] %vm174, 0.0
      %182 = vst.msk [vmem:[#allocation3 + $0x48] sm:$0xff] %vm171, 0.0
      %183 = vst.msk [vmem:[#allocation3 + $0x50] sm:$0xff] %vm171, 0.0
      %184 = vst.msk [vmem:[#allocation3 + $0x58] sm:$0x3] %vm174, 0.0
      %185 = vst.msk [vmem:[#allocation3 + $0x60] sm:$0xff] %vm171, 0.0
      %186 = vst.msk [vmem:[#allocation3 + $0x68] sm:$0xff] %vm171, 0.0
      %187 = vst.msk [vmem:[#allocation3 + $0x70] sm:$0x3] %vm174, 0.0
      %188 = vst.msk [vmem:[#allocation3 + $0x78] sm:$0xff] %vm171, 0.0
      %189 = vst.msk [vmem:[#allocation3 + $0x80] sm:$0xff] %vm171, 0.0
      %190 = vst.msk [vmem:[#allocation3 + $0x88] sm:$0x3] %vm174, 0.0
      %191 = vst.msk [vmem:[#allocation3 + $0x90] sm:$0xff] %vm171, 0.0
      %192 = vst.msk [vmem:[#allocation3 + $0x98] sm:$0xff] %vm171, 0.0
      %193 = vst.msk [vmem:[#allocation3 + $0xa0] sm:$0x3] %vm174, 0.0
      %194 = vst.msk [vmem:[#allocation3 + $0xa8] sm:$0xff] %vm171, 0.0
      %195 = vst.msk [vmem:[#allocation3 + $0xb0] sm:$0xff] %vm171, 0.0
      %196 = vst.msk [vmem:[#allocation3 + $0xb8] sm:$0x3] %vm174, 0.0
      %197 = vst.msk [vmem:[#allocation3 + $0xc0] sm:$0xff] %vm171, 0.0
      %198 = vst.msk [vmem:[#allocation3 + $0xc8] sm:$0xff] %vm171, 0.0
      %199 = vst.msk [vmem:[#allocation3 + $0xd0] sm:$0x3] %vm174, 0.0
      %200 = vst.msk [vmem:[#allocation3 + $0xd8] sm:$0xff] %vm171, 0.0
      %201 = vst.msk [vmem:[#allocation3 + $0xe0] sm:$0xff] %vm171, 0.0
      %202 = vst.msk [vmem:[#allocation3 + $0xe8] sm:$0x3] %vm174, 0.0
      %203 = vst.msk [vmem:[#allocation3 + $0xf0] sm:$0xff] %vm171, 0.0
      %204 = vst.msk [vmem:[#allocation3 + $0xf8] sm:$0xff] %vm171, 0.0
      %205 = vst.msk [vmem:[#allocation3 + $0x100] sm:$0x3] %vm174, 0.0
      %206 = vst.msk [vmem:[#allocation3 + $0x108] sm:$0xff] %vm171, 0.0
      %207 = vst.msk [vmem:[#allocation3 + $0x110] sm:$0xff] %vm171, 0.0
      %208 = vst.msk [vmem:[#allocation3 + $0x118] sm:$0x3] %vm174, 0.0
      %209 = vst.msk [vmem:[#allocation3 + $0x120] sm:$0xff] %vm171, 0.0
      %210 = vst.msk [vmem:[#allocation3 + $0x128] sm:$0xff] %vm171, 0.0
      %211 = vst.msk [vmem:[#allocation3 + $0x130] sm:$0x3] %vm174, 0.0
      %212 = vst.msk [vmem:[#allocation3 + $0x138] sm:$0xff] %vm171, 0.0
      %213 = vst.msk [vmem:[#allocation3 + $0x140] sm:$0xff] %vm171, 0.0
      %214 = vst.msk [vmem:[#allocation3 + $0x148] sm:$0x3] %vm174, 0.0
      %215 = vst.msk [vmem:[#allocation3 + $0x150] sm:$0xff] %vm171, 0.0
      %216 = vst.msk [vmem:[#allocation3 + $0x158] sm:$0xff] %vm171, 0.0
      %217 = vst.msk [vmem:[#allocation3 + $0x160] sm:$0x3] %vm174, 0.0
      %218 = vst.msk [vmem:[#allocation3 + $0x168] sm:$0xff] %vm171, 0.0
      %219 = vst.msk [vmem:[#allocation3 + $0x170] sm:$0xff] %vm171, 0.0
      %220 = vst.msk [vmem:[#allocation3 + $0x178] sm:$0x3] %vm174, 0.0
      %221 = vst.msk [vmem:[#allocation3 + $0x180] sm:$0xff] %vm171, 0.0
      %222 = vst.msk [vmem:[#allocation3 + $0x188] sm:$0xff] %vm171, 0.0
      %223 = vst.msk [vmem:[#allocation3 + $0x190] sm:$0x3] %vm174, 0.0
      %224 = vst.msk [vmem:[#allocation3 + $0x198] sm:$0xff] %vm171, 0.0
      %225 = vst.msk [vmem:[#allocation3 + $0x1a0] sm:$0xff] %vm171, 0.0
      %226 = vst.msk [vmem:[#allocation3 + $0x1a8] sm:$0x3] %vm174, 0.0
      %v227 = vld [vmem:[%s165] sm:$0xff]
      %v228 = vld [vmem:[%s165 + $0x8] sm:$0xff]
      %v229 = vld [vmem:[%s165 + $0x10] sm:$0xff]
      %v230 = vld [vmem:[%s165 + $0x18] sm:$0xff]
      %v231 = vld [vmem:[%s165 + $0x20] sm:$0xff]
      %v232 = vld [vmem:[%s165 + $0x28] sm:$0xff]
      %v233 = vld [vmem:[%s165 + $0x30] sm:$0xff]
      %v234 = vld [vmem:[%s165 + $0x38] sm:$0xff]
      %v235 = vld [vmem:[%s165 + $0x40] sm:$0xff]
      %v236 = vld [vmem:[%s165 + $0x48] sm:$0xff]
      %v237 = vld [vmem:[%s165 + $0x50] sm:$0xff]
      %v238 = vld [vmem:[%s165 + $0x58] sm:$0xff]
      %v239 = vld [vmem:[%s165 + $0x60] sm:$0xff]
      %v240 = vld [vmem:[%s165 + $0x68] sm:$0xff]
      %v241 = vld [vmem:[%s165 + $0x70] sm:$0xff]
      %v242 = vld [vmem:[%s165 + $0x78] sm:$0xff]
      %v243 = vld [vmem:[%s165 + $0x80] sm:$0xff]
      %v244 = vld [vmem:[%s165 + $0x88] sm:$0xff]
      %v245 = vld [vmem:[%s165 + $0x90] sm:$0xff]
      %v246 = vld [vmem:[%s165 + $0x98] sm:$0xff]
      %v247 = vld [vmem:[%s165 + $0xa0] sm:$0xff]
      %v248 = vld [vmem:[%s165 + $0xa8] sm:$0xff]
      %v249 = vld [vmem:[%s165 + $0xb0] sm:$0xff]
      %v250 = vld [vmem:[%s165 + $0xb8] sm:$0xff]
      %v251 = vld [vmem:[%s165 + $0xc0] sm:$0xff]
      %v252 = vld [vmem:[%s165 + $0xc8] sm:$0xff]
      %v253 = vld [vmem:[%s165 + $0xd0] sm:$0xff]
      %v254 = vld [vmem:[%s165 + $0xd8] sm:$0xff]
      %v255 = vld [vmem:[%s165 + $0xe0] sm:$0xff]
      %v256 = vld [vmem:[%s165 + $0xe8] sm:$0xff]
      %v257 = vld [vmem:[%s165 + $0xf0] sm:$0xff]
      %v258 = vld [vmem:[%s165 + $0xf8] sm:$0xff]
      %s259 = scalar_lea.vmem [#allocation3], 24
      %260 = vst.msk [vmem:[%s259 + $0x1] sm:$0xff] %vm171, %v227
      %261 = vst.msk [vmem:[%s259 + $0x9] sm:$0xff] %vm171, %v228
      %262 = vst.msk [vmem:[%s259 + $0x19] sm:$0xff] %vm171, %v229
      %263 = vst.msk [vmem:[%s259 + $0x21] sm:$0xff] %vm171, %v230
      %264 = vst.msk [vmem:[%s259 + $0x31] sm:$0xff] %vm171, %v231
      %265 = vst.msk [vmem:[%s259 + $0x39] sm:$0xff] %vm171, %v232
      %266 = vst.msk [vmem:[%s259 + $0x49] sm:$0xff] %vm171, %v233
      %267 = vst.msk [vmem:[%s259 + $0x51] sm:$0xff] %vm171, %v234
      %268 = vst.msk [vmem:[%s259 + $0x61] sm:$0xff] %vm171, %v235
      %269 = vst.msk [vmem:[%s259 + $0x69] sm:$0xff] %vm171, %v236
      %270 = vst.msk [vmem:[%s259 + $0x79] sm:$0xff] %vm171, %v237
      %271 = vst.msk [vmem:[%s259 + $0x81] sm:$0xff] %vm171, %v238
      %272 = vst.msk [vmem:[%s259 + $0x91] sm:$0xff] %vm171, %v239
      %273 = vst.msk [vmem:[%s259 + $0x99] sm:$0xff] %vm171, %v240
      %274 = vst.msk [vmem:[%s259 + $0xa9] sm:$0xff] %vm171, %v241
      %275 = vst.msk [vmem:[%s259 + $0xb1] sm:$0xff] %vm171, %v242
      %276 = vst.msk [vmem:[%s259 + $0xc1] sm:$0xff] %vm171, %v243
      %277 = vst.msk [vmem:[%s259 + $0xc9] sm:$0xff] %vm171, %v244
      %278 = vst.msk [vmem:[%s259 + $0xd9] sm:$0xff] %vm171, %v245
      %279 = vst.msk [vmem:[%s259 + $0xe1] sm:$0xff] %vm171, %v246
      %280 = vst.msk [vmem:[%s259 + $0xf1] sm:$0xff] %vm171, %v247
      %281 = vst.msk [vmem:[%s259 + $0xf9] sm:$0xff] %vm171, %v248
      %282 = vst.msk [vmem:[%s259 + $0x109] sm:$0xff] %vm171, %v249
      %283 = vst.msk [vmem:[%s259 + $0x111] sm:$0xff] %vm171, %v250
      %284 = vst.msk [vmem:[%s259 + $0x121] sm:$0xff] %vm171, %v251
      %285 = vst.msk [vmem:[%s259 + $0x129] sm:$0xff] %vm171, %v252
      %286 = vst.msk [vmem:[%s259 + $0x139] sm:$0xff] %vm171, %v253
      %287 = vst.msk [vmem:[%s259 + $0x141] sm:$0xff] %vm171, %v254
      %288 = vst.msk [vmem:[%s259 + $0x151] sm:$0xff] %vm171, %v255
      %289 = vst.msk [vmem:[%s259 + $0x159] sm:$0xff] %vm171, %v256
      %290 = vst.msk [vmem:[%s259 + $0x169] sm:$0xff] %vm171, %v257
      %291 = vst.msk [vmem:[%s259 + $0x171] sm:$0xff] %vm171, %v258
      %v292 = vld [vmem:[#allocation3] sm:$0xff]
      %v293 = vld [vmem:[#allocation3 + $0x8] sm:$0xff]
      %v294 = vld [vmem:[#allocation3 + $0x18] sm:$0xff]
      %v295 = vld [vmem:[#allocation3 + $0x20] sm:$0xff]
      %v296 = vld [vmem:[#allocation3 + $0x30] sm:$0xff]
      %v297 = vld [vmem:[#allocation3 + $0x38] sm:$0xff]
      %v298 = vld [vmem:[#allocation3 + $0x48] sm:$0xff]
      %v299 = vld [vmem:[#allocation3 + $0x50] sm:$0xff]
      %v300 = vld [vmem:[#allocation3 + $0x60] sm:$0xff]
      %v301 = vld [vmem:[#allocation3 + $0x68] sm:$0xff]
      %v302 = vld [vmem:[#allocation3 + $0x78] sm:$0xff]
      %v303 = vld [vmem:[#allocation3 + $0x80] sm:$0xff]
      %v304 = vld [vmem:[#allocation3 + $0x90] sm:$0xff]
      %v305 = vld [vmem:[#allocation3 + $0x98] sm:$0xff]
      %v306 = vld [vmem:[#allocation3 + $0xa8] sm:$0xff]
      %v307 = vld [vmem:[#allocation3 + $0xb0] sm:$0xff]
      %v308 = vld [vmem:[#allocation3 + $0xc0] sm:$0xff]
      %v309 = vld [vmem:[#allocation3 + $0xc8] sm:$0xff]
      %v310 = vld [vmem:[#allocation3 + $0xd8] sm:$0xff]
      %v311 = vld [vmem:[#allocation3 + $0xe0] sm:$0xff]
      %v312 = vld [vmem:[#allocation3 + $0xf0] sm:$0xff]
      %v313 = vld [vmem:[#allocation3 + $0xf8] sm:$0xff]
      %v314 = vld [vmem:[#allocation3 + $0x108] sm:$0xff]
      %v315 = vld [vmem:[#allocation3 + $0x110] sm:$0xff]
      %v316 = vld [vmem:[#allocation3 + $0x120] sm:$0xff]
      %v317 = vld [vmem:[#allocation3 + $0x128] sm:$0xff]
      %v318 = vld [vmem:[#allocation3 + $0x138] sm:$0xff]
      %v319 = vld [vmem:[#allocation3 + $0x140] sm:$0xff]
      %v320 = vld [vmem:[#allocation3 + $0x150] sm:$0xff]
      %v321 = vld [vmem:[#allocation3 + $0x158] sm:$0xff]
      %v322 = vld [vmem:[#allocation3 + $0x168] sm:$0xff]
      %v323 = vld [vmem:[#allocation3 + $0x170] sm:$0xff]
      %v324 = vld [vmem:[#allocation3 + $0x180] sm:$0xff]
      %v325 = vld [vmem:[#allocation3 + $0x188] sm:$0xff]
      %v326 = vld [vmem:[#allocation3 + $0x198] sm:$0xff]
      %v327 = vld [vmem:[#allocation3 + $0x1a0] sm:$0xff]
      %328 = vst.msk [vmem:[#allocation2] sm:$0xff] %vm171, %v292
      %329 = vst.msk [vmem:[#allocation2 + $0x8] sm:$0xff] %vm171, %v293
      %330 = vst.msk [vmem:[#allocation2 + $0x10] sm:$0xff] %vm171, %v294
      %331 = vst.msk [vmem:[#allocation2 + $0x18] sm:$0xff] %vm171, %v295
      %332 = vst.msk [vmem:[#allocation2 + $0x20] sm:$0xff] %vm171, %v296
      %333 = vst.msk [vmem:[#allocation2 + $0x28] sm:$0xff] %vm171, %v297
      %334 = vst.msk [vmem:[#allocation2 + $0x30] sm:$0xff] %vm171, %v298
      %335 = vst.msk [vmem:[#allocation2 + $0x38] sm:$0xff] %vm171, %v299
      %336 = vst.msk [vmem:[#allocation2 + $0x40] sm:$0xff] %vm171, %v300
      %337 = vst.msk [vmem:[#allocation2 + $0x48] sm:$0xff] %vm171, %v301
      %338 = vst.msk [vmem:[#allocation2 + $0x50] sm:$0xff] %vm171, %v302
      %339 = vst.msk [vmem:[#allocation2 + $0x58] sm:$0xff] %vm171, %v303
      %340 = vst.msk [vmem:[#allocation2 + $0x60] sm:$0xff] %vm171, %v304
      %341 = vst.msk [vmem:[#allocation2 + $0x68] sm:$0xff] %vm171, %v305
      %342 = vst.msk [vmem:[#allocation2 + $0x70] sm:$0xff] %vm171, %v306
      %343 = vst.msk [vmem:[#allocation2 + $0x78] sm:$0xff] %vm171, %v307
      %344 = vst.msk [vmem:[#allocation2 + $0x80] sm:$0xff] %vm171, %v308
      %345 = vst.msk [vmem:[#allocation2 + $0x88] sm:$0xff] %vm171, %v309
      %346 = vst.msk [vmem:[#allocation2 + $0x90] sm:$0xff] %vm171, %v310
      %347 = vst.msk [vmem:[#allocation2 + $0x98] sm:$0xff] %vm171, %v311
      %348 = vst.msk [vmem:[#allocation2 + $0xa0] sm:$0xff] %vm171, %v312
      %349 = vst.msk [vmem:[#allocation2 + $0xa8] sm:$0xff] %vm171, %v313
      %350 = vst.msk [vmem:[#allocation2 + $0xb0] sm:$0xff] %vm171, %v314
      %351 = vst.msk [vmem:[#allocation2 + $0xb8] sm:$0xff] %vm171, %v315
      %352 = vst.msk [vmem:[#allocation2 + $0xc0] sm:$0xff] %vm171, %v316
      %353 = vst.msk [vmem:[#allocation2 + $0xc8] sm:$0xff] %vm171, %v317
      %354 = vst.msk [vmem:[#allocation2 + $0xd0] sm:$0xff] %vm171, %v318
      %355 = vst.msk [vmem:[#allocation2 + $0xd8] sm:$0xff] %vm171, %v319
      %356 = vst.msk [vmem:[#allocation2 + $0xe0] sm:$0xff] %vm171, %v320
      %357 = vst.msk [vmem:[#allocation2 + $0xe8] sm:$0xff] %vm171, %v321
      %358 = vst.msk [vmem:[#allocation2 + $0xf0] sm:$0xff] %vm171, %v322
      %359 = vst.msk [vmem:[#allocation2 + $0xf8] sm:$0xff] %vm171, %v323
      %392 = vrot.lane.b32.xlu0 %v294, 12
      %v393 = vpop.permute.xlu0 %392
      %394 = vrot.lane.b32.xlu0 %v295, 12
      %v395 = vpop.permute.xlu0 %394
      %396 = vrot.lane.b32.xlu0 %v296, 12
      %v397 = vpop.permute.xlu0 %396
      %398 = vrot.lane.b32.xlu0 %v297, 12
      %v399 = vpop.permute.xlu0 %398
      %400 = vrot.lane.b32.xlu0 %v298, 12
      %v401 = vpop.permute.xlu0 %400
      %402 = vrot.lane.b32.xlu0 %v299, 12
      %v403 = vpop.permute.xlu0 %402
      %404 = vrot.lane.b32.xlu0 %v300, 12
      %v405 = vpop.permute.xlu0 %404
      %406 = vrot.lane.b32.xlu0 %v301, 12
      %v407 = vpop.permute.xlu0 %406
      %408 = vrot.lane.b32.xlu0 %v302, 12
      %v409 = vpop.permute.xlu0 %408
      %410 = vrot.lane.b32.xlu0 %v303, 12
      %v411 = vpop.permute.xlu0 %410
      %412 = vrot.lane.b32.xlu0 %v304, 12
      %v413 = vpop.permute.xlu0 %412
      %414 = vrot.lane.b32.xlu0 %v305, 12
      %v415 = vpop.permute.xlu0 %414
      %416 = vrot.lane.b32.xlu0 %v306, 12
      %v417 = vpop.permute.xlu0 %416
      %418 = vrot.lane.b32.xlu0 %v307, 12
      %v419 = vpop.permute.xlu0 %418
      %420 = vrot.lane.b32.xlu0 %v308, 12
      %v421 = vpop.permute.xlu0 %420
      %422 = vrot.lane.b32.xlu0 %v309, 12
      %v423 = vpop.permute.xlu0 %422
      %424 = vrot.lane.b32.xlu0 %v310, 12
      %v425 = vpop.permute.xlu0 %424
      %426 = vrot.lane.b32.xlu0 %v311, 12
      %v427 = vpop.permute.xlu0 %426
      %428 = vrot.lane.b32.xlu0 %v312, 12
      %v429 = vpop.permute.xlu0 %428
      %430 = vrot.lane.b32.xlu0 %v313, 12
      %v431 = vpop.permute.xlu0 %430
      %432 = vrot.lane.b32.xlu0 %v314, 12
      %v433 = vpop.permute.xlu0 %432
      %434 = vrot.lane.b32.xlu0 %v315, 12
      %v435 = vpop.permute.xlu0 %434
      %436 = vrot.lane.b32.xlu0 %v316, 12
      %v437 = vpop.permute.xlu0 %436
      %438 = vrot.lane.b32.xlu0 %v317, 12
      %v439 = vpop.permute.xlu0 %438
      %440 = vrot.lane.b32.xlu0 %v318, 12
      %v441 = vpop.permute.xlu0 %440
      %442 = vrot.lane.b32.xlu0 %v319, 12
      %v443 = vpop.permute.xlu0 %442
      %444 = vrot.lane.b32.xlu0 %v320, 12
      %v445 = vpop.permute.xlu0 %444
      %446 = vrot.lane.b32.xlu0 %v321, 12
      %v447 = vpop.permute.xlu0 %446
      %448 = vrot.lane.b32.xlu0 %v322, 12
      %v449 = vpop.permute.xlu0 %448
      %450 = vrot.lane.b32.xlu0 %v323, 12
      %v451 = vpop.permute.xlu0 %450
      %452 = vrot.lane.b32.xlu0 %v324, 12
      %v453 = vpop.permute.xlu0 %452
      %454 = vrot.lane.b32.xlu0 %v325, 12
      %v455 = vpop.permute.xlu0 %454
      %vm488 = vcmask 130144
      %489 = vst.msk [vmem:[#allocation2] sm:$0xff] %vm488, %v393
      %490 = vst.msk [vmem:[#allocation2 + $0x8] sm:$0xff] %vm488, %v395
      %491 = vst.msk [vmem:[#allocation2 + $0x10] sm:$0xff] %vm488, %v397
      %492 = vst.msk [vmem:[#allocation2 + $0x18] sm:$0xff] %vm488, %v399
      %493 = vst.msk [vmem:[#allocation2 + $0x20] sm:$0xff] %vm488, %v401
      %494 = vst.msk [vmem:[#allocation2 + $0x28] sm:$0xff] %vm488, %v403
      %495 = vst.msk [vmem:[#allocation2 + $0x30] sm:$0xff] %vm488, %v405
      %496 = vst.msk [vmem:[#allocation2 + $0x38] sm:$0xff] %vm488, %v407
      %497 = vst.msk [vmem:[#allocation2 + $0x40] sm:$0xff] %vm488, %v409
      %498 = vst.msk [vmem:[#allocation2 + $0x48] sm:$0xff] %vm488, %v411
      %499 = vst.msk [vmem:[#allocation2 + $0x50] sm:$0xff] %vm488, %v413
      %500 = vst.msk [vmem:[#allocation2 + $0x58] sm:$0xff] %vm488, %v415
      %501 = vst.msk [vmem:[#allocation2 + $0x60] sm:$0xff] %vm488, %v417
      %502 = vst.msk [vmem:[#allocation2 + $0x68] sm:$0xff] %vm488, %v419
      %503 = vst.msk [vmem:[#allocation2 + $0x70] sm:$0xff] %vm488, %v421
      %504 = vst.msk [vmem:[#allocation2 + $0x78] sm:$0xff] %vm488, %v423
      %505 = vst.msk [vmem:[#allocation2 + $0x80] sm:$0xff] %vm488, %v425
      %506 = vst.msk [vmem:[#allocation2 + $0x88] sm:$0xff] %vm488, %v427
      %507 = vst.msk [vmem:[#allocation2 + $0x90] sm:$0xff] %vm488, %v429
      %508 = vst.msk [vmem:[#allocation2 + $0x98] sm:$0xff] %vm488, %v431
      %509 = vst.msk [vmem:[#allocation2 + $0xa0] sm:$0xff] %vm488, %v433
      %510 = vst.msk [vmem:[#allocation2 + $0xa8] sm:$0xff] %vm488, %v435
      %511 = vst.msk [vmem:[#allocation2 + $0xb0] sm:$0xff] %vm488, %v437
      %512 = vst.msk [vmem:[#allocation2 + $0xb8] sm:$0xff] %vm488, %v439
      %513 = vst.msk [vmem:[#allocation2 + $0xc0] sm:$0xff] %vm488, %v441
      %514 = vst.msk [vmem:[#allocation2 + $0xc8] sm:$0xff] %vm488, %v443
      %515 = vst.msk [vmem:[#allocation2 + $0xd0] sm:$0xff] %vm488, %v445
      %516 = vst.msk [vmem:[#allocation2 + $0xd8] sm:$0xff] %vm488, %v447
      %517 = vst.msk [vmem:[#allocation2 + $0xe0] sm:$0xff] %vm488, %v449
      %518 = vst.msk [vmem:[#allocation2 + $0xe8] sm:$0xff] %vm488, %v451
      %519 = vst.msk [vmem:[#allocation2 + $0xf0] sm:$0xff] %vm488, %v453
      %520 = vst.msk [vmem:[#allocation2 + $0xf8] sm:$0xff] %vm488, %v455
      %523 = vrot.lane.b32.xlu0 %v296, 24
      %v524 = vpop.permute.xlu0 %523
      %525 = vrot.lane.b32.xlu0 %v297, 24
      %v526 = vpop.permute.xlu0 %525
      %527 = vrot.lane.b32.xlu0 %v298, 24
      %v528 = vpop.permute.xlu0 %527
      %529 = vrot.lane.b32.xlu0 %v299, 24
      %v530 = vpop.permute.xlu0 %529
      %531 = vrot.lane.b32.xlu0 %v300, 24
      %v532 = vpop.permute.xlu0 %531
      %533 = vrot.lane.b32.xlu0 %v301, 24
      %v534 = vpop.permute.xlu0 %533
      %535 = vrot.lane.b32.xlu0 %v302, 24
      %v536 = vpop.permute.xlu0 %535
      %537 = vrot.lane.b32.xlu0 %v303, 24
      %v538 = vpop.permute.xlu0 %537
      %539 = vrot.lane.b32.xlu0 %v304, 24
      %v540 = vpop.permute.xlu0 %539
      %541 = vrot.lane.b32.xlu0 %v305, 24
      %v542 = vpop.permute.xlu0 %541
      %543 = vrot.lane.b32.xlu0 %v306, 24
      %v544 = vpop.permute.xlu0 %543
      %545 = vrot.lane.b32.xlu0 %v307, 24
      %v546 = vpop.permute.xlu0 %545
      %547 = vrot.lane.b32.xlu0 %v308, 24
      %v548 = vpop.permute.xlu0 %547
      %549 = vrot.lane.b32.xlu0 %v309, 24
      %v550 = vpop.permute.xlu0 %549
      %551 = vrot.lane.b32.xlu0 %v310, 24
      %v552 = vpop.permute.xlu0 %551
      %553 = vrot.lane.b32.xlu0 %v311, 24
      %v554 = vpop.permute.xlu0 %553
      %555 = vrot.lane.b32.xlu0 %v312, 24
      %v556 = vpop.permute.xlu0 %555
      %557 = vrot.lane.b32.xlu0 %v313, 24
      %v558 = vpop.permute.xlu0 %557
      %559 = vrot.lane.b32.xlu0 %v314, 24
      %v560 = vpop.permute.xlu0 %559
      %561 = vrot.lane.b32.xlu0 %v315, 24
      %v562 = vpop.permute.xlu0 %561
      %563 = vrot.lane.b32.xlu0 %v316, 24
      %v564 = vpop.permute.xlu0 %563
      %565 = vrot.lane.b32.xlu0 %v317, 24
      %v566 = vpop.permute.xlu0 %565
      %567 = vrot.lane.b32.xlu0 %v318, 24
      %v568 = vpop.permute.xlu0 %567
      %569 = vrot.lane.b32.xlu0 %v319, 24
      %v570 = vpop.permute.xlu0 %569
      %571 = vrot.lane.b32.xlu0 %v320, 24
      %v572 = vpop.permute.xlu0 %571
      %573 = vrot.lane.b32.xlu0 %v321, 24
      %v574 = vpop.permute.xlu0 %573
      %575 = vrot.lane.b32.xlu0 %v322, 24
      %v576 = vpop.permute.xlu0 %575
      %577 = vrot.lane.b32.xlu0 %v323, 24
      %v578 = vpop.permute.xlu0 %577
      %579 = vrot.lane.b32.xlu0 %v324, 24
      %v580 = vpop.permute.xlu0 %579
      %581 = vrot.lane.b32.xlu0 %v325, 24
      %v582 = vpop.permute.xlu0 %581
      %583 = vrot.lane.b32.xlu0 %v326, 24
      %v584 = vpop.permute.xlu0 %583
      %585 = vrot.lane.b32.xlu0 %v327, 24
      %v586 = vpop.permute.xlu0 %585
      %vm619 = vcmask 228544
      %620 = vst.msk [vmem:[#allocation2] sm:$0xff] %vm619, %v524
      %621 = vst.msk [vmem:[#allocation2 + $0x8] sm:$0xff] %vm619, %v526
      %622 = vst.msk [vmem:[#allocation2 + $0x10] sm:$0xff] %vm619, %v528
      %623 = vst.msk [vmem:[#allocation2 + $0x18] sm:$0xff] %vm619, %v530
      %624 = vst.msk [vmem:[#allocation2 + $0x20] sm:$0xff] %vm619, %v532
      %625 = vst.msk [vmem:[#allocation2 + $0x28] sm:$0xff] %vm619, %v534
      %626 = vst.msk [vmem:[#allocation2 + $0x30] sm:$0xff] %vm619, %v536
      %627 = vst.msk [vmem:[#allocation2 + $0x38] sm:$0xff] %vm619, %v538
      %628 = vst.msk [vmem:[#allocation2 + $0x40] sm:$0xff] %vm619, %v540
      %629 = vst.msk [vmem:[#allocation2 + $0x48] sm:$0xff] %vm619, %v542
      %630 = vst.msk [vmem:[#allocation2 + $0x50] sm:$0xff] %vm619, %v544
      %631 = vst.msk [vmem:[#allocation2 + $0x58] sm:$0xff] %vm619, %v546
      %632 = vst.msk [vmem:[#allocation2 + $0x60] sm:$0xff] %vm619, %v548
      %633 = vst.msk [vmem:[#allocation2 + $0x68] sm:$0xff] %vm619, %v550
      %634 = vst.msk [vmem:[#allocation2 + $0x70] sm:$0xff] %vm619, %v552
      %635 = vst.msk [vmem:[#allocation2 + $0x78] sm:$0xff] %vm619, %v554
      %636 = vst.msk [vmem:[#allocation2 + $0x80] sm:$0xff] %vm619, %v556
      %637 = vst.msk [vmem:[#allocation2 + $0x88] sm:$0xff] %vm619, %v558
      %638 = vst.msk [vmem:[#allocation2 + $0x90] sm:$0xff] %vm619, %v560
      %639 = vst.msk [vmem:[#allocation2 + $0x98] sm:$0xff] %vm619, %v562
      %640 = vst.msk [vmem:[#allocation2 + $0xa0] sm:$0xff] %vm619, %v564
      %641 = vst.msk [vmem:[#allocation2 + $0xa8] sm:$0xff] %vm619, %v566
      %642 = vst.msk [vmem:[#allocation2 + $0xb0] sm:$0xff] %vm619, %v568
      %643 = vst.msk [vmem:[#allocation2 + $0xb8] sm:$0xff] %vm619, %v570
      %644 = vst.msk [vmem:[#allocation2 + $0xc0] sm:$0xff] %vm619, %v572
      %645 = vst.msk [vmem:[#allocation2 + $0xc8] sm:$0xff] %vm619, %v574
      %646 = vst.msk [vmem:[#allocation2 + $0xd0] sm:$0xff] %vm619, %v576
      %647 = vst.msk [vmem:[#allocation2 + $0xd8] sm:$0xff] %vm619, %v578
      %648 = vst.msk [vmem:[#allocation2 + $0xe0] sm:$0xff] %vm619, %v580
      %649 = vst.msk [vmem:[#allocation2 + $0xe8] sm:$0xff] %vm619, %v582
      %650 = vst.msk [vmem:[#allocation2 + $0xf0] sm:$0xff] %vm619, %v584
      %651 = vst.msk [vmem:[#allocation2 + $0xf8] sm:$0xff] %vm619, %v586
      %v652 = vld [vmem:[#allocation3 + $0x1] sm:$0xff]
      %v653 = vld [vmem:[#allocation3 + $0x9] sm:$0xff]
      %v654 = vld [vmem:[#allocation3 + $0x19] sm:$0xff]
      %v655 = vld [vmem:[#allocation3 + $0x21] sm:$0xff]
      %v656 = vld [vmem:[#allocation3 + $0x31] sm:$0xff]
      %v657 = vld [vmem:[#allocation3 + $0x39] sm:$0xff]
      %v658 = vld [vmem:[#allocation3 + $0x49] sm:$0xff]
      %v659 = vld [vmem:[#allocation3 + $0x51] sm:$0xff]
      %v660 = vld [vmem:[#allocation3 + $0x61] sm:$0xff]
      %v661 = vld [vmem:[#allocation3 + $0x69] sm:$0xff]
      %v662 = vld [vmem:[#allocation3 + $0x79] sm:$0xff]
      %v663 = vld [vmem:[#allocation3 + $0x81] sm:$0xff]
      %v664 = vld [vmem:[#allocation3 + $0x91] sm:$0xff]
      %v665 = vld [vmem:[#allocation3 + $0x99] sm:$0xff]
      %v666 = vld [vmem:[#allocation3 + $0xa9] sm:$0xff]
      %v667 = vld [vmem:[#allocation3 + $0xb1] sm:$0xff]
      %v668 = vld [vmem:[#allocation3 + $0xc1] sm:$0xff]
      %v669 = vld [vmem:[#allocation3 + $0xc9] sm:$0xff]
      %v670 = vld [vmem:[#allocation3 + $0xd9] sm:$0xff]
      %v671 = vld [vmem:[#allocation3 + $0xe1] sm:$0xff]
      %v672 = vld [vmem:[#allocation3 + $0xf1] sm:$0xff]
      %v673 = vld [vmem:[#allocation3 + $0xf9] sm:$0xff]
      %v674 = vld [vmem:[#allocation3 + $0x109] sm:$0xff]
      %v675 = vld [vmem:[#allocation3 + $0x111] sm:$0xff]
      %v676 = vld [vmem:[#allocation3 + $0x121] sm:$0xff]
      %v677 = vld [vmem:[#allocation3 + $0x129] sm:$0xff]
      %v678 = vld [vmem:[#allocation3 + $0x139] sm:$0xff]
      %v679 = vld [vmem:[#allocation3 + $0x141] sm:$0xff]
      %v680 = vld [vmem:[#allocation3 + $0x151] sm:$0xff]
      %v681 = vld [vmem:[#allocation3 + $0x159] sm:$0xff]
      %v682 = vld [vmem:[#allocation3 + $0x169] sm:$0xff]
      %v683 = vld [vmem:[#allocation3 + $0x171] sm:$0xff]
      %v684 = vld [vmem:[#allocation3 + $0x181] sm:$0xff]
      %v685 = vld [vmem:[#allocation3 + $0x189] sm:$0xff]
      %v686 = vld [vmem:[#allocation3 + $0x199] sm:$0xff]
      %v687 = vld [vmem:[#allocation3 + $0x1a1] sm:$0xff]
      %720 = vrot.lane.b32.xlu0 %v652, 4
      %v721 = vpop.permute.xlu0 %720
      %722 = vrot.lane.b32.xlu0 %v653, 4
      %v723 = vpop.permute.xlu0 %722
      %724 = vrot.lane.b32.xlu0 %v654, 4
      %v725 = vpop.permute.xlu0 %724
      %726 = vrot.lane.b32.xlu0 %v655, 4
      %v727 = vpop.permute.xlu0 %726
      %728 = vrot.lane.b32.xlu0 %v656, 4
      %v729 = vpop.permute.xlu0 %728
      %730 = vrot.lane.b32.xlu0 %v657, 4
      %v731 = vpop.permute.xlu0 %730
      %732 = vrot.lane.b32.xlu0 %v658, 4
      %v733 = vpop.permute.xlu0 %732
      %734 = vrot.lane.b32.xlu0 %v659, 4
      %v735 = vpop.permute.xlu0 %734
      %736 = vrot.lane.b32.xlu0 %v660, 4
      %v737 = vpop.permute.xlu0 %736
      %738 = vrot.lane.b32.xlu0 %v661, 4
      %v739 = vpop.permute.xlu0 %738
      %740 = vrot.lane.b32.xlu0 %v662, 4
      %v741 = vpop.permute.xlu0 %740
      %742 = vrot.lane.b32.xlu0 %v663, 4
      %v743 = vpop.permute.xlu0 %742
      %744 = vrot.lane.b32.xlu0 %v664, 4
      %v745 = vpop.permute.xlu0 %744
      %746 = vrot.lane.b32.xlu0 %v665, 4
      %v747 = vpop.permute.xlu0 %746
      %748 = vrot.lane.b32.xlu0 %v666, 4
      %v749 = vpop.permute.xlu0 %748
      %750 = vrot.lane.b32.xlu0 %v667, 4
      %v751 = vpop.permute.xlu0 %750
      %752 = vrot.lane.b32.xlu0 %v668, 4
      %v753 = vpop.permute.xlu0 %752
      %754 = vrot.lane.b32.xlu0 %v669, 4
      %v755 = vpop.permute.xlu0 %754
      %756 = vrot.lane.b32.xlu0 %v670, 4
      %v757 = vpop.permute.xlu0 %756
      %758 = vrot.lane.b32.xlu0 %v671, 4
      %v759 = vpop.permute.xlu0 %758
      %760 = vrot.lane.b32.xlu0 %v672, 4
      %v761 = vpop.permute.xlu0 %760
      %762 = vrot.lane.b32.xlu0 %v673, 4
      %v763 = vpop.permute.xlu0 %762
      %764 = vrot.lane.b32.xlu0 %v674, 4
      %v765 = vpop.permute.xlu0 %764
      %766 = vrot.lane.b32.xlu0 %v675, 4
      %v767 = vpop.permute.xlu0 %766
      %768 = vrot.lane.b32.xlu0 %v676, 4
      %v769 = vpop.permute.xlu0 %768
      %770 = vrot.lane.b32.xlu0 %v677, 4
      %v771 = vpop.permute.xlu0 %770
      %772 = vrot.lane.b32.xlu0 %v678, 4
      %v773 = vpop.permute.xlu0 %772
      %774 = vrot.lane.b32.xlu0 %v679, 4
      %v775 = vpop.permute.xlu0 %774
      %776 = vrot.lane.b32.xlu0 %v680, 4
      %v777 = vpop.permute.xlu0 %776
      %778 = vrot.lane.b32.xlu0 %v681, 4
      %v779 = vpop.permute.xlu0 %778
      %780 = vrot.lane.b32.xlu0 %v682, 4
      %v781 = vpop.permute.xlu0 %780
      %782 = vrot.lane.b32.xlu0 %v683, 4
      %v783 = vpop.permute.xlu0 %782
      %vm816 = vcmask 64544
      %817 = vst.msk [vmem:[#allocation2] sm:$0xff] %vm816, %v721
      %818 = vst.msk [vmem:[#allocation2 + $0x8] sm:$0xff] %vm816, %v723
      %819 = vst.msk [vmem:[#allocation2 + $0x10] sm:$0xff] %vm816, %v725
      %820 = vst.msk [vmem:[#allocation2 + $0x18] sm:$0xff] %vm816, %v727
      %821 = vst.msk [vmem:[#allocation2 + $0x20] sm:$0xff] %vm816, %v729
      %822 = vst.msk [vmem:[#allocation2 + $0x28] sm:$0xff] %vm816, %v731
      %823 = vst.msk [vmem:[#allocation2 + $0x30] sm:$0xff] %vm816, %v733
      %824 = vst.msk [vmem:[#allocation2 + $0x38] sm:$0xff] %vm816, %v735
      %825 = vst.msk [vmem:[#allocation2 + $0x40] sm:$0xff] %vm816, %v737
      %826 = vst.msk [vmem:[#allocation2 + $0x48] sm:$0xff] %vm816, %v739
      %827 = vst.msk [vmem:[#allocation2 + $0x50] sm:$0xff] %vm816, %v741
      %828 = vst.msk [vmem:[#allocation2 + $0x58] sm:$0xff] %vm816, %v743
      %829 = vst.msk [vmem:[#allocation2 + $0x60] sm:$0xff] %vm816, %v745
      %830 = vst.msk [vmem:[#allocation2 + $0x68] sm:$0xff] %vm816, %v747
      %831 = vst.msk [vmem:[#allocation2 + $0x70] sm:$0xff] %vm816, %v749
      %832 = vst.msk [vmem:[#allocation2 + $0x78] sm:$0xff] %vm816, %v751
      %833 = vst.msk [vmem:[#allocation2 + $0x80] sm:$0xff] %vm816, %v753
      %834 = vst.msk [vmem:[#allocation2 + $0x88] sm:$0xff] %vm816, %v755
      %835 = vst.msk [vmem:[#allocation2 + $0x90] sm:$0xff] %vm816, %v757
      %836 = vst.msk [vmem:[#allocation2 + $0x98] sm:$0xff] %vm816, %v759
      %837 = vst.msk [vmem:[#allocation2 + $0xa0] sm:$0xff] %vm816, %v761
      %838 = vst.msk [vmem:[#allocation2 + $0xa8] sm:$0xff] %vm816, %v763
      %839 = vst.msk [vmem:[#allocation2 + $0xb0] sm:$0xff] %vm816, %v765
      %840 = vst.msk [vmem:[#allocation2 + $0xb8] sm:$0xff] %vm816, %v767
      %841 = vst.msk [vmem:[#allocation2 + $0xc0] sm:$0xff] %vm816, %v769
      %842 = vst.msk [vmem:[#allocation2 + $0xc8] sm:$0xff] %vm816, %v771
      %843 = vst.msk [vmem:[#allocation2 + $0xd0] sm:$0xff] %vm816, %v773
      %844 = vst.msk [vmem:[#allocation2 + $0xd8] sm:$0xff] %vm816, %v775
      %845 = vst.msk [vmem:[#allocation2 + $0xe0] sm:$0xff] %vm816, %v777
      %846 = vst.msk [vmem:[#allocation2 + $0xe8] sm:$0xff] %vm816, %v779
      %847 = vst.msk [vmem:[#allocation2 + $0xf0] sm:$0xff] %vm816, %v781
      %848 = vst.msk [vmem:[#allocation2 + $0xf8] sm:$0xff] %vm816, %v783
      %851 = vrot.lane.b32.xlu0 %v654, 16
      %v852 = vpop.permute.xlu0 %851
      %853 = vrot.lane.b32.xlu0 %v655, 16
      %v854 = vpop.permute.xlu0 %853
      %855 = vrot.lane.b32.xlu0 %v656, 16
      %v856 = vpop.permute.xlu0 %855
      %857 = vrot.lane.b32.xlu0 %v657, 16
      %v858 = vpop.permute.xlu0 %857
      %859 = vrot.lane.b32.xlu0 %v658, 16
      %v860 = vpop.permute.xlu0 %859
      %861 = vrot.lane.b32.xlu0 %v659, 16
      %v862 = vpop.permute.xlu0 %861
      %863 = vrot.lane.b32.xlu0 %v660, 16
      %v864 = vpop.permute.xlu0 %863
      %865 = vrot.lane.b32.xlu0 %v661, 16
      %v866 = vpop.permute.xlu0 %865
      %867 = vrot.lane.b32.xlu0 %v662, 16
      %v868 = vpop.permute.xlu0 %867
      %869 = vrot.lane.b32.xlu0 %v663, 16
      %v870 = vpop.permute.xlu0 %869
      %871 = vrot.lane.b32.xlu0 %v664, 16
      %v872 = vpop.permute.xlu0 %871
      %873 = vrot.lane.b32.xlu0 %v665, 16
      %v874 = vpop.permute.xlu0 %873
      %875 = vrot.lane.b32.xlu0 %v666, 16
      %v876 = vpop.permute.xlu0 %875
      %877 = vrot.lane.b32.xlu0 %v667, 16
      %v878 = vpop.permute.xlu0 %877
      %879 = vrot.lane.b32.xlu0 %v668, 16
      %v880 = vpop.permute.xlu0 %879
      %881 = vrot.lane.b32.xlu0 %v669, 16
      %v882 = vpop.permute.xlu0 %881
      %883 = vrot.lane.b32.xlu0 %v670, 16
      %v884 = vpop.permute.xlu0 %883
      %885 = vrot.lane.b32.xlu0 %v671, 16
      %v886 = vpop.permute.xlu0 %885
      %887 = vrot.lane.b32.xlu0 %v672, 16
      %v888 = vpop.permute.xlu0 %887
      %889 = vrot.lane.b32.xlu0 %v673, 16
      %v890 = vpop.permute.xlu0 %889
      %891 = vrot.lane.b32.xlu0 %v674, 16
      %v892 = vpop.permute.xlu0 %891
      %893 = vrot.lane.b32.xlu0 %v675, 16
      %v894 = vpop.permute.xlu0 %893
      %895 = vrot.lane.b32.xlu0 %v676, 16
      %v896 = vpop.permute.xlu0 %895
      %897 = vrot.lane.b32.xlu0 %v677, 16
      %v898 = vpop.permute.xlu0 %897
      %899 = vrot.lane.b32.xlu0 %v678, 16
      %v900 = vpop.permute.xlu0 %899
      %901 = vrot.lane.b32.xlu0 %v679, 16
      %v902 = vpop.permute.xlu0 %901
      %903 = vrot.lane.b32.xlu0 %v680, 16
      %v904 = vpop.permute.xlu0 %903
      %905 = vrot.lane.b32.xlu0 %v681, 16
      %v906 = vpop.permute.xlu0 %905
      %907 = vrot.lane.b32.xlu0 %v682, 16
      %v908 = vpop.permute.xlu0 %907
      %909 = vrot.lane.b32.xlu0 %v683, 16
      %v910 = vpop.permute.xlu0 %909
      %911 = vrot.lane.b32.xlu0 %v684, 16
      %v912 = vpop.permute.xlu0 %911
      %913 = vrot.lane.b32.xlu0 %v685, 16
      %v914 = vpop.permute.xlu0 %913
      %vm947 = vcmask 162944
      %948 = vst.msk [vmem:[#allocation2] sm:$0xff] %vm947, %v852
      %949 = vst.msk [vmem:[#allocation2 + $0x8] sm:$0xff] %vm947, %v854
      %950 = vst.msk [vmem:[#allocation2 + $0x10] sm:$0xff] %vm947, %v856
      %951 = vst.msk [vmem:[#allocation2 + $0x18] sm:$0xff] %vm947, %v858
      %952 = vst.msk [vmem:[#allocation2 + $0x20] sm:$0xff] %vm947, %v860
      %953 = vst.msk [vmem:[#allocation2 + $0x28] sm:$0xff] %vm947, %v862
      %954 = vst.msk [vmem:[#allocation2 + $0x30] sm:$0xff] %vm947, %v864
      %955 = vst.msk [vmem:[#allocation2 + $0x38] sm:$0xff] %vm947, %v866
      %956 = vst.msk [vmem:[#allocation2 + $0x40] sm:$0xff] %vm947, %v868
      %957 = vst.msk [vmem:[#allocation2 + $0x48] sm:$0xff] %vm947, %v870
      %958 = vst.msk [vmem:[#allocation2 + $0x50] sm:$0xff] %vm947, %v872
      %959 = vst.msk [vmem:[#allocation2 + $0x58] sm:$0xff] %vm947, %v874
      %960 = vst.msk [vmem:[#allocation2 + $0x60] sm:$0xff] %vm947, %v876
      %961 = vst.msk [vmem:[#allocation2 + $0x68] sm:$0xff] %vm947, %v878
      %962 = vst.msk [vmem:[#allocation2 + $0x70] sm:$0xff] %vm947, %v880
      %963 = vst.msk [vmem:[#allocation2 + $0x78] sm:$0xff] %vm947, %v882
      %964 = vst.msk [vmem:[#allocation2 + $0x80] sm:$0xff] %vm947, %v884
      %965 = vst.msk [vmem:[#allocation2 + $0x88] sm:$0xff] %vm947, %v886
      %966 = vst.msk [vmem:[#allocation2 + $0x90] sm:$0xff] %vm947, %v888
      %967 = vst.msk [vmem:[#allocation2 + $0x98] sm:$0xff] %vm947, %v890
      %968 = vst.msk [vmem:[#allocation2 + $0xa0] sm:$0xff] %vm947, %v892
      %969 = vst.msk [vmem:[#allocation2 + $0xa8] sm:$0xff] %vm947, %v894
      %970 = vst.msk [vmem:[#allocation2 + $0xb0] sm:$0xff] %vm947, %v896
      %971 = vst.msk [vmem:[#allocation2 + $0xb8] sm:$0xff] %vm947, %v898
      %972 = vst.msk [vmem:[#allocation2 + $0xc0] sm:$0xff] %vm947, %v900
      %973 = vst.msk [vmem:[#allocation2 + $0xc8] sm:$0xff] %vm947, %v902
      %974 = vst.msk [vmem:[#allocation2 + $0xd0] sm:$0xff] %vm947, %v904
      %975 = vst.msk [vmem:[#allocation2 + $0xd8] sm:$0xff] %vm947, %v906
      %976 = vst.msk [vmem:[#allocation2 + $0xe0] sm:$0xff] %vm947, %v908
      %977 = vst.msk [vmem:[#allocation2 + $0xe8] sm:$0xff] %vm947, %v910
      %978 = vst.msk [vmem:[#allocation2 + $0xf0] sm:$0xff] %vm947, %v912
      %979 = vst.msk [vmem:[#allocation2 + $0xf8] sm:$0xff] %vm947, %v914
      %982 = vrot.lane.b32.xlu0 %v656, 28
      %v983 = vpop.permute.xlu0 %982
      %984 = vrot.lane.b32.xlu0 %v657, 28
      %v985 = vpop.permute.xlu0 %984
      %986 = vrot.lane.b32.xlu0 %v658, 28
      %v987 = vpop.permute.xlu0 %986
      %988 = vrot.lane.b32.xlu0 %v659, 28
      %v989 = vpop.permute.xlu0 %988
      %990 = vrot.lane.b32.xlu0 %v660, 28
      %v991 = vpop.permute.xlu0 %990
      %992 = vrot.lane.b32.xlu0 %v661, 28
      %v993 = vpop.permute.xlu0 %992
      %994 = vrot.lane.b32.xlu0 %v662, 28
      %v995 = vpop.permute.xlu0 %994
      %996 = vrot.lane.b32.xlu0 %v663, 28
      %v997 = vpop.permute.xlu0 %996
      %998 = vrot.lane.b32.xlu0 %v664, 28
      %v999 = vpop.permute.xlu0 %998
      %1000 = vrot.lane.b32.xlu0 %v665, 28
      %v1001 = vpop.permute.xlu0 %1000
      %1002 = vrot.lane.b32.xlu0 %v666, 28
      %v1003 = vpop.permute.xlu0 %1002
      %1004 = vrot.lane.b32.xlu0 %v667, 28
      %v1005 = vpop.permute.xlu0 %1004
      %1006 = vrot.lane.b32.xlu0 %v668, 28
      %v1007 = vpop.permute.xlu0 %1006
      %1008 = vrot.lane.b32.xlu0 %v669, 28
      %v1009 = vpop.permute.xlu0 %1008
      %1010 = vrot.lane.b32.xlu0 %v670, 28
      %v1011 = vpop.permute.xlu0 %1010
      %1012 = vrot.lane.b32.xlu0 %v671, 28
      %v1013 = vpop.permute.xlu0 %1012
      %1014 = vrot.lane.b32.xlu0 %v672, 28
      %v1015 = vpop.permute.xlu0 %1014
      %1016 = vrot.lane.b32.xlu0 %v673, 28
      %v1017 = vpop.permute.xlu0 %1016
      %1018 = vrot.lane.b32.xlu0 %v674, 28
      %v1019 = vpop.permute.xlu0 %1018
      %1020 = vrot.lane.b32.xlu0 %v675, 28
      %v1021 = vpop.permute.xlu0 %1020
      %1022 = vrot.lane.b32.xlu0 %v676, 28
      %v1023 = vpop.permute.xlu0 %1022
      %1024 = vrot.lane.b32.xlu0 %v677, 28
      %v1025 = vpop.permute.xlu0 %1024
      %1026 = vrot.lane.b32.xlu0 %v678, 28
      %v1027 = vpop.permute.xlu0 %1026
      %1028 = vrot.lane.b32.xlu0 %v679, 28
      %v1029 = vpop.permute.xlu0 %1028
      %1030 = vrot.lane.b32.xlu0 %v680, 28
      %v1031 = vpop.permute.xlu0 %1030
      %1032 = vrot.lane.b32.xlu0 %v681, 28
      %v1033 = vpop.permute.xlu0 %1032
      %1034 = vrot.lane.b32.xlu0 %v682, 28
      %v1035 = vpop.permute.xlu0 %1034
      %1036 = vrot.lane.b32.xlu0 %v683, 28
      %v1037 = vpop.permute.xlu0 %1036
      %1038 = vrot.lane.b32.xlu0 %v684, 28
      %v1039 = vpop.permute.xlu0 %1038
      %1040 = vrot.lane.b32.xlu0 %v685, 28
      %v1041 = vpop.permute.xlu0 %1040
      %1042 = vrot.lane.b32.xlu0 %v686, 28
      %v1043 = vpop.permute.xlu0 %1042
      %1044 = vrot.lane.b32.xlu0 %v687, 28
      %v1045 = vpop.permute.xlu0 %1044
      %vm1078 = vcmask 261344
      %1079 = vst.msk [vmem:[#allocation2] sm:$0xff] %vm1078, %v983
      %1080 = vst.msk [vmem:[#allocation2 + $0x8] sm:$0xff] %vm1078, %v985
      %1081 = vst.msk [vmem:[#allocation2 + $0x10] sm:$0xff] %vm1078, %v987
      %1082 = vst.msk [vmem:[#allocation2 + $0x18] sm:$0xff] %vm1078, %v989
      %1083 = vst.msk [vmem:[#allocation2 + $0x20] sm:$0xff] %vm1078, %v991
      %1084 = vst.msk [vmem:[#allocation2 + $0x28] sm:$0xff] %vm1078, %v993
      %1085 = vst.msk [vmem:[#allocation2 + $0x30] sm:$0xff] %vm1078, %v995
      %1086 = vst.msk [vmem:[#allocation2 + $0x38] sm:$0xff] %vm1078, %v997
      %1087 = vst.msk [vmem:[#allocation2 + $0x40] sm:$0xff] %vm1078, %v999
      %1088 = vst.msk [vmem:[#allocation2 + $0x48] sm:$0xff] %vm1078, %v1001
      %1089 = vst.msk [vmem:[#allocation2 + $0x50] sm:$0xff] %vm1078, %v1003
      %1090 = vst.msk [vmem:[#allocation2 + $0x58] sm:$0xff] %vm1078, %v1005
      %1091 = vst.msk [vmem:[#allocation2 + $0x60] sm:$0xff] %vm1078, %v1007
      %1092 = vst.msk [vmem:[#allocation2 + $0x68] sm:$0xff] %vm1078, %v1009
      %1093 = vst.msk [vmem:[#allocation2 + $0x70] sm:$0xff] %vm1078, %v1011
      %1094 = vst.msk [vmem:[#allocation2 + $0x78] sm:$0xff] %vm1078, %v1013
      %1095 = vst.msk [vmem:[#allocation2 + $0x80] sm:$0xff] %vm1078, %v1015
      %1096 = vst.msk [vmem:[#allocation2 + $0x88] sm:$0xff] %vm1078, %v1017
      %1097 = vst.msk [vmem:[#allocation2 + $0x90] sm:$0xff] %vm1078, %v1019
      %1098 = vst.msk [vmem:[#allocation2 + $0x98] sm:$0xff] %vm1078, %v1021
      %1099 = vst.msk [vmem:[#allocation2 + $0xa0] sm:$0xff] %vm1078, %v1023
      %1100 = vst.msk [vmem:[#allocation2 + $0xa8] sm:$0xff] %vm1078, %v1025
      %1101 = vst.msk [vmem:[#allocation2 + $0xb0] sm:$0xff] %vm1078, %v1027
      %1102 = vst.msk [vmem:[#allocation2 + $0xb8] sm:$0xff] %vm1078, %v1029
      %1103 = vst.msk [vmem:[#allocation2 + $0xc0] sm:$0xff] %vm1078, %v1031
      %1104 = vst.msk [vmem:[#allocation2 + $0xc8] sm:$0xff] %vm1078, %v1033
      %1105 = vst.msk [vmem:[#allocation2 + $0xd0] sm:$0xff] %vm1078, %v1035
      %1106 = vst.msk [vmem:[#allocation2 + $0xd8] sm:$0xff] %vm1078, %v1037
      %1107 = vst.msk [vmem:[#allocation2 + $0xe0] sm:$0xff] %vm1078, %v1039
      %1108 = vst.msk [vmem:[#allocation2 + $0xe8] sm:$0xff] %vm1078, %v1041
      %1109 = vst.msk [vmem:[#allocation2 + $0xf0] sm:$0xff] %vm1078, %v1043
      %1110 = vst.msk [vmem:[#allocation2 + $0xf8] sm:$0xff] %vm1078, %v1045
      %v1111 = vld [vmem:[#allocation3 + $0x2] sm:$0xff]
      %v1112 = vld [vmem:[#allocation3 + $0xa] sm:$0xff]
      %v1113 = vld [vmem:[#allocation3 + $0x1a] sm:$0xff]
      %v1114 = vld [vmem:[#allocation3 + $0x22] sm:$0xff]
      %v1115 = vld [vmem:[#allocation3 + $0x32] sm:$0xff]
      %v1116 = vld [vmem:[#allocation3 + $0x3a] sm:$0xff]
      %v1117 = vld [vmem:[#allocation3 + $0x4a] sm:$0xff]
      %v1118 = vld [vmem:[#allocation3 + $0x52] sm:$0xff]
      %v1119 = vld [vmem:[#allocation3 + $0x62] sm:$0xff]
      %v1120 = vld [vmem:[#allocation3 + $0x6a] sm:$0xff]
      %v1121 = vld [vmem:[#allocation3 + $0x7a] sm:$0xff]
      %v1122 = vld [vmem:[#allocation3 + $0x82] sm:$0xff]
      %v1123 = vld [vmem:[#allocation3 + $0x92] sm:$0xff]
      %v1124 = vld [vmem:[#allocation3 + $0x9a] sm:$0xff]
      %v1125 = vld [vmem:[#allocation3 + $0xaa] sm:$0xff]
      %v1126 = vld [vmem:[#allocation3 + $0xb2] sm:$0xff]
      %v1127 = vld [vmem:[#allocation3 + $0xc2] sm:$0xff]
      %v1128 = vld [vmem:[#allocation3 + $0xca] sm:$0xff]
      %v1129 = vld [vmem:[#allocation3 + $0xda] sm:$0xff]
      %v1130 = vld [vmem:[#allocation3 + $0xe2] sm:$0xff]
      %v1131 = vld [vmem:[#allocation3 + $0xf2] sm:$0xff]
      %v1132 = vld [vmem:[#allocation3 + $0xfa] sm:$0xff]
      %v1133 = vld [vmem:[#allocation3 + $0x10a] sm:$0xff]
      %v1134 = vld [vmem:[#allocation3 + $0x112] sm:$0xff]
      %v1135 = vld [vmem:[#allocation3 + $0x122] sm:$0xff]
      %v1136 = vld [vmem:[#allocation3 + $0x12a] sm:$0xff]
      %v1137 = vld [vmem:[#allocation3 + $0x13a] sm:$0xff]
      %v1138 = vld [vmem:[#allocation3 + $0x142] sm:$0xff]
      %v1139 = vld [vmem:[#allocation3 + $0x152] sm:$0xff]
      %v1140 = vld [vmem:[#allocation3 + $0x15a] sm:$0xff]
      %v1141 = vld [vmem:[#allocation3 + $0x16a] sm:$0xff]
      %v1142 = vld [vmem:[#allocation3 + $0x172] sm:$0xff]
      %v1143 = vld [vmem:[#allocation3 + $0x182] sm:$0xff]
      %v1144 = vld [vmem:[#allocation3 + $0x18a] sm:$0xff]
      %v1145 = vld [vmem:[#allocation3 + $0x19a] sm:$0xff]
      %v1146 = vld [vmem:[#allocation3 + $0x1a2] sm:$0xff]
      %1179 = vrot.lane.b32.xlu0 %v1111, 8
      %v1180 = vpop.permute.xlu0 %1179
      %1181 = vrot.lane.b32.xlu0 %v1112, 8
      %v1182 = vpop.permute.xlu0 %1181
      %1183 = vrot.lane.b32.xlu0 %v1113, 8
      %v1184 = vpop.permute.xlu0 %1183
      %1185 = vrot.lane.b32.xlu0 %v1114, 8
      %v1186 = vpop.permute.xlu0 %1185
      %1187 = vrot.lane.b32.xlu0 %v1115, 8
      %v1188 = vpop.permute.xlu0 %1187
      %1189 = vrot.lane.b32.xlu0 %v1116, 8
      %v1190 = vpop.permute.xlu0 %1189
      %1191 = vrot.lane.b32.xlu0 %v1117, 8
      %v1192 = vpop.permute.xlu0 %1191
      %1193 = vrot.lane.b32.xlu0 %v1118, 8
      %v1194 = vpop.permute.xlu0 %1193
      %1195 = vrot.lane.b32.xlu0 %v1119, 8
      %v1196 = vpop.permute.xlu0 %1195
      %1197 = vrot.lane.b32.xlu0 %v1120, 8
      %v1198 = vpop.permute.xlu0 %1197
      %1199 = vrot.lane.b32.xlu0 %v1121, 8
      %v1200 = vpop.permute.xlu0 %1199
      %1201 = vrot.lane.b32.xlu0 %v1122, 8
      %v1202 = vpop.permute.xlu0 %1201
      %1203 = vrot.lane.b32.xlu0 %v1123, 8
      %v1204 = vpop.permute.xlu0 %1203
      %1205 = vrot.lane.b32.xlu0 %v1124, 8
      %v1206 = vpop.permute.xlu0 %1205
      %1207 = vrot.lane.b32.xlu0 %v1125, 8
      %v1208 = vpop.permute.xlu0 %1207
      %1209 = vrot.lane.b32.xlu0 %v1126, 8
      %v1210 = vpop.permute.xlu0 %1209
      %1211 = vrot.lane.b32.xlu0 %v1127, 8
      %v1212 = vpop.permute.xlu0 %1211
      %1213 = vrot.lane.b32.xlu0 %v1128, 8
      %v1214 = vpop.permute.xlu0 %1213
      %1215 = vrot.lane.b32.xlu0 %v1129, 8
      %v1216 = vpop.permute.xlu0 %1215
      %1217 = vrot.lane.b32.xlu0 %v1130, 8
      %v1218 = vpop.permute.xlu0 %1217
      %1219 = vrot.lane.b32.xlu0 %v1131, 8
      %v1220 = vpop.permute.xlu0 %1219
      %1221 = vrot.lane.b32.xlu0 %v1132, 8
      %v1222 = vpop.permute.xlu0 %1221
      %1223 = vrot.lane.b32.xlu0 %v1133, 8
      %v1224 = vpop.permute.xlu0 %1223
      %1225 = vrot.lane.b32.xlu0 %v1134, 8
      %v1226 = vpop.permute.xlu0 %1225
      %1227 = vrot.lane.b32.xlu0 %v1135, 8
      %v1228 = vpop.permute.xlu0 %1227
      %1229 = vrot.lane.b32.xlu0 %v1136, 8
      %v1230 = vpop.permute.xlu0 %1229
      %1231 = vrot.lane.b32.xlu0 %v1137, 8
      %v1232 = vpop.permute.xlu0 %1231
      %1233 = vrot.lane.b32.xlu0 %v1138, 8
      %v1234 = vpop.permute.xlu0 %1233
      %1235 = vrot.lane.b32.xlu0 %v1139, 8
      %v1236 = vpop.permute.xlu0 %1235
      %1237 = vrot.lane.b32.xlu0 %v1140, 8
      %v1238 = vpop.permute.xlu0 %1237
      %1239 = vrot.lane.b32.xlu0 %v1141, 8
      %v1240 = vpop.permute.xlu0 %1239
      %1241 = vrot.lane.b32.xlu0 %v1142, 8
      %v1242 = vpop.permute.xlu0 %1241
      %vm1275 = vcmask 97344
      %1276 = vst.msk [vmem:[#allocation2] sm:$0xff] %vm1275, %v1180
      %1277 = vst.msk [vmem:[#allocation2 + $0x8] sm:$0xff] %vm1275, %v1182
      %1278 = vst.msk [vmem:[#allocation2 + $0x10] sm:$0xff] %vm1275, %v1184
      %1279 = vst.msk [vmem:[#allocation2 + $0x18] sm:$0xff] %vm1275, %v1186
      %1280 = vst.msk [vmem:[#allocation2 + $0x20] sm:$0xff] %vm1275, %v1188
      %1281 = vst.msk [vmem:[#allocation2 + $0x28] sm:$0xff] %vm1275, %v1190
      %1282 = vst.msk [vmem:[#allocation2 + $0x30] sm:$0xff] %vm1275, %v1192
      %1283 = vst.msk [vmem:[#allocation2 + $0x38] sm:$0xff] %vm1275, %v1194
      %1284 = vst.msk [vmem:[#allocation2 + $0x40] sm:$0xff] %vm1275, %v1196
      %1285 = vst.msk [vmem:[#allocation2 + $0x48] sm:$0xff] %vm1275, %v1198
      %1286 = vst.msk [vmem:[#allocation2 + $0x50] sm:$0xff] %vm1275, %v1200
      %1287 = vst.msk [vmem:[#allocation2 + $0x58] sm:$0xff] %vm1275, %v1202
      %1288 = vst.msk [vmem:[#allocation2 + $0x60] sm:$0xff] %vm1275, %v1204
      %1289 = vst.msk [vmem:[#allocation2 + $0x68] sm:$0xff] %vm1275, %v1206
      %1290 = vst.msk [vmem:[#allocation2 + $0x70] sm:$0xff] %vm1275, %v1208
      %1291 = vst.msk [vmem:[#allocation2 + $0x78] sm:$0xff] %vm1275, %v1210
      %1292 = vst.msk [vmem:[#allocation2 + $0x80] sm:$0xff] %vm1275, %v1212
      %1293 = vst.msk [vmem:[#allocation2 + $0x88] sm:$0xff] %vm1275, %v1214
      %1294 = vst.msk [vmem:[#allocation2 + $0x90] sm:$0xff] %vm1275, %v1216
      %1295 = vst.msk [vmem:[#allocation2 + $0x98] sm:$0xff] %vm1275, %v1218
      %1296 = vst.msk [vmem:[#allocation2 + $0xa0] sm:$0xff] %vm1275, %v1220
      %1297 = vst.msk [vmem:[#allocation2 + $0xa8] sm:$0xff] %vm1275, %v1222
      %1298 = vst.msk [vmem:[#allocation2 + $0xb0] sm:$0xff] %vm1275, %v1224
      %1299 = vst.msk [vmem:[#allocation2 + $0xb8] sm:$0xff] %vm1275, %v1226
      %1300 = vst.msk [vmem:[#allocation2 + $0xc0] sm:$0xff] %vm1275, %v1228
      %1301 = vst.msk [vmem:[#allocation2 + $0xc8] sm:$0xff] %vm1275, %v1230
      %1302 = vst.msk [vmem:[#allocation2 + $0xd0] sm:$0xff] %vm1275, %v1232
      %1303 = vst.msk [vmem:[#allocation2 + $0xd8] sm:$0xff] %vm1275, %v1234
      %1304 = vst.msk [vmem:[#allocation2 + $0xe0] sm:$0xff] %vm1275, %v1236
      %1305 = vst.msk [vmem:[#allocation2 + $0xe8] sm:$0xff] %vm1275, %v1238
      %1306 = vst.msk [vmem:[#allocation2 + $0xf0] sm:$0xff] %vm1275, %v1240
      %1307 = vst.msk [vmem:[#allocation2 + $0xf8] sm:$0xff] %vm1275, %v1242
      %1310 = vrot.lane.b32.xlu0 %v1113, 20
      %v1311 = vpop.permute.xlu0 %1310
      %1312 = vrot.lane.b32.xlu0 %v1114, 20
      %v1313 = vpop.permute.xlu0 %1312
      %1314 = vrot.lane.b32.xlu0 %v1115, 20
      %v1315 = vpop.permute.xlu0 %1314
      %1316 = vrot.lane.b32.xlu0 %v1116, 20
      %v1317 = vpop.permute.xlu0 %1316
      %1318 = vrot.lane.b32.xlu0 %v1117, 20
      %v1319 = vpop.permute.xlu0 %1318
      %1320 = vrot.lane.b32.xlu0 %v1118, 20
      %v1321 = vpop.permute.xlu0 %1320
      %1322 = vrot.lane.b32.xlu0 %v1119, 20
      %v1323 = vpop.permute.xlu0 %1322
      %1324 = vrot.lane.b32.xlu0 %v1120, 20
      %v1325 = vpop.permute.xlu0 %1324
      %1326 = vrot.lane.b32.xlu0 %v1121, 20
      %v1327 = vpop.permute.xlu0 %1326
      %1328 = vrot.lane.b32.xlu0 %v1122, 20
      %v1329 = vpop.permute.xlu0 %1328
      %1330 = vrot.lane.b32.xlu0 %v1123, 20
      %v1331 = vpop.permute.xlu0 %1330
      %1332 = vrot.lane.b32.xlu0 %v1124, 20
      %v1333 = vpop.permute.xlu0 %1332
      %1334 = vrot.lane.b32.xlu0 %v1125, 20
      %v1335 = vpop.permute.xlu0 %1334
      %1336 = vrot.lane.b32.xlu0 %v1126, 20
      %v1337 = vpop.permute.xlu0 %1336
      %1338 = vrot.lane.b32.xlu0 %v1127, 20
      %v1339 = vpop.permute.xlu0 %1338
      %1340 = vrot.lane.b32.xlu0 %v1128, 20
      %v1341 = vpop.permute.xlu0 %1340
      %1342 = vrot.lane.b32.xlu0 %v1129, 20
      %v1343 = vpop.permute.xlu0 %1342
      %1344 = vrot.lane.b32.xlu0 %v1130, 20
      %v1345 = vpop.permute.xlu0 %1344
      %1346 = vrot.lane.b32.xlu0 %v1131, 20
      %v1347 = vpop.permute.xlu0 %1346
      %1348 = vrot.lane.b32.xlu0 %v1132, 20
      %v1349 = vpop.permute.xlu0 %1348
      %1350 = vrot.lane.b32.xlu0 %v1133, 20
      %v1351 = vpop.permute.xlu0 %1350
      %1352 = vrot.lane.b32.xlu0 %v1134, 20
      %v1353 = vpop.permute.xlu0 %1352
      %1354 = vrot.lane.b32.xlu0 %v1135, 20
      %v1355 = vpop.permute.xlu0 %1354
      %1356 = vrot.lane.b32.xlu0 %v1136, 20
      %v1357 = vpop.permute.xlu0 %1356
      %1358 = vrot.lane.b32.xlu0 %v1137, 20
      %v1359 = vpop.permute.xlu0 %1358
      %1360 = vrot.lane.b32.xlu0 %v1138, 20
      %v1361 = vpop.permute.xlu0 %1360
      %1362 = vrot.lane.b32.xlu0 %v1139, 20
      %v1363 = vpop.permute.xlu0 %1362
      %1364 = vrot.lane.b32.xlu0 %v1140, 20
      %v1365 = vpop.permute.xlu0 %1364
      %1366 = vrot.lane.b32.xlu0 %v1141, 20
      %v1367 = vpop.permute.xlu0 %1366
      %1368 = vrot.lane.b32.xlu0 %v1142, 20
      %v1369 = vpop.permute.xlu0 %1368
      %1370 = vrot.lane.b32.xlu0 %v1143, 20
      %v1371 = vpop.permute.xlu0 %1370
      %1372 = vrot.lane.b32.xlu0 %v1144, 20
      %v1373 = vpop.permute.xlu0 %1372
      %vm1406 = vcmask 195744
      %1407 = vst.msk [vmem:[#allocation2] sm:$0xff] %vm1406, %v1311
      %1408 = vst.msk [vmem:[#allocation2 + $0x8] sm:$0xff] %vm1406, %v1313
      %1409 = vst.msk [vmem:[#allocation2 + $0x10] sm:$0xff] %vm1406, %v1315
      %1410 = vst.msk [vmem:[#allocation2 + $0x18] sm:$0xff] %vm1406, %v1317
      %1411 = vst.msk [vmem:[#allocation2 + $0x20] sm:$0xff] %vm1406, %v1319
      %1412 = vst.msk [vmem:[#allocation2 + $0x28] sm:$0xff] %vm1406, %v1321
      %1413 = vst.msk [vmem:[#allocation2 + $0x30] sm:$0xff] %vm1406, %v1323
      %1414 = vst.msk [vmem:[#allocation2 + $0x38] sm:$0xff] %vm1406, %v1325
      %1415 = vst.msk [vmem:[#allocation2 + $0x40] sm:$0xff] %vm1406, %v1327
      %1416 = vst.msk [vmem:[#allocation2 + $0x48] sm:$0xff] %vm1406, %v1329
      %1417 = vst.msk [vmem:[#allocation2 + $0x50] sm:$0xff] %vm1406, %v1331
      %1418 = vst.msk [vmem:[#allocation2 + $0x58] sm:$0xff] %vm1406, %v1333
      %1419 = vst.msk [vmem:[#allocation2 + $0x60] sm:$0xff] %vm1406, %v1335
      %1420 = vst.msk [vmem:[#allocation2 + $0x68] sm:$0xff] %vm1406, %v1337
      %1421 = vst.msk [vmem:[#allocation2 + $0x70] sm:$0xff] %vm1406, %v1339
      %1422 = vst.msk [vmem:[#allocation2 + $0x78] sm:$0xff] %vm1406, %v1341
      %1423 = vst.msk [vmem:[#allocation2 + $0x80] sm:$0xff] %vm1406, %v1343
      %1424 = vst.msk [vmem:[#allocation2 + $0x88] sm:$0xff] %vm1406, %v1345
      %1425 = vst.msk [vmem:[#allocation2 + $0x90] sm:$0xff] %vm1406, %v1347
      %1426 = vst.msk [vmem:[#allocation2 + $0x98] sm:$0xff] %vm1406, %v1349
      %1427 = vst.msk [vmem:[#allocation2 + $0xa0] sm:$0xff] %vm1406, %v1351
      %1428 = vst.msk [vmem:[#allocation2 + $0xa8] sm:$0xff] %vm1406, %v1353
      %1429 = vst.msk [vmem:[#allocation2 + $0xb0] sm:$0xff] %vm1406, %v1355
      %1430 = vst.msk [vmem:[#allocation2 + $0xb8] sm:$0xff] %vm1406, %v1357
      %1431 = vst.msk [vmem:[#allocation2 + $0xc0] sm:$0xff] %vm1406, %v1359
      %1432 = vst.msk [vmem:[#allocation2 + $0xc8] sm:$0xff] %vm1406, %v1361
      %1433 = vst.msk [vmem:[#allocation2 + $0xd0] sm:$0xff] %vm1406, %v1363
      %1434 = vst.msk [vmem:[#allocation2 + $0xd8] sm:$0xff] %vm1406, %v1365
      %1435 = vst.msk [vmem:[#allocation2 + $0xe0] sm:$0xff] %vm1406, %v1367
      %1436 = vst.msk [vmem:[#allocation2 + $0xe8] sm:$0xff] %vm1406, %v1369
      %1437 = vst.msk [vmem:[#allocation2 + $0xf0] sm:$0xff] %vm1406, %v1371
      %1438 = vst.msk [vmem:[#allocation2 + $0xf8] sm:$0xff] %vm1406, %v1373
      %1441 = vrot.lane.b32.xlu0 %v1115, 32
      %v1442 = vpop.permute.xlu0 %1441
      %1443 = vrot.lane.b32.xlu0 %v1116, 32
      %v1444 = vpop.permute.xlu0 %1443
      %1445 = vrot.lane.b32.xlu0 %v1117, 32
      %v1446 = vpop.permute.xlu0 %1445
      %1447 = vrot.lane.b32.xlu0 %v1118, 32
      %v1448 = vpop.permute.xlu0 %1447
      %1449 = vrot.lane.b32.xlu0 %v1119, 32
      %v1450 = vpop.permute.xlu0 %1449
      %1451 = vrot.lane.b32.xlu0 %v1120, 32
      %v1452 = vpop.permute.xlu0 %1451
      %1453 = vrot.lane.b32.xlu0 %v1121, 32
      %v1454 = vpop.permute.xlu0 %1453
      %1455 = vrot.lane.b32.xlu0 %v1122, 32
      %v1456 = vpop.permute.xlu0 %1455
      %1457 = vrot.lane.b32.xlu0 %v1123, 32
      %v1458 = vpop.permute.xlu0 %1457
      %1459 = vrot.lane.b32.xlu0 %v1124, 32
      %v1460 = vpop.permute.xlu0 %1459
      %1461 = vrot.lane.b32.xlu0 %v1125, 32
      %v1462 = vpop.permute.xlu0 %1461
      %1463 = vrot.lane.b32.xlu0 %v1126, 32
      %v1464 = vpop.permute.xlu0 %1463
      %1465 = vrot.lane.b32.xlu0 %v1127, 32
      %v1466 = vpop.permute.xlu0 %1465
      %1467 = vrot.lane.b32.xlu0 %v1128, 32
      %v1468 = vpop.permute.xlu0 %1467
      %1469 = vrot.lane.b32.xlu0 %v1129, 32
      %v1470 = vpop.permute.xlu0 %1469
      %1471 = vrot.lane.b32.xlu0 %v1130, 32
      %v1472 = vpop.permute.xlu0 %1471
      %1473 = vrot.lane.b32.xlu0 %v1131, 32
      %v1474 = vpop.permute.xlu0 %1473
      %1475 = vrot.lane.b32.xlu0 %v1132, 32
      %v1476 = vpop.permute.xlu0 %1475
      %1477 = vrot.lane.b32.xlu0 %v1133, 32
      %v1478 = vpop.permute.xlu0 %1477
      %1479 = vrot.lane.b32.xlu0 %v1134, 32
      %v1480 = vpop.permute.xlu0 %1479
      %1481 = vrot.lane.b32.xlu0 %v1135, 32
      %v1482 = vpop.permute.xlu0 %1481
      %1483 = vrot.lane.b32.xlu0 %v1136, 32
      %v1484 = vpop.permute.xlu0 %1483
      %1485 = vrot.lane.b32.xlu0 %v1137, 32
      %v1486 = vpop.permute.xlu0 %1485
      %1487 = vrot.lane.b32.xlu0 %v1138, 32
      %v1488 = vpop.permute.xlu0 %1487
      %1489 = vrot.lane.b32.xlu0 %v1139, 32
      %v1490 = vpop.permute.xlu0 %1489
      %1491 = vrot.lane.b32.xlu0 %v1140, 32
      %v1492 = vpop.permute.xlu0 %1491
      %1493 = vrot.lane.b32.xlu0 %v1141, 32
      %v1494 = vpop.permute.xlu0 %1493
      %1495 = vrot.lane.b32.xlu0 %v1142, 32
      %v1496 = vpop.permute.xlu0 %1495
      %1497 = vrot.lane.b32.xlu0 %v1143, 32
      %v1498 = vpop.permute.xlu0 %1497
      %1499 = vrot.lane.b32.xlu0 %v1144, 32
      %v1500 = vpop.permute.xlu0 %1499
      %1501 = vrot.lane.b32.xlu0 %v1145, 32
      %v1502 = vpop.permute.xlu0 %1501
      %1503 = vrot.lane.b32.xlu0 %v1146, 32
      %v1504 = vpop.permute.xlu0 %1503
      %vm1537 = vcmask 294144
      %1538 = vst.msk [vmem:[#allocation2] sm:$0xff] %vm1537, %v1442
      %1539 = vst.msk [vmem:[#allocation2 + $0x8] sm:$0xff] %vm1537, %v1444
      %1540 = vst.msk [vmem:[#allocation2 + $0x10] sm:$0xff] %vm1537, %v1446
      %1541 = vst.msk [vmem:[#allocation2 + $0x18] sm:$0xff] %vm1537, %v1448
      %1542 = vst.msk [vmem:[#allocation2 + $0x20] sm:$0xff] %vm1537, %v1450
      %1543 = vst.msk [vmem:[#allocation2 + $0x28] sm:$0xff] %vm1537, %v1452
      %1544 = vst.msk [vmem:[#allocation2 + $0x30] sm:$0xff] %vm1537, %v1454
      %1545 = vst.msk [vmem:[#allocation2 + $0x38] sm:$0xff] %vm1537, %v1456
      %1546 = vst.msk [vmem:[#allocation2 + $0x40] sm:$0xff] %vm1537, %v1458
      %1547 = vst.msk [vmem:[#allocation2 + $0x48] sm:$0xff] %vm1537, %v1460
      %1548 = vst.msk [vmem:[#allocation2 + $0x50] sm:$0xff] %vm1537, %v1462
      %1549 = vst.msk [vmem:[#allocation2 + $0x58] sm:$0xff] %vm1537, %v1464
      %1550 = vst.msk [vmem:[#allocation2 + $0x60] sm:$0xff] %vm1537, %v1466
      %1551 = vst.msk [vmem:[#allocation2 + $0x68] sm:$0xff] %vm1537, %v1468
      %1552 = vst.msk [vmem:[#allocation2 + $0x70] sm:$0xff] %vm1537, %v1470
      %1553 = vst.msk [vmem:[#allocation2 + $0x78] sm:$0xff] %vm1537, %v1472
      %1554 = vst.msk [vmem:[#allocation2 + $0x80] sm:$0xff] %vm1537, %v1474
      %1555 = vst.msk [vmem:[#allocation2 + $0x88] sm:$0xff] %vm1537, %v1476
      %1556 = vst.msk [vmem:[#allocation2 + $0x90] sm:$0xff] %vm1537, %v1478
      %1557 = vst.msk [vmem:[#allocation2 + $0x98] sm:$0xff] %vm1537, %v1480
      %1558 = vst.msk [vmem:[#allocation2 + $0xa0] sm:$0xff] %vm1537, %v1482
      %1559 = vst.msk [vmem:[#allocation2 + $0xa8] sm:$0xff] %vm1537, %v1484
      %1560 = vst.msk [vmem:[#allocation2 + $0xb0] sm:$0xff] %vm1537, %v1486
      %1561 = vst.msk [vmem:[#allocation2 + $0xb8] sm:$0xff] %vm1537, %v1488
      %1562 = vst.msk [vmem:[#allocation2 + $0xc0] sm:$0xff] %vm1537, %v1490
      %1563 = vst.msk [vmem:[#allocation2 + $0xc8] sm:$0xff] %vm1537, %v1492
      %1564 = vst.msk [vmem:[#allocation2 + $0xd0] sm:$0xff] %vm1537, %v1494
      %1565 = vst.msk [vmem:[#allocation2 + $0xd8] sm:$0xff] %vm1537, %v1496
      %1566 = vst.msk [vmem:[#allocation2 + $0xe0] sm:$0xff] %vm1537, %v1498
      %1567 = vst.msk [vmem:[#allocation2 + $0xe8] sm:$0xff] %vm1537, %v1500
      %1568 = vst.msk [vmem:[#allocation2 + $0xf0] sm:$0xff] %vm1537, %v1502
      %1569 = vst.msk [vmem:[#allocation2 + $0xf8] sm:$0xff] %vm1537, %v1504
      %v1570 = vld [vmem:[#allocation2] sm:$0xff]
      %v1571 = vld [vmem:[#allocation2 + $0x8] sm:$0xff]
      %v1572 = vld [vmem:[#allocation2 + $0x10] sm:$0xff]
      %v1573 = vld [vmem:[#allocation2 + $0x18] sm:$0xff]
      %v1574 = vld [vmem:[#allocation2 + $0x20] sm:$0xff]
      %v1575 = vld [vmem:[#allocation2 + $0x28] sm:$0xff]
      %v1576 = vld [vmem:[#allocation2 + $0x30] sm:$0xff]
      %v1577 = vld [vmem:[#allocation2 + $0x38] sm:$0xff]
      %v1578 = vld [vmem:[#allocation2 + $0x40] sm:$0xff]
      %v1579 = vld [vmem:[#allocation2 + $0x48] sm:$0xff]
      %v1580 = vld [vmem:[#allocation2 + $0x50] sm:$0xff]
      %v1581 = vld [vmem:[#allocation2 + $0x58] sm:$0xff]
      %v1582 = vld [vmem:[#allocation2 + $0x60] sm:$0xff]
      %v1583 = vld [vmem:[#allocation2 + $0x68] sm:$0xff]
      %v1584 = vld [vmem:[#allocation2 + $0x70] sm:$0xff]
      %v1585 = vld [vmem:[#allocation2 + $0x78] sm:$0xff]
      %v1586 = vld [vmem:[#allocation2 + $0x80] sm:$0xff]
      %v1587 = vld [vmem:[#allocation2 + $0x88] sm:$0xff]
      %v1588 = vld [vmem:[#allocation2 + $0x90] sm:$0xff]
      %v1589 = vld [vmem:[#allocation2 + $0x98] sm:$0xff]
      %v1590 = vld [vmem:[#allocation2 + $0xa0] sm:$0xff]
      %v1591 = vld [vmem:[#allocation2 + $0xa8] sm:$0xff]
      %v1592 = vld [vmem:[#allocation2 + $0xb0] sm:$0xff]
      %v1593 = vld [vmem:[#allocation2 + $0xb8] sm:$0xff]
      %v1594 = vld [vmem:[#allocation2 + $0xc0] sm:$0xff]
      %v1595 = vld [vmem:[#allocation2 + $0xc8] sm:$0xff]
      %v1596 = vld [vmem:[#allocation2 + $0xd0] sm:$0xff]
      %v1597 = vld [vmem:[#allocation2 + $0xd8] sm:$0xff]
      %v1598 = vld [vmem:[#allocation2 + $0xe0] sm:$0xff]
      %v1599 = vld [vmem:[#allocation2 + $0xe8] sm:$0xff]
      %v1600 = vld [vmem:[#allocation2 + $0xf0] sm:$0xff]
      %v1601 = vld [vmem:[#allocation2 + $0xf8] sm:$0xff]
      %v1602 = vld [vmem:[%s1] sm:$0xff]
      %v1603 = vld [vmem:[%s1 + $0x8] sm:$0xff]
      %v1604 = vld [vmem:[%s1 + $0x10] sm:$0xff]
      %v1605 = vld [vmem:[%s1 + $0x18] sm:$0xff]
      %v1606 = vld [vmem:[%s1 + $0x20] sm:$0xf]
      %v1607 = vld [vmem:[%s2] sm:$0x1]
      %v1609 = vperm.slane %v1607, 0
      %vm1611 = vcmask 293888
      %v1613 = vsel %vm1611, %v1570, 0
      %v1616 = vsel %vm1611, %v1571, 0
      %v1619 = vsel %vm1611, %v1572, 0
      %v1622 = vsel %vm1611, %v1573, 0
      %v1625 = vsel %vm1611, %v1574, 0
      %v1628 = vsel %vm1611, %v1575, 0
      %v1631 = vsel %vm1611, %v1576, 0
      %v1634 = vsel %vm1611, %v1577, 0
      %v1637 = vsel %vm1611, %v1578, 0
      %v1640 = vsel %vm1611, %v1579, 0
      %v1643 = vsel %vm1611, %v1580, 0
      %v1646 = vsel %vm1611, %v1581, 0
      %v1649 = vsel %vm1611, %v1582, 0
      %v1652 = vsel %vm1611, %v1583, 0
      %v1655 = vsel %vm1611, %v1584, 0
      %v1658 = vsel %vm1611, %v1585, 0
      %v1661 = vsel %vm1611, %v1586, 0
      %v1664 = vsel %vm1611, %v1587, 0
      %v1667 = vsel %vm1611, %v1588, 0
      %v1670 = vsel %vm1611, %v1589, 0
      %v1673 = vsel %vm1611, %v1590, 0
      %v1676 = vsel %vm1611, %v1591, 0
      %v1679 = vsel %vm1611, %v1592, 0
      %v1682 = vsel %vm1611, %v1593, 0
      %v1685 = vsel %vm1611, %v1594, 0
      %v1688 = vsel %vm1611, %v1595, 0
      %v1691 = vsel %vm1611, %v1596, 0
      %v1694 = vsel %vm1611, %v1597, 0
      %v1697 = vsel %vm1611, %v1598, 0
      %v1700 = vsel %vm1611, %v1599, 0
      %v1703 = vsel %vm1611, %v1600, 0
      %v1706 = vsel %vm1611, %v1601, 0
      %vm1708 = vcmask 1043456
      %v1710 = vsel %vm1708, %v1606, 0
      %1712 = vmatpush.msra.mxu0 0.0
      %1713 = vmatpush.msra.mxu0 0.0
      %1714 = vmatpush.msra.mxu0 0.0
      %1715 = vmatpush.msra.mxu0 0.0
      %1716 = vmatpush.msra.mxu0 0.0
      %1717 = vmatpush.msra.mxu0 0.0
      %1718 = vmatpush.msra.mxu0 0.0
      %1719 = vmatpush.msra.mxu0 0.0
      %1720 = vmatpush.msra.mxu0 0.0
      %1721 = vmatpush.msra.mxu0 0.0
      %1722 = vmatpush.msra.mxu0 0.0
      %v1723 = vand.u32 %v1710, 4294901760
      %1724 = vmatpush.msra.mxu0 %v1723
      %v1725 = vand.u32 %v1605, 4294901760
      %1726 = vmatpush.msra.mxu0 %v1725
      %v1727 = vand.u32 %v1604, 4294901760
      %1728 = vmatpush.msra.mxu0 %v1727
      %v1729 = vand.u32 %v1603, 4294901760
      %1730 = vmatpush.msra.mxu0 %v1729
      %v1731 = vand.u32 %v1602, 4294901760
      %1732 = vmatpush.msra.mxu0 %v1731
      %v1733 = vand.u32 %v1613, 4294901760
      %v1734 = vsub.f32 %v1613, %v1733
      %v1735 = vand.u32 %v1734, 4294901760
      %v1736 = vsub.f32 %v1734, %v1735
      %v1737 = vand.u32 %v1736, 4294901760
      %1738 = vmatmul.f32.gmra.mxu0 %v1737
      %v1739 = vpop.f32.mrf.mxu0
      %v1740 = vadd.f32 %v1609, %v1739
      %v1741 = vand.u32 %v1616, 4294901760
      %v1742 = vsub.f32 %v1616, %v1741
      %v1743 = vand.u32 %v1742, 4294901760
      %v1744 = vsub.f32 %v1742, %v1743
      %v1745 = vand.u32 %v1744, 4294901760
      %1746 = vmatmul.f32.gmra.mxu0 %v1745
      %v1747 = vpop.f32.mrf.mxu0
      %v1748 = vadd.f32 %v1609, %v1747
      %v1749 = vand.u32 %v1619, 4294901760
      %v1750 = vsub.f32 %v1619, %v1749
      %v1751 = vand.u32 %v1750, 4294901760
      %v1752 = vsub.f32 %v1750, %v1751
      %v1753 = vand.u32 %v1752, 4294901760
      %1754 = vmatmul.f32.gmra.mxu0 %v1753
      %v1755 = vpop.f32.mrf.mxu0
      %v1756 = vadd.f32 %v1609, %v1755
      %v1757 = vand.u32 %v1622, 4294901760
      %v1758 = vsub.f32 %v1622, %v1757
      %v1759 = vand.u32 %v1758, 4294901760
      %v1760 = vsub.f32 %v1758, %v1759
      %v1761 = vand.u32 %v1760, 4294901760
      %1762 = vmatmul.f32.gmra.mxu0 %v1761
      %v1763 = vpop.f32.mrf.mxu0
      %v1764 = vadd.f32 %v1609, %v1763
      %v1765 = vand.u32 %v1625, 4294901760
      %v1766 = vsub.f32 %v1625, %v1765
      %v1767 = vand.u32 %v1766, 4294901760
      %v1768 = vsub.f32 %v1766, %v1767
      %v1769 = vand.u32 %v1768, 4294901760
      %1770 = vmatmul.f32.gmra.mxu0 %v1769
      %v1771 = vpop.f32.mrf.mxu0
      %v1772 = vadd.f32 %v1609, %v1771
      %v1773 = vand.u32 %v1628, 4294901760
      %v1774 = vsub.f32 %v1628, %v1773
      %v1775 = vand.u32 %v1774, 4294901760
      %v1776 = vsub.f32 %v1774, %v1775
      %v1777 = vand.u32 %v1776, 4294901760
      %1778 = vmatmul.f32.gmra.mxu0 %v1777
      %v1779 = vpop.f32.mrf.mxu0
      %v1780 = vadd.f32 %v1609, %v1779
      %v1781 = vand.u32 %v1631, 4294901760
      %v1782 = vsub.f32 %v1631, %v1781
      %v1783 = vand.u32 %v1782, 4294901760
      %v1784 = vsub.f32 %v1782, %v1783
      %v1785 = vand.u32 %v1784, 4294901760
      %1786 = vmatmul.f32.gmra.mxu0 %v1785
      %v1787 = vpop.f32.mrf.mxu0
      %v1788 = vadd.f32 %v1609, %v1787
      %v1789 = vand.u32 %v1634, 4294901760
      %v1790 = vsub.f32 %v1634, %v1789
      %v1791 = vand.u32 %v1790, 4294901760
      %v1792 = vsub.f32 %v1790, %v1791
      %v1793 = vand.u32 %v1792, 4294901760
      %1794 = vmatmul.f32.gmra.mxu0 %v1793
      %v1795 = vpop.f32.mrf.mxu0
      %v1796 = vadd.f32 %v1609, %v1795
      %v1797 = vand.u32 %v1637, 4294901760
      %v1798 = vsub.f32 %v1637, %v1797
      %v1799 = vand.u32 %v1798, 4294901760
      %v1800 = vsub.f32 %v1798, %v1799
      %v1801 = vand.u32 %v1800, 4294901760
      %1802 = vmatmul.f32.gmra.mxu0 %v1801
      %v1803 = vpop.f32.mrf.mxu0
      %v1804 = vadd.f32 %v1609, %v1803
      %v1805 = vand.u32 %v1640, 4294901760
      %v1806 = vsub.f32 %v1640, %v1805
      %v1807 = vand.u32 %v1806, 4294901760
      %v1808 = vsub.f32 %v1806, %v1807
      %v1809 = vand.u32 %v1808, 4294901760
      %1810 = vmatmul.f32.gmra.mxu0 %v1809
      %v1811 = vpop.f32.mrf.mxu0
      %v1812 = vadd.f32 %v1609, %v1811
      %v1813 = vand.u32 %v1643, 4294901760
      %v1814 = vsub.f32 %v1643, %v1813
      %v1815 = vand.u32 %v1814, 4294901760
      %v1816 = vsub.f32 %v1814, %v1815
      %v1817 = vand.u32 %v1816, 4294901760
      %1818 = vmatmul.f32.gmra.mxu0 %v1817
      %v1819 = vpop.f32.mrf.mxu0
      %v1820 = vadd.f32 %v1609, %v1819
      %v1821 = vand.u32 %v1646, 4294901760
      %v1822 = vsub.f32 %v1646, %v1821
      %v1823 = vand.u32 %v1822, 4294901760
      %v1824 = vsub.f32 %v1822, %v1823
      %v1825 = vand.u32 %v1824, 4294901760
      %1826 = vmatmul.f32.gmra.mxu0 %v1825
      %v1827 = vpop.f32.mrf.mxu0
      %v1828 = vadd.f32 %v1609, %v1827
      %v1829 = vand.u32 %v1649, 4294901760
      %v1830 = vsub.f32 %v1649, %v1829
      %v1831 = vand.u32 %v1830, 4294901760
      %v1832 = vsub.f32 %v1830, %v1831
      %v1833 = vand.u32 %v1832, 4294901760
      %1834 = vmatmul.f32.gmra.mxu0 %v1833
      %v1835 = vpop.f32.mrf.mxu0
      %v1836 = vadd.f32 %v1609, %v1835
      %v1837 = vand.u32 %v1652, 4294901760
      %v1838 = vsub.f32 %v1652, %v1837
      %v1839 = vand.u32 %v1838, 4294901760
      %v1840 = vsub.f32 %v1838, %v1839
      %v1841 = vand.u32 %v1840, 4294901760
      %1842 = vmatmul.f32.gmra.mxu0 %v1841
      %v1843 = vpop.f32.mrf.mxu0
      %v1844 = vadd.f32 %v1609, %v1843
      %v1845 = vand.u32 %v1655, 4294901760
      %v1846 = vsub.f32 %v1655, %v1845
      %v1847 = vand.u32 %v1846, 4294901760
      %v1848 = vsub.f32 %v1846, %v1847
      %v1849 = vand.u32 %v1848, 4294901760
      %1850 = vmatmul.f32.gmra.mxu0 %v1849
      %v1851 = vpop.f32.mrf.mxu0
      %v1852 = vadd.f32 %v1609, %v1851
      %v1853 = vand.u32 %v1658, 4294901760
      %v1854 = vsub.f32 %v1658, %v1853
      %v1855 = vand.u32 %v1854, 4294901760
      %v1856 = vsub.f32 %v1854, %v1855
      %v1857 = vand.u32 %v1856, 4294901760
      %1858 = vmatmul.f32.gmra.mxu0 %v1857
      %v1859 = vpop.f32.mrf.mxu0
      %v1860 = vadd.f32 %v1609, %v1859
      %v1861 = vand.u32 %v1661, 4294901760
      %v1862 = vsub.f32 %v1661, %v1861
      %v1863 = vand.u32 %v1862, 4294901760
      %v1864 = vsub.f32 %v1862, %v1863
      %v1865 = vand.u32 %v1864, 4294901760
      %1866 = vmatmul.f32.gmra.mxu0 %v1865
      %v1867 = vpop.f32.mrf.mxu0
      %v1868 = vadd.f32 %v1609, %v1867
      %v1869 = vand.u32 %v1664, 4294901760
      %v1870 = vsub.f32 %v1664, %v1869
      %v1871 = vand.u32 %v1870, 4294901760
      %v1872 = vsub.f32 %v1870, %v1871
      %v1873 = vand.u32 %v1872, 4294901760
      %1874 = vmatmul.f32.gmra.mxu0 %v1873
      %v1875 = vpop.f32.mrf.mxu0
      %v1876 = vadd.f32 %v1609, %v1875
      %v1877 = vand.u32 %v1667, 4294901760
      %v1878 = vsub.f32 %v1667, %v1877
      %v1879 = vand.u32 %v1878, 4294901760
      %v1880 = vsub.f32 %v1878, %v1879
      %v1881 = vand.u32 %v1880, 4294901760
      %1882 = vmatmul.f32.gmra.mxu0 %v1881
      %v1883 = vpop.f32.mrf.mxu0
      %v1884 = vadd.f32 %v1609, %v1883
      %v1885 = vand.u32 %v1670, 4294901760
      %v1886 = vsub.f32 %v1670, %v1885
      %v1887 = vand.u32 %v1886, 4294901760
      %v1888 = vsub.f32 %v1886, %v1887
      %v1889 = vand.u32 %v1888, 4294901760
      %1890 = vmatmul.f32.gmra.mxu0 %v1889
      %v1891 = vpop.f32.mrf.mxu0
      %v1892 = vadd.f32 %v1609, %v1891
      %v1893 = vand.u32 %v1673, 4294901760
      %v1894 = vsub.f32 %v1673, %v1893
      %v1895 = vand.u32 %v1894, 4294901760
      %v1896 = vsub.f32 %v1894, %v1895
      %v1897 = vand.u32 %v1896, 4294901760
      %1898 = vmatmul.f32.gmra.mxu0 %v1897
      %v1899 = vpop.f32.mrf.mxu0
      %v1900 = vadd.f32 %v1609, %v1899
      %v1901 = vand.u32 %v1676, 4294901760
      %v1902 = vsub.f32 %v1676, %v1901
      %v1903 = vand.u32 %v1902, 4294901760
      %v1904 = vsub.f32 %v1902, %v1903
      %v1905 = vand.u32 %v1904, 4294901760
      %1906 = vmatmul.f32.gmra.mxu0 %v1905
      %v1907 = vpop.f32.mrf.mxu0
      %v1908 = vadd.f32 %v1609, %v1907
      %v1909 = vand.u32 %v1679, 4294901760
      %v1910 = vsub.f32 %v1679, %v1909
      %v1911 = vand.u32 %v1910, 4294901760
      %v1912 = vsub.f32 %v1910, %v1911
      %v1913 = vand.u32 %v1912, 4294901760
      %1914 = vmatmul.f32.gmra.mxu0 %v1913
      %v1915 = vpop.f32.mrf.mxu0
      %v1916 = vadd.f32 %v1609, %v1915
      %v1917 = vand.u32 %v1682, 4294901760
      %v1918 = vsub.f32 %v1682, %v1917
      %v1919 = vand.u32 %v1918, 4294901760
      %v1920 = vsub.f32 %v1918, %v1919
      %v1921 = vand.u32 %v1920, 4294901760
      %1922 = vmatmul.f32.gmra.mxu0 %v1921
      %v1923 = vpop.f32.mrf.mxu0
      %v1924 = vadd.f32 %v1609, %v1923
      %v1925 = vand.u32 %v1685, 4294901760
      %v1926 = vsub.f32 %v1685, %v1925
      %v1927 = vand.u32 %v1926, 4294901760
      %v1928 = vsub.f32 %v1926, %v1927
      %v1929 = vand.u32 %v1928, 4294901760
      %1930 = vmatmul.f32.gmra.mxu0 %v1929
      %v1931 = vpop.f32.mrf.mxu0
      %v1932 = vadd.f32 %v1609, %v1931
      %v1933 = vand.u32 %v1688, 4294901760
      %v1934 = vsub.f32 %v1688, %v1933
      %v1935 = vand.u32 %v1934, 4294901760
      %v1936 = vsub.f32 %v1934, %v1935
      %v1937 = vand.u32 %v1936, 4294901760
      %1938 = vmatmul.f32.gmra.mxu0 %v1937
      %v1939 = vpop.f32.mrf.mxu0
      %v1940 = vadd.f32 %v1609, %v1939
      %v1941 = vand.u32 %v1691, 4294901760
      %v1942 = vsub.f32 %v1691, %v1941
      %v1943 = vand.u32 %v1942, 4294901760
      %v1944 = vsub.f32 %v1942, %v1943
      %v1945 = vand.u32 %v1944, 4294901760
      %1946 = vmatmul.f32.gmra.mxu0 %v1945
      %v1947 = vpop.f32.mrf.mxu0
      %v1948 = vadd.f32 %v1609, %v1947
      %v1949 = vand.u32 %v1694, 4294901760
      %v1950 = vsub.f32 %v1694, %v1949
      %v1951 = vand.u32 %v1950, 4294901760
      %v1952 = vsub.f32 %v1950, %v1951
      %v1953 = vand.u32 %v1952, 4294901760
      %1954 = vmatmul.f32.gmra.mxu0 %v1953
      %v1955 = vpop.f32.mrf.mxu0
      %v1956 = vadd.f32 %v1609, %v1955
      %v1957 = vand.u32 %v1697, 4294901760
      %v1958 = vsub.f32 %v1697, %v1957
      %v1959 = vand.u32 %v1958, 4294901760
      %v1960 = vsub.f32 %v1958, %v1959
      %v1961 = vand.u32 %v1960, 4294901760
      %1962 = vmatmul.f32.gmra.mxu0 %v1961
      %v1963 = vpop.f32.mrf.mxu0
      %v1964 = vadd.f32 %v1609, %v1963
      %v1965 = vand.u32 %v1700, 4294901760
      %v1966 = vsub.f32 %v1700, %v1965
      %v1967 = vand.u32 %v1966, 4294901760
      %v1968 = vsub.f32 %v1966, %v1967
      %v1969 = vand.u32 %v1968, 4294901760
      %1970 = vmatmul.f32.gmra.mxu0 %v1969
      %v1971 = vpop.f32.mrf.mxu0
      %v1972 = vadd.f32 %v1609, %v1971
      %v1973 = vand.u32 %v1703, 4294901760
      %v1974 = vsub.f32 %v1703, %v1973
      %v1975 = vand.u32 %v1974, 4294901760
      %v1976 = vsub.f32 %v1974, %v1975
      %v1977 = vand.u32 %v1976, 4294901760
      %1978 = vmatmul.f32.gmra.mxu0 %v1977
      %v1979 = vpop.f32.mrf.mxu0
      %v1980 = vadd.f32 %v1609, %v1979
      %v1981 = vand.u32 %v1706, 4294901760
      %v1982 = vsub.f32 %v1706, %v1981
      %v1983 = vand.u32 %v1982, 4294901760
      %v1984 = vsub.f32 %v1982, %v1983
      %v1985 = vand.u32 %v1984, 4294901760
      %1986 = vmatmul.f32.gmra.mxu0 %v1985
      %v1987 = vpop.f32.mrf.mxu0
      %v1988 = vadd.f32 %v1609, %v1987
      %1989 = vdwg.mxu0
      %1990 = vmatpush.msra.mxu0 0.0
      %1991 = vmatpush.msra.mxu0 0.0
      %1992 = vmatpush.msra.mxu0 0.0
      %1993 = vmatpush.msra.mxu0 0.0
      %1994 = vmatpush.msra.mxu0 0.0
      %1995 = vmatpush.msra.mxu0 0.0
      %1996 = vmatpush.msra.mxu0 0.0
      %1997 = vmatpush.msra.mxu0 0.0
      %1998 = vmatpush.msra.mxu0 0.0
      %1999 = vmatpush.msra.mxu0 0.0
      %2000 = vmatpush.msra.mxu0 0.0
      %v2001 = vand.u32 %v1710, 4294901760
      %v2002 = vsub.f32 %v1710, %v2001
      %v2003 = vand.u32 %v2002, 4294901760
      %v2004 = vsub.f32 %v2002, %v2003
      %v2005 = vand.u32 %v2004, 4294901760
      %2006 = vmatpush.msra.mxu0 %v2005
      %v2007 = vand.u32 %v1605, 4294901760
      %v2008 = vsub.f32 %v1605, %v2007
      %v2009 = vand.u32 %v2008, 4294901760
      %v2010 = vsub.f32 %v2008, %v2009
      %v2011 = vand.u32 %v2010, 4294901760
      %2012 = vmatpush.msra.mxu0 %v2011
      %v2013 = vand.u32 %v1604, 4294901760
      %v2014 = vsub.f32 %v1604, %v2013
      %v2015 = vand.u32 %v2014, 4294901760
      %v2016 = vsub.f32 %v2014, %v2015
      %v2017 = vand.u32 %v2016, 4294901760
      %2018 = vmatpush.msra.mxu0 %v2017
      %v2019 = vand.u32 %v1603, 4294901760
      %v2020 = vsub.f32 %v1603, %v2019
      %v2021 = vand.u32 %v2020, 4294901760
      %v2022 = vsub.f32 %v2020, %v2021
      %v2023 = vand.u32 %v2022, 4294901760
      %2024 = vmatpush.msra.mxu0 %v2023
      %v2025 = vand.u32 %v1602, 4294901760
      %v2026 = vsub.f32 %v1602, %v2025
      %v2027 = vand.u32 %v2026, 4294901760
      %v2028 = vsub.f32 %v2026, %v2027
      %v2029 = vand.u32 %v2028, 4294901760
      %2030 = vmatpush.msra.mxu0 %v2029
      %v2031 = vand.u32 %v1613, 4294901760
      %2032 = vmatmul.f32.gmra.mxu0 %v2031
      %v2033 = vpop.f32.mrf.mxu0
      %v2034 = vadd.f32 %v1740, %v2033
      %v2035 = vand.u32 %v1616, 4294901760
      %2036 = vmatmul.f32.gmra.mxu0 %v2035
      %v2037 = vpop.f32.mrf.mxu0
      %v2038 = vadd.f32 %v1748, %v2037
      %v2039 = vand.u32 %v1619, 4294901760
      %2040 = vmatmul.f32.gmra.mxu0 %v2039
      %v2041 = vpop.f32.mrf.mxu0
      %v2042 = vadd.f32 %v1756, %v2041
      %v2043 = vand.u32 %v1622, 4294901760
      %2044 = vmatmul.f32.gmra.mxu0 %v2043
      %v2045 = vpop.f32.mrf.mxu0
      %v2046 = vadd.f32 %v1764, %v2045
      %v2047 = vand.u32 %v1625, 4294901760
      %2048 = vmatmul.f32.gmra.mxu0 %v2047
      %v2049 = vpop.f32.mrf.mxu0
      %v2050 = vadd.f32 %v1772, %v2049
      %v2051 = vand.u32 %v1628, 4294901760
      %2052 = vmatmul.f32.gmra.mxu0 %v2051
      %v2053 = vpop.f32.mrf.mxu0
      %v2054 = vadd.f32 %v1780, %v2053
      %v2055 = vand.u32 %v1631, 4294901760
      %2056 = vmatmul.f32.gmra.mxu0 %v2055
      %v2057 = vpop.f32.mrf.mxu0
      %v2058 = vadd.f32 %v1788, %v2057
      %v2059 = vand.u32 %v1634, 4294901760
      %2060 = vmatmul.f32.gmra.mxu0 %v2059
      %v2061 = vpop.f32.mrf.mxu0
      %v2062 = vadd.f32 %v1796, %v2061
      %v2063 = vand.u32 %v1637, 4294901760
      %2064 = vmatmul.f32.gmra.mxu0 %v2063
      %v2065 = vpop.f32.mrf.mxu0
      %v2066 = vadd.f32 %v1804, %v2065
      %v2067 = vand.u32 %v1640, 4294901760
      %2068 = vmatmul.f32.gmra.mxu0 %v2067
      %v2069 = vpop.f32.mrf.mxu0
      %v2070 = vadd.f32 %v1812, %v2069
      %v2071 = vand.u32 %v1643, 4294901760
      %2072 = vmatmul.f32.gmra.mxu0 %v2071
      %v2073 = vpop.f32.mrf.mxu0
      %v2074 = vadd.f32 %v1820, %v2073
      %v2075 = vand.u32 %v1646, 4294901760
      %2076 = vmatmul.f32.gmra.mxu0 %v2075
      %v2077 = vpop.f32.mrf.mxu0
      %v2078 = vadd.f32 %v1828, %v2077
      %v2079 = vand.u32 %v1649, 4294901760
      %2080 = vmatmul.f32.gmra.mxu0 %v2079
      %v2081 = vpop.f32.mrf.mxu0
      %v2082 = vadd.f32 %v1836, %v2081
      %v2083 = vand.u32 %v1652, 4294901760
      %2084 = vmatmul.f32.gmra.mxu0 %v2083
      %v2085 = vpop.f32.mrf.mxu0
      %v2086 = vadd.f32 %v1844, %v2085
      %v2087 = vand.u32 %v1655, 4294901760
      %2088 = vmatmul.f32.gmra.mxu0 %v2087
      %v2089 = vpop.f32.mrf.mxu0
      %v2090 = vadd.f32 %v1852, %v2089
      %v2091 = vand.u32 %v1658, 4294901760
      %2092 = vmatmul.f32.gmra.mxu0 %v2091
      %v2093 = vpop.f32.mrf.mxu0
      %v2094 = vadd.f32 %v1860, %v2093
      %v2095 = vand.u32 %v1661, 4294901760
      %2096 = vmatmul.f32.gmra.mxu0 %v2095
      %v2097 = vpop.f32.mrf.mxu0
      %v2098 = vadd.f32 %v1868, %v2097
      %v2099 = vand.u32 %v1664, 4294901760
      %2100 = vmatmul.f32.gmra.mxu0 %v2099
      %v2101 = vpop.f32.mrf.mxu0
      %v2102 = vadd.f32 %v1876, %v2101
      %v2103 = vand.u32 %v1667, 4294901760
      %2104 = vmatmul.f32.gmra.mxu0 %v2103
      %v2105 = vpop.f32.mrf.mxu0
      %v2106 = vadd.f32 %v1884, %v2105
      %v2107 = vand.u32 %v1670, 4294901760
      %2108 = vmatmul.f32.gmra.mxu0 %v2107
      %v2109 = vpop.f32.mrf.mxu0
      %v2110 = vadd.f32 %v1892, %v2109
      %v2111 = vand.u32 %v1673, 4294901760
      %2112 = vmatmul.f32.gmra.mxu0 %v2111
      %v2113 = vpop.f32.mrf.mxu0
      %v2114 = vadd.f32 %v1900, %v2113
      %v2115 = vand.u32 %v1676, 4294901760
      %2116 = vmatmul.f32.gmra.mxu0 %v2115
      %v2117 = vpop.f32.mrf.mxu0
      %v2118 = vadd.f32 %v1908, %v2117
      %v2119 = vand.u32 %v1679, 4294901760
      %2120 = vmatmul.f32.gmra.mxu0 %v2119
      %v2121 = vpop.f32.mrf.mxu0
      %v2122 = vadd.f32 %v1916, %v2121
      %v2123 = vand.u32 %v1682, 4294901760
      %2124 = vmatmul.f32.gmra.mxu0 %v2123
      %v2125 = vpop.f32.mrf.mxu0
      %v2126 = vadd.f32 %v1924, %v2125
      %v2127 = vand.u32 %v1685, 4294901760
      %2128 = vmatmul.f32.gmra.mxu0 %v2127
      %v2129 = vpop.f32.mrf.mxu0
      %v2130 = vadd.f32 %v1932, %v2129
      %v2131 = vand.u32 %v1688, 4294901760
      %2132 = vmatmul.f32.gmra.mxu0 %v2131
      %v2133 = vpop.f32.mrf.mxu0
      %v2134 = vadd.f32 %v1940, %v2133
      %v2135 = vand.u32 %v1691, 4294901760
      %2136 = vmatmul.f32.gmra.mxu0 %v2135
      %v2137 = vpop.f32.mrf.mxu0
      %v2138 = vadd.f32 %v1948, %v2137
      %v2139 = vand.u32 %v1694, 4294901760
      %2140 = vmatmul.f32.gmra.mxu0 %v2139
      %v2141 = vpop.f32.mrf.mxu0
      %v2142 = vadd.f32 %v1956, %v2141
      %v2143 = vand.u32 %v1697, 4294901760
      %2144 = vmatmul.f32.gmra.mxu0 %v2143
      %v2145 = vpop.f32.mrf.mxu0
      %v2146 = vadd.f32 %v1964, %v2145
      %v2147 = vand.u32 %v1700, 4294901760
      %2148 = vmatmul.f32.gmra.mxu0 %v2147
      %v2149 = vpop.f32.mrf.mxu0
      %v2150 = vadd.f32 %v1972, %v2149
      %v2151 = vand.u32 %v1703, 4294901760
      %2152 = vmatmul.f32.gmra.mxu0 %v2151
      %v2153 = vpop.f32.mrf.mxu0
      %v2154 = vadd.f32 %v1980, %v2153
      %v2155 = vand.u32 %v1706, 4294901760
      %2156 = vmatmul.f32.gmra.mxu0 %v2155
      %v2157 = vpop.f32.mrf.mxu0
      %v2158 = vadd.f32 %v1988, %v2157
      %2159 = vdwg.mxu0
      %2160 = vmatpush.msra.mxu0 0.0
      %2161 = vmatpush.msra.mxu0 0.0
      %2162 = vmatpush.msra.mxu0 0.0
      %2163 = vmatpush.msra.mxu0 0.0
      %2164 = vmatpush.msra.mxu0 0.0
      %2165 = vmatpush.msra.mxu0 0.0
      %2166 = vmatpush.msra.mxu0 0.0
      %2167 = vmatpush.msra.mxu0 0.0
      %2168 = vmatpush.msra.mxu0 0.0
      %2169 = vmatpush.msra.mxu0 0.0
      %2170 = vmatpush.msra.mxu0 0.0
      %v2171 = vand.u32 %v1710, 4294901760
      %v2172 = vsub.f32 %v1710, %v2171
      %2173 = vmatpush.msra.mxu0 %v2172
      %v2174 = vand.u32 %v1605, 4294901760
      %v2175 = vsub.f32 %v1605, %v2174
      %2176 = vmatpush.msra.mxu0 %v2175
      %v2177 = vand.u32 %v1604, 4294901760
      %v2178 = vsub.f32 %v1604, %v2177
      %2179 = vmatpush.msra.mxu0 %v2178
      %v2180 = vand.u32 %v1603, 4294901760
      %v2181 = vsub.f32 %v1603, %v2180
      %2182 = vmatpush.msra.mxu0 %v2181
      %v2183 = vand.u32 %v1602, 4294901760
      %v2184 = vsub.f32 %v1602, %v2183
      %2185 = vmatpush.msra.mxu0 %v2184
      %v2186 = vand.u32 %v1613, 4294901760
      %v2187 = vsub.f32 %v1613, %v2186
      %2188 = vmatmul.f32.gmra.mxu0 %v2187
      %v2189 = vpop.f32.mrf.mxu0
      %v2190 = vadd.f32 %v2034, %v2189
      %v2191 = vand.u32 %v1616, 4294901760
      %v2192 = vsub.f32 %v1616, %v2191
      %2193 = vmatmul.f32.gmra.mxu0 %v2192
      %v2194 = vpop.f32.mrf.mxu0
      %v2195 = vadd.f32 %v2038, %v2194
      %v2196 = vand.u32 %v1619, 4294901760
      %v2197 = vsub.f32 %v1619, %v2196
      %2198 = vmatmul.f32.gmra.mxu0 %v2197
      %v2199 = vpop.f32.mrf.mxu0
      %v2200 = vadd.f32 %v2042, %v2199
      %v2201 = vand.u32 %v1622, 4294901760
      %v2202 = vsub.f32 %v1622, %v2201
      %2203 = vmatmul.f32.gmra.mxu0 %v2202
      %v2204 = vpop.f32.mrf.mxu0
      %v2205 = vadd.f32 %v2046, %v2204
      %v2206 = vand.u32 %v1625, 4294901760
      %v2207 = vsub.f32 %v1625, %v2206
      %2208 = vmatmul.f32.gmra.mxu0 %v2207
      %v2209 = vpop.f32.mrf.mxu0
      %v2210 = vadd.f32 %v2050, %v2209
      %v2211 = vand.u32 %v1628, 4294901760
      %v2212 = vsub.f32 %v1628, %v2211
      %2213 = vmatmul.f32.gmra.mxu0 %v2212
      %v2214 = vpop.f32.mrf.mxu0
      %v2215 = vadd.f32 %v2054, %v2214
      %v2216 = vand.u32 %v1631, 4294901760
      %v2217 = vsub.f32 %v1631, %v2216
      %2218 = vmatmul.f32.gmra.mxu0 %v2217
      %v2219 = vpop.f32.mrf.mxu0
      %v2220 = vadd.f32 %v2058, %v2219
      %v2221 = vand.u32 %v1634, 4294901760
      %v2222 = vsub.f32 %v1634, %v2221
      %2223 = vmatmul.f32.gmra.mxu0 %v2222
      %v2224 = vpop.f32.mrf.mxu0
      %v2225 = vadd.f32 %v2062, %v2224
      %v2226 = vand.u32 %v1637, 4294901760
      %v2227 = vsub.f32 %v1637, %v2226
      %2228 = vmatmul.f32.gmra.mxu0 %v2227
      %v2229 = vpop.f32.mrf.mxu0
      %v2230 = vadd.f32 %v2066, %v2229
      %v2231 = vand.u32 %v1640, 4294901760
      %v2232 = vsub.f32 %v1640, %v2231
      %2233 = vmatmul.f32.gmra.mxu0 %v2232
      %v2234 = vpop.f32.mrf.mxu0
      %v2235 = vadd.f32 %v2070, %v2234
      %v2236 = vand.u32 %v1643, 4294901760
      %v2237 = vsub.f32 %v1643, %v2236
      %2238 = vmatmul.f32.gmra.mxu0 %v2237
      %v2239 = vpop.f32.mrf.mxu0
      %v2240 = vadd.f32 %v2074, %v2239
      %v2241 = vand.u32 %v1646, 4294901760
      %v2242 = vsub.f32 %v1646, %v2241
      %2243 = vmatmul.f32.gmra.mxu0 %v2242
      %v2244 = vpop.f32.mrf.mxu0
      %v2245 = vadd.f32 %v2078, %v2244
      %v2246 = vand.u32 %v1649, 4294901760
      %v2247 = vsub.f32 %v1649, %v2246
      %2248 = vmatmul.f32.gmra.mxu0 %v2247
      %v2249 = vpop.f32.mrf.mxu0
      %v2250 = vadd.f32 %v2082, %v2249
      %v2251 = vand.u32 %v1652, 4294901760
      %v2252 = vsub.f32 %v1652, %v2251
      %2253 = vmatmul.f32.gmra.mxu0 %v2252
      %v2254 = vpop.f32.mrf.mxu0
      %v2255 = vadd.f32 %v2086, %v2254
      %v2256 = vand.u32 %v1655, 4294901760
      %v2257 = vsub.f32 %v1655, %v2256
      %2258 = vmatmul.f32.gmra.mxu0 %v2257
      %v2259 = vpop.f32.mrf.mxu0
      %v2260 = vadd.f32 %v2090, %v2259
      %v2261 = vand.u32 %v1658, 4294901760
      %v2262 = vsub.f32 %v1658, %v2261
      %2263 = vmatmul.f32.gmra.mxu0 %v2262
      %v2264 = vpop.f32.mrf.mxu0
      %v2265 = vadd.f32 %v2094, %v2264
      %v2266 = vand.u32 %v1661, 4294901760
      %v2267 = vsub.f32 %v1661, %v2266
      %2268 = vmatmul.f32.gmra.mxu0 %v2267
      %v2269 = vpop.f32.mrf.mxu0
      %v2270 = vadd.f32 %v2098, %v2269
      %v2271 = vand.u32 %v1664, 4294901760
      %v2272 = vsub.f32 %v1664, %v2271
      %2273 = vmatmul.f32.gmra.mxu0 %v2272
      %v2274 = vpop.f32.mrf.mxu0
      %v2275 = vadd.f32 %v2102, %v2274
      %v2276 = vand.u32 %v1667, 4294901760
      %v2277 = vsub.f32 %v1667, %v2276
      %2278 = vmatmul.f32.gmra.mxu0 %v2277
      %v2279 = vpop.f32.mrf.mxu0
      %v2280 = vadd.f32 %v2106, %v2279
      %v2281 = vand.u32 %v1670, 4294901760
      %v2282 = vsub.f32 %v1670, %v2281
      %2283 = vmatmul.f32.gmra.mxu0 %v2282
      %v2284 = vpop.f32.mrf.mxu0
      %v2285 = vadd.f32 %v2110, %v2284
      %v2286 = vand.u32 %v1673, 4294901760
      %v2287 = vsub.f32 %v1673, %v2286
      %2288 = vmatmul.f32.gmra.mxu0 %v2287
      %v2289 = vpop.f32.mrf.mxu0
      %v2290 = vadd.f32 %v2114, %v2289
      %v2291 = vand.u32 %v1676, 4294901760
      %v2292 = vsub.f32 %v1676, %v2291
      %2293 = vmatmul.f32.gmra.mxu0 %v2292
      %v2294 = vpop.f32.mrf.mxu0
      %v2295 = vadd.f32 %v2118, %v2294
      %v2296 = vand.u32 %v1679, 4294901760
      %v2297 = vsub.f32 %v1679, %v2296
      %2298 = vmatmul.f32.gmra.mxu0 %v2297
      %v2299 = vpop.f32.mrf.mxu0
      %v2300 = vadd.f32 %v2122, %v2299
      %v2301 = vand.u32 %v1682, 4294901760
      %v2302 = vsub.f32 %v1682, %v2301
      %2303 = vmatmul.f32.gmra.mxu0 %v2302
      %v2304 = vpop.f32.mrf.mxu0
      %v2305 = vadd.f32 %v2126, %v2304
      %v2306 = vand.u32 %v1685, 4294901760
      %v2307 = vsub.f32 %v1685, %v2306
      %2308 = vmatmul.f32.gmra.mxu0 %v2307
      %v2309 = vpop.f32.mrf.mxu0
      %v2310 = vadd.f32 %v2130, %v2309
      %v2311 = vand.u32 %v1688, 4294901760
      %v2312 = vsub.f32 %v1688, %v2311
      %2313 = vmatmul.f32.gmra.mxu0 %v2312
      %v2314 = vpop.f32.mrf.mxu0
      %v2315 = vadd.f32 %v2134, %v2314
      %v2316 = vand.u32 %v1691, 4294901760
      %v2317 = vsub.f32 %v1691, %v2316
      %2318 = vmatmul.f32.gmra.mxu0 %v2317
      %v2319 = vpop.f32.mrf.mxu0
      %v2320 = vadd.f32 %v2138, %v2319
      %v2321 = vand.u32 %v1694, 4294901760
      %v2322 = vsub.f32 %v1694, %v2321
      %2323 = vmatmul.f32.gmra.mxu0 %v2322
      %v2324 = vpop.f32.mrf.mxu0
      %v2325 = vadd.f32 %v2142, %v2324
      %v2326 = vand.u32 %v1697, 4294901760
      %v2327 = vsub.f32 %v1697, %v2326
      %2328 = vmatmul.f32.gmra.mxu0 %v2327
      %v2329 = vpop.f32.mrf.mxu0
      %v2330 = vadd.f32 %v2146, %v2329
      %v2331 = vand.u32 %v1700, 4294901760
      %v2332 = vsub.f32 %v1700, %v2331
      %2333 = vmatmul.f32.gmra.mxu0 %v2332
      %v2334 = vpop.f32.mrf.mxu0
      %v2335 = vadd.f32 %v2150, %v2334
      %v2336 = vand.u32 %v1703, 4294901760
      %v2337 = vsub.f32 %v1703, %v2336
      %2338 = vmatmul.f32.gmra.mxu0 %v2337
      %v2339 = vpop.f32.mrf.mxu0
      %v2340 = vadd.f32 %v2154, %v2339
      %v2341 = vand.u32 %v1706, 4294901760
      %v2342 = vsub.f32 %v1706, %v2341
      %2343 = vmatmul.f32.gmra.mxu0 %v2342
      %v2344 = vpop.f32.mrf.mxu0
      %v2345 = vadd.f32 %v2158, %v2344
      %2346 = vdwg.mxu0
      %2347 = vmatpush.msra.mxu0 0.0
      %2348 = vmatpush.msra.mxu0 0.0
      %2349 = vmatpush.msra.mxu0 0.0
      %2350 = vmatpush.msra.mxu0 0.0
      %2351 = vmatpush.msra.mxu0 0.0
      %2352 = vmatpush.msra.mxu0 0.0
      %2353 = vmatpush.msra.mxu0 0.0
      %2354 = vmatpush.msra.mxu0 0.0
      %2355 = vmatpush.msra.mxu0 0.0
      %2356 = vmatpush.msra.mxu0 0.0
      %2357 = vmatpush.msra.mxu0 0.0
      %v2358 = vand.u32 %v1710, 4294901760
      %2359 = vmatpush.msra.mxu0 %v2358
      %v2360 = vand.u32 %v1605, 4294901760
      %2361 = vmatpush.msra.mxu0 %v2360
      %v2362 = vand.u32 %v1604, 4294901760
      %2363 = vmatpush.msra.mxu0 %v2362
      %v2364 = vand.u32 %v1603, 4294901760
      %2365 = vmatpush.msra.mxu0 %v2364
      %v2366 = vand.u32 %v1602, 4294901760
      %2367 = vmatpush.msra.mxu0 %v2366
      %v2368 = vand.u32 %v1613, 4294901760
      %v2369 = vsub.f32 %v1613, %v2368
      %v2370 = vand.u32 %v2369, 4294901760
      %2371 = vmatmul.f32.gmra.mxu0 %v2370
      %v2372 = vpop.f32.mrf.mxu0
      %v2373 = vadd.f32 %v2190, %v2372
      %v2374 = vand.u32 %v1616, 4294901760
      %v2375 = vsub.f32 %v1616, %v2374
      %v2376 = vand.u32 %v2375, 4294901760
      %2377 = vmatmul.f32.gmra.mxu0 %v2376
      %v2378 = vpop.f32.mrf.mxu0
      %v2379 = vadd.f32 %v2195, %v2378
      %v2380 = vand.u32 %v1619, 4294901760
      %v2381 = vsub.f32 %v1619, %v2380
      %v2382 = vand.u32 %v2381, 4294901760
      %2383 = vmatmul.f32.gmra.mxu0 %v2382
      %v2384 = vpop.f32.mrf.mxu0
      %v2385 = vadd.f32 %v2200, %v2384
      %v2386 = vand.u32 %v1622, 4294901760
      %v2387 = vsub.f32 %v1622, %v2386
      %v2388 = vand.u32 %v2387, 4294901760
      %2389 = vmatmul.f32.gmra.mxu0 %v2388
      %v2390 = vpop.f32.mrf.mxu0
      %v2391 = vadd.f32 %v2205, %v2390
      %v2392 = vand.u32 %v1625, 4294901760
      %v2393 = vsub.f32 %v1625, %v2392
      %v2394 = vand.u32 %v2393, 4294901760
      %2395 = vmatmul.f32.gmra.mxu0 %v2394
      %v2396 = vpop.f32.mrf.mxu0
      %v2397 = vadd.f32 %v2210, %v2396
      %v2398 = vand.u32 %v1628, 4294901760
      %v2399 = vsub.f32 %v1628, %v2398
      %v2400 = vand.u32 %v2399, 4294901760
      %2401 = vmatmul.f32.gmra.mxu0 %v2400
      %v2402 = vpop.f32.mrf.mxu0
      %v2403 = vadd.f32 %v2215, %v2402
      %v2404 = vand.u32 %v1631, 4294901760
      %v2405 = vsub.f32 %v1631, %v2404
      %v2406 = vand.u32 %v2405, 4294901760
      %2407 = vmatmul.f32.gmra.mxu0 %v2406
      %v2408 = vpop.f32.mrf.mxu0
      %v2409 = vadd.f32 %v2220, %v2408
      %v2410 = vand.u32 %v1634, 4294901760
      %v2411 = vsub.f32 %v1634, %v2410
      %v2412 = vand.u32 %v2411, 4294901760
      %2413 = vmatmul.f32.gmra.mxu0 %v2412
      %v2414 = vpop.f32.mrf.mxu0
      %v2415 = vadd.f32 %v2225, %v2414
      %v2416 = vand.u32 %v1637, 4294901760
      %v2417 = vsub.f32 %v1637, %v2416
      %v2418 = vand.u32 %v2417, 4294901760
      %2419 = vmatmul.f32.gmra.mxu0 %v2418
      %v2420 = vpop.f32.mrf.mxu0
      %v2421 = vadd.f32 %v2230, %v2420
      %v2422 = vand.u32 %v1640, 4294901760
      %v2423 = vsub.f32 %v1640, %v2422
      %v2424 = vand.u32 %v2423, 4294901760
      %2425 = vmatmul.f32.gmra.mxu0 %v2424
      %v2426 = vpop.f32.mrf.mxu0
      %v2427 = vadd.f32 %v2235, %v2426
      %v2428 = vand.u32 %v1643, 4294901760
      %v2429 = vsub.f32 %v1643, %v2428
      %v2430 = vand.u32 %v2429, 4294901760
      %2431 = vmatmul.f32.gmra.mxu0 %v2430
      %v2432 = vpop.f32.mrf.mxu0
      %v2433 = vadd.f32 %v2240, %v2432
      %v2434 = vand.u32 %v1646, 4294901760
      %v2435 = vsub.f32 %v1646, %v2434
      %v2436 = vand.u32 %v2435, 4294901760
      %2437 = vmatmul.f32.gmra.mxu0 %v2436
      %v2438 = vpop.f32.mrf.mxu0
      %v2439 = vadd.f32 %v2245, %v2438
      %v2440 = vand.u32 %v1649, 4294901760
      %v2441 = vsub.f32 %v1649, %v2440
      %v2442 = vand.u32 %v2441, 4294901760
      %2443 = vmatmul.f32.gmra.mxu0 %v2442
      %v2444 = vpop.f32.mrf.mxu0
      %v2445 = vadd.f32 %v2250, %v2444
      %v2446 = vand.u32 %v1652, 4294901760
      %v2447 = vsub.f32 %v1652, %v2446
      %v2448 = vand.u32 %v2447, 4294901760
      %2449 = vmatmul.f32.gmra.mxu0 %v2448
      %v2450 = vpop.f32.mrf.mxu0
      %v2451 = vadd.f32 %v2255, %v2450
      %v2452 = vand.u32 %v1655, 4294901760
      %v2453 = vsub.f32 %v1655, %v2452
      %v2454 = vand.u32 %v2453, 4294901760
      %2455 = vmatmul.f32.gmra.mxu0 %v2454
      %v2456 = vpop.f32.mrf.mxu0
      %v2457 = vadd.f32 %v2260, %v2456
      %v2458 = vand.u32 %v1658, 4294901760
      %v2459 = vsub.f32 %v1658, %v2458
      %v2460 = vand.u32 %v2459, 4294901760
      %2461 = vmatmul.f32.gmra.mxu0 %v2460
      %v2462 = vpop.f32.mrf.mxu0
      %v2463 = vadd.f32 %v2265, %v2462
      %v2464 = vand.u32 %v1661, 4294901760
      %v2465 = vsub.f32 %v1661, %v2464
      %v2466 = vand.u32 %v2465, 4294901760
      %2467 = vmatmul.f32.gmra.mxu0 %v2466
      %v2468 = vpop.f32.mrf.mxu0
      %v2469 = vadd.f32 %v2270, %v2468
      %v2470 = vand.u32 %v1664, 4294901760
      %v2471 = vsub.f32 %v1664, %v2470
      %v2472 = vand.u32 %v2471, 4294901760
      %2473 = vmatmul.f32.gmra.mxu0 %v2472
      %v2474 = vpop.f32.mrf.mxu0
      %v2475 = vadd.f32 %v2275, %v2474
      %v2476 = vand.u32 %v1667, 4294901760
      %v2477 = vsub.f32 %v1667, %v2476
      %v2478 = vand.u32 %v2477, 4294901760
      %2479 = vmatmul.f32.gmra.mxu0 %v2478
      %v2480 = vpop.f32.mrf.mxu0
      %v2481 = vadd.f32 %v2280, %v2480
      %v2482 = vand.u32 %v1670, 4294901760
      %v2483 = vsub.f32 %v1670, %v2482
      %v2484 = vand.u32 %v2483, 4294901760
      %2485 = vmatmul.f32.gmra.mxu0 %v2484
      %v2486 = vpop.f32.mrf.mxu0
      %v2487 = vadd.f32 %v2285, %v2486
      %v2488 = vand.u32 %v1673, 4294901760
      %v2489 = vsub.f32 %v1673, %v2488
      %v2490 = vand.u32 %v2489, 4294901760
      %2491 = vmatmul.f32.gmra.mxu0 %v2490
      %v2492 = vpop.f32.mrf.mxu0
      %v2493 = vadd.f32 %v2290, %v2492
      %v2494 = vand.u32 %v1676, 4294901760
      %v2495 = vsub.f32 %v1676, %v2494
      %v2496 = vand.u32 %v2495, 4294901760
      %2497 = vmatmul.f32.gmra.mxu0 %v2496
      %v2498 = vpop.f32.mrf.mxu0
      %v2499 = vadd.f32 %v2295, %v2498
      %v2500 = vand.u32 %v1679, 4294901760
      %v2501 = vsub.f32 %v1679, %v2500
      %v2502 = vand.u32 %v2501, 4294901760
      %2503 = vmatmul.f32.gmra.mxu0 %v2502
      %v2504 = vpop.f32.mrf.mxu0
      %v2505 = vadd.f32 %v2300, %v2504
      %v2506 = vand.u32 %v1682, 4294901760
      %v2507 = vsub.f32 %v1682, %v2506
      %v2508 = vand.u32 %v2507, 4294901760
      %2509 = vmatmul.f32.gmra.mxu0 %v2508
      %v2510 = vpop.f32.mrf.mxu0
      %v2511 = vadd.f32 %v2305, %v2510
      %v2512 = vand.u32 %v1685, 4294901760
      %v2513 = vsub.f32 %v1685, %v2512
      %v2514 = vand.u32 %v2513, 4294901760
      %2515 = vmatmul.f32.gmra.mxu0 %v2514
      %v2516 = vpop.f32.mrf.mxu0
      %v2517 = vadd.f32 %v2310, %v2516
      %v2518 = vand.u32 %v1688, 4294901760
      %v2519 = vsub.f32 %v1688, %v2518
      %v2520 = vand.u32 %v2519, 4294901760
      %2521 = vmatmul.f32.gmra.mxu0 %v2520
      %v2522 = vpop.f32.mrf.mxu0
      %v2523 = vadd.f32 %v2315, %v2522
      %v2524 = vand.u32 %v1691, 4294901760
      %v2525 = vsub.f32 %v1691, %v2524
      %v2526 = vand.u32 %v2525, 4294901760
      %2527 = vmatmul.f32.gmra.mxu0 %v2526
      %v2528 = vpop.f32.mrf.mxu0
      %v2529 = vadd.f32 %v2320, %v2528
      %v2530 = vand.u32 %v1694, 4294901760
      %v2531 = vsub.f32 %v1694, %v2530
      %v2532 = vand.u32 %v2531, 4294901760
      %2533 = vmatmul.f32.gmra.mxu0 %v2532
      %v2534 = vpop.f32.mrf.mxu0
      %v2535 = vadd.f32 %v2325, %v2534
      %v2536 = vand.u32 %v1697, 4294901760
      %v2537 = vsub.f32 %v1697, %v2536
      %v2538 = vand.u32 %v2537, 4294901760
      %2539 = vmatmul.f32.gmra.mxu0 %v2538
      %v2540 = vpop.f32.mrf.mxu0
      %v2541 = vadd.f32 %v2330, %v2540
      %v2542 = vand.u32 %v1700, 4294901760
      %v2543 = vsub.f32 %v1700, %v2542
      %v2544 = vand.u32 %v2543, 4294901760
      %2545 = vmatmul.f32.gmra.mxu0 %v2544
      %v2546 = vpop.f32.mrf.mxu0
      %v2547 = vadd.f32 %v2335, %v2546
      %v2548 = vand.u32 %v1703, 4294901760
      %v2549 = vsub.f32 %v1703, %v2548
      %v2550 = vand.u32 %v2549, 4294901760
      %2551 = vmatmul.f32.gmra.mxu0 %v2550
      %v2552 = vpop.f32.mrf.mxu0
      %v2553 = vadd.f32 %v2340, %v2552
      %v2554 = vand.u32 %v1706, 4294901760
      %v2555 = vsub.f32 %v1706, %v2554
      %v2556 = vand.u32 %v2555, 4294901760
      %2557 = vmatmul.f32.gmra.mxu0 %v2556
      %v2558 = vpop.f32.mrf.mxu0
      %v2559 = vadd.f32 %v2345, %v2558
      %2560 = vdwg.mxu0
      %2561 = vmatpush.msra.mxu0 0.0
      %2562 = vmatpush.msra.mxu0 0.0
      %2563 = vmatpush.msra.mxu0 0.0
      %2564 = vmatpush.msra.mxu0 0.0
      %2565 = vmatpush.msra.mxu0 0.0
      %2566 = vmatpush.msra.mxu0 0.0
      %2567 = vmatpush.msra.mxu0 0.0
      %2568 = vmatpush.msra.mxu0 0.0
      %2569 = vmatpush.msra.mxu0 0.0
      %2570 = vmatpush.msra.mxu0 0.0
      %2571 = vmatpush.msra.mxu0 0.0
      %v2572 = vand.u32 %v1710, 4294901760
      %v2573 = vsub.f32 %v1710, %v2572
      %v2574 = vand.u32 %v2573, 4294901760
      %2575 = vmatpush.msra.mxu0 %v2574
      %v2576 = vand.u32 %v1605, 4294901760
      %v2577 = vsub.f32 %v1605, %v2576
      %v2578 = vand.u32 %v2577, 4294901760
      %2579 = vmatpush.msra.mxu0 %v2578
      %v2580 = vand.u32 %v1604, 4294901760
      %v2581 = vsub.f32 %v1604, %v2580
      %v2582 = vand.u32 %v2581, 4294901760
      %2583 = vmatpush.msra.mxu0 %v2582
      %v2584 = vand.u32 %v1603, 4294901760
      %v2585 = vsub.f32 %v1603, %v2584
      %v2586 = vand.u32 %v2585, 4294901760
      %2587 = vmatpush.msra.mxu0 %v2586
      %v2588 = vand.u32 %v1602, 4294901760
      %v2589 = vsub.f32 %v1602, %v2588
      %v2590 = vand.u32 %v2589, 4294901760
      %2591 = vmatpush.msra.mxu0 %v2590
      %v2592 = vand.u32 %v1613, 4294901760
      %2593 = vmatmul.f32.gmra.mxu0 %v2592
      %v2594 = vpop.f32.mrf.mxu0
      %v2595 = vadd.f32 %v2373, %v2594
      %v2596 = vand.u32 %v1616, 4294901760
      %2597 = vmatmul.f32.gmra.mxu0 %v2596
      %v2598 = vpop.f32.mrf.mxu0
      %v2599 = vadd.f32 %v2379, %v2598
      %v2600 = vand.u32 %v1619, 4294901760
      %2601 = vmatmul.f32.gmra.mxu0 %v2600
      %v2602 = vpop.f32.mrf.mxu0
      %v2603 = vadd.f32 %v2385, %v2602
      %v2604 = vand.u32 %v1622, 4294901760
      %2605 = vmatmul.f32.gmra.mxu0 %v2604
      %v2606 = vpop.f32.mrf.mxu0
      %v2607 = vadd.f32 %v2391, %v2606
      %v2608 = vand.u32 %v1625, 4294901760
      %2609 = vmatmul.f32.gmra.mxu0 %v2608
      %v2610 = vpop.f32.mrf.mxu0
      %v2611 = vadd.f32 %v2397, %v2610
      %v2612 = vand.u32 %v1628, 4294901760
      %2613 = vmatmul.f32.gmra.mxu0 %v2612
      %v2614 = vpop.f32.mrf.mxu0
      %v2615 = vadd.f32 %v2403, %v2614
      %v2616 = vand.u32 %v1631, 4294901760
      %2617 = vmatmul.f32.gmra.mxu0 %v2616
      %v2618 = vpop.f32.mrf.mxu0
      %v2619 = vadd.f32 %v2409, %v2618
      %v2620 = vand.u32 %v1634, 4294901760
      %2621 = vmatmul.f32.gmra.mxu0 %v2620
      %v2622 = vpop.f32.mrf.mxu0
      %v2623 = vadd.f32 %v2415, %v2622
      %v2624 = vand.u32 %v1637, 4294901760
      %2625 = vmatmul.f32.gmra.mxu0 %v2624
      %v2626 = vpop.f32.mrf.mxu0
      %v2627 = vadd.f32 %v2421, %v2626
      %v2628 = vand.u32 %v1640, 4294901760
      %2629 = vmatmul.f32.gmra.mxu0 %v2628
      %v2630 = vpop.f32.mrf.mxu0
      %v2631 = vadd.f32 %v2427, %v2630
      %v2632 = vand.u32 %v1643, 4294901760
      %2633 = vmatmul.f32.gmra.mxu0 %v2632
      %v2634 = vpop.f32.mrf.mxu0
      %v2635 = vadd.f32 %v2433, %v2634
      %v2636 = vand.u32 %v1646, 4294901760
      %2637 = vmatmul.f32.gmra.mxu0 %v2636
      %v2638 = vpop.f32.mrf.mxu0
      %v2639 = vadd.f32 %v2439, %v2638
      %v2640 = vand.u32 %v1649, 4294901760
      %2641 = vmatmul.f32.gmra.mxu0 %v2640
      %v2642 = vpop.f32.mrf.mxu0
      %v2643 = vadd.f32 %v2445, %v2642
      %v2644 = vand.u32 %v1652, 4294901760
      %2645 = vmatmul.f32.gmra.mxu0 %v2644
      %v2646 = vpop.f32.mrf.mxu0
      %v2647 = vadd.f32 %v2451, %v2646
      %v2648 = vand.u32 %v1655, 4294901760
      %2649 = vmatmul.f32.gmra.mxu0 %v2648
      %v2650 = vpop.f32.mrf.mxu0
      %v2651 = vadd.f32 %v2457, %v2650
      %v2652 = vand.u32 %v1658, 4294901760
      %2653 = vmatmul.f32.gmra.mxu0 %v2652
      %v2654 = vpop.f32.mrf.mxu0
      %v2655 = vadd.f32 %v2463, %v2654
      %v2656 = vand.u32 %v1661, 4294901760
      %2657 = vmatmul.f32.gmra.mxu0 %v2656
      %v2658 = vpop.f32.mrf.mxu0
      %v2659 = vadd.f32 %v2469, %v2658
      %v2660 = vand.u32 %v1664, 4294901760
      %2661 = vmatmul.f32.gmra.mxu0 %v2660
      %v2662 = vpop.f32.mrf.mxu0
      %v2663 = vadd.f32 %v2475, %v2662
      %v2664 = vand.u32 %v1667, 4294901760
      %2665 = vmatmul.f32.gmra.mxu0 %v2664
      %v2666 = vpop.f32.mrf.mxu0
      %v2667 = vadd.f32 %v2481, %v2666
      %v2668 = vand.u32 %v1670, 4294901760
      %2669 = vmatmul.f32.gmra.mxu0 %v2668
      %v2670 = vpop.f32.mrf.mxu0
      %v2671 = vadd.f32 %v2487, %v2670
      %v2672 = vand.u32 %v1673, 4294901760
      %2673 = vmatmul.f32.gmra.mxu0 %v2672
      %v2674 = vpop.f32.mrf.mxu0
      %v2675 = vadd.f32 %v2493, %v2674
      %v2676 = vand.u32 %v1676, 4294901760
      %2677 = vmatmul.f32.gmra.mxu0 %v2676
      %v2678 = vpop.f32.mrf.mxu0
      %v2679 = vadd.f32 %v2499, %v2678
      %v2680 = vand.u32 %v1679, 4294901760
      %2681 = vmatmul.f32.gmra.mxu0 %v2680
      %v2682 = vpop.f32.mrf.mxu0
      %v2683 = vadd.f32 %v2505, %v2682
      %v2684 = vand.u32 %v1682, 4294901760
      %2685 = vmatmul.f32.gmra.mxu0 %v2684
      %v2686 = vpop.f32.mrf.mxu0
      %v2687 = vadd.f32 %v2511, %v2686
      %v2688 = vand.u32 %v1685, 4294901760
      %2689 = vmatmul.f32.gmra.mxu0 %v2688
      %v2690 = vpop.f32.mrf.mxu0
      %v2691 = vadd.f32 %v2517, %v2690
      %v2692 = vand.u32 %v1688, 4294901760
      %2693 = vmatmul.f32.gmra.mxu0 %v2692
      %v2694 = vpop.f32.mrf.mxu0
      %v2695 = vadd.f32 %v2523, %v2694
      %v2696 = vand.u32 %v1691, 4294901760
      %2697 = vmatmul.f32.gmra.mxu0 %v2696
      %v2698 = vpop.f32.mrf.mxu0
      %v2699 = vadd.f32 %v2529, %v2698
      %v2700 = vand.u32 %v1694, 4294901760
      %2701 = vmatmul.f32.gmra.mxu0 %v2700
      %v2702 = vpop.f32.mrf.mxu0
      %v2703 = vadd.f32 %v2535, %v2702
      %v2704 = vand.u32 %v1697, 4294901760
      %2705 = vmatmul.f32.gmra.mxu0 %v2704
      %v2706 = vpop.f32.mrf.mxu0
      %v2707 = vadd.f32 %v2541, %v2706
      %v2708 = vand.u32 %v1700, 4294901760
      %2709 = vmatmul.f32.gmra.mxu0 %v2708
      %v2710 = vpop.f32.mrf.mxu0
      %v2711 = vadd.f32 %v2547, %v2710
      %v2712 = vand.u32 %v1703, 4294901760
      %2713 = vmatmul.f32.gmra.mxu0 %v2712
      %v2714 = vpop.f32.mrf.mxu0
      %v2715 = vadd.f32 %v2553, %v2714
      %v2716 = vand.u32 %v1706, 4294901760
      %2717 = vmatmul.f32.gmra.mxu0 %v2716
      %v2718 = vpop.f32.mrf.mxu0
      %v2719 = vadd.f32 %v2559, %v2718
      %2720 = vdwg.mxu0
      %2721 = vmatpush.msra.mxu0 0.0
      %2722 = vmatpush.msra.mxu0 0.0
      %2723 = vmatpush.msra.mxu0 0.0
      %2724 = vmatpush.msra.mxu0 0.0
      %2725 = vmatpush.msra.mxu0 0.0
      %2726 = vmatpush.msra.mxu0 0.0
      %2727 = vmatpush.msra.mxu0 0.0
      %2728 = vmatpush.msra.mxu0 0.0
      %2729 = vmatpush.msra.mxu0 0.0
      %2730 = vmatpush.msra.mxu0 0.0
      %2731 = vmatpush.msra.mxu0 0.0
      %v2732 = vand.u32 %v1710, 4294901760
      %2733 = vmatpush.msra.mxu0 %v2732
      %v2734 = vand.u32 %v1605, 4294901760
      %2735 = vmatpush.msra.mxu0 %v2734
      %v2736 = vand.u32 %v1604, 4294901760
      %2737 = vmatpush.msra.mxu0 %v2736
      %v2738 = vand.u32 %v1603, 4294901760
      %2739 = vmatpush.msra.mxu0 %v2738
      %v2740 = vand.u32 %v1602, 4294901760
      %2741 = vmatpush.msra.mxu0 %v2740
      %v2742 = vand.u32 %v1613, 4294901760
      %2743 = vmatmul.f32.gmra.mxu0 %v2742
      %v2744 = vpop.f32.mrf.mxu0
      %v2745 = vadd.f32 %v2595, %v2744
      %v2746 = vand.u32 %v1616, 4294901760
      %2747 = vmatmul.f32.gmra.mxu0 %v2746
      %v2748 = vpop.f32.mrf.mxu0
      %v2749 = vadd.f32 %v2599, %v2748
      %v2750 = vand.u32 %v1619, 4294901760
      %2751 = vmatmul.f32.gmra.mxu0 %v2750
      %v2752 = vpop.f32.mrf.mxu0
      %v2753 = vadd.f32 %v2603, %v2752
      %v2754 = vand.u32 %v1622, 4294901760
      %2755 = vmatmul.f32.gmra.mxu0 %v2754
      %v2756 = vpop.f32.mrf.mxu0
      %v2757 = vadd.f32 %v2607, %v2756
      %v2758 = vand.u32 %v1625, 4294901760
      %2759 = vmatmul.f32.gmra.mxu0 %v2758
      %v2760 = vpop.f32.mrf.mxu0
      %v2761 = vadd.f32 %v2611, %v2760
      %v2762 = vand.u32 %v1628, 4294901760
      %2763 = vmatmul.f32.gmra.mxu0 %v2762
      %v2764 = vpop.f32.mrf.mxu0
      %v2765 = vadd.f32 %v2615, %v2764
      %v2766 = vand.u32 %v1631, 4294901760
      %2767 = vmatmul.f32.gmra.mxu0 %v2766
      %v2768 = vpop.f32.mrf.mxu0
      %v2769 = vadd.f32 %v2619, %v2768
      %v2770 = vand.u32 %v1634, 4294901760
      %2771 = vmatmul.f32.gmra.mxu0 %v2770
      %v2772 = vpop.f32.mrf.mxu0
      %v2773 = vadd.f32 %v2623, %v2772
      %v2774 = vand.u32 %v1637, 4294901760
      %2775 = vmatmul.f32.gmra.mxu0 %v2774
      %v2776 = vpop.f32.mrf.mxu0
      %v2777 = vadd.f32 %v2627, %v2776
      %v2778 = vand.u32 %v1640, 4294901760
      %2779 = vmatmul.f32.gmra.mxu0 %v2778
      %v2780 = vpop.f32.mrf.mxu0
      %v2781 = vadd.f32 %v2631, %v2780
      %v2782 = vand.u32 %v1643, 4294901760
      %2783 = vmatmul.f32.gmra.mxu0 %v2782
      %v2784 = vpop.f32.mrf.mxu0
      %v2785 = vadd.f32 %v2635, %v2784
      %v2786 = vand.u32 %v1646, 4294901760
      %2787 = vmatmul.f32.gmra.mxu0 %v2786
      %v2788 = vpop.f32.mrf.mxu0
      %v2789 = vadd.f32 %v2639, %v2788
      %v2790 = vand.u32 %v1649, 4294901760
      %2791 = vmatmul.f32.gmra.mxu0 %v2790
      %v2792 = vpop.f32.mrf.mxu0
      %v2793 = vadd.f32 %v2643, %v2792
      %v2794 = vand.u32 %v1652, 4294901760
      %2795 = vmatmul.f32.gmra.mxu0 %v2794
      %v2796 = vpop.f32.mrf.mxu0
      %v2797 = vadd.f32 %v2647, %v2796
      %v2798 = vand.u32 %v1655, 4294901760
      %2799 = vmatmul.f32.gmra.mxu0 %v2798
      %v2800 = vpop.f32.mrf.mxu0
      %v2801 = vadd.f32 %v2651, %v2800
      %v2802 = vand.u32 %v1658, 4294901760
      %2803 = vmatmul.f32.gmra.mxu0 %v2802
      %v2804 = vpop.f32.mrf.mxu0
      %v2805 = vadd.f32 %v2655, %v2804
      %v2806 = vand.u32 %v1661, 4294901760
      %2807 = vmatmul.f32.gmra.mxu0 %v2806
      %v2808 = vpop.f32.mrf.mxu0
      %v2809 = vadd.f32 %v2659, %v2808
      %v2810 = vand.u32 %v1664, 4294901760
      %2811 = vmatmul.f32.gmra.mxu0 %v2810
      %v2812 = vpop.f32.mrf.mxu0
      %v2813 = vadd.f32 %v2663, %v2812
      %v2814 = vand.u32 %v1667, 4294901760
      %2815 = vmatmul.f32.gmra.mxu0 %v2814
      %v2816 = vpop.f32.mrf.mxu0
      %v2817 = vadd.f32 %v2667, %v2816
      %v2818 = vand.u32 %v1670, 4294901760
      %2819 = vmatmul.f32.gmra.mxu0 %v2818
      %v2820 = vpop.f32.mrf.mxu0
      %v2821 = vadd.f32 %v2671, %v2820
      %v2822 = vand.u32 %v1673, 4294901760
      %2823 = vmatmul.f32.gmra.mxu0 %v2822
      %v2824 = vpop.f32.mrf.mxu0
      %v2825 = vadd.f32 %v2675, %v2824
      %v2826 = vand.u32 %v1676, 4294901760
      %2827 = vmatmul.f32.gmra.mxu0 %v2826
      %v2828 = vpop.f32.mrf.mxu0
      %v2829 = vadd.f32 %v2679, %v2828
      %v2830 = vand.u32 %v1679, 4294901760
      %2831 = vmatmul.f32.gmra.mxu0 %v2830
      %v2832 = vpop.f32.mrf.mxu0
      %v2833 = vadd.f32 %v2683, %v2832
      %v2834 = vand.u32 %v1682, 4294901760
      %2835 = vmatmul.f32.gmra.mxu0 %v2834
      %v2836 = vpop.f32.mrf.mxu0
      %v2837 = vadd.f32 %v2687, %v2836
      %v2838 = vand.u32 %v1685, 4294901760
      %2839 = vmatmul.f32.gmra.mxu0 %v2838
      %v2840 = vpop.f32.mrf.mxu0
      %v2841 = vadd.f32 %v2691, %v2840
      %v2842 = vand.u32 %v1688, 4294901760
      %2843 = vmatmul.f32.gmra.mxu0 %v2842
      %v2844 = vpop.f32.mrf.mxu0
      %v2845 = vadd.f32 %v2695, %v2844
      %v2846 = vand.u32 %v1691, 4294901760
      %2847 = vmatmul.f32.gmra.mxu0 %v2846
      %v2848 = vpop.f32.mrf.mxu0
      %v2849 = vadd.f32 %v2699, %v2848
      %v2850 = vand.u32 %v1694, 4294901760
      %2851 = vmatmul.f32.gmra.mxu0 %v2850
      %v2852 = vpop.f32.mrf.mxu0
      %v2853 = vadd.f32 %v2703, %v2852
      %v2854 = vand.u32 %v1697, 4294901760
      %2855 = vmatmul.f32.gmra.mxu0 %v2854
      %v2856 = vpop.f32.mrf.mxu0
      %v2857 = vadd.f32 %v2707, %v2856
      %v2858 = vand.u32 %v1700, 4294901760
      %2859 = vmatmul.f32.gmra.mxu0 %v2858
      %v2860 = vpop.f32.mrf.mxu0
      %v2861 = vadd.f32 %v2711, %v2860
      %v2862 = vand.u32 %v1703, 4294901760
      %2863 = vmatmul.f32.gmra.mxu0 %v2862
      %v2864 = vpop.f32.mrf.mxu0
      %v2865 = vadd.f32 %v2715, %v2864
      %v2866 = vand.u32 %v1706, 4294901760
      %2867 = vmatmul.f32.gmra.mxu0 %v2866
      %v2868 = vpop.f32.mrf.mxu0
      %v2869 = vadd.f32 %v2719, %v2868
      %2870 = vdwg.mxu0
      %v2871 = vmax.f32 %v2745, 0.0
      %v2872 = vmax.f32 %v2749, 0.0
      %v2873 = vmax.f32 %v2753, 0.0
      %v2874 = vmax.f32 %v2757, 0.0
      %v2875 = vmax.f32 %v2761, 0.0
      %v2876 = vmax.f32 %v2765, 0.0
      %v2877 = vmax.f32 %v2769, 0.0
      %v2878 = vmax.f32 %v2773, 0.0
      %v2879 = vmax.f32 %v2777, 0.0
      %v2880 = vmax.f32 %v2781, 0.0
      %v2881 = vmax.f32 %v2785, 0.0
      %v2882 = vmax.f32 %v2789, 0.0
      %v2883 = vmax.f32 %v2793, 0.0
      %v2884 = vmax.f32 %v2797, 0.0
      %v2885 = vmax.f32 %v2801, 0.0
      %v2886 = vmax.f32 %v2805, 0.0
      %v2887 = vmax.f32 %v2809, 0.0
      %v2888 = vmax.f32 %v2813, 0.0
      %v2889 = vmax.f32 %v2817, 0.0
      %v2890 = vmax.f32 %v2821, 0.0
      %v2891 = vmax.f32 %v2825, 0.0
      %v2892 = vmax.f32 %v2829, 0.0
      %v2893 = vmax.f32 %v2833, 0.0
      %v2894 = vmax.f32 %v2837, 0.0
      %v2895 = vmax.f32 %v2841, 0.0
      %v2896 = vmax.f32 %v2845, 0.0
      %v2897 = vmax.f32 %v2849, 0.0
      %v2898 = vmax.f32 %v2853, 0.0
      %v2899 = vmax.f32 %v2857, 0.0
      %v2900 = vmax.f32 %v2861, 0.0
      %v2901 = vmax.f32 %v2865, 0.0
      %v2902 = vmax.f32 %v2869, 0.0
      %2903 = vst.msk [vmem:[%s170] sm:$0xff] %vm171, %v2871
      %2904 = vst.msk [vmem:[%s170 + $0x8] sm:$0xff] %vm171, %v2872
      %2905 = vst.msk [vmem:[%s170 + $0x10] sm:$0xff] %vm171, %v2873
      %2906 = vst.msk [vmem:[%s170 + $0x18] sm:$0xff] %vm171, %v2874
      %2907 = vst.msk [vmem:[%s170 + $0x20] sm:$0xff] %vm171, %v2875
      %2908 = vst.msk [vmem:[%s170 + $0x28] sm:$0xff] %vm171, %v2876
      %2909 = vst.msk [vmem:[%s170 + $0x30] sm:$0xff] %vm171, %v2877
      %2910 = vst.msk [vmem:[%s170 + $0x38] sm:$0xff] %vm171, %v2878
      %2911 = vst.msk [vmem:[%s170 + $0x40] sm:$0xff] %vm171, %v2879
      %2912 = vst.msk [vmem:[%s170 + $0x48] sm:$0xff] %vm171, %v2880
      %2913 = vst.msk [vmem:[%s170 + $0x50] sm:$0xff] %vm171, %v2881
      %2914 = vst.msk [vmem:[%s170 + $0x58] sm:$0xff] %vm171, %v2882
      %2915 = vst.msk [vmem:[%s170 + $0x60] sm:$0xff] %vm171, %v2883
      %2916 = vst.msk [vmem:[%s170 + $0x68] sm:$0xff] %vm171, %v2884
      %2917 = vst.msk [vmem:[%s170 + $0x70] sm:$0xff] %vm171, %v2885
      %2918 = vst.msk [vmem:[%s170 + $0x78] sm:$0xff] %vm171, %v2886
      %2919 = vst.msk [vmem:[%s170 + $0x80] sm:$0xff] %vm171, %v2887
      %2920 = vst.msk [vmem:[%s170 + $0x88] sm:$0xff] %vm171, %v2888
      %2921 = vst.msk [vmem:[%s170 + $0x90] sm:$0xff] %vm171, %v2889
      %2922 = vst.msk [vmem:[%s170 + $0x98] sm:$0xff] %vm171, %v2890
      %2923 = vst.msk [vmem:[%s170 + $0xa0] sm:$0xff] %vm171, %v2891
      %2924 = vst.msk [vmem:[%s170 + $0xa8] sm:$0xff] %vm171, %v2892
      %2925 = vst.msk [vmem:[%s170 + $0xb0] sm:$0xff] %vm171, %v2893
      %2926 = vst.msk [vmem:[%s170 + $0xb8] sm:$0xff] %vm171, %v2894
      %2927 = vst.msk [vmem:[%s170 + $0xc0] sm:$0xff] %vm171, %v2895
      %2928 = vst.msk [vmem:[%s170 + $0xc8] sm:$0xff] %vm171, %v2896
      %2929 = vst.msk [vmem:[%s170 + $0xd0] sm:$0xff] %vm171, %v2897
      %2930 = vst.msk [vmem:[%s170 + $0xd8] sm:$0xff] %vm171, %v2898
      %2931 = vst.msk [vmem:[%s170 + $0xe0] sm:$0xff] %vm171, %v2899
      %2932 = vst.msk [vmem:[%s170 + $0xe8] sm:$0xff] %vm171, %v2900
      %2933 = vst.msk [vmem:[%s170 + $0xf0] sm:$0xff] %vm171, %v2901
      %2934 = vst.msk [vmem:[%s170 + $0xf8] sm:$0xff] %vm171, %v2902
      %p2935 = scmp.lt.s32.totalorder %s14, 1
      %s2936 = scalar_select %p2935, %s14, 1
      %s2937 = smul.addr %s2936, 32
      %s2938 = smul.addr %s2937, 8
      %s2939 = scalar_lea.vmem %s3, %s2938
      // Predicated region
      $region33: #{basic_block_forward.2} parent=31 // pred_check
        %p2940 = pneg %p100
      $region34: #{basic_block_forward.2} parent=31 // pred_check_branch
        %2942 = sbr.rel (%p2940) target = $region36
      $region35: #{basic_block_forward.2} parent=31 // pred_region
        _
      $region36: #{basic_block_forward.2} parent=31 // pred_fallthru
        _
    $region32: #{basic_block_forward.2} parent=5 // pred_fallthru
      _
    %p2943 = scmp.le.s32.totalorder 2, %s9
    // Predicated region
    $region37: #{basic_block_forward.2} parent=5 // pred_check
      %p2944 = pneg %p2943
    $region38: #{basic_block_forward.2} parent=5 // pred_check_branch
      %2946 = sbr.rel (%p2944) target = $region40
    $region39: #{basic_block_forward.2} parent=5 // pred_region
      %s2947 = ssub.s32 %s9, 2
      // Predicated region
      $region41: #{basic_block_forward.2} parent=39 // pred_check
        %p2948 = pneg %p106
      $region42: #{basic_block_forward.2} parent=39 // pred_check_branch
        %2950 = sbr.rel (%p2948) target = $region44
      $region43: #{basic_block_forward.2} parent=39 // pred_region
        %p2951 = scmp.lt.s32.totalorder %s15, 1
        %s2952 = scalar_select %p2951, %s15, 1
        %s2953 = smul.addr %s2952, 32
        %s2954 = smul.addr %s2953, 8
        %s2955 = scalar_lea.vmem %s3, %s2954
      $region44: #{basic_block_forward.2} parent=39 // pred_fallthru
        _
    $region40: #{basic_block_forward.2} parent=5 // pred_fallthru
      _
  $region6: #{basic_block_forward.2} parent=0 // loop_footer
    %s13 = sadd.s32 1, %s9
  $region7: #{basic_block_forward.2} parent=0 // loop_footer_branch
    %8 = sbr.rel target = $region3
  $region8: #{basic_block_forward.2} parent=0 // loop_exit
    _

// kernel: basic_block_forward.3
$region0: #{basic_block_forward.3}
  #allocation0 [shape = 'u32[]', space=smem, size = 0x4, offset = 0x4, fixed_abs, tag = 'smem constant byte address 0x4 - core index']
  #allocation1 [shape = 'u32[72,128]{1,0:T(1,128)}', space=vmem, size = 0x9000, scoped, tag = 'internal scratch']
  #allocation2 [shape = 'f32[16,16,36]{2,1,0:T(8,128)}', space=vmem, size = 0x20000, scoped, tag = 'scratch operand']
  #allocation3 [shape = 'f32[18,18,4]{2,1,0:T(8,128)}', space=vmem, size = 0x36000, scoped, tag = 'scratch operand']
  %s0 = inlined_call_operand.vmem [shape: f32[2,16,16,4], index: 0, kind: input, shape index: {}]
  %s1 = inlined_call_operand.vmem [shape: f32[36,4], index: 1, kind: input, shape index: {}]
  %s2 = inlined_call_operand.vmem [shape: f32[1,4], index: 2, kind: input, shape index: {}]
  %s3 = inlined_call_operand.vmem [shape: f32[2,16,16,4], index: 3, kind: input, shape index: {}]
  %s4 = inlined_call_operand.vmem [shape: f32[2,16,16,4], index: 4, kind: output, shape index: {}]
  %s5 = sld [smem:[#allocation0]]
  $region49: #{basic_block_forward.3} parent=0
    _
  %s7 = ssub.s32 1, %s5
  %s8 = scalar_select 0, %s7, %s5
  loop: start=0, step=1, limit=4
  $region2: #{basic_block_forward.3} parent=0 // loop_pre_header
    _
  $region3: #{basic_block_forward.3} parent=0 // loop_header
    %s10 = sphi 0, %s14
    %p11 = scmp.ge.s32.totalorder %s10, 4
    %s20 = sphi 0, %s22
    %s23 = sphi 0, %s20
    %s24 = sphi 0, %s23
    %s40 = sphi 0, %s24
    %s44 = sphi 0, %s44
    %s46 = sphi 0, %s44
    %s47 = sphi 0, %s46
    %s61 = sphi 0, %s47
    %s65 = sphi 0, %s65
    %s67 = sphi 0, %s65
    %s68 = sphi 0, %s67
    %s82 = sphi 0, %s68
    %s88 = sphi 0, %s90
    %s91 = sphi 0, %s88
    %s92 = sphi 0, %s91
    %s108 = sphi 0, %s92
    %s114 = sphi 0, %s116
    %s117 = sphi 0, %s114
    %s118 = sphi 0, %s117
    %s134 = sphi 0, %s118
  $region4: #{basic_block_forward.3} parent=0 // loop_header_branch
    %13 = sbr.rel (%p11) target = $region8
  $region5: #{basic_block_forward.3} parent=0 // loop_body
    %s15 = ssub.s32 %s10, 1
    %s16 = ssub.s32 %s10, 2
    %s17 = sadd.s32 %s10, 1
    %s18 = ssub.s32 %s10, %s17
    %p19 = scmp.eq.s32.totalorder %s18, 0
    %s21 = sadd.s32 %s20, 1
    %s22 = scalar_select %p19, %s20, %s21
    %p25 = pneg %p19
    %p26 = scmp.eq.s32.totalorder %s10, 1
    %p27 = por %p25, %p26
    %p28 = scmp.ne.s32.totalorder %s20, %s23
    %p29 = scmp.eq.s32.totalorder %s10, 0
    %p30 = por %p28, %p29
    %p31 = scmp.ne.s32.totalorder %s20, %s23
    %p32 = scmp.eq.s32.totalorder %s15, 1
    %p33 = por %p31, %p32
    %p34 = scmp.ne.s32.totalorder %s23, %s24
    %p35 = scmp.eq.s32.totalorder %s15, 0
    %p36 = por %p34, %p35
    %p37 = scmp.ne.s32.totalorder %s23, %s24
    %p38 = scmp.eq.s32.totalorder %s16, 1
    %p39 = por %p37, %p38
    %p41 = scmp.ne.s32.totalorder %s24, %s40
    %p42 = scmp.eq.s32.totalorder %s16, 0
    %p43 = por %p41, %p42
    %s45 = sadd.s32 %s44, 1
    %p48 = scmp.eq.s32.totalorder %s10, 1
    %p49 = scmp.ne.s32.totalorder %s44, %s46
    %p50 = scmp.eq.s32.totalorder %s10, 0
    %p51 = por %p49, %p50
    %p52 = scmp.ne.s32.totalorder %s44, %s46
    %p53 = scmp.eq.s32.totalorder %s15, 1
    %p54 = por %p52, %p53
    %p55 = scmp.ne.s32.totalorder %s46, %s47
    %p56 = scmp.eq.s32.totalorder %s15, 0
    %p57 = por %p55, %p56
    %p58 = scmp.ne.s32.totalorder %s46, %s47
    %p59 = scmp.eq.s32.totalorder %s16, 1
    %p60 = por %p58, %p59
    %p62 = scmp.ne.s32.totalorder %s47, %s61
    %p63 = scmp.eq.s32.totalorder %s16, 0
    %p64 = por %p62, %p63
    %s66 = sadd.s32 %s65, 1
    %p69 = scmp.eq.s32.totalorder %s10, 1
    %p70 = scmp.ne.s32.totalorder %s65, %s67
    %p71 = scmp.eq.s32.totalorder %s10, 0
    %p72 = por %p70, %p71
    %p73 = scmp.ne.s32.totalorder %s65, %s67
    %p74 = scmp.eq.s32.totalorder %s15, 1
    %p75 = por %p73, %p74
    %p76 = scmp.ne.s32.totalorder %s67, %s68
    %p77 = scmp.eq.s32.totalorder %s15, 0
    %p78 = por %p76, %p77
    %p79 = scmp.ne.s32.totalorder %s67, %s68
    %p80 = scmp.eq.s32.totalorder %s16, 1
    %p81 = por %p79, %p80
    %p83 = scmp.ne.s32.totalorder %s68, %s82
    %p84 = scmp.eq.s32.totalorder %s16, 0
    %p85 = por %p83, %p84
    %s86 = ssub.s32 %s10, %s17
    %p87 = scmp.eq.s32.totalorder %s86, 0
    %s89 = sadd.s32 %s88, 1
    %s90 = scalar_select %p87, %s88, %s89
    %p93 = pneg %p87
    %p94 = scmp.eq.s32.totalorder %s10, 1
    %p95 = por %p93, %p94
    %p96 = scmp.ne.s32.totalorder %s88, %s91
    %p97 = scmp.eq.s32.totalorder %s10, 0
    %p98 = por %p96, %p97
    %p99 = scmp.ne.s32.totalorder %s88, %s91
    %p100 = scmp.eq.s32.totalorder %s15, 1
    %p101 = por %p99, %p100
    %p102 = scmp.ne.s32.totalorder %s91, %s92
    %p103 = scmp.eq.s32.totalorder %s15, 0
    %p104 = por %p102, %p103
    %p105 = scmp.ne.s32.totalorder %s91, %s92
    %p106 = scmp.eq.s32.totalorder %s16, 1
    %p107 = por %p105, %p106
    %p109 = scmp.ne.s32.totalorder %s92, %s108
    %p110 = scmp.eq.s32.totalorder %s16, 0
    %p111 = por %p109, %p110
    %s112 = ssub.s32 %s10, %s17
    %p113 = scmp.eq.s32.totalorder %s112, 0
    %s115 = sadd.s32 %s114, 1
    %s116 = scalar_select %p113, %s114, %s115
    %p119 = pneg %p113
    %p120 = scmp.eq.s32.totalorder %s10, 1
    %p121 = por %p119, %p120
    %p122 = scmp.ne.s32.totalorder %s114, %s117
    %p123 = scmp.eq.s32.totalorder %s10, 0
    %p124 = por %p122, %p123
    %p125 = scmp.ne.s32.totalorder %s114, %s117
    %p126 = scmp.eq.s32.totalorder %s15, 1
    %p127 = por %p125, %p126
    %p128 = scmp.ne.s32.totalorder %s117, %s118
    %p129 = scmp.eq.s32.totalorder %s15, 0
    %p130 = por %p128, %p129
    %p131 = scmp.ne.s32.totalorder %s117, %s118
    %p132 = scmp.eq.s32.totalorder %s16, 1
    %p133 = por %p131, %p132
    %p135 = scmp.ne.s32.totalorder %s118, %s134
    %p136 = scmp.eq.s32.totalorder %s16, 0
    %p137 = por %p135, %p136
    %p138 = scmp.le.s32.totalorder 1, %s10
    %p139 = scmp.lt.s32.totalorder %s10, 3
    %p140 = pnand %p138, %p139
    %p141 = pneg %p140
    // Predicated region
    $region9: #{basic_block_forward.3} parent=5 // pred_check
      _
    $region10: #{basic_block_forward.3} parent=5 // pred_check_branch
      %143 = sbr.rel (%p140) target = $region12
    $region11: #{basic_block_forward.3} parent=5 // pred_region
      %s144 = ssub.s32 %s10, 1
      // Predicated region
      $region13: #{basic_block_forward.3} parent=11 // pred_check
        %p145 = pneg %p57
      $region14: #{basic_block_forward.3} parent=11 // pred_check_branch
        %147 = sbr.rel (%p145) target = $region16
      $region15: #{basic_block_forward.3} parent=11 // pred_region
        _
      $region16: #{basic_block_forward.3} parent=11 // pred_fallthru
        _
      // Predicated region
      $region17: #{basic_block_forward.3} parent=11 // pred_check
        %p148 = pneg %p78
      $region18: #{basic_block_forward.3} parent=11 // pred_check_branch
        %150 = sbr.rel (%p148) target = $region20
      $region19: #{basic_block_forward.3} parent=11 // pred_region
        _
      $region20: #{basic_block_forward.3} parent=11 // pred_fallthru
        _
    $region12: #{basic_block_forward.3} parent=5 // pred_fallthru
      _
    %p151 = scmp.lt.s32.totalorder %s10, 2
    // Predicated region
    $region21: #{basic_block_forward.3} parent=5 // pred_check
      %p152 = pneg %p151
    $region22: #{basic_block_forward.3} parent=5 // pred_check_branch
      %154 = sbr.rel (%p152) target = $region24
    $region23: #{basic_block_forward.3} parent=5 // pred_region
      // Predicated region
      $region25: #{basic_block_forward.3} parent=23 // pred_check
        %p155 = pneg %p30
      $region26: #{basic_block_forward.3} parent=23 // pred_check_branch
        %157 = sbr.rel (%p155) target = $region28
      $region27: #{basic_block_forward.3} parent=23 // pred_region
        %p158 = scmp.lt.s32.totalorder %s10, 1
        %s159 = scalar_select %p158, %s10, 1
        %s160 = smul.addr %s159, 32
        %s161 = smul.addr %s160, 8
        %s162 = scalar_lea.vmem %s0, %s161
      $region28: #{basic_block_forward.3} parent=23 // pred_fallthru
        _
      // Predicated region
      $region29: #{basic_block_forward.3} parent=23 // pred_check
        %p163 = pneg %p98
      $region30: #{basic_block_forward.3} parent=23 // pred_check_branch
        %165 = sbr.rel (%p163) target = $region32
      $region31: #{basic_block_forward.3} parent=23 // pred_region
        %p166 = scmp.lt.s32.totalorder %s10, 1
        %s167 = scalar_select %p166, %s10, 1
        %s168 = smul.addr %s167, 32
        %s169 = smul.addr %s168, 8
        %s170 = scalar_lea.vmem %s3, %s169
      $region32: #{basic_block_forward.3} parent=23 // pred_fallthru
        _
    $region24: #{basic_block_forward.3} parent=5 // pred_fallthru
      _
    %p171 = scmp.le.s32.totalorder 1, %s10
    %p172 = scmp.lt.s32.totalorder %s10, 3
    %p173 = pnand %p171, %p172
    %p174 = pneg %p173
    // Predicated region
    $region33: #{basic_block_forward.3} parent=5 // pred_check
      _
    $region34: #{basic_block_forward.3} parent=5 // pred_check_branch
      %176 = sbr.rel (%p173) target = $region36
    $region35: #{basic_block_forward.3} parent=5 // pred_region
      %s177 = ssub.s32 %s10, 1
      %p178 = scmp.lt.s32.totalorder %s15, 1
      %s179 = scalar_select %p178, %s15, 1
      %s180 = smul.addr %s179, 32
      %s181 = smul.addr %s180, 8
      %s182 = scalar_lea.vmem %s0, %s181
      %p183 = pneg %p36
      %p184 = pneg %p33
      %p185 = pneg %p57
      %p186 = pneg %p54
      %p187 = pneg %p78
      %p188 = pneg %p75
      %p189 = scmp.lt.s32.totalorder %s15, 1
      %s190 = scalar_select %p189, %s15, 1
      %s191 = smul.addr %s190, 32
      %s192 = smul.addr %s191, 8
      %s193 = scalar_lea.vmem %s3, %s192
      %p194 = pneg %p104
      %p195 = pneg %p101
      %p196 = pneg %p130
      %p197 = pneg %p127
      %p198 = scmp.lt.s32.totalorder %s15, 1
      %s199 = scalar_select %p198, %s15, 1
      %s200 = smul.addr %s199, 32
      %s201 = smul.addr %s200, 8
      %s202 = scalar_lea.vmem %s4, %s201
      %p203 = scmp.lt.s32.totalorder %s15, 1
      %s204 = scalar_select %p203, %s15, 1
      %s205 = smul.addr %s204, 32
      %s206 = smul.addr %s205, 8
      %s207 = scalar_lea.vmem %s0, %s206
      %p208 = scmp.lt.s32.totalorder %s15, 1
      %s209 = scalar_select %p208, %s15, 1
      %s210 = smul.addr %s209, 32
      %s211 = smul.addr %s210, 8
      %s212 = scalar_lea.vmem %s3, %s211
      %p213 = scmp.lt.s32.totalorder %s15, 1
      %s214 = scalar_select %p213, %s15, 1
      %s215 = smul.addr %s214, 32
      %s216 = smul.addr %s215, 8
      %s217 = scalar_lea.vmem %s4, %s216
      %vm218 = vcmask 31744
      %219 = vst.msk [vmem:[#allocation3] sm:$0xff] %vm218, 0.0
      %220 = vst.msk [vmem:[#allocation3 + $0x8] sm:$0xff] %vm218, 0.0
      %vm221 = vcmask 25600
      %222 = vst.msk [vmem:[#allocation3 + $0x10] sm:$0x3] %vm221, 0.0
      %223 = vst.msk [vmem:[#allocation3 + $0x18] sm:$0xff] %vm218, 0.0
      %224 = vst.msk [vmem:[#allocation3 + $0x20] sm:$0xff] %vm218, 0.0
      %225 = vst.msk [vmem:[#allocation3 + $0x28] sm:$0x3] %vm221, 0.0
      %226 = vst.msk [vmem:[#allocation3 + $0x30] sm:$0xff] %vm218, 0.0
      %227 = vst.msk [vmem:[#allocation3 + $0x38] sm:$0xff] %vm218, 0.0
      %228 = vst.msk [vmem:[#allocation3 + $0x40] sm:$0x3] %vm221, 0.0
      %229 = vst.msk [vmem:[#allocation3 + $0x48] sm:$0xff] %vm218, 0.0
      %230 = vst.msk [vmem:[#allocation3 + $0x50] sm:$0xff] %vm218, 0.0
      %231 = vst.msk [vmem:[#allocation3 + $0x58] sm:$0x3] %vm221, 0.0
      %232 = vst.msk [vmem:[#allocation3 + $0x60] sm:$0xff] %vm218, 0.0
      %233 = vst.msk [vmem:[#allocation3 + $0x68] sm:$0xff] %vm218, 0.0
      %234 = vst.msk [vmem:[#allocation3 + $0x70] sm:$0x3] %vm221, 0.0
      %235 = vst.msk [vmem:[#allocation3 + $0x78] sm:$0xff] %vm218, 0.0
      %236 = vst.msk [vmem:[#allocation3 + $0x80] sm:$0xff] %vm218, 0.0
      %237 = vst.msk [vmem:[#allocation3 + $0x88] sm:$0x3] %vm221, 0.0
      %238 = vst.msk [vmem:[#allocation3 + $0x90] sm:$0xff] %vm218, 0.0
      %239 = vst.msk [vmem:[#allocation3 + $0x98] sm:$0xff] %vm218, 0.0
      %240 = vst.msk [vmem:[#allocation3 + $0xa0] sm:$0x3] %vm221, 0.0
      %241 = vst.msk [vmem:[#allocation3 + $0xa8] sm:$0xff] %vm218, 0.0
      %242 = vst.msk [vmem:[#allocation3 + $0xb0] sm:$0xff] %vm218, 0.0
      %243 = vst.msk [vmem:[#allocation3 + $0xb8] sm:$0x3] %vm221, 0.0
      %244 = vst.msk [vmem:[#allocation3 + $0xc0] sm:$0xff] %vm218, 0.0
      %245 = vst.msk [vmem:[#allocation3 + $0xc8] sm:$0xff] %vm218, 0.0
      %246 = vst.msk [vmem:[#allocation3 + $0xd0] sm:$0x3] %vm221, 0.0
      %247 = vst.msk [vmem:[#allocation3 + $0xd8] sm:$0xff] %vm218, 0.0
      %248 = vst.msk [vmem:[#allocation3 + $0xe0] sm:$0xff] %vm218, 0.0
      %249 = vst.msk [vmem:[#allocation3 + $0xe8] sm:$0x3] %vm221, 0.0
      %250 = vst.msk [vmem:[#allocation3 + $0xf0] sm:$0xff] %vm218, 0.0
      %251 = vst.msk [vmem:[#allocation3 + $0xf8] sm:$0xff] %vm218, 0.0
      %252 = vst.msk [vmem:[#allocation3 + $0x100] sm:$0x3] %vm221, 0.0
      %253 = vst.msk [vmem:[#allocation3 + $0x108] sm:$0xff] %vm218, 0.0
      %254 = vst.msk [vmem:[#allocation3 + $0x110] sm:$0xff] %vm218, 0.0
      %255 = vst.msk [vmem:[#allocation3 + $0x118] sm:$0x3] %vm221, 0.0
      %256 = vst.msk [vmem:[#allocation3 + $0x120] sm:$0xff] %vm218, 0.0
      %257 = vst.msk [vmem:[#allocation3 + $0x128] sm:$0xff] %vm218, 0.0
      %258 = vst.msk [vmem:[#allocation3 + $0x130] sm:$0x3] %vm221, 0.0
      %259 = vst.msk [vmem:[#allocation3 + $0x138] sm:$0xff] %vm218, 0.0
      %260 = vst.msk [vmem:[#allocation3 + $0x140] sm:$0xff] %vm218, 0.0
      %261 = vst.msk [vmem:[#allocation3 + $0x148] sm:$0x3] %vm221, 0.0
      %262 = vst.msk [vmem:[#allocation3 + $0x150] sm:$0xff] %vm218, 0.0
      %263 = vst.msk [vmem:[#allocation3 + $0x158] sm:$0xff] %vm218, 0.0
      %264 = vst.msk [vmem:[#allocation3 + $0x160] sm:$0x3] %vm221, 0.0
      %265 = vst.msk [vmem:[#allocation3 + $0x168] sm:$0xff] %vm218, 0.0
      %266 = vst.msk [vmem:[#allocation3 + $0x170] sm:$0xff] %vm218, 0.0
      %267 = vst.msk [vmem:[#allocation3 + $0x178] sm:$0x3] %vm221, 0.0
      %268 = vst.msk [vmem:[#allocation3 + $0x180] sm:$0xff] %vm218, 0.0
      %269 = vst.msk [vmem:[#allocation3 + $0x188] sm:$0xff] %vm218, 0.0
      %270 = vst.msk [vmem:[#allocation3 + $0x190] sm:$0x3] %vm221, 0.0
      %271 = vst.msk [vmem:[#allocation3 + $0x198] sm:$0xff] %vm218, 0.0
      %272 = vst.msk [vmem:[#allocation3 + $0x1a0] sm:$0xff] %vm218, 0.0
      %273 = vst.msk [vmem:[#allocation3 + $0x1a8] sm:$0x3] %vm221, 0.0
      %v274 = vld [vmem:[%s207] sm:$0xff]
      %v275 = vld [vmem:[%s207 + $0x8] sm:$0xff]
      %v276 = vld [vmem:[%s207 + $0x10] sm:$0xff]
      %v277 = vld [vmem:[%s207 + $0x18] sm:$0xff]
      %v278 = vld [vmem:[%s207 + $0x20] sm:$0xff]
      %v279 = vld [vmem:[%s207 + $0x28] sm:$0xff]
      %v280 = vld [vmem:[%s207 + $0x30] sm:$0xff]
      %v281 = vld [vmem:[%s207 + $0x38] sm:$0xff]
      %v282 = vld [vmem:[%s207 + $0x40] sm:$0xff]
      %v283 = vld [vmem:[%s207 + $0x48] sm:$0xff]
      %v284 = vld [vmem:[%s207 + $0x50] sm:$0xff]
      %v285 = vld [vmem:[%s207 + $0x58] sm:$0xff]
      %v286 = vld [vmem:[%s207 + $0x60] sm:$0xff]
      %v287 = vld [vmem:[%s207 + $0x68] sm:$0xff]
      %v288 = vld [vmem:[%s207 + $0x70] sm:$0xff]
      %v289 = vld [vmem:[%s207 + $0x78] sm:$0xff]
      %v290 = vld [vmem:[%s207 + $0x80] sm:$0xff]
      %v291 = vld [vmem:[%s207 + $0x88] sm:$0xff]
      %v292 = vld [vmem:[%s207 + $0x90] sm:$0xff]
      %v293 = vld [vmem:[%s207 + $0x98] sm:$0xff]
      %v294 = vld [vmem:[%s207 + $0xa0] sm:$0xff]
      %v295 = vld [vmem:[%s207 + $0xa8] sm:$0xff]
      %v296 = vld [vmem:[%s207 + $0xb0] sm:$0xff]
      %v297 = vld [vmem:[%s207 + $0xb8] sm:$0xff]
      %v298 = vld [vmem:[%s207 + $0xc0] sm:$0xff]
      %v299 = vld [vmem:[%s207 + $0xc8] sm:$0xff]
      %v300 = vld [vmem:[%s207 + $0xd0] sm:$0xff]
      %v301 = vld [vmem:[%s207 + $0xd8] sm:$0xff]
      %v302 = vld [vmem:[%s207 + $0xe0] sm:$0xff]
      %v303 = vld [vmem:[%s207 + $0xe8] sm:$0xff]
      %v304 = vld [vmem:[%s207 + $0xf0] sm:$0xff]
      %v305 = vld [vmem:[%s207 + $0xf8] sm:$0xff]
      %s306 = scalar_lea.vmem [#allocation3], 24
      %307 = vst.msk [vmem:[%s306 + $0x1] sm:$0xff] %vm218, %v274
      %308 = vst.msk [vmem:[%s306 + $0x9] sm:$0xff] %vm218, %v275
      %309 = vst.msk [vmem:[%s306 + $0x19] sm:$0xff] %vm218, %v276
      %310 = vst.msk [vmem:[%s306 + $0x21] sm:$0xff] %vm218, %v277
      %311 = vst.msk [vmem:[%s306 + $0x31] sm:$0xff] %vm218, %v278
      %312 = vst.msk [vmem:[%s306 + $0x39] sm:$0xff] %vm218, %v279
      %313 = vst.msk [vmem:[%s306 + $0x49] sm:$0xff] %vm218, %v280
      %314 = vst.msk [vmem:[%s306 + $0x51] sm:$0xff] %vm218, %v281
      %315 = vst.msk [vmem:[%s306 + $0x61] sm:$0xff] %vm218, %v282
      %316 = vst.msk [vmem:[%s306 + $0x69] sm:$0xff] %vm218, %v283
      %317 = vst.msk [vmem:[%s306 + $0x79] sm:$0xff] %vm218, %v284
      %318 = vst.msk [vmem:[%s306 + $0x81] sm:$0xff] %vm218, %v285
      %319 = vst.msk [vmem:[%s306 + $0x91] sm:$0xff] %vm218, %v286
      %320 = vst.msk [vmem:[%s306 + $0x99] sm:$0xff] %vm218, %v287
      %321 = vst.msk [vmem:[%s306 + $0xa9] sm:$0xff] %vm218, %v288
      %322 = vst.msk [vmem:[%s306 + $0xb1] sm:$0xff] %vm218, %v289
      %323 = vst.msk [vmem:[%s306 + $0xc1] sm:$0xff] %vm218, %v290
      %324 = vst.msk [vmem:[%s306 + $0xc9] sm:$0xff] %vm218, %v291
      %325 = vst.msk [vmem:[%s306 + $0xd9] sm:$0xff] %vm218, %v292
      %326 = vst.msk [vmem:[%s306 + $0xe1] sm:$0xff] %vm218, %v293
      %327 = vst.msk [vmem:[%s306 + $0xf1] sm:$0xff] %vm218, %v294
      %328 = vst.msk [vmem:[%s306 + $0xf9] sm:$0xff] %vm218, %v295
      %329 = vst.msk [vmem:[%s306 + $0x109] sm:$0xff] %vm218, %v296
      %330 = vst.msk [vmem:[%s306 + $0x111] sm:$0xff] %vm218, %v297
      %331 = vst.msk [vmem:[%s306 + $0x121] sm:$0xff] %vm218, %v298
      %332 = vst.msk [vmem:[%s306 + $0x129] sm:$0xff] %vm218, %v299
      %333 = vst.msk [vmem:[%s306 + $0x139] sm:$0xff] %vm218, %v300
      %334 = vst.msk [vmem:[%s306 + $0x141] sm:$0xff] %vm218, %v301
      %335 = vst.msk [vmem:[%s306 + $0x151] sm:$0xff] %vm218, %v302
      %336 = vst.msk [vmem:[%s306 + $0x159] sm:$0xff] %vm218, %v303
      %337 = vst.msk [vmem:[%s306 + $0x169] sm:$0xff] %vm218, %v304
      %338 = vst.msk [vmem:[%s306 + $0x171] sm:$0xff] %vm218, %v305
      %v339 = vld [vmem:[#allocation3] sm:$0xff]
      %v340 = vld [vmem:[#allocation3 + $0x8] sm:$0xff]
      %v341 = vld [vmem:[#allocation3 + $0x18] sm:$0xff]
      %v342 = vld [vmem:[#allocation3 + $0x20] sm:$0xff]
      %v343 = vld [vmem:[#allocation3 + $0x30] sm:$0xff]
      %v344 = vld [vmem:[#allocation3 + $0x38] sm:$0xff]
      %v345 = vld [vmem:[#allocation3 + $0x48] sm:$0xff]
      %v346 = vld [vmem:[#allocation3 + $0x50] sm:$0xff]
      %v347 = vld [vmem:[#allocation3 + $0x60] sm:$0xff]
      %v348 = vld [vmem:[#allocation3 + $0x68] sm:$0xff]
      %v349 = vld [vmem:[#allocation3 + $0x78] sm:$0xff]
      %v350 = vld [vmem:[#allocation3 + $0x80] sm:$0xff]
      %v351 = vld [vmem:[#allocation3 + $0x90] sm:$0xff]
      %v352 = vld [vmem:[#allocation3 + $0x98] sm:$0xff]
      %v353 = vld [vmem:[#allocation3 + $0xa8] sm:$0xff]
      %v354 = vld [vmem:[#allocation3 + $0xb0] sm:$0xff]
      %v355 = vld [vmem:[#allocation3 + $0xc0] sm:$0xff]
      %v356 = vld [vmem:[#allocation3 + $0xc8] sm:$0xff]
      %v357 = vld [vmem:[#allocation3 + $0xd8] sm:$0xff]
      %v358 = vld [vmem:[#allocation3 + $0xe0] sm:$0xff]
      %v359 = vld [vmem:[#allocation3 + $0xf0] sm:$0xff]
      %v360 = vld [vmem:[#allocation3 + $0xf8] sm:$0xff]
      %v361 = vld [vmem:[#allocation3 + $0x108] sm:$0xff]
      %v362 = vld [vmem:[#allocation3 + $0x110] sm:$0xff]
      %v363 = vld [vmem:[#allocation3 + $0x120] sm:$0xff]
      %v364 = vld [vmem:[#allocation3 + $0x128] sm:$0xff]
      %v365 = vld [vmem:[#allocation3 + $0x138] sm:$0xff]
      %v366 = vld [vmem:[#allocation3 + $0x140] sm:$0xff]
      %v367 = vld [vmem:[#allocation3 + $0x150] sm:$0xff]
      %v368 = vld [vmem:[#allocation3 + $0x158] sm:$0xff]
      %v369 = vld [vmem:[#allocation3 + $0x168] sm:$0xff]
      %v370 = vld [vmem:[#allocation3 + $0x170] sm:$0xff]
      %v371 = vld [vmem:[#allocation3 + $0x180] sm:$0xff]
      %v372 = vld [vmem:[#allocation3 + $0x188] sm:$0xff]
      %v373 = vld [vmem:[#allocation3 + $0x198] sm:$0xff]
      %v374 = vld [vmem:[#allocation3 + $0x1a0] sm:$0xff]
      %375 = vst.msk [vmem:[#allocation2] sm:$0xff] %vm218, %v339
      %376 = vst.msk [vmem:[#allocation2 + $0x8] sm:$0xff] %vm218, %v340
      %377 = vst.msk [vmem:[#allocation2 + $0x10] sm:$0xff] %vm218, %v341
      %378 = vst.msk [vmem:[#allocation2 + $0x18] sm:$0xff] %vm218, %v342
      %379 = vst.msk [vmem:[#allocation2 + $0x20] sm:$0xff] %vm218, %v343
      %380 = vst.msk [vmem:[#allocation2 + $0x28] sm:$0xff] %vm218, %v344
      %381 = vst.msk [vmem:[#allocation2 + $0x30] sm:$0xff] %vm218, %v345
      %382 = vst.msk [vmem:[#allocation2 + $0x38] sm:$0xff] %vm218, %v346
      %383 = vst.msk [vmem:[#allocation2 + $0x40] sm:$0xff] %vm218, %v347
      %384 = vst.msk [vmem:[#allocation2 + $0x48] sm:$0xff] %vm218, %v348
      %385 = vst.msk [vmem:[#allocation2 + $0x50] sm:$0xff] %vm218, %v349
      %386 = vst.msk [vmem:[#allocation2 + $0x58] sm:$0xff] %vm218, %v350
      %387 = vst.msk [vmem:[#allocation2 + $0x60] sm:$0xff] %vm218, %v351
      %388 = vst.msk [vmem:[#allocation2 + $0x68] sm:$0xff] %vm218, %v352
      %389 = vst.msk [vmem:[#allocation2 + $0x70] sm:$0xff] %vm218, %v353
      %390 = vst.msk [vmem:[#allocation2 + $0x78] sm:$0xff] %vm218, %v354
      %391 = vst.msk [vmem:[#allocation2 + $0x80] sm:$0xff] %vm218, %v355
      %392 = vst.msk [vmem:[#allocation2 + $0x88] sm:$0xff] %vm218, %v356
      %393 = vst.msk [vmem:[#allocation2 + $0x90] sm:$0xff] %vm218, %v357
      %394 = vst.msk [vmem:[#allocation2 + $0x98] sm:$0xff] %vm218, %v358
      %395 = vst.msk [vmem:[#allocation2 + $0xa0] sm:$0xff] %vm218, %v359
      %396 = vst.msk [vmem:[#allocation2 + $0xa8] sm:$0xff] %vm218, %v360
      %397 = vst.msk [vmem:[#allocation2 + $0xb0] sm:$0xff] %vm218, %v361
      %398 = vst.msk [vmem:[#allocation2 + $0xb8] sm:$0xff] %vm218, %v362
      %399 = vst.msk [vmem:[#allocation2 + $0xc0] sm:$0xff] %vm218, %v363
      %400 = vst.msk [vmem:[#allocation2 + $0xc8] sm:$0xff] %vm218, %v364
      %401 = vst.msk [vmem:[#allocation2 + $0xd0] sm:$0xff] %vm218, %v365
      %402 = vst.msk [vmem:[#allocation2 + $0xd8] sm:$0xff] %vm218, %v366
      %403 = vst.msk [vmem:[#allocation2 + $0xe0] sm:$0xff] %vm218, %v367
      %404 = vst.msk [vmem:[#allocation2 + $0xe8] sm:$0xff] %vm218, %v368
      %405 = vst.msk [vmem:[#allocation2 + $0xf0] sm:$0xff] %vm218, %v369
      %406 = vst.msk [vmem:[#allocation2 + $0xf8] sm:$0xff] %vm218, %v370
      %439 = vrot.lane.b32.xlu0 %v341, 12
      %v440 = vpop.permute.xlu0 %439
      %441 = vrot.lane.b32.xlu0 %v342, 12
      %v442 = vpop.permute.xlu0 %441
      %443 = vrot.lane.b32.xlu0 %v343, 12
      %v444 = vpop.permute.xlu0 %443
      %445 = vrot.lane.b32.xlu0 %v344, 12
      %v446 = vpop.permute.xlu0 %445
      %447 = vrot.lane.b32.xlu0 %v345, 12
      %v448 = vpop.permute.xlu0 %447
      %449 = vrot.lane.b32.xlu0 %v346, 12
      %v450 = vpop.permute.xlu0 %449
      %451 = vrot.lane.b32.xlu0 %v347, 12
      %v452 = vpop.permute.xlu0 %451
      %453 = vrot.lane.b32.xlu0 %v348, 12
      %v454 = vpop.permute.xlu0 %453
      %455 = vrot.lane.b32.xlu0 %v349, 12
      %v456 = vpop.permute.xlu0 %455
      %457 = vrot.lane.b32.xlu0 %v350, 12
      %v458 = vpop.permute.xlu0 %457
      %459 = vrot.lane.b32.xlu0 %v351, 12
      %v460 = vpop.permute.xlu0 %459
      %461 = vrot.lane.b32.xlu0 %v352, 12
      %v462 = vpop.permute.xlu0 %461
      %463 = vrot.lane.b32.xlu0 %v353, 12
      %v464 = vpop.permute.xlu0 %463
      %465 = vrot.lane.b32.xlu0 %v354, 12
      %v466 = vpop.permute.xlu0 %465
      %467 = vrot.lane.b32.xlu0 %v355, 12
      %v468 = vpop.permute.xlu0 %467
      %469 = vrot.lane.b32.xlu0 %v356, 12
      %v470 = vpop.permute.xlu0 %469
      %471 = vrot.lane.b32.xlu0 %v357, 12
      %v472 = vpop.permute.xlu0 %471
      %473 = vrot.lane.b32.xlu0 %v358, 12
      %v474 = vpop.permute.xlu0 %473
      %475 = vrot.lane.b32.xlu0 %v359, 12
      %v476 = vpop.permute.xlu0 %475
      %477 = vrot.lane.b32.xlu0 %v360, 12
      %v478 = vpop.permute.xlu0 %477
      %479 = vrot.lane.b32.xlu0 %v361, 12
      %v480 = vpop.permute.xlu0 %479
      %481 = vrot.lane.b32.xlu0 %v362, 12
      %v482 = vpop.permute.xlu0 %481
      %483 = vrot.lane.b32.xlu0 %v363, 12
      %v484 = vpop.permute.xlu0 %483
      %485 = vrot.lane.b32.xlu0 %v364, 12
      %v486 = vpop.permute.xlu0 %485
      %487 = vrot.lane.b32.xlu0 %v365, 12
      %v488 = vpop.permute.xlu0 %487
      %489 = vrot.lane.b32.xlu0 %v366, 12
      %v490 = vpop.permute.xlu0 %489
      %491 = vrot.lane.b32.xlu0 %v367, 12
      %v492 = vpop.permute.xlu0 %491
      %493 = vrot.lane.b32.xlu0 %v368, 12
      %v494 = vpop.permute.xlu0 %493
      %495 = vrot.lane.b32.xlu0 %v369, 12
      %v496 = vpop.permute.xlu0 %495
      %497 = vrot.lane.b32.xlu0 %v370, 12
      %v498 = vpop.permute.xlu0 %497
      %499 = vrot.lane.b32.xlu0 %v371, 12
      %v500 = vpop.permute.xlu0 %499
      %501 = vrot.lane.b32.xlu0 %v372, 12
      %v502 = vpop.permute.xlu0 %501
      %vm535 = vcmask 130144
      %536 = vst.msk [vmem:[#allocation2] sm:$0xff] %vm535, %v440
      %537 = vst.msk [vmem:[#allocation2 + $0x8] sm:$0xff] %vm535, %v442
      %538 = vst.msk [vmem:[#allocation2 + $0x10] sm:$0xff] %vm535, %v444
      %539 = vst.msk [vmem:[#allocation2 + $0x18] sm:$0xff] %vm535, %v446
      %540 = vst.msk [vmem:[#allocation2 + $0x20] sm:$0xff] %vm535, %v448
      %541 = vst.msk [vmem:[#allocation2 + $0x28] sm:$0xff] %vm535, %v450
      %542 = vst.msk [vmem:[#allocation2 + $0x30] sm:$0xff] %vm535, %v452
      %543 = vst.msk [vmem:[#allocation2 + $0x38] sm:$0xff] %vm535, %v454
      %544 = vst.msk [vmem:[#allocation2 + $0x40] sm:$0xff] %vm535, %v456
      %545 = vst.msk [vmem:[#allocation2 + $0x48] sm:$0xff] %vm535, %v458
      %546 = vst.msk [vmem:[#allocation2 + $0x50] sm:$0xff] %vm535, %v460
      %547 = vst.msk [vmem:[#allocation2 + $0x58] sm:$0xff] %vm535, %v462
      %548 = vst.msk [vmem:[#allocation2 + $0x60] sm:$0xff] %vm535, %v464
      %549 = vst.msk [vmem:[#allocation2 + $0x68] sm:$0xff] %vm535, %v466
      %550 = vst.msk [vmem:[#allocation2 + $0x70] sm:$0xff] %vm535, %v468
      %551 = vst.msk [vmem:[#allocation2 + $0x78] sm:$0xff] %vm535, %v470
      %552 = vst.msk [vmem:[#allocation2 + $0x80] sm:$0xff] %vm535, %v472
      %553 = vst.msk [vmem:[#allocation2 + $0x88] sm:$0xff] %vm535, %v474
      %554 = vst.msk [vmem:[#allocation2 + $0x90] sm:$0xff] %vm535, %v476
      %555 = vst.msk [vmem:[#allocation2 + $0x98] sm:$0xff] %vm535, %v478
      %556 = vst.msk [vmem:[#allocation2 + $0xa0] sm:$0xff] %vm535, %v480
      %557 = vst.msk [vmem:[#allocation2 + $0xa8] sm:$0xff] %vm535, %v482
      %558 = vst.msk [vmem:[#allocation2 + $0xb0] sm:$0xff] %vm535, %v484
      %559 = vst.msk [vmem:[#allocation2 + $0xb8] sm:$0xff] %vm535, %v486
      %560 = vst.msk [vmem:[#allocation2 + $0xc0] sm:$0xff] %vm535, %v488
      %561 = vst.msk [vmem:[#allocation2 + $0xc8] sm:$0xff] %vm535, %v490
      %562 = vst.msk [vmem:[#allocation2 + $0xd0] sm:$0xff] %vm535, %v492
      %563 = vst.msk [vmem:[#allocation2 + $0xd8] sm:$0xff] %vm535, %v494
      %564 = vst.msk [vmem:[#allocation2 + $0xe0] sm:$0xff] %vm535, %v496
      %565 = vst.msk [vmem:[#allocation2 + $0xe8] sm:$0xff] %vm535, %v498
      %566 = vst.msk [vmem:[#allocation2 + $0xf0] sm:$0xff] %vm535, %v500
      %567 = vst.msk [vmem:[#allocation2 + $0xf8] sm:$0xff] %vm535, %v502
      %570 = vrot.lane.b32.xlu0 %v343, 24
      %v571 = vpop.permute.xlu0 %570
      %572 = vrot.lane.b32.xlu0 %v344, 24
      %v573 = vpop.permute.xlu0 %572
      %574 = vrot.lane.b32.xlu0 %v345, 24
      %v575 = vpop.permute.xlu0 %574
      %576 = vrot.lane.b32.xlu0 %v346, 24
      %v577 = vpop.permute.xlu0 %576
      %578 = vrot.lane.b32.xlu0 %v347, 24
      %v579 = vpop.permute.xlu0 %578
      %580 = vrot.lane.b32.xlu0 %v348, 24
      %v581 = vpop.permute.xlu0 %580
      %582 = vrot.lane.b32.xlu0 %v349, 24
      %v583 = vpop.permute.xlu0 %582
      %584 = vrot.lane.b32.xlu0 %v350, 24
      %v585 = vpop.permute.xlu0 %584
      %586 = vrot.lane.b32.xlu0 %v351, 24
      %v587 = vpop.permute.xlu0 %586
      %588 = vrot.lane.b32.xlu0 %v352, 24
      %v589 = vpop.permute.xlu0 %588
      %590 = vrot.lane.b32.xlu0 %v353, 24
      %v591 = vpop.permute.xlu0 %590
      %592 = vrot.lane.b32.xlu0 %v354, 24
      %v593 = vpop.permute.xlu0 %592
      %594 = vrot.lane.b32.xlu0 %v355, 24
      %v595 = vpop.permute.xlu0 %594
      %596 = vrot.lane.b32.xlu0 %v356, 24
      %v597 = vpop.permute.xlu0 %596
      %598 = vrot.lane.b32.xlu0 %v357, 24
      %v599 = vpop.permute.xlu0 %598
      %600 = vrot.lane.b32.xlu0 %v358, 24
      %v601 = vpop.permute.xlu0 %600
      %602 = vrot.lane.b32.xlu0 %v359, 24
      %v603 = vpop.permute.xlu0 %602
      %604 = vrot.lane.b32.xlu0 %v360, 24
      %v605 = vpop.permute.xlu0 %604
      %606 = vrot.lane.b32.xlu0 %v361, 24
      %v607 = vpop.permute.xlu0 %606
      %608 = vrot.lane.b32.xlu0 %v362, 24
      %v609 = vpop.permute.xlu0 %608
      %610 = vrot.lane.b32.xlu0 %v363, 24
      %v611 = vpop.permute.xlu0 %610
      %612 = vrot.lane.b32.xlu0 %v364, 24
      %v613 = vpop.permute.xlu0 %612
      %614 = vrot.lane.b32.xlu0 %v365, 24
      %v615 = vpop.permute.xlu0 %614
      %616 = vrot.lane.b32.xlu0 %v366, 24
      %v617 = vpop.permute.xlu0 %616
      %618 = vrot.lane.b32.xlu0 %v367, 24
      %v619 = vpop.permute.xlu0 %618
      %620 = vrot.lane.b32.xlu0 %v368, 24
      %v621 = vpop.permute.xlu0 %620
      %622 = vrot.lane.b32.xlu0 %v369, 24
      %v623 = vpop.permute.xlu0 %622
      %624 = vrot.lane.b32.xlu0 %v370, 24
      %v625 = vpop.permute.xlu0 %624
      %626 = vrot.lane.b32.xlu0 %v371, 24
      %v627 = vpop.permute.xlu0 %626
      %628 = vrot.lane.b32.xlu0 %v372, 24
      %v629 = vpop.permute.xlu0 %628
      %630 = vrot.lane.b32.xlu0 %v373, 24
      %v631 = vpop.permute.xlu0 %630
      %632 = vrot.lane.b32.xlu0 %v374, 24
      %v633 = vpop.permute.xlu0 %632
      %vm666 = vcmask 228544
      %667 = vst.msk [vmem:[#allocation2] sm:$0xff] %vm666, %v571
      %668 = vst.msk [vmem:[#allocation2 + $0x8] sm:$0xff] %vm666, %v573
      %669 = vst.msk [vmem:[#allocation2 + $0x10] sm:$0xff] %vm666, %v575
      %670 = vst.msk [vmem:[#allocation2 + $0x18] sm:$0xff] %vm666, %v577
      %671 = vst.msk [vmem:[#allocation2 + $0x20] sm:$0xff] %vm666, %v579
      %672 = vst.msk [vmem:[#allocation2 + $0x28] sm:$0xff] %vm666, %v581
      %673 = vst.msk [vmem:[#allocation2 + $0x30] sm:$0xff] %vm666, %v583
      %674 = vst.msk [vmem:[#allocation2 + $0x38] sm:$0xff] %vm666, %v585
      %675 = vst.msk [vmem:[#allocation2 + $0x40] sm:$0xff] %vm666, %v587
      %676 = vst.msk [vmem:[#allocation2 + $0x48] sm:$0xff] %vm666, %v589
      %677 = vst.msk [vmem:[#allocation2 + $0x50] sm:$0xff] %vm666, %v591
      %678 = vst.msk [vmem:[#allocation2 + $0x58] sm:$0xff] %vm666, %v593
      %679 = vst.msk [vmem:[#allocation2 + $0x60] sm:$0xff] %vm666, %v595
      %680 = vst.msk [vmem:[#allocation2 + $0x68] sm:$0xff] %vm666, %v597
      %681 = vst.msk [vmem:[#allocation2 + $0x70] sm:$0xff] %vm666, %v599
      %682 = vst.msk [vmem:[#allocation2 + $0x78] sm:$0xff] %vm666, %v601
      %683 = vst.msk [vmem:[#allocation2 + $0x80] sm:$0xff] %vm666, %v603
      %684 = vst.msk [vmem:[#allocation2 + $0x88] sm:$0xff] %vm666, %v605
      %685 = vst.msk [vmem:[#allocation2 + $0x90] sm:$0xff] %vm666, %v607
      %686 = vst.msk [vmem:[#allocation2 + $0x98] sm:$0xff] %vm666, %v609
      %687 = vst.msk [vmem:[#allocation2 + $0xa0] sm:$0xff] %vm666, %v611
      %688 = vst.msk [vmem:[#allocation2 + $0xa8] sm:$0xff] %vm666, %v613
      %689 = vst.msk [vmem:[#allocation2 + $0xb0] sm:$0xff] %vm666, %v615
      %690 = vst.msk [vmem:[#allocation2 + $0xb8] sm:$0xff] %vm666, %v617
      %691 = vst.msk [vmem:[#allocation2 + $0xc0] sm:$0xff] %vm666, %v619
      %692 = vst.msk [vmem:[#allocation2 + $0xc8] sm:$0xff] %vm666, %v621
      %693 = vst.msk [vmem:[#allocation2 + $0xd0] sm:$0xff] %vm666, %v623
      %694 = vst.msk [vmem:[#allocation2 + $0xd8] sm:$0xff] %vm666, %v625
      %695 = vst.msk [vmem:[#allocation2 + $0xe0] sm:$0xff] %vm666, %v627
      %696 = vst.msk [vmem:[#allocation2 + $0xe8] sm:$0xff] %vm666, %v629
      %697 = vst.msk [vmem:[#allocation2 + $0xf0] sm:$0xff] %vm666, %v631
      %698 = vst.msk [vmem:[#allocation2 + $0xf8] sm:$0xff] %vm666, %v633
      %v699 = vld [vmem:[#allocation3 + $0x1] sm:$0xff]
      %v700 = vld [vmem:[#allocation3 + $0x9] sm:$0xff]
      %v701 = vld [vmem:[#allocation3 + $0x19] sm:$0xff]
      %v702 = vld [vmem:[#allocation3 + $0x21] sm:$0xff]
      %v703 = vld [vmem:[#allocation3 + $0x31] sm:$0xff]
      %v704 = vld [vmem:[#allocation3 + $0x39] sm:$0xff]
      %v705 = vld [vmem:[#allocation3 + $0x49] sm:$0xff]
      %v706 = vld [vmem:[#allocation3 + $0x51] sm:$0xff]
      %v707 = vld [vmem:[#allocation3 + $0x61] sm:$0xff]
      %v708 = vld [vmem:[#allocation3 + $0x69] sm:$0xff]
      %v709 = vld [vmem:[#allocation3 + $0x79] sm:$0xff]
      %v710 = vld [vmem:[#allocation3 + $0x81] sm:$0xff]
      %v711 = vld [vmem:[#allocation3 + $0x91] sm:$0xff]
      %v712 = vld [vmem:[#allocation3 + $0x99] sm:$0xff]
      %v713 = vld [vmem:[#allocation3 + $0xa9] sm:$0xff]
      %v714 = vld [vmem:[#allocation3 + $0xb1] sm:$0xff]
      %v715 = vld [vmem:[#allocation3 + $0xc1] sm:$0xff]
      %v716 = vld [vmem:[#allocation3 + $0xc9] sm:$0xff]
      %v717 = vld [vmem:[#allocation3 + $0xd9] sm:$0xff]
      %v718 = vld [vmem:[#allocation3 + $0xe1] sm:$0xff]
      %v719 = vld [vmem:[#allocation3 + $0xf1] sm:$0xff]
      %v720 = vld [vmem:[#allocation3 + $0xf9] sm:$0xff]
      %v721 = vld [vmem:[#allocation3 + $0x109] sm:$0xff]
      %v722 = vld [vmem:[#allocation3 + $0x111] sm:$0xff]
      %v723 = vld [vmem:[#allocation3 + $0x121] sm:$0xff]
      %v724 = vld [vmem:[#allocation3 + $0x129] sm:$0xff]
      %v725 = vld [vmem:[#allocation3 + $0x139] sm:$0xff]
      %v726 = vld [vmem:[#allocation3 + $0x141] sm:$0xff]
      %v727 = vld [vmem:[#allocation3 + $0x151] sm:$0xff]
      %v728 = vld [vmem:[#allocation3 + $0x159] sm:$0xff]
      %v729 = vld [vmem:[#allocation3 + $0x169] sm:$0xff]
      %v730 = vld [vmem:[#allocation3 + $0x171] sm:$0xff]
      %v731 = vld [vmem:[#allocation3 + $0x181] sm:$0xff]
      %v732 = vld [vmem:[#allocation3 + $0x189] sm:$0xff]
      %v733 = vld [vmem:[#allocation3 + $0x199] sm:$0xff]
      %v734 = vld [vmem:[#allocation3 + $0x1a1] sm:$0xff]
      %767 = vrot.lane.b32.xlu0 %v699, 4
      %v768 = vpop.permute.xlu0 %767
      %769 = vrot.lane.b32.xlu0 %v700, 4
      %v770 = vpop.permute.xlu0 %769
      %771 = vrot.lane.b32.xlu0 %v701, 4
      %v772 = vpop.permute.xlu0 %771
      %773 = vrot.lane.b32.xlu0 %v702, 4
      %v774 = vpop.permute.xlu0 %773
      %775 = vrot.lane.b32.xlu0 %v703, 4
      %v776 = vpop.permute.xlu0 %775
      %777 = vrot.lane.b32.xlu0 %v704, 4
      %v778 = vpop.permute.xlu0 %777
      %779 = vrot.lane.b32.xlu0 %v705, 4
      %v780 = vpop.permute.xlu0 %779
      %781 = vrot.lane.b32.xlu0 %v706, 4
      %v782 = vpop.permute.xlu0 %781
      %783 = vrot.lane.b32.xlu0 %v707, 4
      %v784 = vpop.permute.xlu0 %783
      %785 = vrot.lane.b32.xlu0 %v708, 4
      %v786 = vpop.permute.xlu0 %785
      %787 = vrot.lane.b32.xlu0 %v709, 4
      %v788 = vpop.permute.xlu0 %787
      %789 = vrot.lane.b32.xlu0 %v710, 4
      %v790 = vpop.permute.xlu0 %789
      %791 = vrot.lane.b32.xlu0 %v711, 4
      %v792 = vpop.permute.xlu0 %791
      %793 = vrot.lane.b32.xlu0 %v712, 4
      %v794 = vpop.permute.xlu0 %793
      %795 = vrot.lane.b32.xlu0 %v713, 4
      %v796 = vpop.permute.xlu0 %795
      %797 = vrot.lane.b32.xlu0 %v714, 4
      %v798 = vpop.permute.xlu0 %797
      %799 = vrot.lane.b32.xlu0 %v715, 4
      %v800 = vpop.permute.xlu0 %799
      %801 = vrot.lane.b32.xlu0 %v716, 4
      %v802 = vpop.permute.xlu0 %801
      %803 = vrot.lane.b32.xlu0 %v717, 4
      %v804 = vpop.permute.xlu0 %803
      %805 = vrot.lane.b32.xlu0 %v718, 4
      %v806 = vpop.permute.xlu0 %805
      %807 = vrot.lane.b32.xlu0 %v719, 4
      %v808 = vpop.permute.xlu0 %807
      %809 = vrot.lane.b32.xlu0 %v720, 4
      %v810 = vpop.permute.xlu0 %809
      %811 = vrot.lane.b32.xlu0 %v721, 4
      %v812 = vpop.permute.xlu0 %811
      %813 = vrot.lane.b32.xlu0 %v722, 4
      %v814 = vpop.permute.xlu0 %813
      %815 = vrot.lane.b32.xlu0 %v723, 4
      %v816 = vpop.permute.xlu0 %815
      %817 = vrot.lane.b32.xlu0 %v724, 4
      %v818 = vpop.permute.xlu0 %817
      %819 = vrot.lane.b32.xlu0 %v725, 4
      %v820 = vpop.permute.xlu0 %819
      %821 = vrot.lane.b32.xlu0 %v726, 4
      %v822 = vpop.permute.xlu0 %821
      %823 = vrot.lane.b32.xlu0 %v727, 4
      %v824 = vpop.permute.xlu0 %823
      %825 = vrot.lane.b32.xlu0 %v728, 4
      %v826 = vpop.permute.xlu0 %825
      %827 = vrot.lane.b32.xlu0 %v729, 4
      %v828 = vpop.permute.xlu0 %827
      %829 = vrot.lane.b32.xlu0 %v730, 4
      %v830 = vpop.permute.xlu0 %829
      %vm863 = vcmask 64544
      %864 = vst.msk [vmem:[#allocation2] sm:$0xff] %vm863, %v768
      %865 = vst.msk [vmem:[#allocation2 + $0x8] sm:$0xff] %vm863, %v770
      %866 = vst.msk [vmem:[#allocation2 + $0x10] sm:$0xff] %vm863, %v772
      %867 = vst.msk [vmem:[#allocation2 + $0x18] sm:$0xff] %vm863, %v774
      %868 = vst.msk [vmem:[#allocation2 + $0x20] sm:$0xff] %vm863, %v776
      %869 = vst.msk [vmem:[#allocation2 + $0x28] sm:$0xff] %vm863, %v778
      %870 = vst.msk [vmem:[#allocation2 + $0x30] sm:$0xff] %vm863, %v780
      %871 = vst.msk [vmem:[#allocation2 + $0x38] sm:$0xff] %vm863, %v782
      %872 = vst.msk [vmem:[#allocation2 + $0x40] sm:$0xff] %vm863, %v784
      %873 = vst.msk [vmem:[#allocation2 + $0x48] sm:$0xff] %vm863, %v786
      %874 = vst.msk [vmem:[#allocation2 + $0x50] sm:$0xff] %vm863, %v788
      %875 = vst.msk [vmem:[#allocation2 + $0x58] sm:$0xff] %vm863, %v790
      %876 = vst.msk [vmem:[#allocation2 + $0x60] sm:$0xff] %vm863, %v792
      %877 = vst.msk [vmem:[#allocation2 + $0x68] sm:$0xff] %vm863, %v794
      %878 = vst.msk [vmem:[#allocation2 + $0x70] sm:$0xff] %vm863, %v796
      %879 = vst.msk [vmem:[#allocation2 + $0x78] sm:$0xff] %vm863, %v798
      %880 = vst.msk [vmem:[#allocation2 + $0x80] sm:$0xff] %vm863, %v800
      %881 = vst.msk [vmem:[#allocation2 + $0x88] sm:$0xff] %vm863, %v802
      %882 = vst.msk [vmem:[#allocation2 + $0x90] sm:$0xff] %vm863, %v804
      %883 = vst.msk [vmem:[#allocation2 + $0x98] sm:$0xff] %vm863, %v806
      %884 = vst.msk [vmem:[#allocation2 + $0xa0] sm:$0xff] %vm863, %v808
      %885 = vst.msk [vmem:[#allocation2 + $0xa8] sm:$0xff] %vm863, %v810
      %886 = vst.msk [vmem:[#allocation2 + $0xb0] sm:$0xff] %vm863, %v812
      %887 = vst.msk [vmem:[#allocation2 + $0xb8] sm:$0xff] %vm863, %v814
      %888 = vst.msk [vmem:[#allocation2 + $0xc0] sm:$0xff] %vm863, %v816
      %889 = vst.msk [vmem:[#allocation2 + $0xc8] sm:$0xff] %vm863, %v818
      %890 = vst.msk [vmem:[#allocation2 + $0xd0] sm:$0xff] %vm863, %v820
      %891 = vst.msk [vmem:[#allocation2 + $0xd8] sm:$0xff] %vm863, %v822
      %892 = vst.msk [vmem:[#allocation2 + $0xe0] sm:$0xff] %vm863, %v824
      %893 = vst.msk [vmem:[#allocation2 + $0xe8] sm:$0xff] %vm863, %v826
      %894 = vst.msk [vmem:[#allocation2 + $0xf0] sm:$0xff] %vm863, %v828
      %895 = vst.msk [vmem:[#allocation2 + $0xf8] sm:$0xff] %vm863, %v830
      %898 = vrot.lane.b32.xlu0 %v701, 16
      %v899 = vpop.permute.xlu0 %898
      %900 = vrot.lane.b32.xlu0 %v702, 16
      %v901 = vpop.permute.xlu0 %900
      %902 = vrot.lane.b32.xlu0 %v703, 16
      %v903 = vpop.permute.xlu0 %902
      %904 = vrot.lane.b32.xlu0 %v704, 16
      %v905 = vpop.permute.xlu0 %904
      %906 = vrot.lane.b32.xlu0 %v705, 16
      %v907 = vpop.permute.xlu0 %906
      %908 = vrot.lane.b32.xlu0 %v706, 16
      %v909 = vpop.permute.xlu0 %908
      %910 = vrot.lane.b32.xlu0 %v707, 16
      %v911 = vpop.permute.xlu0 %910
      %912 = vrot.lane.b32.xlu0 %v708, 16
      %v913 = vpop.permute.xlu0 %912
      %914 = vrot.lane.b32.xlu0 %v709, 16
      %v915 = vpop.permute.xlu0 %914
      %916 = vrot.lane.b32.xlu0 %v710, 16
      %v917 = vpop.permute.xlu0 %916
      %918 = vrot.lane.b32.xlu0 %v711, 16
      %v919 = vpop.permute.xlu0 %918
      %920 = vrot.lane.b32.xlu0 %v712, 16
      %v921 = vpop.permute.xlu0 %920
      %922 = vrot.lane.b32.xlu0 %v713, 16
      %v923 = vpop.permute.xlu0 %922
      %924 = vrot.lane.b32.xlu0 %v714, 16
      %v925 = vpop.permute.xlu0 %924
      %926 = vrot.lane.b32.xlu0 %v715, 16
      %v927 = vpop.permute.xlu0 %926
      %928 = vrot.lane.b32.xlu0 %v716, 16
      %v929 = vpop.permute.xlu0 %928
      %930 = vrot.lane.b32.xlu0 %v717, 16
      %v931 = vpop.permute.xlu0 %930
      %932 = vrot.lane.b32.xlu0 %v718, 16
      %v933 = vpop.permute.xlu0 %932
      %934 = vrot.lane.b32.xlu0 %v719, 16
      %v935 = vpop.permute.xlu0 %934
      %936 = vrot.lane.b32.xlu0 %v720, 16
      %v937 = vpop.permute.xlu0 %936
      %938 = vrot.lane.b32.xlu0 %v721, 16
      %v939 = vpop.permute.xlu0 %938
      %940 = vrot.lane.b32.xlu0 %v722, 16
      %v941 = vpop.permute.xlu0 %940
      %942 = vrot.lane.b32.xlu0 %v723, 16
      %v943 = vpop.permute.xlu0 %942
      %944 = vrot.lane.b32.xlu0 %v724, 16
      %v945 = vpop.permute.xlu0 %944
      %946 = vrot.lane.b32.xlu0 %v725, 16
      %v947 = vpop.permute.xlu0 %946
      %948 = vrot.lane.b32.xlu0 %v726, 16
      %v949 = vpop.permute.xlu0 %948
      %950 = vrot.lane.b32.xlu0 %v727, 16
      %v951 = vpop.permute.xlu0 %950
      %952 = vrot.lane.b32.xlu0 %v728, 16
      %v953 = vpop.permute.xlu0 %952
      %954 = vrot.lane.b32.xlu0 %v729, 16
      %v955 = vpop.permute.xlu0 %954
      %956 = vrot.lane.b32.xlu0 %v730, 16
      %v957 = vpop.permute.xlu0 %956
      %958 = vrot.lane.b32.xlu0 %v731, 16
      %v959 = vpop.permute.xlu0 %958
      %960 = vrot.lane.b32.xlu0 %v732, 16
      %v961 = vpop.permute.xlu0 %960
      %vm994 = vcmask 162944
      %995 = vst.msk [vmem:[#allocation2] sm:$0xff] %vm994, %v899
      %996 = vst.msk [vmem:[#allocation2 + $0x8] sm:$0xff] %vm994, %v901
      %997 = vst.msk [vmem:[#allocation2 + $0x10] sm:$0xff] %vm994, %v903
      %998 = vst.msk [vmem:[#allocation2 + $0x18] sm:$0xff] %vm994, %v905
      %999 = vst.msk [vmem:[#allocation2 + $0x20] sm:$0xff] %vm994, %v907
      %1000 = vst.msk [vmem:[#allocation2 + $0x28] sm:$0xff] %vm994, %v909
      %1001 = vst.msk [vmem:[#allocation2 + $0x30] sm:$0xff] %vm994, %v911
      %1002 = vst.msk [vmem:[#allocation2 + $0x38] sm:$0xff] %vm994, %v913
      %1003 = vst.msk [vmem:[#allocation2 + $0x40] sm:$0xff] %vm994, %v915
      %1004 = vst.msk [vmem:[#allocation2 + $0x48] sm:$0xff] %vm994, %v917
      %1005 = vst.msk [vmem:[#allocation2 + $0x50] sm:$0xff] %vm994, %v919
      %1006 = vst.msk [vmem:[#allocation2 + $0x58] sm:$0xff] %vm994, %v921
      %1007 = vst.msk [vmem:[#allocation2 + $0x60] sm:$0xff] %vm994, %v923
      %1008 = vst.msk [vmem:[#allocation2 + $0x68] sm:$0xff] %vm994, %v925
      %1009 = vst.msk [vmem:[#allocation2 + $0x70] sm:$0xff] %vm994, %v927
      %1010 = vst.msk [vmem:[#allocation2 + $0x78] sm:$0xff] %vm994, %v929
      %1011 = vst.msk [vmem:[#allocation2 + $0x80] sm:$0xff] %vm994, %v931
      %1012 = vst.msk [vmem:[#allocation2 + $0x88] sm:$0xff] %vm994, %v933
      %1013 = vst.msk [vmem:[#allocation2 + $0x90] sm:$0xff] %vm994, %v935
      %1014 = vst.msk [vmem:[#allocation2 + $0x98] sm:$0xff] %vm994, %v937
      %1015 = vst.msk [vmem:[#allocation2 + $0xa0] sm:$0xff] %vm994, %v939
      %1016 = vst.msk [vmem:[#allocation2 + $0xa8] sm:$0xff] %vm994, %v941
      %1017 = vst.msk [vmem:[#allocation2 + $0xb0] sm:$0xff] %vm994, %v943
      %1018 = vst.msk [vmem:[#allocation2 + $0xb8] sm:$0xff] %vm994, %v945
      %1019 = vst.msk [vmem:[#allocation2 + $0xc0] sm:$0xff] %vm994, %v947
      %1020 = vst.msk [vmem:[#allocation2 + $0xc8] sm:$0xff] %vm994, %v949
      %1021 = vst.msk [vmem:[#allocation2 + $0xd0] sm:$0xff] %vm994, %v951
      %1022 = vst.msk [vmem:[#allocation2 + $0xd8] sm:$0xff] %vm994, %v953
      %1023 = vst.msk [vmem:[#allocation2 + $0xe0] sm:$0xff] %vm994, %v955
      %1024 = vst.msk [vmem:[#allocation2 + $0xe8] sm:$0xff] %vm994, %v957
      %1025 = vst.msk [vmem:[#allocation2 + $0xf0] sm:$0xff] %vm994, %v959
      %1026 = vst.msk [vmem:[#allocation2 + $0xf8] sm:$0xff] %vm994, %v961
      %1029 = vrot.lane.b32.xlu0 %v703, 28
      %v1030 = vpop.permute.xlu0 %1029
      %1031 = vrot.lane.b32.xlu0 %v704, 28
      %v1032 = vpop.permute.xlu0 %1031
      %1033 = vrot.lane.b32.xlu0 %v705, 28
      %v1034 = vpop.permute.xlu0 %1033
      %1035 = vrot.lane.b32.xlu0 %v706, 28
      %v1036 = vpop.permute.xlu0 %1035
      %1037 = vrot.lane.b32.xlu0 %v707, 28
      %v1038 = vpop.permute.xlu0 %1037
      %1039 = vrot.lane.b32.xlu0 %v708, 28
      %v1040 = vpop.permute.xlu0 %1039
      %1041 = vrot.lane.b32.xlu0 %v709, 28
      %v1042 = vpop.permute.xlu0 %1041
      %1043 = vrot.lane.b32.xlu0 %v710, 28
      %v1044 = vpop.permute.xlu0 %1043
      %1045 = vrot.lane.b32.xlu0 %v711, 28
      %v1046 = vpop.permute.xlu0 %1045
      %1047 = vrot.lane.b32.xlu0 %v712, 28
      %v1048 = vpop.permute.xlu0 %1047
      %1049 = vrot.lane.b32.xlu0 %v713, 28
      %v1050 = vpop.permute.xlu0 %1049
      %1051 = vrot.lane.b32.xlu0 %v714, 28
      %v1052 = vpop.permute.xlu0 %1051
      %1053 = vrot.lane.b32.xlu0 %v715, 28
      %v1054 = vpop.permute.xlu0 %1053
      %1055 = vrot.lane.b32.xlu0 %v716, 28
      %v1056 = vpop.permute.xlu0 %1055
      %1057 = vrot.lane.b32.xlu0 %v717, 28
      %v1058 = vpop.permute.xlu0 %1057
      %1059 = vrot.lane.b32.xlu0 %v718, 28
      %v1060 = vpop.permute.xlu0 %1059
      %1061 = vrot.lane.b32.xlu0 %v719, 28
      %v1062 = vpop.permute.xlu0 %1061
      %1063 = vrot.lane.b32.xlu0 %v720, 28
      %v1064 = vpop.permute.xlu0 %1063
      %1065 = vrot.lane.b32.xlu0 %v721, 28
      %v1066 = vpop.permute.xlu0 %1065
      %1067 = vrot.lane.b32.xlu0 %v722, 28
      %v1068 = vpop.permute.xlu0 %1067
      %1069 = vrot.lane.b32.xlu0 %v723, 28
      %v1070 = vpop.permute.xlu0 %1069
      %1071 = vrot.lane.b32.xlu0 %v724, 28
      %v1072 = vpop.permute.xlu0 %1071
      %1073 = vrot.lane.b32.xlu0 %v725, 28
      %v1074 = vpop.permute.xlu0 %1073
      %1075 = vrot.lane.b32.xlu0 %v726, 28
      %v1076 = vpop.permute.xlu0 %1075
      %1077 = vrot.lane.b32.xlu0 %v727, 28
      %v1078 = vpop.permute.xlu0 %1077
      %1079 = vrot.lane.b32.xlu0 %v728, 28
      %v1080 = vpop.permute.xlu0 %1079
      %1081 = vrot.lane.b32.xlu0 %v729, 28
      %v1082 = vpop.permute.xlu0 %1081
      %1083 = vrot.lane.b32.xlu0 %v730, 28
      %v1084 = vpop.permute.xlu0 %1083
      %1085 = vrot.lane.b32.xlu0 %v731, 28
      %v1086 = vpop.permute.xlu0 %1085
      %1087 = vrot.lane.b32.xlu0 %v732, 28
      %v1088 = vpop.permute.xlu0 %1087
      %1089 = vrot.lane.b32.xlu0 %v733, 28
      %v1090 = vpop.permute.xlu0 %1089
      %1091 = vrot.lane.b32.xlu0 %v734, 28
      %v1092 = vpop.permute.xlu0 %1091
      %vm1125 = vcmask 261344
      %1126 = vst.msk [vmem:[#allocation2] sm:$0xff] %vm1125, %v1030
      %1127 = vst.msk [vmem:[#allocation2 + $0x8] sm:$0xff] %vm1125, %v1032
      %1128 = vst.msk [vmem:[#allocation2 + $0x10] sm:$0xff] %vm1125, %v1034
      %1129 = vst.msk [vmem:[#allocation2 + $0x18] sm:$0xff] %vm1125, %v1036
      %1130 = vst.msk [vmem:[#allocation2 + $0x20] sm:$0xff] %vm1125, %v1038
      %1131 = vst.msk [vmem:[#allocation2 + $0x28] sm:$0xff] %vm1125, %v1040
      %1132 = vst.msk [vmem:[#allocation2 + $0x30] sm:$0xff] %vm1125, %v1042
      %1133 = vst.msk [vmem:[#allocation2 + $0x38] sm:$0xff] %vm1125, %v1044
      %1134 = vst.msk [vmem:[#allocation2 + $0x40] sm:$0xff] %vm1125, %v1046
      %1135 = vst.msk [vmem:[#allocation2 + $0x48] sm:$0xff] %vm1125, %v1048
      %1136 = vst.msk [vmem:[#allocation2 + $0x50] sm:$0xff] %vm1125, %v1050
      %1137 = vst.msk [vmem:[#allocation2 + $0x58] sm:$0xff] %vm1125, %v1052
      %1138 = vst.msk [vmem:[#allocation2 + $0x60] sm:$0xff] %vm1125, %v1054
      %1139 = vst.msk [vmem:[#allocation2 + $0x68] sm:$0xff] %vm1125, %v1056
      %1140 = vst.msk [vmem:[#allocation2 + $0x70] sm:$0xff] %vm1125, %v1058
      %1141 = vst.msk [vmem:[#allocation2 + $0x78] sm:$0xff] %vm1125, %v1060
      %1142 = vst.msk [vmem:[#allocation2 + $0x80] sm:$0xff] %vm1125, %v1062
      %1143 = vst.msk [vmem:[#allocation2 + $0x88] sm:$0xff] %vm1125, %v1064
      %1144 = vst.msk [vmem:[#allocation2 + $0x90] sm:$0xff] %vm1125, %v1066
      %1145 = vst.msk [vmem:[#allocation2 + $0x98] sm:$0xff] %vm1125, %v1068
      %1146 = vst.msk [vmem:[#allocation2 + $0xa0] sm:$0xff] %vm1125, %v1070
      %1147 = vst.msk [vmem:[#allocation2 + $0xa8] sm:$0xff] %vm1125, %v1072
      %1148 = vst.msk [vmem:[#allocation2 + $0xb0] sm:$0xff] %vm1125, %v1074
      %1149 = vst.msk [vmem:[#allocation2 + $0xb8] sm:$0xff] %vm1125, %v1076
      %1150 = vst.msk [vmem:[#allocation2 + $0xc0] sm:$0xff] %vm1125, %v1078
      %1151 = vst.msk [vmem:[#allocation2 + $0xc8] sm:$0xff] %vm1125, %v1080
      %1152 = vst.msk [vmem:[#allocation2 + $0xd0] sm:$0xff] %vm1125, %v1082
      %1153 = vst.msk [vmem:[#allocation2 + $0xd8] sm:$0xff] %vm1125, %v1084
      %1154 = vst.msk [vmem:[#allocation2 + $0xe0] sm:$0xff] %vm1125, %v1086
      %1155 = vst.msk [vmem:[#allocation2 + $0xe8] sm:$0xff] %vm1125, %v1088
      %1156 = vst.msk [vmem:[#allocation2 + $0xf0] sm:$0xff] %vm1125, %v1090
      %1157 = vst.msk [vmem:[#allocation2 + $0xf8] sm:$0xff] %vm1125, %v1092
      %v1158 = vld [vmem:[#allocation3 + $0x2] sm:$0xff]
      %v1159 = vld [vmem:[#allocation3 + $0xa] sm:$0xff]
      %v1160 = vld [vmem:[#allocation3 + $0x1a] sm:$0xff]
      %v1161 = vld [vmem:[#allocation3 + $0x22] sm:$0xff]
      %v1162 = vld [vmem:[#allocation3 + $0x32] sm:$0xff]
      %v1163 = vld [vmem:[#allocation3 + $0x3a] sm:$0xff]
      %v1164 = vld [vmem:[#allocation3 + $0x4a] sm:$0xff]
      %v1165 = vld [vmem:[#allocation3 + $0x52] sm:$0xff]
      %v1166 = vld [vmem:[#allocation3 + $0x62] sm:$0xff]
      %v1167 = vld [vmem:[#allocation3 + $0x6a] sm:$0xff]
      %v1168 = vld [vmem:[#allocation3 + $0x7a] sm:$0xff]
      %v1169 = vld [vmem:[#allocation3 + $0x82] sm:$0xff]
      %v1170 = vld [vmem:[#allocation3 + $0x92] sm:$0xff]
      %v1171 = vld [vmem:[#allocation3 + $0x9a] sm:$0xff]
      %v1172 = vld [vmem:[#allocation3 + $0xaa] sm:$0xff]
      %v1173 = vld [vmem:[#allocation3 + $0xb2] sm:$0xff]
      %v1174 = vld [vmem:[#allocation3 + $0xc2] sm:$0xff]
      %v1175 = vld [vmem:[#allocation3 + $0xca] sm:$0xff]
      %v1176 = vld [vmem:[#allocation3 + $0xda] sm:$0xff]
      %v1177 = vld [vmem:[#allocation3 + $0xe2] sm:$0xff]
      %v1178 = vld [vmem:[#allocation3 + $0xf2] sm:$0xff]
      %v1179 = vld [vmem:[#allocation3 + $0xfa] sm:$0xff]
      %v1180 = vld [vmem:[#allocation3 + $0x10a] sm:$0xff]
      %v1181 = vld [vmem:[#allocation3 + $0x112] sm:$0xff]
      %v1182 = vld [vmem:[#allocation3 + $0x122] sm:$0xff]
      %v1183 = vld [vmem:[#allocation3 + $0x12a] sm:$0xff]
      %v1184 = vld [vmem:[#allocation3 + $0x13a] sm:$0xff]
      %v1185 = vld [vmem:[#allocation3 + $0x142] sm:$0xff]
      %v1186 = vld [vmem:[#allocation3 + $0x152] sm:$0xff]
      %v1187 = vld [vmem:[#allocation3 + $0x15a] sm:$0xff]
      %v1188 = vld [vmem:[#allocation3 + $0x16a] sm:$0xff]
      %v1189 = vld [vmem:[#allocation3 + $0x172] sm:$0xff]
      %v1190 = vld [vmem:[#allocation3 + $0x182] sm:$0xff]
      %v1191 = vld [vmem:[#allocation3 + $0x18a] sm:$0xff]
      %v1192 = vld [vmem:[#allocation3 + $0x19a] sm:$0xff]
      %v1193 = vld [vmem:[#allocation3 + $0x1a2] sm:$0xff]
      %1226 = vrot.lane.b32.xlu0 %v1158, 8
      %v1227 = vpop.permute.xlu0 %1226
      %1228 = vrot.lane.b32.xlu0 %v1159, 8
      %v1229 = vpop.permute.xlu0 %1228
      %1230 = vrot.lane.b32.xlu0 %v1160, 8
      %v1231 = vpop.permute.xlu0 %1230
      %1232 = vrot.lane.b32.xlu0 %v1161, 8
      %v1233 = vpop.permute.xlu0 %1232
      %1234 = vrot.lane.b32.xlu0 %v1162, 8
      %v1235 = vpop.permute.xlu0 %1234
      %1236 = vrot.lane.b32.xlu0 %v1163, 8
      %v1237 = vpop.permute.xlu0 %1236
      %1238 = vrot.lane.b32.xlu0 %v1164, 8
      %v1239 = vpop.permute.xlu0 %1238
      %1240 = vrot.lane.b32.xlu0 %v1165, 8
      %v1241 = vpop.permute.xlu0 %1240
      %1242 = vrot.lane.b32.xlu0 %v1166, 8
      %v1243 = vpop.permute.xlu0 %1242
      %1244 = vrot.lane.b32.xlu0 %v1167, 8
      %v1245 = vpop.permute.xlu0 %1244
      %1246 = vrot.lane.b32.xlu0 %v1168, 8
      %v1247 = vpop.permute.xlu0 %1246
      %1248 = vrot.lane.b32.xlu0 %v1169, 8
      %v1249 = vpop.permute.xlu0 %1248
      %1250 = vrot.lane.b32.xlu0 %v1170, 8
      %v1251 = vpop.permute.xlu0 %1250
      %1252 = vrot.lane.b32.xlu0 %v1171, 8
      %v1253 = vpop.permute.xlu0 %1252
      %1254 = vrot.lane.b32.xlu0 %v1172, 8
      %v1255 = vpop.permute.xlu0 %1254
      %1256 = vrot.lane.b32.xlu0 %v1173, 8
      %v1257 = vpop.permute.xlu0 %1256
      %1258 = vrot.lane.b32.xlu0 %v1174, 8
      %v1259 = vpop.permute.xlu0 %1258
      %1260 = vrot.lane.b32.xlu0 %v1175, 8
      %v1261 = vpop.permute.xlu0 %1260
      %1262 = vrot.lane.b32.xlu0 %v1176, 8
      %v1263 = vpop.permute.xlu0 %1262
      %1264 = vrot.lane.b32.xlu0 %v1177, 8
      %v1265 = vpop.permute.xlu0 %1264
      %1266 = vrot.lane.b32.xlu0 %v1178, 8
      %v1267 = vpop.permute.xlu0 %1266
      %1268 = vrot.lane.b32.xlu0 %v1179, 8
      %v1269 = vpop.permute.xlu0 %1268
      %1270 = vrot.lane.b32.xlu0 %v1180, 8
      %v1271 = vpop.permute.xlu0 %1270
      %1272 = vrot.lane.b32.xlu0 %v1181, 8
      %v1273 = vpop.permute.xlu0 %1272
      %1274 = vrot.lane.b32.xlu0 %v1182, 8
      %v1275 = vpop.permute.xlu0 %1274
      %1276 = vrot.lane.b32.xlu0 %v1183, 8
      %v1277 = vpop.permute.xlu0 %1276
      %1278 = vrot.lane.b32.xlu0 %v1184, 8
      %v1279 = vpop.permute.xlu0 %1278
      %1280 = vrot.lane.b32.xlu0 %v1185, 8
      %v1281 = vpop.permute.xlu0 %1280
      %1282 = vrot.lane.b32.xlu0 %v1186, 8
      %v1283 = vpop.permute.xlu0 %1282
      %1284 = vrot.lane.b32.xlu0 %v1187, 8
      %v1285 = vpop.permute.xlu0 %1284
      %1286 = vrot.lane.b32.xlu0 %v1188, 8
      %v1287 = vpop.permute.xlu0 %1286
      %1288 = vrot.lane.b32.xlu0 %v1189, 8
      %v1289 = vpop.permute.xlu0 %1288
      %vm1322 = vcmask 97344
      %1323 = vst.msk [vmem:[#allocation2] sm:$0xff] %vm1322, %v1227
      %1324 = vst.msk [vmem:[#allocation2 + $0x8] sm:$0xff] %vm1322, %v1229
      %1325 = vst.msk [vmem:[#allocation2 + $0x10] sm:$0xff] %vm1322, %v1231
      %1326 = vst.msk [vmem:[#allocation2 + $0x18] sm:$0xff] %vm1322, %v1233
      %1327 = vst.msk [vmem:[#allocation2 + $0x20] sm:$0xff] %vm1322, %v1235
      %1328 = vst.msk [vmem:[#allocation2 + $0x28] sm:$0xff] %vm1322, %v1237
      %1329 = vst.msk [vmem:[#allocation2 + $0x30] sm:$0xff] %vm1322, %v1239
      %1330 = vst.msk [vmem:[#allocation2 + $0x38] sm:$0xff] %vm1322, %v1241
      %1331 = vst.msk [vmem:[#allocation2 + $0x40] sm:$0xff] %vm1322, %v1243
      %1332 = vst.msk [vmem:[#allocation2 + $0x48] sm:$0xff] %vm1322, %v1245
      %1333 = vst.msk [vmem:[#allocation2 + $0x50] sm:$0xff] %vm1322, %v1247
      %1334 = vst.msk [vmem:[#allocation2 + $0x58] sm:$0xff] %vm1322, %v1249
      %1335 = vst.msk [vmem:[#allocation2 + $0x60] sm:$0xff] %vm1322, %v1251
      %1336 = vst.msk [vmem:[#allocation2 + $0x68] sm:$0xff] %vm1322, %v1253
      %1337 = vst.msk [vmem:[#allocation2 + $0x70] sm:$0xff] %vm1322, %v1255
      %1338 = vst.msk [vmem:[#allocation2 + $0x78] sm:$0xff] %vm1322, %v1257
      %1339 = vst.msk [vmem:[#allocation2 + $0x80] sm:$0xff] %vm1322, %v1259
      %1340 = vst.msk [vmem:[#allocation2 + $0x88] sm:$0xff] %vm1322, %v1261
      %1341 = vst.msk [vmem:[#allocation2 + $0x90] sm:$0xff] %vm1322, %v1263
      %1342 = vst.msk [vmem:[#allocation2 + $0x98] sm:$0xff] %vm1322, %v1265
      %1343 = vst.msk [vmem:[#allocation2 + $0xa0] sm:$0xff] %vm1322, %v1267
      %1344 = vst.msk [vmem:[#allocation2 + $0xa8] sm:$0xff] %vm1322, %v1269
      %1345 = vst.msk [vmem:[#allocation2 + $0xb0] sm:$0xff] %vm1322, %v1271
      %1346 = vst.msk [vmem:[#allocation2 + $0xb8] sm:$0xff] %vm1322, %v1273
      %1347 = vst.msk [vmem:[#allocation2 + $0xc0] sm:$0xff] %vm1322, %v1275
      %1348 = vst.msk [vmem:[#allocation2 + $0xc8] sm:$0xff] %vm1322, %v1277
      %1349 = vst.msk [vmem:[#allocation2 + $0xd0] sm:$0xff] %vm1322, %v1279
      %1350 = vst.msk [vmem:[#allocation2 + $0xd8] sm:$0xff] %vm1322, %v1281
      %1351 = vst.msk [vmem:[#allocation2 + $0xe0] sm:$0xff] %vm1322, %v1283
      %1352 = vst.msk [vmem:[#allocation2 + $0xe8] sm:$0xff] %vm1322, %v1285
      %1353 = vst.msk [vmem:[#allocation2 + $0xf0] sm:$0xff] %vm1322, %v1287
      %1354 = vst.msk [vmem:[#allocation2 + $0xf8] sm:$0xff] %vm1322, %v1289
      %1357 = vrot.lane.b32.xlu0 %v1160, 20
      %v1358 = vpop.permute.xlu0 %1357
      %1359 = vrot.lane.b32.xlu0 %v1161, 20
      %v1360 = vpop.permute.xlu0 %1359
      %1361 = vrot.lane.b32.xlu0 %v1162, 20
      %v1362 = vpop.permute.xlu0 %1361
      %1363 = vrot.lane.b32.xlu0 %v1163, 20
      %v1364 = vpop.permute.xlu0 %1363
      %1365 = vrot.lane.b32.xlu0 %v1164, 20
      %v1366 = vpop.permute.xlu0 %1365
      %1367 = vrot.lane.b32.xlu0 %v1165, 20
      %v1368 = vpop.permute.xlu0 %1367
      %1369 = vrot.lane.b32.xlu0 %v1166, 20
      %v1370 = vpop.permute.xlu0 %1369
      %1371 = vrot.lane.b32.xlu0 %v1167, 20
      %v1372 = vpop.permute.xlu0 %1371
      %1373 = vrot.lane.b32.xlu0 %v1168, 20
      %v1374 = vpop.permute.xlu0 %1373
      %1375 = vrot.lane.b32.xlu0 %v1169, 20
      %v1376 = vpop.permute.xlu0 %1375
      %1377 = vrot.lane.b32.xlu0 %v1170, 20
      %v1378 = vpop.permute.xlu0 %1377
      %1379 = vrot.lane.b32.xlu0 %v1171, 20
      %v1380 = vpop.permute.xlu0 %1379
      %1381 = vrot.lane.b32.xlu0 %v1172, 20
      %v1382 = vpop.permute.xlu0 %1381
      %1383 = vrot.lane.b32.xlu0 %v1173, 20
      %v1384 = vpop.permute.xlu0 %1383
      %1385 = vrot.lane.b32.xlu0 %v1174, 20
      %v1386 = vpop.permute.xlu0 %1385
      %1387 = vrot.lane.b32.xlu0 %v1175, 20
      %v1388 = vpop.permute.xlu0 %1387
      %1389 = vrot.lane.b32.xlu0 %v1176, 20
      %v1390 = vpop.permute.xlu0 %1389
      %1391 = vrot.lane.b32.xlu0 %v1177, 20
      %v1392 = vpop.permute.xlu0 %1391
      %1393 = vrot.lane.b32.xlu0 %v1178, 20
      %v1394 = vpop.permute.xlu0 %1393
      %1395 = vrot.lane.b32.xlu0 %v1179, 20
      %v1396 = vpop.permute.xlu0 %1395
      %1397 = vrot.lane.b32.xlu0 %v1180, 20
      %v1398 = vpop.permute.xlu0 %1397
      %1399 = vrot.lane.b32.xlu0 %v1181, 20
      %v1400 = vpop.permute.xlu0 %1399
      %1401 = vrot.lane.b32.xlu0 %v1182, 20
      %v1402 = vpop.permute.xlu0 %1401
      %1403 = vrot.lane.b32.xlu0 %v1183, 20
      %v1404 = vpop.permute.xlu0 %1403
      %1405 = vrot.lane.b32.xlu0 %v1184, 20
      %v1406 = vpop.permute.xlu0 %1405
      %1407 = vrot.lane.b32.xlu0 %v1185, 20
      %v1408 = vpop.permute.xlu0 %1407
      %1409 = vrot.lane.b32.xlu0 %v1186, 20
      %v1410 = vpop.permute.xlu0 %1409
      %1411 = vrot.lane.b32.xlu0 %v1187, 20
      %v1412 = vpop.permute.xlu0 %1411
      %1413 = vrot.lane.b32.xlu0 %v1188, 20
      %v1414 = vpop.permute.xlu0 %1413
      %1415 = vrot.lane.b32.xlu0 %v1189, 20
      %v1416 = vpop.permute.xlu0 %1415
      %1417 = vrot.lane.b32.xlu0 %v1190, 20
      %v1418 = vpop.permute.xlu0 %1417
      %1419 = vrot.lane.b32.xlu0 %v1191, 20
      %v1420 = vpop.permute.xlu0 %1419
      %vm1453 = vcmask 195744
      %1454 = vst.msk [vmem:[#allocation2] sm:$0xff] %vm1453, %v1358
      %1455 = vst.msk [vmem:[#allocation2 + $0x8] sm:$0xff] %vm1453, %v1360
      %1456 = vst.msk [vmem:[#allocation2 + $0x10] sm:$0xff] %vm1453, %v1362
      %1457 = vst.msk [vmem:[#allocation2 + $0x18] sm:$0xff] %vm1453, %v1364
      %1458 = vst.msk [vmem:[#allocation2 + $0x20] sm:$0xff] %vm1453, %v1366
      %1459 = vst.msk [vmem:[#allocation2 + $0x28] sm:$0xff] %vm1453, %v1368
      %1460 = vst.msk [vmem:[#allocation2 + $0x30] sm:$0xff] %vm1453, %v1370
      %1461 = vst.msk [vmem:[#allocation2 + $0x38] sm:$0xff] %vm1453, %v1372
      %1462 = vst.msk [vmem:[#allocation2 + $0x40] sm:$0xff] %vm1453, %v1374
      %1463 = vst.msk [vmem:[#allocation2 + $0x48] sm:$0xff] %vm1453, %v1376
      %1464 = vst.msk [vmem:[#allocation2 + $0x50] sm:$0xff] %vm1453, %v1378
      %1465 = vst.msk [vmem:[#allocation2 + $0x58] sm:$0xff] %vm1453, %v1380
      %1466 = vst.msk [vmem:[#allocation2 + $0x60] sm:$0xff] %vm1453, %v1382
      %1467 = vst.msk [vmem:[#allocation2 + $0x68] sm:$0xff] %vm1453, %v1384
      %1468 = vst.msk [vmem:[#allocation2 + $0x70] sm:$0xff] %vm1453, %v1386
      %1469 = vst.msk [vmem:[#allocation2 + $0x78] sm:$0xff] %vm1453, %v1388
      %1470 = vst.msk [vmem:[#allocation2 + $0x80] sm:$0xff] %vm1453, %v1390
      %1471 = vst.msk [vmem:[#allocation2 + $0x88] sm:$0xff] %vm1453, %v1392
      %1472 = vst.msk [vmem:[#allocation2 + $0x90] sm:$0xff] %vm1453, %v1394
      %1473 = vst.msk [vmem:[#allocation2 + $0x98] sm:$0xff] %vm1453, %v1396
      %1474 = vst.msk [vmem:[#allocation2 + $0xa0] sm:$0xff] %vm1453, %v1398
      %1475 = vst.msk [vmem:[#allocation2 + $0xa8] sm:$0xff] %vm1453, %v1400
      %1476 = vst.msk [vmem:[#allocation2 + $0xb0] sm:$0xff] %vm1453, %v1402
      %1477 = vst.msk [vmem:[#allocation2 + $0xb8] sm:$0xff] %vm1453, %v1404
      %1478 = vst.msk [vmem:[#allocation2 + $0xc0] sm:$0xff] %vm1453, %v1406
      %1479 = vst.msk [vmem:[#allocation2 + $0xc8] sm:$0xff] %vm1453, %v1408
      %1480 = vst.msk [vmem:[#allocation2 + $0xd0] sm:$0xff] %vm1453, %v1410
      %1481 = vst.msk [vmem:[#allocation2 + $0xd8] sm:$0xff] %vm1453, %v1412
      %1482 = vst.msk [vmem:[#allocation2 + $0xe0] sm:$0xff] %vm1453, %v1414
      %1483 = vst.msk [vmem:[#allocation2 + $0xe8] sm:$0xff] %vm1453, %v1416
      %1484 = vst.msk [vmem:[#allocation2 + $0xf0] sm:$0xff] %vm1453, %v1418
      %1485 = vst.msk [vmem:[#allocation2 + $0xf8] sm:$0xff] %vm1453, %v1420
      %1488 = vrot.lane.b32.xlu0 %v1162, 32
      %v1489 = vpop.permute.xlu0 %1488
      %1490 = vrot.lane.b32.xlu0 %v1163, 32
      %v1491 = vpop.permute.xlu0 %1490
      %1492 = vrot.lane.b32.xlu0 %v1164, 32
      %v1493 = vpop.permute.xlu0 %1492
      %1494 = vrot.lane.b32.xlu0 %v1165, 32
      %v1495 = vpop.permute.xlu0 %1494
      %1496 = vrot.lane.b32.xlu0 %v1166, 32
      %v1497 = vpop.permute.xlu0 %1496
      %1498 = vrot.lane.b32.xlu0 %v1167, 32
      %v1499 = vpop.permute.xlu0 %1498
      %1500 = vrot.lane.b32.xlu0 %v1168, 32
      %v1501 = vpop.permute.xlu0 %1500
      %1502 = vrot.lane.b32.xlu0 %v1169, 32
      %v1503 = vpop.permute.xlu0 %1502
      %1504 = vrot.lane.b32.xlu0 %v1170, 32
      %v1505 = vpop.permute.xlu0 %1504
      %1506 = vrot.lane.b32.xlu0 %v1171, 32
      %v1507 = vpop.permute.xlu0 %1506
      %1508 = vrot.lane.b32.xlu0 %v1172, 32
      %v1509 = vpop.permute.xlu0 %1508
      %1510 = vrot.lane.b32.xlu0 %v1173, 32
      %v1511 = vpop.permute.xlu0 %1510
      %1512 = vrot.lane.b32.xlu0 %v1174, 32
      %v1513 = vpop.permute.xlu0 %1512
      %1514 = vrot.lane.b32.xlu0 %v1175, 32
      %v1515 = vpop.permute.xlu0 %1514
      %1516 = vrot.lane.b32.xlu0 %v1176, 32
      %v1517 = vpop.permute.xlu0 %1516
      %1518 = vrot.lane.b32.xlu0 %v1177, 32
      %v1519 = vpop.permute.xlu0 %1518
      %1520 = vrot.lane.b32.xlu0 %v1178, 32
      %v1521 = vpop.permute.xlu0 %1520
      %1522 = vrot.lane.b32.xlu0 %v1179, 32
      %v1523 = vpop.permute.xlu0 %1522
      %1524 = vrot.lane.b32.xlu0 %v1180, 32
      %v1525 = vpop.permute.xlu0 %1524
      %1526 = vrot.lane.b32.xlu0 %v1181, 32
      %v1527 = vpop.permute.xlu0 %1526
      %1528 = vrot.lane.b32.xlu0 %v1182, 32
      %v1529 = vpop.permute.xlu0 %1528
      %1530 = vrot.lane.b32.xlu0 %v1183, 32
      %v1531 = vpop.permute.xlu0 %1530
      %1532 = vrot.lane.b32.xlu0 %v1184, 32
      %v1533 = vpop.permute.xlu0 %1532
      %1534 = vrot.lane.b32.xlu0 %v1185, 32
      %v1535 = vpop.permute.xlu0 %1534
      %1536 = vrot.lane.b32.xlu0 %v1186, 32
      %v1537 = vpop.permute.xlu0 %1536
      %1538 = vrot.lane.b32.xlu0 %v1187, 32
      %v1539 = vpop.permute.xlu0 %1538
      %1540 = vrot.lane.b32.xlu0 %v1188, 32
      %v1541 = vpop.permute.xlu0 %1540
      %1542 = vrot.lane.b32.xlu0 %v1189, 32
      %v1543 = vpop.permute.xlu0 %1542
      %1544 = vrot.lane.b32.xlu0 %v1190, 32
      %v1545 = vpop.permute.xlu0 %1544
      %1546 = vrot.lane.b32.xlu0 %v1191, 32
      %v1547 = vpop.permute.xlu0 %1546
      %1548 = vrot.lane.b32.xlu0 %v1192, 32
      %v1549 = vpop.permute.xlu0 %1548
      %1550 = vrot.lane.b32.xlu0 %v1193, 32
      %v1551 = vpop.permute.xlu0 %1550
      %vm1584 = vcmask 294144
      %1585 = vst.msk [vmem:[#allocation2] sm:$0xff] %vm1584, %v1489
      %1586 = vst.msk [vmem:[#allocation2 + $0x8] sm:$0xff] %vm1584, %v1491
      %1587 = vst.msk [vmem:[#allocation2 + $0x10] sm:$0xff] %vm1584, %v1493
      %1588 = vst.msk [vmem:[#allocation2 + $0x18] sm:$0xff] %vm1584, %v1495
      %1589 = vst.msk [vmem:[#allocation2 + $0x20] sm:$0xff] %vm1584, %v1497
      %1590 = vst.msk [vmem:[#allocation2 + $0x28] sm:$0xff] %vm1584, %v1499
      %1591 = vst.msk [vmem:[#allocation2 + $0x30] sm:$0xff] %vm1584, %v1501
      %1592 = vst.msk [vmem:[#allocation2 + $0x38] sm:$0xff] %vm1584, %v1503
      %1593 = vst.msk [vmem:[#allocation2 + $0x40] sm:$0xff] %vm1584, %v1505
      %1594 = vst.msk [vmem:[#allocation2 + $0x48] sm:$0xff] %vm1584, %v1507
      %1595 = vst.msk [vmem:[#allocation2 + $0x50] sm:$0xff] %vm1584, %v1509
      %1596 = vst.msk [vmem:[#allocation2 + $0x58] sm:$0xff] %vm1584, %v1511
      %1597 = vst.msk [vmem:[#allocation2 + $0x60] sm:$0xff] %vm1584, %v1513
      %1598 = vst.msk [vmem:[#allocation2 + $0x68] sm:$0xff] %vm1584, %v1515
      %1599 = vst.msk [vmem:[#allocation2 + $0x70] sm:$0xff] %vm1584, %v1517
      %1600 = vst.msk [vmem:[#allocation2 + $0x78] sm:$0xff] %vm1584, %v1519
      %1601 = vst.msk [vmem:[#allocation2 + $0x80] sm:$0xff] %vm1584, %v1521
      %1602 = vst.msk [vmem:[#allocation2 + $0x88] sm:$0xff] %vm1584, %v1523
      %1603 = vst.msk [vmem:[#allocation2 + $0x90] sm:$0xff] %vm1584, %v1525
      %1604 = vst.msk [vmem:[#allocation2 + $0x98] sm:$0xff] %vm1584, %v1527
      %1605 = vst.msk [vmem:[#allocation2 + $0xa0] sm:$0xff] %vm1584, %v1529
      %1606 = vst.msk [vmem:[#allocation2 + $0xa8] sm:$0xff] %vm1584, %v1531
      %1607 = vst.msk [vmem:[#allocation2 + $0xb0] sm:$0xff] %vm1584, %v1533
      %1608 = vst.msk [vmem:[#allocation2 + $0xb8] sm:$0xff] %vm1584, %v1535
      %1609 = vst.msk [vmem:[#allocation2 + $0xc0] sm:$0xff] %vm1584, %v1537
      %1610 = vst.msk [vmem:[#allocation2 + $0xc8] sm:$0xff] %vm1584, %v1539
      %1611 = vst.msk [vmem:[#allocation2 + $0xd0] sm:$0xff] %vm1584, %v1541
      %1612 = vst.msk [vmem:[#allocation2 + $0xd8] sm:$0xff] %vm1584, %v1543
      %1613 = vst.msk [vmem:[#allocation2 + $0xe0] sm:$0xff] %vm1584, %v1545
      %1614 = vst.msk [vmem:[#allocation2 + $0xe8] sm:$0xff] %vm1584, %v1547
      %1615 = vst.msk [vmem:[#allocation2 + $0xf0] sm:$0xff] %vm1584, %v1549
      %1616 = vst.msk [vmem:[#allocation2 + $0xf8] sm:$0xff] %vm1584, %v1551
      %v1617 = vld [vmem:[#allocation2] sm:$0xff]
      %v1618 = vld [vmem:[#allocation2 + $0x8] sm:$0xff]
      %v1619 = vld [vmem:[#allocation2 + $0x10] sm:$0xff]
      %v1620 = vld [vmem:[#allocation2 + $0x18] sm:$0xff]
      %v1621 = vld [vmem:[#allocation2 + $0x20] sm:$0xff]
      %v1622 = vld [vmem:[#allocation2 + $0x28] sm:$0xff]
      %v1623 = vld [vmem:[#allocation2 + $0x30] sm:$0xff]
      %v1624 = vld [vmem:[#allocation2 + $0x38] sm:$0xff]
      %v1625 = vld [vmem:[#allocation2 + $0x40] sm:$0xff]
      %v1626 = vld [vmem:[#allocation2 + $0x48] sm:$0xff]
      %v1627 = vld [vmem:[#allocation2 + $0x50] sm:$0xff]
      %v1628 = vld [vmem:[#allocation2 + $0x58] sm:$0xff]
      %v1629 = vld [vmem:[#allocation2 + $0x60] sm:$0xff]
      %v1630 = vld [vmem:[#allocation2 + $0x68] sm:$0xff]
      %v1631 = vld [vmem:[#allocation2 + $0x70] sm:$0xff]
      %v1632 = vld [vmem:[#allocation2 + $0x78] sm:$0xff]
      %v1633 = vld [vmem:[#allocation2 + $0x80] sm:$0xff]
      %v1634 = vld [vmem:[#allocation2 + $0x88] sm:$0xff]
      %v1635 = vld [vmem:[#allocation2 + $0x90] sm:$0xff]
      %v1636 = vld [vmem:[#allocation2 + $0x98] sm:$0xff]
      %v1637 = vld [vmem:[#allocation2 + $0xa0] sm:$0xff]
      %v1638 = vld [vmem:[#allocation2 + $0xa8] sm:$0xff]
      %v1639 = vld [vmem:[#allocation2 + $0xb0] sm:$0xff]
      %v1640 = vld [vmem:[#allocation2 + $0xb8] sm:$0xff]
      %v1641 = vld [vmem:[#allocation2 + $0xc0] sm:$0xff]
      %v1642 = vld [vmem:[#allocation2 + $0xc8] sm:$0xff]
      %v1643 = vld [vmem:[#allocation2 + $0xd0] sm:$0xff]
      %v1644 = vld [vmem:[#allocation2 + $0xd8] sm:$0xff]
      %v1645 = vld [vmem:[#allocation2 + $0xe0] sm:$0xff]
      %v1646 = vld [vmem:[#allocation2 + $0xe8] sm:$0xff]
      %v1647 = vld [vmem:[#allocation2 + $0xf0] sm:$0xff]
      %v1648 = vld [vmem:[#allocation2 + $0xf8] sm:$0xff]
      %v1649 = vld [vmem:[%s1] sm:$0xff]
      %v1650 = vld [vmem:[%s1 + $0x8] sm:$0xff]
      %v1651 = vld [vmem:[%s1 + $0x10] sm:$0xff]
      %v1652 = vld [vmem:[%s1 + $0x18] sm:$0xff]
      %v1653 = vld [vmem:[%s1 + $0x20] sm:$0xf]
      %v1654 = vld [vmem:[%s2] sm:$0x1]
      %v1656 = vperm.slane %v1654, 0
      %vm1658 = vcmask 293888
      %v1660 = vsel %vm1658, %v1617, 0
      %v1663 = vsel %vm1658, %v1618, 0
      %v1666 = vsel %vm1658, %v1619, 0
      %v1669 = vsel %vm1658, %v1620, 0
      %v1672 = vsel %vm1658, %v1621, 0
      %v1675 = vsel %vm1658, %v1622, 0
      %v1678 = vsel %vm1658, %v1623, 0
      %v1681 = vsel %vm1658, %v1624, 0
      %v1684 = vsel %vm1658, %v1625, 0
      %v1687 = vsel %vm1658, %v1626, 0
      %v1690 = vsel %vm1658, %v1627, 0
      %v1693 = vsel %vm1658, %v1628, 0
      %v1696 = vsel %vm1658, %v1629, 0
      %v1699 = vsel %vm1658, %v1630, 0
      %v1702 = vsel %vm1658, %v1631, 0
      %v1705 = vsel %vm1658, %v1632, 0
      %v1708 = vsel %vm1658, %v1633, 0
      %v1711 = vsel %vm1658, %v1634, 0
      %v1714 = vsel %vm1658, %v1635, 0
      %v1717 = vsel %vm1658, %v1636, 0
      %v1720 = vsel %vm1658, %v1637, 0
      %v1723 = vsel %vm1658, %v1638, 0
      %v1726 = vsel %vm1658, %v1639, 0
      %v1729 = vsel %vm1658, %v1640, 0
      %v1732 = vsel %vm1658, %v1641, 0
      %v1735 = vsel %vm1658, %v1642, 0
      %v1738 = vsel %vm1658, %v1643, 0
      %v1741 = vsel %vm1658, %v1644, 0
      %v1744 = vsel %vm1658, %v1645, 0
      %v1747 = vsel %vm1658, %v1646, 0
      %v1750 = vsel %vm1658, %v1647, 0
      %v1753 = vsel %vm1658, %v1648, 0
      %vm1755 = vcmask 1043456
      %v1757 = vsel %vm1755, %v1653, 0
      %1759 = vmatpush.msra.mxu0 0.0
      %1760 = vmatpush.msra.mxu0 0.0
      %1761 = vmatpush.msra.mxu0 0.0
      %1762 = vmatpush.msra.mxu0 0.0
      %1763 = vmatpush.msra.mxu0 0.0
      %1764 = vmatpush.msra.mxu0 0.0
      %1765 = vmatpush.msra.mxu0 0.0
      %1766 = vmatpush.msra.mxu0 0.0
      %1767 = vmatpush.msra.mxu0 0.0
      %1768 = vmatpush.msra.mxu0 0.0
      %1769 = vmatpush.msra.mxu0 0.0
      %v1770 = vand.u32 %v1757, 4294901760
      %1771 = vmatpush.msra.mxu0 %v1770
      %v1772 = vand.u32 %v1652, 4294901760
      %1773 = vmatpush.msra.mxu0 %v1772
      %v1774 = vand.u32 %v1651, 4294901760
      %1775 = vmatpush.msra.mxu0 %v1774
      %v1776 = vand.u32 %v1650, 4294901760
      %1777 = vmatpush.msra.mxu0 %v1776
      %v1778 = vand.u32 %v1649, 4294901760
      %1779 = vmatpush.msra.mxu0 %v1778
      %v1780 = vand.u32 %v1660, 4294901760
      %v1781 = vsub.f32 %v1660, %v1780
      %v1782 = vand.u32 %v1781, 4294901760
      %v1783 = vsub.f32 %v1781, %v1782
      %v1784 = vand.u32 %v1783, 4294901760
      %1785 = vmatmul.f32.gmra.mxu0 %v1784
      %v1786 = vpop.f32.mrf.mxu0
      %v1787 = vadd.f32 %v1656, %v1786
      %v1788 = vand.u32 %v1663, 4294901760
      %v1789 = vsub.f32 %v1663, %v1788
      %v1790 = vand.u32 %v1789, 4294901760
      %v1791 = vsub.f32 %v1789, %v1790
      %v1792 = vand.u32 %v1791, 4294901760
      %1793 = vmatmul.f32.gmra.mxu0 %v1792
      %v1794 = vpop.f32.mrf.mxu0
      %v1795 = vadd.f32 %v1656, %v1794
      %v1796 = vand.u32 %v1666, 4294901760
      %v1797 = vsub.f32 %v1666, %v1796
      %v1798 = vand.u32 %v1797, 4294901760
      %v1799 = vsub.f32 %v1797, %v1798
      %v1800 = vand.u32 %v1799, 4294901760
      %1801 = vmatmul.f32.gmra.mxu0 %v1800
      %v1802 = vpop.f32.mrf.mxu0
      %v1803 = vadd.f32 %v1656, %v1802
      %v1804 = vand.u32 %v1669, 4294901760
      %v1805 = vsub.f32 %v1669, %v1804
      %v1806 = vand.u32 %v1805, 4294901760
      %v1807 = vsub.f32 %v1805, %v1806
      %v1808 = vand.u32 %v1807, 4294901760
      %1809 = vmatmul.f32.gmra.mxu0 %v1808
      %v1810 = vpop.f32.mrf.mxu0
      %v1811 = vadd.f32 %v1656, %v1810
      %v1812 = vand.u32 %v1672, 4294901760
      %v1813 = vsub.f32 %v1672, %v1812
      %v1814 = vand.u32 %v1813, 4294901760
      %v1815 = vsub.f32 %v1813, %v1814
      %v1816 = vand.u32 %v1815, 4294901760
      %1817 = vmatmul.f32.gmra.mxu0 %v1816
      %v1818 = vpop.f32.mrf.mxu0
      %v1819 = vadd.f32 %v1656, %v1818
      %v1820 = vand.u32 %v1675, 4294901760
      %v1821 = vsub.f32 %v1675, %v1820
      %v1822 = vand.u32 %v1821, 4294901760
      %v1823 = vsub.f32 %v1821, %v1822
      %v1824 = vand.u32 %v1823, 4294901760
      %1825 = vmatmul.f32.gmra.mxu0 %v1824
      %v1826 = vpop.f32.mrf.mxu0
      %v1827 = vadd.f32 %v1656, %v1826
      %v1828 = vand.u32 %v1678, 4294901760
      %v1829 = vsub.f32 %v1678, %v1828
      %v1830 = vand.u32 %v1829, 4294901760
      %v1831 = vsub.f32 %v1829, %v1830
      %v1832 = vand.u32 %v1831, 4294901760
      %1833 = vmatmul.f32.gmra.mxu0 %v1832
      %v1834 = vpop.f32.mrf.mxu0
      %v1835 = vadd.f32 %v1656, %v1834
      %v1836 = vand.u32 %v1681, 4294901760
      %v1837 = vsub.f32 %v1681, %v1836
      %v1838 = vand.u32 %v1837, 4294901760
      %v1839 = vsub.f32 %v1837, %v1838
      %v1840 = vand.u32 %v1839, 4294901760
      %1841 = vmatmul.f32.gmra.mxu0 %v1840
      %v1842 = vpop.f32.mrf.mxu0
      %v1843 = vadd.f32 %v1656, %v1842
      %v1844 = vand.u32 %v1684, 4294901760
      %v1845 = vsub.f32 %v1684, %v1844
      %v1846 = vand.u32 %v1845, 4294901760
      %v1847 = vsub.f32 %v1845, %v1846
      %v1848 = vand.u32 %v1847, 4294901760
      %1849 = vmatmul.f32.gmra.mxu0 %v1848
      %v1850 = vpop.f32.mrf.mxu0
      %v1851 = vadd.f32 %v1656, %v1850
      %v1852 = vand.u32 %v1687, 4294901760
      %v1853 = vsub.f32 %v1687, %v1852
      %v1854 = vand.u32 %v1853, 4294901760
      %v1855 = vsub.f32 %v1853, %v1854
      %v1856 = vand.u32 %v1855, 4294901760
      %1857 = vmatmul.f32.gmra.mxu0 %v1856
      %v1858 = vpop.f32.mrf.mxu0
      %v1859 = vadd.f32 %v1656, %v1858
      %v1860 = vand.u32 %v1690, 4294901760
      %v1861 = vsub.f32 %v1690, %v1860
      %v1862 = vand.u32 %v1861, 4294901760
      %v1863 = vsub.f32 %v1861, %v1862
      %v1864 = vand.u32 %v1863, 4294901760
      %1865 = vmatmul.f32.gmra.mxu0 %v1864
      %v1866 = vpop.f32.mrf.mxu0
      %v1867 = vadd.f32 %v1656, %v1866
      %v1868 = vand.u32 %v1693, 4294901760
      %v1869 = vsub.f32 %v1693, %v1868
      %v1870 = vand.u32 %v1869, 4294901760
      %v1871 = vsub.f32 %v1869, %v1870
      %v1872 = vand.u32 %v1871, 4294901760
      %1873 = vmatmul.f32.gmra.mxu0 %v1872
      %v1874 = vpop.f32.mrf.mxu0
      %v1875 = vadd.f32 %v1656, %v1874
      %v1876 = vand.u32 %v1696, 4294901760
      %v1877 = vsub.f32 %v1696, %v1876
      %v1878 = vand.u32 %v1877, 4294901760
      %v1879 = vsub.f32 %v1877, %v1878
      %v1880 = vand.u32 %v1879, 4294901760
      %1881 = vmatmul.f32.gmra.mxu0 %v1880
      %v1882 = vpop.f32.mrf.mxu0
      %v1883 = vadd.f32 %v1656, %v1882
      %v1884 = vand.u32 %v1699, 4294901760
      %v1885 = vsub.f32 %v1699, %v1884
      %v1886 = vand.u32 %v1885, 4294901760
      %v1887 = vsub.f32 %v1885, %v1886
      %v1888 = vand.u32 %v1887, 4294901760
      %1889 = vmatmul.f32.gmra.mxu0 %v1888
      %v1890 = vpop.f32.mrf.mxu0
      %v1891 = vadd.f32 %v1656, %v1890
      %v1892 = vand.u32 %v1702, 4294901760
      %v1893 = vsub.f32 %v1702, %v1892
      %v1894 = vand.u32 %v1893, 4294901760
      %v1895 = vsub.f32 %v1893, %v1894
      %v1896 = vand.u32 %v1895, 4294901760
      %1897 = vmatmul.f32.gmra.mxu0 %v1896
      %v1898 = vpop.f32.mrf.mxu0
      %v1899 = vadd.f32 %v1656, %v1898
      %v1900 = vand.u32 %v1705, 4294901760
      %v1901 = vsub.f32 %v1705, %v1900
      %v1902 = vand.u32 %v1901, 4294901760
      %v1903 = vsub.f32 %v1901, %v1902
      %v1904 = vand.u32 %v1903, 4294901760
      %1905 = vmatmul.f32.gmra.mxu0 %v1904
      %v1906 = vpop.f32.mrf.mxu0
      %v1907 = vadd.f32 %v1656, %v1906
      %v1908 = vand.u32 %v1708, 4294901760
      %v1909 = vsub.f32 %v1708, %v1908
      %v1910 = vand.u32 %v1909, 4294901760
      %v1911 = vsub.f32 %v1909, %v1910
      %v1912 = vand.u32 %v1911, 4294901760
      %1913 = vmatmul.f32.gmra.mxu0 %v1912
      %v1914 = vpop.f32.mrf.mxu0
      %v1915 = vadd.f32 %v1656, %v1914
      %v1916 = vand.u32 %v1711, 4294901760
      %v1917 = vsub.f32 %v1711, %v1916
      %v1918 = vand.u32 %v1917, 4294901760
      %v1919 = vsub.f32 %v1917, %v1918
      %v1920 = vand.u32 %v1919, 4294901760
      %1921 = vmatmul.f32.gmra.mxu0 %v1920
      %v1922 = vpop.f32.mrf.mxu0
      %v1923 = vadd.f32 %v1656, %v1922
      %v1924 = vand.u32 %v1714, 4294901760
      %v1925 = vsub.f32 %v1714, %v1924
      %v1926 = vand.u32 %v1925, 4294901760
      %v1927 = vsub.f32 %v1925, %v1926
      %v1928 = vand.u32 %v1927, 4294901760
      %1929 = vmatmul.f32.gmra.mxu0 %v1928
      %v1930 = vpop.f32.mrf.mxu0
      %v1931 = vadd.f32 %v1656, %v1930
      %v1932 = vand.u32 %v1717, 4294901760
      %v1933 = vsub.f32 %v1717, %v1932
      %v1934 = vand.u32 %v1933, 4294901760
      %v1935 = vsub.f32 %v1933, %v1934
      %v1936 = vand.u32 %v1935, 4294901760
      %1937 = vmatmul.f32.gmra.mxu0 %v1936
      %v1938 = vpop.f32.mrf.mxu0
      %v1939 = vadd.f32 %v1656, %v1938
      %v1940 = vand.u32 %v1720, 4294901760
      %v1941 = vsub.f32 %v1720, %v1940
      %v1942 = vand.u32 %v1941, 4294901760
      %v1943 = vsub.f32 %v1941, %v1942
      %v1944 = vand.u32 %v1943, 4294901760
      %1945 = vmatmul.f32.gmra.mxu0 %v1944
      %v1946 = vpop.f32.mrf.mxu0
      %v1947 = vadd.f32 %v1656, %v1946
      %v1948 = vand.u32 %v1723, 4294901760
      %v1949 = vsub.f32 %v1723, %v1948
      %v1950 = vand.u32 %v1949, 4294901760
      %v1951 = vsub.f32 %v1949, %v1950
      %v1952 = vand.u32 %v1951, 4294901760
      %1953 = vmatmul.f32.gmra.mxu0 %v1952
      %v1954 = vpop.f32.mrf.mxu0
      %v1955 = vadd.f32 %v1656, %v1954
      %v1956 = vand.u32 %v1726, 4294901760
      %v1957 = vsub.f32 %v1726, %v1956
      %v1958 = vand.u32 %v1957, 4294901760
      %v1959 = vsub.f32 %v1957, %v1958
      %v1960 = vand.u32 %v1959, 4294901760
      %1961 = vmatmul.f32.gmra.mxu0 %v1960
      %v1962 = vpop.f32.mrf.mxu0
      %v1963 = vadd.f32 %v1656, %v1962
      %v1964 = vand.u32 %v1729, 4294901760
      %v1965 = vsub.f32 %v1729, %v1964
      %v1966 = vand.u32 %v1965, 4294901760
      %v1967 = vsub.f32 %v1965, %v1966
      %v1968 = vand.u32 %v1967, 4294901760
      %1969 = vmatmul.f32.gmra.mxu0 %v1968
      %v1970 = vpop.f32.mrf.mxu0
      %v1971 = vadd.f32 %v1656, %v1970
      %v1972 = vand.u32 %v1732, 4294901760
      %v1973 = vsub.f32 %v1732, %v1972
      %v1974 = vand.u32 %v1973, 4294901760
      %v1975 = vsub.f32 %v1973, %v1974
      %v1976 = vand.u32 %v1975, 4294901760
      %1977 = vmatmul.f32.gmra.mxu0 %v1976
      %v1978 = vpop.f32.mrf.mxu0
      %v1979 = vadd.f32 %v1656, %v1978
      %v1980 = vand.u32 %v1735, 4294901760
      %v1981 = vsub.f32 %v1735, %v1980
      %v1982 = vand.u32 %v1981, 4294901760
      %v1983 = vsub.f32 %v1981, %v1982
      %v1984 = vand.u32 %v1983, 4294901760
      %1985 = vmatmul.f32.gmra.mxu0 %v1984
      %v1986 = vpop.f32.mrf.mxu0
      %v1987 = vadd.f32 %v1656, %v1986
      %v1988 = vand.u32 %v1738, 4294901760
      %v1989 = vsub.f32 %v1738, %v1988
      %v1990 = vand.u32 %v1989, 4294901760
      %v1991 = vsub.f32 %v1989, %v1990
      %v1992 = vand.u32 %v1991, 4294901760
      %1993 = vmatmul.f32.gmra.mxu0 %v1992
      %v1994 = vpop.f32.mrf.mxu0
      %v1995 = vadd.f32 %v1656, %v1994
      %v1996 = vand.u32 %v1741, 4294901760
      %v1997 = vsub.f32 %v1741, %v1996
      %v1998 = vand.u32 %v1997, 4294901760
      %v1999 = vsub.f32 %v1997, %v1998
      %v2000 = vand.u32 %v1999, 4294901760
      %2001 = vmatmul.f32.gmra.mxu0 %v2000
      %v2002 = vpop.f32.mrf.mxu0
      %v2003 = vadd.f32 %v1656, %v2002
      %v2004 = vand.u32 %v1744, 4294901760
      %v2005 = vsub.f32 %v1744, %v2004
      %v2006 = vand.u32 %v2005, 4294901760
      %v2007 = vsub.f32 %v2005, %v2006
      %v2008 = vand.u32 %v2007, 4294901760
      %2009 = vmatmul.f32.gmra.mxu0 %v2008
      %v2010 = vpop.f32.mrf.mxu0
      %v2011 = vadd.f32 %v1656, %v2010
      %v2012 = vand.u32 %v1747, 4294901760
      %v2013 = vsub.f32 %v1747, %v2012
      %v2014 = vand.u32 %v2013, 4294901760
      %v2015 = vsub.f32 %v2013, %v2014
      %v2016 = vand.u32 %v2015, 4294901760
      %2017 = vmatmul.f32.gmra.mxu0 %v2016
      %v2018 = vpop.f32.mrf.mxu0
      %v2019 = vadd.f32 %v1656, %v2018
      %v2020 = vand.u32 %v1750, 4294901760
      %v2021 = vsub.f32 %v1750, %v2020
      %v2022 = vand.u32 %v2021, 4294901760
      %v2023 = vsub.f32 %v2021, %v2022
      %v2024 = vand.u32 %v2023, 4294901760
      %2025 = vmatmul.f32.gmra.mxu0 %v2024
      %v2026 = vpop.f32.mrf.mxu0
      %v2027 = vadd.f32 %v1656, %v2026
      %v2028 = vand.u32 %v1753, 4294901760
      %v2029 = vsub.f32 %v1753, %v2028
      %v2030 = vand.u32 %v2029, 4294901760
      %v2031 = vsub.f32 %v2029, %v2030
      %v2032 = vand.u32 %v2031, 4294901760
      %2033 = vmatmul.f32.gmra.mxu0 %v2032
      %v2034 = vpop.f32.mrf.mxu0
      %v2035 = vadd.f32 %v1656, %v2034
      %2036 = vdwg.mxu0
      %2037 = vmatpush.msra.mxu0 0.0
      %2038 = vmatpush.msra.mxu0 0.0
      %2039 = vmatpush.msra.mxu0 0.0
      %2040 = vmatpush.msra.mxu0 0.0
      %2041 = vmatpush.msra.mxu0 0.0
      %2042 = vmatpush.msra.mxu0 0.0
      %2043 = vmatpush.msra.mxu0 0.0
      %2044 = vmatpush.msra.mxu0 0.0
      %2045 = vmatpush.msra.mxu0 0.0
      %2046 = vmatpush.msra.mxu0 0.0
      %2047 = vmatpush.msra.mxu0 0.0
      %v2048 = vand.u32 %v1757, 4294901760
      %v2049 = vsub.f32 %v1757, %v2048
      %v2050 = vand.u32 %v2049, 4294901760
      %v2051 = vsub.f32 %v2049, %v2050
      %v2052 = vand.u32 %v2051, 4294901760
      %2053 = vmatpush.msra.mxu0 %v2052
      %v2054 = vand.u32 %v1652, 4294901760
      %v2055 = vsub.f32 %v1652, %v2054
      %v2056 = vand.u32 %v2055, 4294901760
      %v2057 = vsub.f32 %v2055, %v2056
      %v2058 = vand.u32 %v2057, 4294901760
      %2059 = vmatpush.msra.mxu0 %v2058
      %v2060 = vand.u32 %v1651, 4294901760
      %v2061 = vsub.f32 %v1651, %v2060
      %v2062 = vand.u32 %v2061, 4294901760
      %v2063 = vsub.f32 %v2061, %v2062
      %v2064 = vand.u32 %v2063, 4294901760
      %2065 = vmatpush.msra.mxu0 %v2064
      %v2066 = vand.u32 %v1650, 4294901760
      %v2067 = vsub.f32 %v1650, %v2066
      %v2068 = vand.u32 %v2067, 4294901760
      %v2069 = vsub.f32 %v2067, %v2068
      %v2070 = vand.u32 %v2069, 4294901760
      %2071 = vmatpush.msra.mxu0 %v2070
      %v2072 = vand.u32 %v1649, 4294901760
      %v2073 = vsub.f32 %v1649, %v2072
      %v2074 = vand.u32 %v2073, 4294901760
      %v2075 = vsub.f32 %v2073, %v2074
      %v2076 = vand.u32 %v2075, 4294901760
      %2077 = vmatpush.msra.mxu0 %v2076
      %v2078 = vand.u32 %v1660, 4294901760
      %2079 = vmatmul.f32.gmra.mxu0 %v2078
      %v2080 = vpop.f32.mrf.mxu0
      %v2081 = vadd.f32 %v1787, %v2080
      %v2082 = vand.u32 %v1663, 4294901760
      %2083 = vmatmul.f32.gmra.mxu0 %v2082
      %v2084 = vpop.f32.mrf.mxu0
      %v2085 = vadd.f32 %v1795, %v2084
      %v2086 = vand.u32 %v1666, 4294901760
      %2087 = vmatmul.f32.gmra.mxu0 %v2086
      %v2088 = vpop.f32.mrf.mxu0
      %v2089 = vadd.f32 %v1803, %v2088
      %v2090 = vand.u32 %v1669, 4294901760
      %2091 = vmatmul.f32.gmra.mxu0 %v2090
      %v2092 = vpop.f32.mrf.mxu0
      %v2093 = vadd.f32 %v1811, %v2092
      %v2094 = vand.u32 %v1672, 4294901760
      %2095 = vmatmul.f32.gmra.mxu0 %v2094
      %v2096 = vpop.f32.mrf.mxu0
      %v2097 = vadd.f32 %v1819, %v2096
      %v2098 = vand.u32 %v1675, 4294901760
      %2099 = vmatmul.f32.gmra.mxu0 %v2098
      %v2100 = vpop.f32.mrf.mxu0
      %v2101 = vadd.f32 %v1827, %v2100
      %v2102 = vand.u32 %v1678, 4294901760
      %2103 = vmatmul.f32.gmra.mxu0 %v2102
      %v2104 = vpop.f32.mrf.mxu0
      %v2105 = vadd.f32 %v1835, %v2104
      %v2106 = vand.u32 %v1681, 4294901760
      %2107 = vmatmul.f32.gmra.mxu0 %v2106
      %v2108 = vpop.f32.mrf.mxu0
      %v2109 = vadd.f32 %v1843, %v2108
      %v2110 = vand.u32 %v1684, 4294901760
      %2111 = vmatmul.f32.gmra.mxu0 %v2110
      %v2112 = vpop.f32.mrf.mxu0
      %v2113 = vadd.f32 %v1851, %v2112
      %v2114 = vand.u32 %v1687, 4294901760
      %2115 = vmatmul.f32.gmra.mxu0 %v2114
      %v2116 = vpop.f32.mrf.mxu0
      %v2117 = vadd.f32 %v1859, %v2116
      %v2118 = vand.u32 %v1690, 4294901760
      %2119 = vmatmul.f32.gmra.mxu0 %v2118
      %v2120 = vpop.f32.mrf.mxu0
      %v2121 = vadd.f32 %v1867, %v2120
      %v2122 = vand.u32 %v1693, 4294901760
      %2123 = vmatmul.f32.gmra.mxu0 %v2122
      %v2124 = vpop.f32.mrf.mxu0
      %v2125 = vadd.f32 %v1875, %v2124
      %v2126 = vand.u32 %v1696, 4294901760
      %2127 = vmatmul.f32.gmra.mxu0 %v2126
      %v2128 = vpop.f32.mrf.mxu0
      %v2129 = vadd.f32 %v1883, %v2128
      %v2130 = vand.u32 %v1699, 4294901760
      %2131 = vmatmul.f32.gmra.mxu0 %v2130
      %v2132 = vpop.f32.mrf.mxu0
      %v2133 = vadd.f32 %v1891, %v2132
      %v2134 = vand.u32 %v1702, 4294901760
      %2135 = vmatmul.f32.gmra.mxu0 %v2134
      %v2136 = vpop.f32.mrf.mxu0
      %v2137 = vadd.f32 %v1899, %v2136
      %v2138 = vand.u32 %v1705, 4294901760
      %2139 = vmatmul.f32.gmra.mxu0 %v2138
      %v2140 = vpop.f32.mrf.mxu0
      %v2141 = vadd.f32 %v1907, %v2140
      %v2142 = vand.u32 %v1708, 4294901760
      %2143 = vmatmul.f32.gmra.mxu0 %v2142
      %v2144 = vpop.f32.mrf.mxu0
      %v2145 = vadd.f32 %v1915, %v2144
      %v2146 = vand.u32 %v1711, 4294901760
      %2147 = vmatmul.f32.gmra.mxu0 %v2146
      %v2148 = vpop.f32.mrf.mxu0
      %v2149 = vadd.f32 %v1923, %v2148
      %v2150 = vand.u32 %v1714, 4294901760
      %2151 = vmatmul.f32.gmra.mxu0 %v2150
      %v2152 = vpop.f32.mrf.mxu0
      %v2153 = vadd.f32 %v1931, %v2152
      %v2154 = vand.u32 %v1717, 4294901760
      %2155 = vmatmul.f32.gmra.mxu0 %v2154
      %v2156 = vpop.f32.mrf.mxu0
      %v2157 = vadd.f32 %v1939, %v2156
      %v2158 = vand.u32 %v1720, 4294901760
      %2159 = vmatmul.f32.gmra.mxu0 %v2158
      %v2160 = vpop.f32.mrf.mxu0
      %v2161 = vadd.f32 %v1947, %v2160
      %v2162 = vand.u32 %v1723, 4294901760
      %2163 = vmatmul.f32.gmra.mxu0 %v2162
      %v2164 = vpop.f32.mrf.mxu0
      %v2165 = vadd.f32 %v1955, %v2164
      %v2166 = vand.u32 %v1726, 4294901760
      %2167 = vmatmul.f32.gmra.mxu0 %v2166
      %v2168 = vpop.f32.mrf.mxu0
      %v2169 = vadd.f32 %v1963, %v2168
      %v2170 = vand.u32 %v1729, 4294901760
      %2171 = vmatmul.f32.gmra.mxu0 %v2170
      %v2172 = vpop.f32.mrf.mxu0
      %v2173 = vadd.f32 %v1971, %v2172
      %v2174 = vand.u32 %v1732, 4294901760
      %2175 = vmatmul.f32.gmra.mxu0 %v2174
      %v2176 = vpop.f32.mrf.mxu0
      %v2177 = vadd.f32 %v1979, %v2176
      %v2178 = vand.u32 %v1735, 4294901760
      %2179 = vmatmul.f32.gmra.mxu0 %v2178
      %v2180 = vpop.f32.mrf.mxu0
      %v2181 = vadd.f32 %v1987, %v2180
      %v2182 = vand.u32 %v1738, 4294901760
      %2183 = vmatmul.f32.gmra.mxu0 %v2182
      %v2184 = vpop.f32.mrf.mxu0
      %v2185 = vadd.f32 %v1995, %v2184
      %v2186 = vand.u32 %v1741, 4294901760
      %2187 = vmatmul.f32.gmra.mxu0 %v2186
      %v2188 = vpop.f32.mrf.mxu0
      %v2189 = vadd.f32 %v2003, %v2188
      %v2190 = vand.u32 %v1744, 4294901760
      %2191 = vmatmul.f32.gmra.mxu0 %v2190
      %v2192 = vpop.f32.mrf.mxu0
      %v2193 = vadd.f32 %v2011, %v2192
      %v2194 = vand.u32 %v1747, 4294901760
      %2195 = vmatmul.f32.gmra.mxu0 %v2194
      %v2196 = vpop.f32.mrf.mxu0
      %v2197 = vadd.f32 %v2019, %v2196
      %v2198 = vand.u32 %v1750, 4294901760
      %2199 = vmatmul.f32.gmra.mxu0 %v2198
      %v2200 = vpop.f32.mrf.mxu0
      %v2201 = vadd.f32 %v2027, %v2200
      %v2202 = vand.u32 %v1753, 4294901760
      %2203 = vmatmul.f32.gmra.mxu0 %v2202
      %v2204 = vpop.f32.mrf.mxu0
      %v2205 = vadd.f32 %v2035, %v2204
      %2206 = vdwg.mxu0
      %2207 = vmatpush.msra.mxu0 0.0
      %2208 = vmatpush.msra.mxu0 0.0
      %2209 = vmatpush.msra.mxu0 0.0
      %2210 = vmatpush.msra.mxu0 0.0
      %2211 = vmatpush.msra.mxu0 0.0
      %2212 = vmatpush.msra.mxu0 0.0
      %2213 = vmatpush.msra.mxu0 0.0
      %2214 = vmatpush.msra.mxu0 0.0
      %2215 = vmatpush.msra.mxu0 0.0
      %2216 = vmatpush.msra.mxu0 0.0
      %2217 = vmatpush.msra.mxu0 0.0
      %v2218 = vand.u32 %v1757, 4294901760
      %v2219 = vsub.f32 %v1757, %v2218
      %2220 = vmatpush.msra.mxu0 %v2219
      %v2221 = vand.u32 %v1652, 4294901760
      %v2222 = vsub.f32 %v1652, %v2221
      %2223 = vmatpush.msra.mxu0 %v2222
      %v2224 = vand.u32 %v1651, 4294901760
      %v2225 = vsub.f32 %v1651, %v2224
      %2226 = vmatpush.msra.mxu0 %v2225
      %v2227 = vand.u32 %v1650, 4294901760
      %v2228 = vsub.f32 %v1650, %v2227
      %2229 = vmatpush.msra.mxu0 %v2228
      %v2230 = vand.u32 %v1649, 4294901760
      %v2231 = vsub.f32 %v1649, %v2230
      %2232 = vmatpush.msra.mxu0 %v2231
      %v2233 = vand.u32 %v1660, 4294901760
      %v2234 = vsub.f32 %v1660, %v2233
      %2235 = vmatmul.f32.gmra.mxu0 %v2234
      %v2236 = vpop.f32.mrf.mxu0
      %v2237 = vadd.f32 %v2081, %v2236
      %v2238 = vand.u32 %v1663, 4294901760
      %v2239 = vsub.f32 %v1663, %v2238
      %2240 = vmatmul.f32.gmra.mxu0 %v2239
      %v2241 = vpop.f32.mrf.mxu0
      %v2242 = vadd.f32 %v2085, %v2241
      %v2243 = vand.u32 %v1666, 4294901760
      %v2244 = vsub.f32 %v1666, %v2243
      %2245 = vmatmul.f32.gmra.mxu0 %v2244
      %v2246 = vpop.f32.mrf.mxu0
      %v2247 = vadd.f32 %v2089, %v2246
      %v2248 = vand.u32 %v1669, 4294901760
      %v2249 = vsub.f32 %v1669, %v2248
      %2250 = vmatmul.f32.gmra.mxu0 %v2249
      %v2251 = vpop.f32.mrf.mxu0
      %v2252 = vadd.f32 %v2093, %v2251
      %v2253 = vand.u32 %v1672, 4294901760
      %v2254 = vsub.f32 %v1672, %v2253
      %2255 = vmatmul.f32.gmra.mxu0 %v2254
      %v2256 = vpop.f32.mrf.mxu0
      %v2257 = vadd.f32 %v2097, %v2256
      %v2258 = vand.u32 %v1675, 4294901760
      %v2259 = vsub.f32 %v1675, %v2258
      %2260 = vmatmul.f32.gmra.mxu0 %v2259
      %v2261 = vpop.f32.mrf.mxu0
      %v2262 = vadd.f32 %v2101, %v2261
      %v2263 = vand.u32 %v1678, 4294901760
      %v2264 = vsub.f32 %v1678, %v2263
      %2265 = vmatmul.f32.gmra.mxu0 %v2264
      %v2266 = vpop.f32.mrf.mxu0
      %v2267 = vadd.f32 %v2105, %v2266
      %v2268 = vand.u32 %v1681, 4294901760
      %v2269 = vsub.f32 %v1681, %v2268
      %2270 = vmatmul.f32.gmra.mxu0 %v2269
      %v2271 = vpop.f32.mrf.mxu0
      %v2272 = vadd.f32 %v2109, %v2271
      %v2273 = vand.u32 %v1684, 4294901760
      %v2274 = vsub.f32 %v1684, %v2273
      %2275 = vmatmul.f32.gmra.mxu0 %v2274
      %v2276 = vpop.f32.mrf.mxu0
      %v2277 = vadd.f32 %v2113, %v2276
      %v2278 = vand.u32 %v1687, 4294901760
      %v2279 = vsub.f32 %v1687, %v2278
      %2280 = vmatmul.f32.gmra.mxu0 %v2279
      %v2281 = vpop.f32.mrf.mxu0
      %v2282 = vadd.f32 %v2117, %v2281
      %v2283 = vand.u32 %v1690, 4294901760
      %v2284 = vsub.f32 %v1690, %v2283
      %2285 = vmatmul.f32.gmra.mxu0 %v2284
      %v2286 = vpop.f32.mrf.mxu0
      %v2287 = vadd.f32 %v2121, %v2286
      %v2288 = vand.u32 %v1693, 4294901760
      %v2289 = vsub.f32 %v1693, %v2288
      %2290 = vmatmul.f32.gmra.mxu0 %v2289
      %v2291 = vpop.f32.mrf.mxu0
      %v2292 = vadd.f32 %v2125, %v2291
      %v2293 = vand.u32 %v1696, 4294901760
      %v2294 = vsub.f32 %v1696, %v2293
      %2295 = vmatmul.f32.gmra.mxu0 %v2294
      %v2296 = vpop.f32.mrf.mxu0
      %v2297 = vadd.f32 %v2129, %v2296
      %v2298 = vand.u32 %v1699, 4294901760
      %v2299 = vsub.f32 %v1699, %v2298
      %2300 = vmatmul.f32.gmra.mxu0 %v2299
      %v2301 = vpop.f32.mrf.mxu0
      %v2302 = vadd.f32 %v2133, %v2301
      %v2303 = vand.u32 %v1702, 4294901760
      %v2304 = vsub.f32 %v1702, %v2303
      %2305 = vmatmul.f32.gmra.mxu0 %v2304
      %v2306 = vpop.f32.mrf.mxu0
      %v2307 = vadd.f32 %v2137, %v2306
      %v2308 = vand.u32 %v1705, 4294901760
      %v2309 = vsub.f32 %v1705, %v2308
      %2310 = vmatmul.f32.gmra.mxu0 %v2309
      %v2311 = vpop.f32.mrf.mxu0
      %v2312 = vadd.f32 %v2141, %v2311
      %v2313 = vand.u32 %v1708, 4294901760
      %v2314 = vsub.f32 %v1708, %v2313
      %2315 = vmatmul.f32.gmra.mxu0 %v2314
      %v2316 = vpop.f32.mrf.mxu0
      %v2317 = vadd.f32 %v2145, %v2316
      %v2318 = vand.u32 %v1711, 4294901760
      %v2319 = vsub.f32 %v1711, %v2318
      %2320 = vmatmul.f32.gmra.mxu0 %v2319
      %v2321 = vpop.f32.mrf.mxu0
      %v2322 = vadd.f32 %v2149, %v2321
      %v2323 = vand.u32 %v1714, 4294901760
      %v2324 = vsub.f32 %v1714, %v2323
      %2325 = vmatmul.f32.gmra.mxu0 %v2324
      %v2326 = vpop.f32.mrf.mxu0
      %v2327 = vadd.f32 %v2153, %v2326
      %v2328 = vand.u32 %v1717, 4294901760
      %v2329 = vsub.f32 %v1717, %v2328
      %2330 = vmatmul.f32.gmra.mxu0 %v2329
      %v2331 = vpop.f32.mrf.mxu0
      %v2332 = vadd.f32 %v2157, %v2331
      %v2333 = vand.u32 %v1720, 4294901760
      %v2334 = vsub.f32 %v1720, %v2333
      %2335 = vmatmul.f32.gmra.mxu0 %v2334
      %v2336 = vpop.f32.mrf.mxu0
      %v2337 = vadd.f32 %v2161, %v2336
      %v2338 = vand.u32 %v1723, 4294901760
      %v2339 = vsub.f32 %v1723, %v2338
      %2340 = vmatmul.f32.gmra.mxu0 %v2339
      %v2341 = vpop.f32.mrf.mxu0
      %v2342 = vadd.f32 %v2165, %v2341
      %v2343 = vand.u32 %v1726, 4294901760
      %v2344 = vsub.f32 %v1726, %v2343
      %2345 = vmatmul.f32.gmra.mxu0 %v2344
      %v2346 = vpop.f32.mrf.mxu0
      %v2347 = vadd.f32 %v2169, %v2346
      %v2348 = vand.u32 %v1729, 4294901760
      %v2349 = vsub.f32 %v1729, %v2348
      %2350 = vmatmul.f32.gmra.mxu0 %v2349
      %v2351 = vpop.f32.mrf.mxu0
      %v2352 = vadd.f32 %v2173, %v2351
      %v2353 = vand.u32 %v1732, 4294901760
      %v2354 = vsub.f32 %v1732, %v2353
      %2355 = vmatmul.f32.gmra.mxu0 %v2354
      %v2356 = vpop.f32.mrf.mxu0
      %v2357 = vadd.f32 %v2177, %v2356
      %v2358 = vand.u32 %v1735, 4294901760
      %v2359 = vsub.f32 %v1735, %v2358
      %2360 = vmatmul.f32.gmra.mxu0 %v2359
      %v2361 = vpop.f32.mrf.mxu0
      %v2362 = vadd.f32 %v2181, %v2361
      %v2363 = vand.u32 %v1738, 4294901760
      %v2364 = vsub.f32 %v1738, %v2363
      %2365 = vmatmul.f32.gmra.mxu0 %v2364
      %v2366 = vpop.f32.mrf.mxu0
      %v2367 = vadd.f32 %v2185, %v2366
      %v2368 = vand.u32 %v1741, 4294901760
      %v2369 = vsub.f32 %v1741, %v2368
      %2370 = vmatmul.f32.gmra.mxu0 %v2369
      %v2371 = vpop.f32.mrf.mxu0
      %v2372 = vadd.f32 %v2189, %v2371
      %v2373 = vand.u32 %v1744, 4294901760
      %v2374 = vsub.f32 %v1744, %v2373
      %2375 = vmatmul.f32.gmra.mxu0 %v2374
      %v2376 = vpop.f32.mrf.mxu0
      %v2377 = vadd.f32 %v2193, %v2376
      %v2378 = vand.u32 %v1747, 4294901760
      %v2379 = vsub.f32 %v1747, %v2378
      %2380 = vmatmul.f32.gmra.mxu0 %v2379
      %v2381 = vpop.f32.mrf.mxu0
      %v2382 = vadd.f32 %v2197, %v2381
      %v2383 = vand.u32 %v1750, 4294901760
      %v2384 = vsub.f32 %v1750, %v2383
      %2385 = vmatmul.f32.gmra.mxu0 %v2384
      %v2386 = vpop.f32.mrf.mxu0
      %v2387 = vadd.f32 %v2201, %v2386
      %v2388 = vand.u32 %v1753, 4294901760
      %v2389 = vsub.f32 %v1753, %v2388
      %2390 = vmatmul.f32.gmra.mxu0 %v2389
      %v2391 = vpop.f32.mrf.mxu0
      %v2392 = vadd.f32 %v2205, %v2391
      %2393 = vdwg.mxu0
      %2394 = vmatpush.msra.mxu0 0.0
      %2395 = vmatpush.msra.mxu0 0.0
      %2396 = vmatpush.msra.mxu0 0.0
      %2397 = vmatpush.msra.mxu0 0.0
      %2398 = vmatpush.msra.mxu0 0.0
      %2399 = vmatpush.msra.mxu0 0.0
      %2400 = vmatpush.msra.mxu0 0.0
      %2401 = vmatpush.msra.mxu0 0.0
      %2402 = vmatpush.msra.mxu0 0.0
      %2403 = vmatpush.msra.mxu0 0.0
      %2404 = vmatpush.msra.mxu0 0.0
      %v2405 = vand.u32 %v1757, 4294901760
      %2406 = vmatpush.msra.mxu0 %v2405
      %v2407 = vand.u32 %v1652, 4294901760
      %2408 = vmatpush.msra.mxu0 %v2407
      %v2409 = vand.u32 %v1651, 4294901760
      %2410 = vmatpush.msra.mxu0 %v2409
      %v2411 = vand.u32 %v1650, 4294901760
      %2412 = vmatpush.msra.mxu0 %v2411
      %v2413 = vand.u32 %v1649, 4294901760
      %2414 = vmatpush.msra.mxu0 %v2413
      %v2415 = vand.u32 %v1660, 4294901760
      %v2416 = vsub.f32 %v1660, %v2415
      %v2417 = vand.u32 %v2416, 4294901760
      %2418 = vmatmul.f32.gmra.mxu0 %v2417
      %v2419 = vpop.f32.mrf.mxu0
      %v2420 = vadd.f32 %v2237, %v2419
      %v2421 = vand.u32 %v1663, 4294901760
      %v2422 = vsub.f32 %v1663, %v2421
      %v2423 = vand.u32 %v2422, 4294901760
      %2424 = vmatmul.f32.gmra.mxu0 %v2423
      %v2425 = vpop.f32.mrf.mxu0
      %v2426 = vadd.f32 %v2242, %v2425
      %v2427 = vand.u32 %v1666, 4294901760
      %v2428 = vsub.f32 %v1666, %v2427
      %v2429 = vand.u32 %v2428, 4294901760
      %2430 = vmatmul.f32.gmra.mxu0 %v2429
      %v2431 = vpop.f32.mrf.mxu0
      %v2432 = vadd.f32 %v2247, %v2431
      %v2433 = vand.u32 %v1669, 4294901760
      %v2434 = vsub.f32 %v1669, %v2433
      %v2435 = vand.u32 %v2434, 4294901760
      %2436 = vmatmul.f32.gmra.mxu0 %v2435
      %v2437 = vpop.f32.mrf.mxu0
      %v2438 = vadd.f32 %v2252, %v2437
      %v2439 = vand.u32 %v1672, 4294901760
      %v2440 = vsub.f32 %v1672, %v2439
      %v2441 = vand.u32 %v2440, 4294901760
      %2442 = vmatmul.f32.gmra.mxu0 %v2441
      %v2443 = vpop.f32.mrf.mxu0
      %v2444 = vadd.f32 %v2257, %v2443
      %v2445 = vand.u32 %v1675, 4294901760
      %v2446 = vsub.f32 %v1675, %v2445
      %v2447 = vand.u32 %v2446, 4294901760
      %2448 = vmatmul.f32.gmra.mxu0 %v2447
      %v2449 = vpop.f32.mrf.mxu0
      %v2450 = vadd.f32 %v2262, %v2449
      %v2451 = vand.u32 %v1678, 4294901760
      %v2452 = vsub.f32 %v1678, %v2451
      %v2453 = vand.u32 %v2452, 4294901760
      %2454 = vmatmul.f32.gmra.mxu0 %v2453
      %v2455 = vpop.f32.mrf.mxu0
      %v2456 = vadd.f32 %v2267, %v2455
      %v2457 = vand.u32 %v1681, 4294901760
      %v2458 = vsub.f32 %v1681, %v2457
      %v2459 = vand.u32 %v2458, 4294901760
      %2460 = vmatmul.f32.gmra.mxu0 %v2459
      %v2461 = vpop.f32.mrf.mxu0
      %v2462 = vadd.f32 %v2272, %v2461
      %v2463 = vand.u32 %v1684, 4294901760
      %v2464 = vsub.f32 %v1684, %v2463
      %v2465 = vand.u32 %v2464, 4294901760
      %2466 = vmatmul.f32.gmra.mxu0 %v2465
      %v2467 = vpop.f32.mrf.mxu0
      %v2468 = vadd.f32 %v2277, %v2467
      %v2469 = vand.u32 %v1687, 4294901760
      %v2470 = vsub.f32 %v1687, %v2469
      %v2471 = vand.u32 %v2470, 4294901760
      %2472 = vmatmul.f32.gmra.mxu0 %v2471
      %v2473 = vpop.f32.mrf.mxu0
      %v2474 = vadd.f32 %v2282, %v2473
      %v2475 = vand.u32 %v1690, 4294901760
      %v2476 = vsub.f32 %v1690, %v2475
      %v2477 = vand.u32 %v2476, 4294901760
      %2478 = vmatmul.f32.gmra.mxu0 %v2477
      %v2479 = vpop.f32.mrf.mxu0
      %v2480 = vadd.f32 %v2287, %v2479
      %v2481 = vand.u32 %v1693, 4294901760
      %v2482 = vsub.f32 %v1693, %v2481
      %v2483 = vand.u32 %v2482, 4294901760
      %2484 = vmatmul.f32.gmra.mxu0 %v2483
      %v2485 = vpop.f32.mrf.mxu0
      %v2486 = vadd.f32 %v2292, %v2485
      %v2487 = vand.u32 %v1696, 4294901760
      %v2488 = vsub.f32 %v1696, %v2487
      %v2489 = vand.u32 %v2488, 4294901760
      %2490 = vmatmul.f32.gmra.mxu0 %v2489
      %v2491 = vpop.f32.mrf.mxu0
      %v2492 = vadd.f32 %v2297, %v2491
      %v2493 = vand.u32 %v1699, 4294901760
      %v2494 = vsub.f32 %v1699, %v2493
      %v2495 = vand.u32 %v2494, 4294901760
      %2496 = vmatmul.f32.gmra.mxu0 %v2495
      %v2497 = vpop.f32.mrf.mxu0
      %v2498 = vadd.f32 %v2302, %v2497
      %v2499 = vand.u32 %v1702, 4294901760
      %v2500 = vsub.f32 %v1702, %v2499
      %v2501 = vand.u32 %v2500, 4294901760
      %2502 = vmatmul.f32.gmra.mxu0 %v2501
      %v2503 = vpop.f32.mrf.mxu0
      %v2504 = vadd.f32 %v2307, %v2503
      %v2505 = vand.u32 %v1705, 4294901760
      %v2506 = vsub.f32 %v1705, %v2505
      %v2507 = vand.u32 %v2506, 4294901760
      %2508 = vmatmul.f32.gmra.mxu0 %v2507
      %v2509 = vpop.f32.mrf.mxu0
      %v2510 = vadd.f32 %v2312, %v2509
      %v2511 = vand.u32 %v1708, 4294901760
      %v2512 = vsub.f32 %v1708, %v2511
      %v2513 = vand.u32 %v2512, 4294901760
      %2514 = vmatmul.f32.gmra.mxu0 %v2513
      %v2515 = vpop.f32.mrf.mxu0
      %v2516 = vadd.f32 %v2317, %v2515
      %v2517 = vand.u32 %v1711, 4294901760
      %v2518 = vsub.f32 %v1711, %v2517
      %v2519 = vand.u32 %v2518, 4294901760
      %2520 = vmatmul.f32.gmra.mxu0 %v2519
      %v2521 = vpop.f32.mrf.mxu0
      %v2522 = vadd.f32 %v2322, %v2521
      %v2523 = vand.u32 %v1714, 4294901760
      %v2524 = vsub.f32 %v1714, %v2523
      %v2525 = vand.u32 %v2524, 4294901760
      %2526 = vmatmul.f32.gmra.mxu0 %v2525
      %v2527 = vpop.f32.mrf.mxu0
      %v2528 = vadd.f32 %v2327, %v2527
      %v2529 = vand.u32 %v1717, 4294901760
      %v2530 = vsub.f32 %v1717, %v2529
      %v2531 = vand.u32 %v2530, 4294901760
      %2532 = vmatmul.f32.gmra.mxu0 %v2531
      %v2533 = vpop.f32.mrf.mxu0
      %v2534 = vadd.f32 %v2332, %v2533
      %v2535 = vand.u32 %v1720, 4294901760
      %v2536 = vsub.f32 %v1720, %v2535
      %v2537 = vand.u32 %v2536, 4294901760
      %2538 = vmatmul.f32.gmra.mxu0 %v2537
      %v2539 = vpop.f32.mrf.mxu0
      %v2540 = vadd.f32 %v2337, %v2539
      %v2541 = vand.u32 %v1723, 4294901760
      %v2542 = vsub.f32 %v1723, %v2541
      %v2543 = vand.u32 %v2542, 4294901760
      %2544 = vmatmul.f32.gmra.mxu0 %v2543
      %v2545 = vpop.f32.mrf.mxu0
      %v2546 = vadd.f32 %v2342, %v2545
      %v2547 = vand.u32 %v1726, 4294901760
      %v2548 = vsub.f32 %v1726, %v2547
      %v2549 = vand.u32 %v2548, 4294901760
      %2550 = vmatmul.f32.gmra.mxu0 %v2549
      %v2551 = vpop.f32.mrf.mxu0
      %v2552 = vadd.f32 %v2347, %v2551
      %v2553 = vand.u32 %v1729, 4294901760
      %v2554 = vsub.f32 %v1729, %v2553
      %v2555 = vand.u32 %v2554, 4294901760
      %2556 = vmatmul.f32.gmra.mxu0 %v2555
      %v2557 = vpop.f32.mrf.mxu0
      %v2558 = vadd.f32 %v2352, %v2557
      %v2559 = vand.u32 %v1732, 4294901760
      %v2560 = vsub.f32 %v1732, %v2559
      %v2561 = vand.u32 %v2560, 4294901760
      %2562 = vmatmul.f32.gmra.mxu0 %v2561
      %v2563 = vpop.f32.mrf.mxu0
      %v2564 = vadd.f32 %v2357, %v2563
      %v2565 = vand.u32 %v1735, 4294901760
      %v2566 = vsub.f32 %v1735, %v2565
      %v2567 = vand.u32 %v2566, 4294901760
      %2568 = vmatmul.f32.gmra.mxu0 %v2567
      %v2569 = vpop.f32.mrf.mxu0
      %v2570 = vadd.f32 %v2362, %v2569
      %v2571 = vand.u32 %v1738, 4294901760
      %v2572 = vsub.f32 %v1738, %v2571
      %v2573 = vand.u32 %v2572, 4294901760
      %2574 = vmatmul.f32.gmra.mxu0 %v2573
      %v2575 = vpop.f32.mrf.mxu0
      %v2576 = vadd.f32 %v2367, %v2575
      %v2577 = vand.u32 %v1741, 4294901760
      %v2578 = vsub.f32 %v1741, %v2577
      %v2579 = vand.u32 %v2578, 4294901760
      %2580 = vmatmul.f32.gmra.mxu0 %v2579
      %v2581 = vpop.f32.mrf.mxu0
      %v2582 = vadd.f32 %v2372, %v2581
      %v2583 = vand.u32 %v1744, 4294901760
      %v2584 = vsub.f32 %v1744, %v2583
      %v2585 = vand.u32 %v2584, 4294901760
      %2586 = vmatmul.f32.gmra.mxu0 %v2585
      %v2587 = vpop.f32.mrf.mxu0
      %v2588 = vadd.f32 %v2377, %v2587
      %v2589 = vand.u32 %v1747, 4294901760
      %v2590 = vsub.f32 %v1747, %v2589
      %v2591 = vand.u32 %v2590, 4294901760
      %2592 = vmatmul.f32.gmra.mxu0 %v2591
      %v2593 = vpop.f32.mrf.mxu0
      %v2594 = vadd.f32 %v2382, %v2593
      %v2595 = vand.u32 %v1750, 4294901760
      %v2596 = vsub.f32 %v1750, %v2595
      %v2597 = vand.u32 %v2596, 4294901760
      %2598 = vmatmul.f32.gmra.mxu0 %v2597
      %v2599 = vpop.f32.mrf.mxu0
      %v2600 = vadd.f32 %v2387, %v2599
      %v2601 = vand.u32 %v1753, 4294901760
      %v2602 = vsub.f32 %v1753, %v2601
      %v2603 = vand.u32 %v2602, 4294901760
      %2604 = vmatmul.f32.gmra.mxu0 %v2603
      %v2605 = vpop.f32.mrf.mxu0
      %v2606 = vadd.f32 %v2392, %v2605
      %2607 = vdwg.mxu0
      %2608 = vmatpush.msra.mxu0 0.0
      %2609 = vmatpush.msra.mxu0 0.0
      %2610 = vmatpush.msra.mxu0 0.0
      %2611 = vmatpush.msra.mxu0 0.0
      %2612 = vmatpush.msra.mxu0 0.0
      %2613 = vmatpush.msra.mxu0 0.0
      %2614 = vmatpush.msra.mxu0 0.0
      %2615 = vmatpush.msra.mxu0 0.0
      %2616 = vmatpush.msra.mxu0 0.0
      %2617 = vmatpush.msra.mxu0 0.0
      %2618 = vmatpush.msra.mxu0 0.0
      %v2619 = vand.u32 %v1757, 4294901760
      %v2620 = vsub.f32 %v1757, %v2619
      %v2621 = vand.u32 %v2620, 4294901760
      %2622 = vmatpush.msra.mxu0 %v2621
      %v2623 = vand.u32 %v1652, 4294901760
      %v2624 = vsub.f32 %v1652, %v2623
      %v2625 = vand.u32 %v2624, 4294901760
      %2626 = vmatpush.msra.mxu0 %v2625
      %v2627 = vand.u32 %v1651, 4294901760
      %v2628 = vsub.f32 %v1651, %v2627
      %v2629 = vand.u32 %v2628, 4294901760
      %2630 = vmatpush.msra.mxu0 %v2629
      %v2631 = vand.u32 %v1650, 4294901760
      %v2632 = vsub.f32 %v1650, %v2631
      %v2633 = vand.u32 %v2632, 4294901760
      %2634 = vmatpush.msra.mxu0 %v2633
      %v2635 = vand.u32 %v1649, 4294901760
      %v2636 = vsub.f32 %v1649, %v2635
      %v2637 = vand.u32 %v2636, 4294901760
      %2638 = vmatpush.msra.mxu0 %v2637
      %v2639 = vand.u32 %v1660, 4294901760
      %2640 = vmatmul.f32.gmra.mxu0 %v2639
      %v2641 = vpop.f32.mrf.mxu0
      %v2642 = vadd.f32 %v2420, %v2641
      %v2643 = vand.u32 %v1663, 4294901760
      %2644 = vmatmul.f32.gmra.mxu0 %v2643
      %v2645 = vpop.f32.mrf.mxu0
      %v2646 = vadd.f32 %v2426, %v2645
      %v2647 = vand.u32 %v1666, 4294901760
      %2648 = vmatmul.f32.gmra.mxu0 %v2647
      %v2649 = vpop.f32.mrf.mxu0
      %v2650 = vadd.f32 %v2432, %v2649
      %v2651 = vand.u32 %v1669, 4294901760
      %2652 = vmatmul.f32.gmra.mxu0 %v2651
      %v2653 = vpop.f32.mrf.mxu0
      %v2654 = vadd.f32 %v2438, %v2653
      %v2655 = vand.u32 %v1672, 4294901760
      %2656 = vmatmul.f32.gmra.mxu0 %v2655
      %v2657 = vpop.f32.mrf.mxu0
      %v2658 = vadd.f32 %v2444, %v2657
      %v2659 = vand.u32 %v1675, 4294901760
      %2660 = vmatmul.f32.gmra.mxu0 %v2659
      %v2661 = vpop.f32.mrf.mxu0
      %v2662 = vadd.f32 %v2450, %v2661
      %v2663 = vand.u32 %v1678, 4294901760
      %2664 = vmatmul.f32.gmra.mxu0 %v2663
      %v2665 = vpop.f32.mrf.mxu0
      %v2666 = vadd.f32 %v2456, %v2665
      %v2667 = vand.u32 %v1681, 4294901760
      %2668 = vmatmul.f32.gmra.mxu0 %v2667
      %v2669 = vpop.f32.mrf.mxu0
      %v2670 = vadd.f32 %v2462, %v2669
      %v2671 = vand.u32 %v1684, 4294901760
      %2672 = vmatmul.f32.gmra.mxu0 %v2671
      %v2673 = vpop.f32.mrf.mxu0
      %v2674 = vadd.f32 %v2468, %v2673
      %v2675 = vand.u32 %v1687, 4294901760
      %2676 = vmatmul.f32.gmra.mxu0 %v2675
      %v2677 = vpop.f32.mrf.mxu0
      %v2678 = vadd.f32 %v2474, %v2677
      %v2679 = vand.u32 %v1690, 4294901760
      %2680 = vmatmul.f32.gmra.mxu0 %v2679
      %v2681 = vpop.f32.mrf.mxu0
      %v2682 = vadd.f32 %v2480, %v2681
      %v2683 = vand.u32 %v1693, 4294901760
      %2684 = vmatmul.f32.gmra.mxu0 %v2683
      %v2685 = vpop.f32.mrf.mxu0
      %v2686 = vadd.f32 %v2486, %v2685
      %v2687 = vand.u32 %v1696, 4294901760
      %2688 = vmatmul.f32.gmra.mxu0 %v2687
      %v2689 = vpop.f32.mrf.mxu0
      %v2690 = vadd.f32 %v2492, %v2689
      %v2691 = vand.u32 %v1699, 4294901760
      %2692 = vmatmul.f32.gmra.mxu0 %v2691
      %v2693 = vpop.f32.mrf.mxu0
      %v2694 = vadd.f32 %v2498, %v2693
      %v2695 = vand.u32 %v1702, 4294901760
      %2696 = vmatmul.f32.gmra.mxu0 %v2695
      %v2697 = vpop.f32.mrf.mxu0
      %v2698 = vadd.f32 %v2504, %v2697
      %v2699 = vand.u32 %v1705, 4294901760
      %2700 = vmatmul.f32.gmra.mxu0 %v2699
      %v2701 = vpop.f32.mrf.mxu0
      %v2702 = vadd.f32 %v2510, %v2701
      %v2703 = vand.u32 %v1708, 4294901760
      %2704 = vmatmul.f32.gmra.mxu0 %v2703
      %v2705 = vpop.f32.mrf.mxu0
      %v2706 = vadd.f32 %v2516, %v2705
      %v2707 = vand.u32 %v1711, 4294901760
      %2708 = vmatmul.f32.gmra.mxu0 %v2707
      %v2709 = vpop.f32.mrf.mxu0
      %v2710 = vadd.f32 %v2522, %v2709
      %v2711 = vand.u32 %v1714, 4294901760
      %2712 = vmatmul.f32.gmra.mxu0 %v2711
      %v2713 = vpop.f32.mrf.mxu0
      %v2714 = vadd.f32 %v2528, %v2713
      %v2715 = vand.u32 %v1717, 4294901760
      %2716 = vmatmul.f32.gmra.mxu0 %v2715
      %v2717 = vpop.f32.mrf.mxu0
      %v2718 = vadd.f32 %v2534, %v2717
      %v2719 = vand.u32 %v1720, 4294901760
      %2720 = vmatmul.f32.gmra.mxu0 %v2719
      %v2721 = vpop.f32.mrf.mxu0
      %v2722 = vadd.f32 %v2540, %v2721
      %v2723 = vand.u32 %v1723, 4294901760
      %2724 = vmatmul.f32.gmra.mxu0 %v2723
      %v2725 = vpop.f32.mrf.mxu0
      %v2726 = vadd.f32 %v2546, %v2725
      %v2727 = vand.u32 %v1726, 4294901760
      %2728 = vmatmul.f32.gmra.mxu0 %v2727
      %v2729 = vpop.f32.mrf.mxu0
      %v2730 = vadd.f32 %v2552, %v2729
      %v2731 = vand.u32 %v1729, 4294901760
      %2732 = vmatmul.f32.gmra.mxu0 %v2731
      %v2733 = vpop.f32.mrf.mxu0
      %v2734 = vadd.f32 %v2558, %v2733
      %v2735 = vand.u32 %v1732, 4294901760
      %2736 = vmatmul.f32.gmra.mxu0 %v2735
      %v2737 = vpop.f32.mrf.mxu0
      %v2738 = vadd.f32 %v2564, %v2737
      %v2739 = vand.u32 %v1735, 4294901760
      %2740 = vmatmul.f32.gmra.mxu0 %v2739
      %v2741 = vpop.f32.mrf.mxu0
      %v2742 = vadd.f32 %v2570, %v2741
      %v2743 = vand.u32 %v1738, 4294901760
      %2744 = vmatmul.f32.gmra.mxu0 %v2743
      %v2745 = vpop.f32.mrf.mxu0
      %v2746 = vadd.f32 %v2576, %v2745
      %v2747 = vand.u32 %v1741, 4294901760
      %2748 = vmatmul.f32.gmra.mxu0 %v2747
      %v2749 = vpop.f32.mrf.mxu0
      %v2750 = vadd.f32 %v2582, %v2749
      %v2751 = vand.u32 %v1744, 4294901760
      %2752 = vmatmul.f32.gmra.mxu0 %v2751
      %v2753 = vpop.f32.mrf.mxu0
      %v2754 = vadd.f32 %v2588, %v2753
      %v2755 = vand.u32 %v1747, 4294901760
      %2756 = vmatmul.f32.gmra.mxu0 %v2755
      %v2757 = vpop.f32.mrf.mxu0
      %v2758 = vadd.f32 %v2594, %v2757
      %v2759 = vand.u32 %v1750, 4294901760
      %2760 = vmatmul.f32.gmra.mxu0 %v2759
      %v2761 = vpop.f32.mrf.mxu0
      %v2762 = vadd.f32 %v2600, %v2761
      %v2763 = vand.u32 %v1753, 4294901760
      %2764 = vmatmul.f32.gmra.mxu0 %v2763
      %v2765 = vpop.f32.mrf.mxu0
      %v2766 = vadd.f32 %v2606, %v2765
      %2767 = vdwg.mxu0
      %2768 = vmatpush.msra.mxu0 0.0
      %2769 = vmatpush.msra.mxu0 0.0
      %2770 = vmatpush.msra.mxu0 0.0
      %2771 = vmatpush.msra.mxu0 0.0
      %2772 = vmatpush.msra.mxu0 0.0
      %2773 = vmatpush.msra.mxu0 0.0
      %2774 = vmatpush.msra.mxu0 0.0
      %2775 = vmatpush.msra.mxu0 0.0
      %2776 = vmatpush.msra.mxu0 0.0
      %2777 = vmatpush.msra.mxu0 0.0
      %2778 = vmatpush.msra.mxu0 0.0
      %v2779 = vand.u32 %v1757, 4294901760
      %2780 = vmatpush.msra.mxu0 %v2779
      %v2781 = vand.u32 %v1652, 4294901760
      %2782 = vmatpush.msra.mxu0 %v2781
      %v2783 = vand.u32 %v1651, 4294901760
      %2784 = vmatpush.msra.mxu0 %v2783
      %v2785 = vand.u32 %v1650, 4294901760
      %2786 = vmatpush.msra.mxu0 %v2785
      %v2787 = vand.u32 %v1649, 4294901760
      %2788 = vmatpush.msra.mxu0 %v2787
      %v2789 = vand.u32 %v1660, 4294901760
      %2790 = vmatmul.f32.gmra.mxu0 %v2789
      %v2791 = vpop.f32.mrf.mxu0
      %v2792 = vadd.f32 %v2642, %v2791
      %v2793 = vand.u32 %v1663, 4294901760
      %2794 = vmatmul.f32.gmra.mxu0 %v2793
      %v2795 = vpop.f32.mrf.mxu0
      %v2796 = vadd.f32 %v2646, %v2795
      %v2797 = vand.u32 %v1666, 4294901760
      %2798 = vmatmul.f32.gmra.mxu0 %v2797
      %v2799 = vpop.f32.mrf.mxu0
      %v2800 = vadd.f32 %v2650, %v2799
      %v2801 = vand.u32 %v1669, 4294901760
      %2802 = vmatmul.f32.gmra.mxu0 %v2801
      %v2803 = vpop.f32.mrf.mxu0
      %v2804 = vadd.f32 %v2654, %v2803
      %v2805 = vand.u32 %v1672, 4294901760
      %2806 = vmatmul.f32.gmra.mxu0 %v2805
      %v2807 = vpop.f32.mrf.mxu0
      %v2808 = vadd.f32 %v2658, %v2807
      %v2809 = vand.u32 %v1675, 4294901760
      %2810 = vmatmul.f32.gmra.mxu0 %v2809
      %v2811 = vpop.f32.mrf.mxu0
      %v2812 = vadd.f32 %v2662, %v2811
      %v2813 = vand.u32 %v1678, 4294901760
      %2814 = vmatmul.f32.gmra.mxu0 %v2813
      %v2815 = vpop.f32.mrf.mxu0
      %v2816 = vadd.f32 %v2666, %v2815
      %v2817 = vand.u32 %v1681, 4294901760
      %2818 = vmatmul.f32.gmra.mxu0 %v2817
      %v2819 = vpop.f32.mrf.mxu0
      %v2820 = vadd.f32 %v2670, %v2819
      %v2821 = vand.u32 %v1684, 4294901760
      %2822 = vmatmul.f32.gmra.mxu0 %v2821
      %v2823 = vpop.f32.mrf.mxu0
      %v2824 = vadd.f32 %v2674, %v2823
      %v2825 = vand.u32 %v1687, 4294901760
      %2826 = vmatmul.f32.gmra.mxu0 %v2825
      %v2827 = vpop.f32.mrf.mxu0
      %v2828 = vadd.f32 %v2678, %v2827
      %v2829 = vand.u32 %v1690, 4294901760
      %2830 = vmatmul.f32.gmra.mxu0 %v2829
      %v2831 = vpop.f32.mrf.mxu0
      %v2832 = vadd.f32 %v2682, %v2831
      %v2833 = vand.u32 %v1693, 4294901760
      %2834 = vmatmul.f32.gmra.mxu0 %v2833
      %v2835 = vpop.f32.mrf.mxu0
      %v2836 = vadd.f32 %v2686, %v2835
      %v2837 = vand.u32 %v1696, 4294901760
      %2838 = vmatmul.f32.gmra.mxu0 %v2837
      %v2839 = vpop.f32.mrf.mxu0
      %v2840 = vadd.f32 %v2690, %v2839
      %v2841 = vand.u32 %v1699, 4294901760
      %2842 = vmatmul.f32.gmra.mxu0 %v2841
      %v2843 = vpop.f32.mrf.mxu0
      %v2844 = vadd.f32 %v2694, %v2843
      %v2845 = vand.u32 %v1702, 4294901760
      %2846 = vmatmul.f32.gmra.mxu0 %v2845
      %v2847 = vpop.f32.mrf.mxu0
      %v2848 = vadd.f32 %v2698, %v2847
      %v2849 = vand.u32 %v1705, 4294901760
      %2850 = vmatmul.f32.gmra.mxu0 %v2849
      %v2851 = vpop.f32.mrf.mxu0
      %v2852 = vadd.f32 %v2702, %v2851
      %v2853 = vand.u32 %v1708, 4294901760
      %2854 = vmatmul.f32.gmra.mxu0 %v2853
      %v2855 = vpop.f32.mrf.mxu0
      %v2856 = vadd.f32 %v2706, %v2855
      %v2857 = vand.u32 %v1711, 4294901760
      %2858 = vmatmul.f32.gmra.mxu0 %v2857
      %v2859 = vpop.f32.mrf.mxu0
      %v2860 = vadd.f32 %v2710, %v2859
      %v2861 = vand.u32 %v1714, 4294901760
      %2862 = vmatmul.f32.gmra.mxu0 %v2861
      %v2863 = vpop.f32.mrf.mxu0
      %v2864 = vadd.f32 %v2714, %v2863
      %v2865 = vand.u32 %v1717, 4294901760
      %2866 = vmatmul.f32.gmra.mxu0 %v2865
      %v2867 = vpop.f32.mrf.mxu0
      %v2868 = vadd.f32 %v2718, %v2867
      %v2869 = vand.u32 %v1720, 4294901760
      %2870 = vmatmul.f32.gmra.mxu0 %v2869
      %v2871 = vpop.f32.mrf.mxu0
      %v2872 = vadd.f32 %v2722, %v2871
      %v2873 = vand.u32 %v1723, 4294901760
      %2874 = vmatmul.f32.gmra.mxu0 %v2873
      %v2875 = vpop.f32.mrf.mxu0
      %v2876 = vadd.f32 %v2726, %v2875
      %v2877 = vand.u32 %v1726, 4294901760
      %2878 = vmatmul.f32.gmra.mxu0 %v2877
      %v2879 = vpop.f32.mrf.mxu0
      %v2880 = vadd.f32 %v2730, %v2879
      %v2881 = vand.u32 %v1729, 4294901760
      %2882 = vmatmul.f32.gmra.mxu0 %v2881
      %v2883 = vpop.f32.mrf.mxu0
      %v2884 = vadd.f32 %v2734, %v2883
      %v2885 = vand.u32 %v1732, 4294901760
      %2886 = vmatmul.f32.gmra.mxu0 %v2885
      %v2887 = vpop.f32.mrf.mxu0
      %v2888 = vadd.f32 %v2738, %v2887
      %v2889 = vand.u32 %v1735, 4294901760
      %2890 = vmatmul.f32.gmra.mxu0 %v2889
      %v2891 = vpop.f32.mrf.mxu0
      %v2892 = vadd.f32 %v2742, %v2891
      %v2893 = vand.u32 %v1738, 4294901760
      %2894 = vmatmul.f32.gmra.mxu0 %v2893
      %v2895 = vpop.f32.mrf.mxu0
      %v2896 = vadd.f32 %v2746, %v2895
      %v2897 = vand.u32 %v1741, 4294901760
      %2898 = vmatmul.f32.gmra.mxu0 %v2897
      %v2899 = vpop.f32.mrf.mxu0
      %v2900 = vadd.f32 %v2750, %v2899
      %v2901 = vand.u32 %v1744, 4294901760
      %2902 = vmatmul.f32.gmra.mxu0 %v2901
      %v2903 = vpop.f32.mrf.mxu0
      %v2904 = vadd.f32 %v2754, %v2903
      %v2905 = vand.u32 %v1747, 4294901760
      %2906 = vmatmul.f32.gmra.mxu0 %v2905
      %v2907 = vpop.f32.mrf.mxu0
      %v2908 = vadd.f32 %v2758, %v2907
      %v2909 = vand.u32 %v1750, 4294901760
      %2910 = vmatmul.f32.gmra.mxu0 %v2909
      %v2911 = vpop.f32.mrf.mxu0
      %v2912 = vadd.f32 %v2762, %v2911
      %v2913 = vand.u32 %v1753, 4294901760
      %2914 = vmatmul.f32.gmra.mxu0 %v2913
      %v2915 = vpop.f32.mrf.mxu0
      %v2916 = vadd.f32 %v2766, %v2915
      %2917 = vdwg.mxu0
      %v2918 = vld [vmem:[%s212] sm:$0xff]
      %v2919 = vld [vmem:[%s212 + $0x8] sm:$0xff]
      %v2920 = vld [vmem:[%s212 + $0x10] sm:$0xff]
      %v2921 = vld [vmem:[%s212 + $0x18] sm:$0xff]
      %v2922 = vld [vmem:[%s212 + $0x20] sm:$0xff]
      %v2923 = vld [vmem:[%s212 + $0x28] sm:$0xff]
      %v2924 = vld [vmem:[%s212 + $0x30] sm:$0xff]
      %v2925 = vld [vmem:[%s212 + $0x38] sm:$0xff]
      %v2926 = vld [vmem:[%s212 + $0x40] sm:$0xff]
      %v2927 = vld [vmem:[%s212 + $0x48] sm:$0xff]
      %v2928 = vld [vmem:[%s212 + $0x50] sm:$0xff]
      %v2929 = vld [vmem:[%s212 + $0x58] sm:$0xff]
      %v2930 = vld [vmem:[%s212 + $0x60] sm:$0xff]
      %v2931 = vld [vmem:[%s212 + $0x68] sm:$0xff]
      %v2932 = vld [vmem:[%s212 + $0x70] sm:$0xff]
      %v2933 = vld [vmem:[%s212 + $0x78] sm:$0xff]
      %v2934 = vld [vmem:[%s212 + $0x80] sm:$0xff]
      %v2935 = vld [vmem:[%s212 + $0x88] sm:$0xff]
      %v2936 = vld [vmem:[%s212 + $0x90] sm:$0xff]
      %v2937 = vld [vmem:[%s212 + $0x98] sm:$0xff]
      %v2938 = vld [vmem:[%s212 + $0xa0] sm:$0xff]
      %v2939 = vld [vmem:[%s212 + $0xa8] sm:$0xff]
      %v2940 = vld [vmem:[%s212 + $0xb0] sm:$0xff]
      %v2941 = vld [vmem:[%s212 + $0xb8] sm:$0xff]
      %v2942 = vld [vmem:[%s212 + $0xc0] sm:$0xff]
      %v2943 = vld [vmem:[%s212 + $0xc8] sm:$0xff]
      %v2944 = vld [vmem:[%s212 + $0xd0] sm:$0xff]
      %v2945 = vld [vmem:[%s212 + $0xd8] sm:$0xff]
      %v2946 = vld [vmem:[%s212 + $0xe0] sm:$0xff]
      %v2947 = vld [vmem:[%s212 + $0xe8] sm:$0xff]
      %v2948 = vld [vmem:[%s212 + $0xf0] sm:$0xff]
      %v2949 = vld [vmem:[%s212 + $0xf8] sm:$0xff]
      %v2950 = vadd.f32 %v2792, %v2918
      %v2951 = vadd.f32 %v2796, %v2919
      %v2952 = vadd.f32 %v2800, %v2920
      %v2953 = vadd.f32 %v2804, %v2921
      %v2954 = vadd.f32 %v2808, %v2922
      %v2955 = vadd.f32 %v2812, %v2923
      %v2956 = vadd.f32 %v2816, %v2924
      %v2957 = vadd.f32 %v2820, %v2925
      %v2958 = vadd.f32 %v2824, %v2926
      %v2959 = vadd.f32 %v2828, %v2927
      %v2960 = vadd.f32 %v2832, %v2928
      %v2961 = vadd.f32 %v2836, %v2929
      %v2962 = vadd.f32 %v2840, %v2930
      %v2963 = vadd.f32 %v2844, %v2931
      %v2964 = vadd.f32 %v2848, %v2932
      %v2965 = vadd.f32 %v2852, %v2933
      %v2966 = vadd.f32 %v2856, %v2934
      %v2967 = vadd.f32 %v2860, %v2935
      %v2968 = vadd.f32 %v2864, %v2936
      %v2969 = vadd.f32 %v2868, %v2937
      %v2970 = vadd.f32 %v2872, %v2938
      %v2971 = vadd.f32 %v2876, %v2939
      %v2972 = vadd.f32 %v2880, %v2940
      %v2973 = vadd.f32 %v2884, %v2941
      %v2974 = vadd.f32 %v2888, %v2942
      %v2975 = vadd.f32 %v2892, %v2943
      %v2976 = vadd.f32 %v2896, %v2944
      %v2977 = vadd.f32 %v2900, %v2945
      %v2978 = vadd.f32 %v2904, %v2946
      %v2979 = vadd.f32 %v2908, %v2947
      %v2980 = vadd.f32 %v2912, %v2948
      %v2981 = vadd.f32 %v2916, %v2949
      %v2982 = vmax.f32 %v2950, 0.0
      %v2983 = vmax.f32 %v2951, 0.0
      %v2984 = vmax.f32 %v2952, 0.0
      %v2985 = vmax.f32 %v2953, 0.0
      %v2986 = vmax.f32 %v2954, 0.0
      %v2987 = vmax.f32 %v2955, 0.0
      %v2988 = vmax.f32 %v2956, 0.0
      %v2989 = vmax.f32 %v2957, 0.0
      %v2990 = vmax.f32 %v2958, 0.0
      %v2991 = vmax.f32 %v2959, 0.0
      %v2992 = vmax.f32 %v2960, 0.0
      %v2993 = vmax.f32 %v2961, 0.0
      %v2994 = vmax.f32 %v2962, 0.0
      %v2995 = vmax.f32 %v2963, 0.0
      %v2996 = vmax.f32 %v2964, 0.0
      %v2997 = vmax.f32 %v2965, 0.0
      %v2998 = vmax.f32 %v2966, 0.0
      %v2999 = vmax.f32 %v2967, 0.0
      %v3000 = vmax.f32 %v2968, 0.0
      %v3001 = vmax.f32 %v2969, 0.0
      %v3002 = vmax.f32 %v2970, 0.0
      %v3003 = vmax.f32 %v2971, 0.0
      %v3004 = vmax.f32 %v2972, 0.0
      %v3005 = vmax.f32 %v2973, 0.0
      %v3006 = vmax.f32 %v2974, 0.0
      %v3007 = vmax.f32 %v2975, 0.0
      %v3008 = vmax.f32 %v2976, 0.0
      %v3009 = vmax.f32 %v2977, 0.0
      %v3010 = vmax.f32 %v2978, 0.0
      %v3011 = vmax.f32 %v2979, 0.0
      %v3012 = vmax.f32 %v2980, 0.0
      %v3013 = vmax.f32 %v2981, 0.0
      %3014 = vst.msk [vmem:[%s217] sm:$0xff] %vm218, %v2982
      %3015 = vst.msk [vmem:[%s217 + $0x8] sm:$0xff] %vm218, %v2983
      %3016 = vst.msk [vmem:[%s217 + $0x10] sm:$0xff] %vm218, %v2984
      %3017 = vst.msk [vmem:[%s217 + $0x18] sm:$0xff] %vm218, %v2985
      %3018 = vst.msk [vmem:[%s217 + $0x20] sm:$0xff] %vm218, %v2986
      %3019 = vst.msk [vmem:[%s217 + $0x28] sm:$0xff] %vm218, %v2987
      %3020 = vst.msk [vmem:[%s217 + $0x30] sm:$0xff] %vm218, %v2988
      %3021 = vst.msk [vmem:[%s217 + $0x38] sm:$0xff] %vm218, %v2989
      %3022 = vst.msk [vmem:[%s217 + $0x40] sm:$0xff] %vm218, %v2990
      %3023 = vst.msk [vmem:[%s217 + $0x48] sm:$0xff] %vm218, %v2991
      %3024 = vst.msk [vmem:[%s217 + $0x50] sm:$0xff] %vm218, %v2992
      %3025 = vst.msk [vmem:[%s217 + $0x58] sm:$0xff] %vm218, %v2993
      %3026 = vst.msk [vmem:[%s217 + $0x60] sm:$0xff] %vm218, %v2994
      %3027 = vst.msk [vmem:[%s217 + $0x68] sm:$0xff] %vm218, %v2995
      %3028 = vst.msk [vmem:[%s217 + $0x70] sm:$0xff] %vm218, %v2996
      %3029 = vst.msk [vmem:[%s217 + $0x78] sm:$0xff] %vm218, %v2997
      %3030 = vst.msk [vmem:[%s217 + $0x80] sm:$0xff] %vm218, %v2998
      %3031 = vst.msk [vmem:[%s217 + $0x88] sm:$0xff] %vm218, %v2999
      %3032 = vst.msk [vmem:[%s217 + $0x90] sm:$0xff] %vm218, %v3000
      %3033 = vst.msk [vmem:[%s217 + $0x98] sm:$0xff] %vm218, %v3001
      %3034 = vst.msk [vmem:[%s217 + $0xa0] sm:$0xff] %vm218, %v3002
      %3035 = vst.msk [vmem:[%s217 + $0xa8] sm:$0xff] %vm218, %v3003
      %3036 = vst.msk [vmem:[%s217 + $0xb0] sm:$0xff] %vm218, %v3004
      %3037 = vst.msk [vmem:[%s217 + $0xb8] sm:$0xff] %vm218, %v3005
      %3038 = vst.msk [vmem:[%s217 + $0xc0] sm:$0xff] %vm218, %v3006
      %3039 = vst.msk [vmem:[%s217 + $0xc8] sm:$0xff] %vm218, %v3007
      %3040 = vst.msk [vmem:[%s217 + $0xd0] sm:$0xff] %vm218, %v3008
      %3041 = vst.msk [vmem:[%s217 + $0xd8] sm:$0xff] %vm218, %v3009
      %3042 = vst.msk [vmem:[%s217 + $0xe0] sm:$0xff] %vm218, %v3010
      %3043 = vst.msk [vmem:[%s217 + $0xe8] sm:$0xff] %vm218, %v3011
      %3044 = vst.msk [vmem:[%s217 + $0xf0] sm:$0xff] %vm218, %v3012
      %3045 = vst.msk [vmem:[%s217 + $0xf8] sm:$0xff] %vm218, %v3013
      %p3046 = scmp.lt.s32.totalorder %s15, 1
      %s3047 = scalar_select %p3046, %s15, 1
      %s3048 = smul.addr %s3047, 32
      %s3049 = smul.addr %s3048, 8
      %s3050 = scalar_lea.vmem %s4, %s3049
      // Predicated region
      $region37: #{basic_block_forward.3} parent=35 // pred_check
        %p3051 = pneg %p127
      $region38: #{basic_block_forward.3} parent=35 // pred_check_branch
        %3053 = sbr.rel (%p3051) target = $region40
      $region39: #{basic_block_forward.3} parent=35 // pred_region
        _
      $region40: #{basic_block_forward.3} parent=35 // pred_fallthru
        _
    $region36: #{basic_block_forward.3} parent=5 // pred_fallthru
      _
    %p3054 = scmp.le.s32.totalorder 2, %s10
    // Predicated region
    $region41: #{basic_block_forward.3} parent=5 // pred_check
      %p3055 = pneg %p3054
    $region42: #{basic_block_forward.3} parent=5 // pred_check_branch
      %3057 = sbr.rel (%p3055) target = $region44
    $region43: #{basic_block_forward.3} parent=5 // pred_region
      %s3058 = ssub.s32 %s10, 2
      // Predicated region
      $region45: #{basic_block_forward.3} parent=43 // pred_check
        %p3059 = pneg %p133
      $region46: #{basic_block_forward.3} parent=43 // pred_check_branch
        %3061 = sbr.rel (%p3059) target = $region48
      $region47: #{basic_block_forward.3} parent=43 // pred_region
        %p3062 = scmp.lt.s32.totalorder %s16, 1
        %s3063 = scalar_select %p3062, %s16, 1
        %s3064 = smul.addr %s3063, 32
        %s3065 = smul.addr %s3064, 8
        %s3066 = scalar_lea.vmem %s4, %s3065
      $region48: #{basic_block_forward.3} parent=43 // pred_fallthru
        _
    $region44: #{basic_block_forward.3} parent=5 // pred_fallthru
      _
  $region6: #{basic_block_forward.3} parent=0 // loop_footer
    %s14 = sadd.s32 1, %s10
  $region7: #{basic_block_forward.3} parent=0 // loop_footer_branch
    %9 = sbr.rel target = $region3
  $region8: #{basic_block_forward.3} parent=0 // loop_exit
    _

</llo_original>
